<compile_context>
chip_gen: v6e
topology: v6e:2x2x1
jax: 0.10.0
libtpu: 0.0.40
codegen_flags: <defaults>
</compile_context>

<pallas_src>
import functools

import jax
import jax.numpy as jnp
from jax.experimental import pallas as pl
from jax.experimental.pallas import tpu as pltpu

EPS = 1e-5
VMEM_LIMIT = 48 * 1024 * 1024  # below v7x's 64 MiB physical; raise on v5e/v6e.


# --------------------------------- kernels -----------------------------------
def _conv_bn_stats_kernel(xin_ref, sc_ref, sh_ref, w_ref, y_ref, st_ref,
                          pad_ref, *, apply_input_affine_relu):
    """One conv stage for one image.

    xin_ref : (1, H*W, Cin) f32   channels-last input slab (pre-BN if stage 2)
    sc_ref  : (1, Cin)      f32   BN scale for the *input* (stage 2 only)
    sh_ref  : (1, Cin)      f32   BN shift for the *input* (stage 2 only)
    w_ref   : (9, Cin, Cout) bf16 per-tap folded weights (kh*3+kw, ci, co)
    y_ref   : (1, H*W, Cout) f32  pre-BN conv output of this stage
    st_ref  : (1, 2, Cout)  f32   per-image [channel-sum, centered SSQ]
    pad_ref : (H+2, W+2, Cin) bf16 scratch holding the zero-halo'd input
    """
    Hp, Wp, Cin = pad_ref.shape
    H, W = Hp - 2, Wp - 2
    Cout = w_ref.shape[-1]
    M = H * W

    # ---- input -> (optional BN+ReLU, f32) -> bf16 halo-padded VMEM scratch --
    x = xin_ref[0].reshape(H, W, Cin)
    if apply_input_affine_relu:
        sc = sc_ref[...].reshape(1, 1, Cin)
        sh = sh_ref[...].reshape(1, 1, Cin)
        x = jnp.maximum(x * sc + sh, 0.0)

    # Zero ONLY the 1-pixel halo strips; interior is overwritten below.
    zrow = jnp.zeros((1, Wp, Cin), pad_ref.dtype)
    zcol = jnp.zeros((Hp, 1, Cin), pad_ref.dtype)
    pad_ref[0:1, :, :] = zrow                       # top halo
    pad_ref[H + 1:H + 2, :, :] = zrow               # bottom halo
    pad_ref[:, 0:1, :] = zcol                       # left halo
    pad_ref[:, W + 1:W + 2, :] = zcol               # right halo
    pad_ref[1:H + 1, 1:W + 1, :] = x.astype(pad_ref.dtype)   # interior only

    # ---- 3x3 conv: 9 per-tap MXU matmuls, bf16 operands, f32 accumulation ---
    acc = jnp.zeros((M, Cout), jnp.float32)
    for kh in range(3):
        for kw in range(3):
            tap = pad_ref[kh:kh + H, kw:kw + W, :].reshape(M, Cin)
            acc = acc + jnp.dot(tap, w_ref[kh * 3 + kw],
                                preferred_element_type=jnp.float32)

    # ---- per-image BN partials in f32: channel sum + CENTERED sum-of-squares
    # (combined across images with Chan's formula in the wrapper -> avoids the
    #  one-pass E[x^2]-E[x]^2 cancellation problem flagged in review).
    s = jnp.sum(acc, axis=0, keepdims=True)                    # (1, Cout)
    mu = s * (1.0 / M)
    d = acc - mu
    m2 = jnp.sum(d * d, axis=0, keepdims=True)                 # (1, Cout)
    st_ref[...] = jnp.concatenate([s, m2], axis=0).reshape(1, 2, Cout)

    # Pre-BN conv output, stored in its natural (rows, Cout) layout.
    y_ref[...] = acc.reshape(1, M, Cout)


def _bn_relu_kernel(y_ref, sc_ref, sh_ref, o_ref):
    """Pointwise BN-apply + ReLU on one image's channels-last slab."""
    c = sc_ref.shape[-1]
    sc = sc_ref[...].reshape(1, 1, c)
    sh = sh_ref[...].reshape(1, 1, c)
    o_ref[...] = jnp.maximum(y_ref[...] * sc + sh, 0.0)


# ----------------------------- pallas_call wrappers ---------------------------
def _conv_stage(xin, sc, sh, w_taps, H, W, *, apply_input_affine_relu):
    N, M, Cin = xin.shape
    Cout = w_taps.shape[-1]
    kernel = functools.partial(
        _conv_bn_stats_kernel,
        apply_input_affine_relu=apply_input_affine_relu)

    flops = 2 * N * M * 9 * Cin * Cout
    bytes_accessed = (xin.size * xin.dtype.itemsize
                      + w_taps.size * w_taps.dtype.itemsize
                      + N * M * Cout * 4 + N * 2 * Cout * 4
                      + 2 * sc.size * 4)

    return pl.pallas_call(
        kernel,
        out_shape=(
            jax.ShapeDtypeStruct((N, M, Cout), jnp.float32),   # pre-BN conv out
            jax.ShapeDtypeStruct((N, 2, Cout), jnp.float32),   # per-image stats
        ),
        grid=(N,),
        in_specs=[
            pl.BlockSpec((1, M, Cin), lambda n: (n, 0, 0)),
            # Broadcast operands: constant index_map -> DMA'd once, resident.
            pl.BlockSpec((1, Cin), lambda n: (0, 0)),
            pl.BlockSpec((1, Cin), lambda n: (0, 0)),
            pl.BlockSpec((9, Cin, Cout), lambda n: (0, 0, 0)),
        ],
        out_specs=(
            pl.BlockSpec((1, M, Cout), lambda n: (n, 0, 0)),
            pl.BlockSpec((1, 2, Cout), lambda n: (n, 0, 0)),
        ),
        scratch_shapes=[pltpu.VMEM((H + 2, W + 2, Cin), jnp.bfloat16)],
        compiler_params=pltpu.CompilerParams(
            dimension_semantics=("parallel",),      # batch axis -> v7x megacore
            vmem_limit_bytes=VMEM_LIMIT,
        ),
        cost_estimate=pl.CostEstimate(
            flops=flops, transcendentals=0, bytes_accessed=bytes_accessed),
    )(xin, sc, sh, w_taps)


def _bn_relu_apply(y, scale, shift):
    N, M, C = y.shape
    return pl.pallas_call(
        _bn_relu_kernel,
        out_shape=jax.ShapeDtypeStruct((N, M, C), jnp.float32),
        grid=(N,),
        in_specs=[
            pl.BlockSpec((1, M, C), lambda n: (n, 0, 0)),
            pl.BlockSpec((1, C), lambda n: (0, 0)),
            pl.BlockSpec((1, C), lambda n: (0, 0)),
        ],
        out_specs=pl.BlockSpec((1, M, C), lambda n: (n, 0, 0)),
        compiler_params=pltpu.CompilerParams(
            dimension_semantics=("parallel",),
            vmem_limit_bytes=VMEM_LIMIT,
        ),
    )(y, scale, shift)


def _finalize_bn(stats, gamma, beta, m_per_image):
    """Combine per-image (sum, centered SSQ) -> BN scale/shift (tiny, in XLA)."""
    n = stats.shape[0]
    count = n * m_per_image
    s = stats[:, 0, :]                                   # (N, C)
    m2 = stats[:, 1, :]                                  # (N, C)
    mean = jnp.sum(s, axis=0) / count                    # (C,)
    mu_i = s / m_per_image                               # (N, C)
    m2_tot = jnp.sum(m2 + m_per_image * (mu_i - mean[None, :]) ** 2, axis=0)
    var = m2_tot / count                                 # biased (training BN)
    scale = gamma * jax.lax.rsqrt(var + EPS)
    shift = beta - mean * scale
    return scale.reshape(1, -1), shift.reshape(1, -1)


# -------------------------------- public API ----------------------------------
def prepare_params(params):
    """Fold PyTorch OIHW weights into per-tap (9, Cin, Cout) bf16 once."""
    def fold(w_oihw):
        cout, cin, kh, kw = w_oihw.shape
        w_hwio = jnp.transpose(w_oihw, (2, 3, 1, 0))      # (3, 3, Cin, Cout)
        return w_hwio.reshape(kh * kw, cin, cout).astype(jnp.bfloat16)

    return {
        "w1": fold(params["w1"]),
        "w2": fold(params["w2"]),
        "g1": params["g1"].astype(jnp.float32),
        "b1": params["b1"].astype(jnp.float32),
        "g2": params["g2"].astype(jnp.float32),
        "b2": params["b2"].astype(jnp.float32),
    }


def double_conv(x_nchw, prepped):
    """DoubleConv forward (training-mode BN). NCHW in, NCHW out."""
    N, Cin, H, W = x_nchw.shape
    Cout = prepped["w1"].shape[-1]
    M = H * W

    # Single entry relayout: NCHW -> channels-last (N, H*W, Cin) slab.
    x = jnp.transpose(x_nchw, (0, 2, 3, 1)).reshape(N, M, Cin)

    unused = jnp.zeros((1, Cin), jnp.float32)   # stage 1 applies no input BN

    # Stage 1: conv1 + per-image partial BN stats.
    y1, st1 = _conv_stage(x, unused, unused, prepped["w1"], H, W,
                          apply_input_affine_relu=False)
    scale1, shift1 = _finalize_bn(st1, prepped["g1"], prepped["b1"], M)

    # Stage 2: bn1-apply + relu + conv2 + per-image partial BN stats.
    y2, st2 = _conv_stage(y1, scale1, shift1, prepped["w2"], H, W,
                          apply_input_affine_relu=True)
    scale2, shift2 = _finalize_bn(st2, prepped["g2"], prepped["b2"], M)

    # Stage 3: bn2-apply + relu.
    out_slab = _bn_relu_apply(y2, scale2, shift2)

    # Single exit relayout back to NCHW.
    return jnp.transpose(out_slab.reshape(N, H, W, Cout), (0, 3, 1, 2))


# ----------------------------- pure-JAX reference -----------------------------
def _ref_stage(x_nchw, w_oihw, gamma, beta):
    y = jax.lax.conv_general_dilated(
        x_nchw, w_oihw, window_strides=(1, 1), padding=((1, 1), (1, 1)),
        dimension_numbers=("NCHW", "OIHW", "NCHW"),
        precision=jax.lax.Precision.HIGHEST)
    mean = jnp.mean(y, axis=(0, 2, 3), keepdims=True)
    var = jnp.mean((y - mean) ** 2, axis=(0, 2, 3), keepdims=True)
    y = (y - mean) * jax.lax.rsqrt(var + EPS)
    y = y * gamma.reshape(1, -1, 1, 1) + beta.reshape(1, -1, 1, 1)
    return jnp.maximum(y, 0.0)


def reference_double_conv(x_nchw, params):
    y = _ref_stage(x_nchw, params["w1"], params["g1"], params["b1"])
    return _ref_stage(y, params["w2"], params["g2"], params["b2"])


if __name__ == "__main__":
    # Small shapes consistent with DoubleConv(in_channels=4, out_channels=8)
    N, Cin, H, W = 2, 4, 16, 16
    Cout = 8

    key = jax.random.PRNGKey(0)
    kx, k1, k2 = jax.random.split(key, 3)

    x = jax.random.normal(kx, (N, Cin, H, W), jnp.float32)

    # Deterministic synthetic parameters (PyTorch BN init: gamma=1, beta=0).
    params = {
        "w1": 0.1 * jax.random.normal(k1, (Cout, Cin, 3, 3), jnp.float32),
        "g1": jnp.ones((Cout,), jnp.float32),
        "b1": jnp.zeros((Cout,), jnp.float32),
        "w2": 0.1 * jax.random.normal(k2, (Cout, Cout, 3, 3), jnp.float32),
        "g2": jnp.ones((Cout,), jnp.float32),
        "b2": jnp.zeros((Cout,), jnp.float32),
    }

    prepped = prepare_params(params)   # weight folding once, off the hot path

    fwd = jax.jit(double_conv)
    out = jax.block_until_ready(fwd(x, prepped))
    assert out.shape == (N, Cout, H, W), out.shape

    ref = jax.block_until_ready(reference_double_conv(x, params))
    max_err = float(jnp.max(jnp.abs(out - ref)))
    # bf16 matmul operands (f32 accumulation & f32 BN stats) -> slightly
    # looser tolerance than a pure-f32 kernel.
    assert jnp.allclose(out, ref, atol=5e-2, rtol=5e-2), f"max_err={max_err}"

    print("KERNEL_OK")
</pallas_src>

<mosaic_0001>
module attributes {stable_mosaic.version = 11 : i64} {
  func.func @_conv_bn_stats_kernel(%arg0: i32, %arg1: memref<1x256x4xf32, #tpu.memory_space<vmem>>, %arg2: memref<1x4xf32, #tpu.memory_space<vmem>>, %arg3: memref<1x4xf32, #tpu.memory_space<vmem>>, %arg4: memref<9x4x8xbf16, #tpu.memory_space<vmem>>, %arg5: memref<1x256x8xf32, #tpu.memory_space<vmem>>, %arg6: memref<1x2x8xf32, #tpu.memory_space<vmem>>, %arg7: memref<18x18x4xbf16, #tpu.memory_space<vmem>>) attributes {dimension_semantics = [#tpu.dimension_semantics<parallel>], iteration_bounds = array<i64: 2>, scalar_prefetch = 0 : i64, scratch_operands = 1 : i64, tpu.core_type = #tpu.core_type<tc>, window_params = [{transform_indices = @transform_0, window_bounds = array<i64: 1, 256, 4>}, {pipeline_mode = #tpu.pipeline_mode<synchronous>, transform_indices = @transform_1, window_bounds = array<i64: 1, 4>}, {pipeline_mode = #tpu.pipeline_mode<synchronous>, transform_indices = @transform_2, window_bounds = array<i64: 1, 4>}, {pipeline_mode = #tpu.pipeline_mode<synchronous>, transform_indices = @transform_3, window_bounds = array<i64: 9, 4, 8>}, {transform_indices = @transform_4, window_bounds = array<i64: 1, 256, 8>}, {transform_indices = @transform_5, window_bounds = array<i64: 1, 2, 8>}]} {
    %c0 = arith.constant 0 : index
    %c0_0 = arith.constant 0 : index
    %c0_1 = arith.constant 0 : index
    %0 = vector.load %arg1[%c0, %c0_0, %c0_1] : memref<1x256x4xf32, #tpu.memory_space<vmem>>, vector<1x256x4xf32>
    %1 = vector.shape_cast %0 : vector<1x256x4xf32> to vector<256x4xf32>
    %2 = vector.shape_cast %1 : vector<256x4xf32> to vector<16x16x4xf32>
    %cst = arith.constant 0.000000e+00 : bf16
    %3 = vector.broadcast %cst : bf16 to vector<1x18x4xbf16>
    %cst_2 = arith.constant 0.000000e+00 : bf16
    %4 = vector.broadcast %cst_2 : bf16 to vector<18x1x4xbf16>
    %c0_3 = arith.constant 0 : index
    %c0_4 = arith.constant 0 : index
    %c0_5 = arith.constant 0 : index
    %5 = vector.load %arg7[%c0_3, %c0_4, %c0_5] : memref<18x18x4xbf16, #tpu.memory_space<vmem>>, vector<1x18x4xbf16>
    tpu.vector_store %arg7[%c0_3, %c0_4, %c0_5], %3 {strides = array<i32>} : memref<18x18x4xbf16, #tpu.memory_space<vmem>>, vector<1x18x4xbf16>,
    %c17 = arith.constant 17 : index
    %c0_6 = arith.constant 0 : index
    %c0_7 = arith.constant 0 : index
    %6 = vector.load %arg7[%c17, %c0_6, %c0_7] : memref<18x18x4xbf16, #tpu.memory_space<vmem>>, vector<1x18x4xbf16>
    tpu.vector_store %arg7[%c17, %c0_6, %c0_7], %3 {strides = array<i32>} : memref<18x18x4xbf16, #tpu.memory_space<vmem>>, vector<1x18x4xbf16>,
    %c0_8 = arith.constant 0 : index
    %c0_9 = arith.constant 0 : index
    %c0_10 = arith.constant 0 : index
    %7 = vector.load %arg7[%c0_8, %c0_9, %c0_10] : memref<18x18x4xbf16, #tpu.memory_space<vmem>>, vector<18x1x4xbf16>
    tpu.vector_store %arg7[%c0_8, %c0_9, %c0_10], %4 {strides = array<i32>} : memref<18x18x4xbf16, #tpu.memory_space<vmem>>, vector<18x1x4xbf16>,
    %c0_11 = arith.constant 0 : index
    %c17_12 = arith.constant 17 : index
    %c0_13 = arith.constant 0 : index
    %8 = vector.load %arg7[%c0_11, %c17_12, %c0_13] : memref<18x18x4xbf16, #tpu.memory_space<vmem>>, vector<18x1x4xbf16>
    tpu.vector_store %arg7[%c0_11, %c17_12, %c0_13], %4 {strides = array<i32>} : memref<18x18x4xbf16, #tpu.memory_space<vmem>>, vector<18x1x4xbf16>,
    %9 = arith.truncf %2 : vector<16x16x4xf32> to vector<16x16x4xbf16>
    %c1 = arith.constant 1 : index
    %c1_14 = arith.constant 1 : index
    %c0_15 = arith.constant 0 : index
    %10 = vector.load %arg7[%c1, %c1_14, %c0_15] : memref<18x18x4xbf16, #tpu.memory_space<vmem>>, vector<16x16x4xbf16>
    tpu.vector_store %arg7[%c1, %c1_14, %c0_15], %9 {strides = array<i32>} : memref<18x18x4xbf16, #tpu.memory_space<vmem>>, vector<16x16x4xbf16>,
    %cst_16 = arith.constant 0.000000e+00 : f32
    %11 = vector.broadcast %cst_16 : f32 to vector<256x8xf32>
    %c0_17 = arith.constant 0 : index
    %c0_18 = arith.constant 0 : index
    %c0_19 = arith.constant 0 : index
    %12 = vector.load %arg7[%c0_17, %c0_18, %c0_19] : memref<18x18x4xbf16, #tpu.memory_space<vmem>>, vector<16x16x4xbf16>
    %13 = vector.shape_cast %12 : vector<16x16x4xbf16> to vector<256x4xbf16>
    %c0_20 = arith.constant 0 : index
    %c0_21 = arith.constant 0 : index
    %c0_22 = arith.constant 0 : index
    %14 = vector.load %arg4[%c0_20, %c0_21, %c0_22] : memref<9x4x8xbf16, #tpu.memory_space<vmem>>, vector<1x4x8xbf16>
    %15 = vector.shape_cast %14 : vector<1x4x8xbf16> to vector<4x8xbf16>
    %cst_23 = arith.constant dense<0.000000e+00> : vector<256x8xf32>
    %16 = tpu.matmul %13, %15, %cst_23 {dimension_numbers = #tpu.dot_dimension_numbers<[1], [0], [0], [1], [0, 0, 1, 1], [], []>} : vector<256x4xbf16>, vector<4x8xbf16>, vector<256x8xf32> -> vector<256x8xf32>
    %17 = arith.addf %11, %16 : vector<256x8xf32>
    %c0_24 = arith.constant 0 : index
    %c1_25 = arith.constant 1 : index
    %c0_26 = arith.constant 0 : index
    %18 = vector.load %arg7[%c0_24, %c1_25, %c0_26] : memref<18x18x4xbf16, #tpu.memory_space<vmem>>, vector<16x16x4xbf16>
    %19 = vector.shape_cast %18 : vector<16x16x4xbf16> to vector<256x4xbf16>
    %c1_27 = arith.constant 1 : index
    %c0_28 = arith.constant 0 : index
    %c0_29 = arith.constant 0 : index
    %20 = vector.load %arg4[%c1_27, %c0_28, %c0_29] : memref<9x4x8xbf16, #tpu.memory_space<vmem>>, vector<1x4x8xbf16>
    %21 = vector.shape_cast %20 : vector<1x4x8xbf16> to vector<4x8xbf16>
    %cst_30 = arith.constant dense<0.000000e+00> : vector<256x8xf32>
    %22 = tpu.matmul %19, %21, %cst_30 {dimension_numbers = #tpu.dot_dimension_numbers<[1], [0], [0], [1], [0, 0, 1, 1], [], []>} : vector<256x4xbf16>, vector<4x8xbf16>, vector<256x8xf32> -> vector<256x8xf32>
    %23 = arith.addf %17, %22 : vector<256x8xf32>
    %c0_31 = arith.constant 0 : index
    %c2 = arith.constant 2 : index
    %c0_32 = arith.constant 0 : index
    %24 = vector.load %arg7[%c0_31, %c2, %c0_32] : memref<18x18x4xbf16, #tpu.memory_space<vmem>>, vector<16x16x4xbf16>
    %25 = vector.shape_cast %24 : vector<16x16x4xbf16> to vector<256x4xbf16>
    %c2_33 = arith.constant 2 : index
    %c0_34 = arith.constant 0 : index
    %c0_35 = arith.constant 0 : index
    %26 = vector.load %arg4[%c2_33, %c0_34, %c0_35] : memref<9x4x8xbf16, #tpu.memory_space<vmem>>, vector<1x4x8xbf16>
    %27 = vector.shape_cast %26 : vector<1x4x8xbf16> to vector<4x8xbf16>
    %cst_36 = arith.constant dense<0.000000e+00> : vector<256x8xf32>
    %28 = tpu.matmul %25, %27, %cst_36 {dimension_numbers = #tpu.dot_dimension_numbers<[1], [0], [0], [1], [0, 0, 1, 1], [], []>} : vector<256x4xbf16>, vector<4x8xbf16>, vector<256x8xf32> -> vector<256x8xf32>
    %29 = arith.addf %23, %28 : vector<256x8xf32>
    %c1_37 = arith.constant 1 : index
    %c0_38 = arith.constant 0 : index
    %c0_39 = arith.constant 0 : index
    %30 = vector.load %arg7[%c1_37, %c0_38, %c0_39] : memref<18x18x4xbf16, #tpu.memory_space<vmem>>, vector<16x16x4xbf16>
    %31 = vector.shape_cast %30 : vector<16x16x4xbf16> to vector<256x4xbf16>
    %c3 = arith.constant 3 : index
    %c0_40 = arith.constant 0 : index
    %c0_41 = arith.constant 0 : index
    %32 = vector.load %arg4[%c3, %c0_40, %c0_41] : memref<9x4x8xbf16, #tpu.memory_space<vmem>>, vector<1x4x8xbf16>
    %33 = vector.shape_cast %32 : vector<1x4x8xbf16> to vector<4x8xbf16>
    %cst_42 = arith.constant dense<0.000000e+00> : vector<256x8xf32>
    %34 = tpu.matmul %31, %33, %cst_42 {dimension_numbers = #tpu.dot_dimension_numbers<[1], [0], [0], [1], [0, 0, 1, 1], [], []>} : vector<256x4xbf16>, vector<4x8xbf16>, vector<256x8xf32> -> vector<256x8xf32>
    %35 = arith.addf %29, %34 : vector<256x8xf32>
    %c1_43 = arith.constant 1 : index
    %c1_44 = arith.constant 1 : index
    %c0_45 = arith.constant 0 : index
    %36 = vector.load %arg7[%c1_43, %c1_44, %c0_45] : memref<18x18x4xbf16, #tpu.memory_space<vmem>>, vector<16x16x4xbf16>
    %37 = vector.shape_cast %36 : vector<16x16x4xbf16> to vector<256x4xbf16>
    %c4 = arith.constant 4 : index
    %c0_46 = arith.constant 0 : index
    %c0_47 = arith.constant 0 : index
    %38 = vector.load %arg4[%c4, %c0_46, %c0_47] : memref<9x4x8xbf16, #tpu.memory_space<vmem>>, vector<1x4x8xbf16>
    %39 = vector.shape_cast %38 : vector<1x4x8xbf16> to vector<4x8xbf16>
    %cst_48 = arith.constant dense<0.000000e+00> : vector<256x8xf32>
    %40 = tpu.matmul %37, %39, %cst_48 {dimension_numbers = #tpu.dot_dimension_numbers<[1], [0], [0], [1], [0, 0, 1, 1], [], []>} : vector<256x4xbf16>, vector<4x8xbf16>, vector<256x8xf32> -> vector<256x8xf32>
    %41 = arith.addf %35, %40 : vector<256x8xf32>
    %c1_49 = arith.constant 1 : index
    %c2_50 = arith.constant 2 : index
    %c0_51 = arith.constant 0 : index
    %42 = vector.load %arg7[%c1_49, %c2_50, %c0_51] : memref<18x18x4xbf16, #tpu.memory_space<vmem>>, vector<16x16x4xbf16>
    %43 = vector.shape_cast %42 : vector<16x16x4xbf16> to vector<256x4xbf16>
    %c5 = arith.constant 5 : index
    %c0_52 = arith.constant 0 : index
    %c0_53 = arith.constant 0 : index
    %44 = vector.load %arg4[%c5, %c0_52, %c0_53] : memref<9x4x8xbf16, #tpu.memory_space<vmem>>, vector<1x4x8xbf16>
    %45 = vector.shape_cast %44 : vector<1x4x8xbf16> to vector<4x8xbf16>
    %cst_54 = arith.constant dense<0.000000e+00> : vector<256x8xf32>
    %46 = tpu.matmul %43, %45, %cst_54 {dimension_numbers = #tpu.dot_dimension_numbers<[1], [0], [0], [1], [0, 0, 1, 1], [], []>} : vector<256x4xbf16>, vector<4x8xbf16>, vector<256x8xf32> -> vector<256x8xf32>
    %47 = arith.addf %41, %46 : vector<256x8xf32>
    %c2_55 = arith.constant 2 : index
    %c0_56 = arith.constant 0 : index
    %c0_57 = arith.constant 0 : index
    %48 = vector.load %arg7[%c2_55, %c0_56, %c0_57] : memref<18x18x4xbf16, #tpu.memory_space<vmem>>, vector<16x16x4xbf16>
    %49 = vector.shape_cast %48 : vector<16x16x4xbf16> to vector<256x4xbf16>
    %c6 = arith.constant 6 : index
    %c0_58 = arith.constant 0 : index
    %c0_59 = arith.constant 0 : index
    %50 = vector.load %arg4[%c6, %c0_58, %c0_59] : memref<9x4x8xbf16, #tpu.memory_space<vmem>>, vector<1x4x8xbf16>
    %51 = vector.shape_cast %50 : vector<1x4x8xbf16> to vector<4x8xbf16>
    %cst_60 = arith.constant dense<0.000000e+00> : vector<256x8xf32>
    %52 = tpu.matmul %49, %51, %cst_60 {dimension_numbers = #tpu.dot_dimension_numbers<[1], [0], [0], [1], [0, 0, 1, 1], [], []>} : vector<256x4xbf16>, vector<4x8xbf16>, vector<256x8xf32> -> vector<256x8xf32>
    %53 = arith.addf %47, %52 : vector<256x8xf32>
    %c2_61 = arith.constant 2 : index
    %c1_62 = arith.constant 1 : index
    %c0_63 = arith.constant 0 : index
    %54 = vector.load %arg7[%c2_61, %c1_62, %c0_63] : memref<18x18x4xbf16, #tpu.memory_space<vmem>>, vector<16x16x4xbf16>
    %55 = vector.shape_cast %54 : vector<16x16x4xbf16> to vector<256x4xbf16>
    %c7 = arith.constant 7 : index
    %c0_64 = arith.constant 0 : index
    %c0_65 = arith.constant 0 : index
    %56 = vector.load %arg4[%c7, %c0_64, %c0_65] : memref<9x4x8xbf16, #tpu.memory_space<vmem>>, vector<1x4x8xbf16>
    %57 = vector.shape_cast %56 : vector<1x4x8xbf16> to vector<4x8xbf16>
    %cst_66 = arith.constant dense<0.000000e+00> : vector<256x8xf32>
    %58 = tpu.matmul %55, %57, %cst_66 {dimension_numbers = #tpu.dot_dimension_numbers<[1], [0], [0], [1], [0, 0, 1, 1], [], []>} : vector<256x4xbf16>, vector<4x8xbf16>, vector<256x8xf32> -> vector<256x8xf32>
    %59 = arith.addf %53, %58 : vector<256x8xf32>
    %c2_67 = arith.constant 2 : index
    %c2_68 = arith.constant 2 : index
    %c0_69 = arith.constant 0 : index
    %60 = vector.load %arg7[%c2_67, %c2_68, %c0_69] : memref<18x18x4xbf16, #tpu.memory_space<vmem>>, vector<16x16x4xbf16>
    %61 = vector.shape_cast %60 : vector<16x16x4xbf16> to vector<256x4xbf16>
    %c8 = arith.constant 8 : index
    %c0_70 = arith.constant 0 : index
    %c0_71 = arith.constant 0 : index
    %62 = vector.load %arg4[%c8, %c0_70, %c0_71] : memref<9x4x8xbf16, #tpu.memory_space<vmem>>, vector<1x4x8xbf16>
    %63 = vector.shape_cast %62 : vector<1x4x8xbf16> to vector<4x8xbf16>
    %cst_72 = arith.constant dense<0.000000e+00> : vector<256x8xf32>
    %64 = tpu.matmul %61, %63, %cst_72 {dimension_numbers = #tpu.dot_dimension_numbers<[1], [0], [0], [1], [0, 0, 1, 1], [], []>} : vector<256x4xbf16>, vector<4x8xbf16>, vector<256x8xf32> -> vector<256x8xf32>
    %65 = arith.addf %59, %64 : vector<256x8xf32>
    %cst_73 = arith.constant dense<0.000000e+00> : vector<8xf32>
    %66 = vector.multi_reduction <add>, %65, %cst_73 [0] : vector<256x8xf32> to vector<8xf32>
    %67 = vector.shape_cast %66 : vector<8xf32> to vector<1x8xf32>
    %cst_74 = arith.constant 3.906250e-03 : f32
    %68 = vector.broadcast %cst_74 : f32 to vector<1x8xf32>
    %69 = arith.mulf %67, %68 : vector<1x8xf32>
    %70 = vector.broadcast %69 : vector<1x8xf32> to vector<256x8xf32>
    %71 = arith.subf %65, %70 : vector<256x8xf32>
    %72 = arith.mulf %71, %71 : vector<256x8xf32>
    %cst_75 = arith.constant dense<0.000000e+00> : vector<8xf32>
    %73 = vector.multi_reduction <add>, %72, %cst_75 [0] : vector<256x8xf32> to vector<8xf32>
    %74 = vector.shape_cast %73 : vector<8xf32> to vector<1x8xf32>
    %75 = tpu.concatenate %67, %74 in 0 : vector<1x8xf32>, vector<1x8xf32> -> vector<2x8xf32>
    %76 = vector.shape_cast %75 : vector<2x8xf32> to vector<1x2x8xf32>
    %c0_76 = arith.constant 0 : index
    %c0_77 = arith.constant 0 : index
    %c0_78 = arith.constant 0 : index
    %77 = vector.load %arg6[%c0_76, %c0_77, %c0_78] : memref<1x2x8xf32, #tpu.memory_space<vmem>>, vector<1x2x8xf32>
    tpu.vector_store %arg6[%c0_76, %c0_77, %c0_78], %76 {strides = array<i32>} : memref<1x2x8xf32, #tpu.memory_space<vmem>>, vector<1x2x8xf32>,
    %78 = vector.shape_cast %65 : vector<256x8xf32> to vector<1x256x8xf32>
    %c0_79 = arith.constant 0 : index
    %c0_80 = arith.constant 0 : index
    %c0_81 = arith.constant 0 : index
    %79 = vector.load %arg5[%c0_79, %c0_80, %c0_81] : memref<1x256x8xf32, #tpu.memory_space<vmem>>, vector<1x256x8xf32>
    tpu.vector_store %arg5[%c0_79, %c0_80, %c0_81], %78 {strides = array<i32>} : memref<1x256x8xf32, #tpu.memory_space<vmem>>, vector<1x256x8xf32>,
    return
  }
  func.func @transform_0(%arg0: i32) -> (i32, i32, i32) {
    %c0_i32 = arith.constant 0 : i32
    %c0_i32_0 = arith.constant 0 : i32
    %c0_i32_1 = arith.constant 0 : i32
    return %arg0, %c0_i32, %c0_i32_0 : i32, i32, i32
  }
  func.func @transform_1(%arg0: i32) -> (i32, i32) {
    %c0_i32 = arith.constant 0 : i32
    %c0_i32_0 = arith.constant 0 : i32
    %c0_i32_1 = arith.constant 0 : i32
    return %c0_i32, %c0_i32_0 : i32, i32
  }
  func.func @transform_2(%arg0: i32) -> (i32, i32) {
    %c0_i32 = arith.constant 0 : i32
    %c0_i32_0 = arith.constant 0 : i32
    %c0_i32_1 = arith.constant 0 : i32
    return %c0_i32, %c0_i32_0 : i32, i32
  }
  func.func @transform_3(%arg0: i32) -> (i32, i32, i32) {
    %c0_i32 = arith.constant 0 : i32
    %c0_i32_0 = arith.constant 0 : i32
    %c0_i32_1 = arith.constant 0 : i32
    %c0_i32_2 = arith.constant 0 : i32
    return %c0_i32, %c0_i32_0, %c0_i32_1 : i32, i32, i32
  }
  func.func @transform_4(%arg0: i32) -> (i32, i32, i32) {
    %c0_i32 = arith.constant 0 : i32
    %c0_i32_0 = arith.constant 0 : i32
    %c0_i32_1 = arith.constant 0 : i32
    return %arg0, %c0_i32, %c0_i32_0 : i32, i32, i32
  }
  func.func @transform_5(%arg0: i32) -> (i32, i32, i32) {
    %c0_i32 = arith.constant 0 : i32
    %c0_i32_0 = arith.constant 0 : i32
    %c0_i32_1 = arith.constant 0 : i32
    return %arg0, %c0_i32, %c0_i32_0 : i32, i32, i32
  }
}

module attributes {stable_mosaic.version = 11 : i64} {
  func.func @_conv_bn_stats_kernel(%arg0: i32, %arg1: memref<1x256x8xf32, #tpu.memory_space<vmem>>, %arg2: memref<1x8xf32, #tpu.memory_space<vmem>>, %arg3: memref<1x8xf32, #tpu.memory_space<vmem>>, %arg4: memref<9x8x8xbf16, #tpu.memory_space<vmem>>, %arg5: memref<1x256x8xf32, #tpu.memory_space<vmem>>, %arg6: memref<1x2x8xf32, #tpu.memory_space<vmem>>, %arg7: memref<18x18x8xbf16, #tpu.memory_space<vmem>>) attributes {dimension_semantics = [#tpu.dimension_semantics<parallel>], iteration_bounds = array<i64: 2>, scalar_prefetch = 0 : i64, scratch_operands = 1 : i64, tpu.core_type = #tpu.core_type<tc>, window_params = [{transform_indices = @transform_0, window_bounds = array<i64: 1, 256, 8>}, {pipeline_mode = #tpu.pipeline_mode<synchronous>, transform_indices = @transform_1, window_bounds = array<i64: 1, 8>}, {pipeline_mode = #tpu.pipeline_mode<synchronous>, transform_indices = @transform_2, window_bounds = array<i64: 1, 8>}, {pipeline_mode = #tpu.pipeline_mode<synchronous>, transform_indices = @transform_3, window_bounds = array<i64: 9, 8, 8>}, {transform_indices = @transform_4, window_bounds = array<i64: 1, 256, 8>}, {transform_indices = @transform_5, window_bounds = array<i64: 1, 2, 8>}]} {
    %c0 = arith.constant 0 : index
    %c0_0 = arith.constant 0 : index
    %c0_1 = arith.constant 0 : index
    %0 = vector.load %arg1[%c0, %c0_0, %c0_1] : memref<1x256x8xf32, #tpu.memory_space<vmem>>, vector<1x256x8xf32>
    %1 = vector.shape_cast %0 : vector<1x256x8xf32> to vector<256x8xf32>
    %2 = vector.shape_cast %1 : vector<256x8xf32> to vector<16x16x8xf32>
    %c0_2 = arith.constant 0 : index
    %c0_3 = arith.constant 0 : index
    %3 = vector.load %arg2[%c0_2, %c0_3] : memref<1x8xf32, #tpu.memory_space<vmem>>, vector<1x8xf32>
    %4 = vector.shape_cast %3 : vector<1x8xf32> to vector<1x1x8xf32>
    %c0_4 = arith.constant 0 : index
    %c0_5 = arith.constant 0 : index
    %5 = vector.load %arg3[%c0_4, %c0_5] : memref<1x8xf32, #tpu.memory_space<vmem>>, vector<1x8xf32>
    %6 = vector.shape_cast %5 : vector<1x8xf32> to vector<1x1x8xf32>
    %7 = vector.broadcast %4 : vector<1x1x8xf32> to vector<16x16x8xf32>
    %8 = arith.mulf %2, %7 : vector<16x16x8xf32>
    %9 = vector.broadcast %6 : vector<1x1x8xf32> to vector<16x16x8xf32>
    %10 = arith.addf %8, %9 : vector<16x16x8xf32>
    %cst = arith.constant 0.000000e+00 : f32
    %11 = vector.broadcast %cst : f32 to vector<16x16x8xf32>
    %12 = arith.maximumf %10, %11 : vector<16x16x8xf32>
    %cst_6 = arith.constant 0.000000e+00 : bf16
    %13 = vector.broadcast %cst_6 : bf16 to vector<1x18x8xbf16>
    %cst_7 = arith.constant 0.000000e+00 : bf16
    %14 = vector.broadcast %cst_7 : bf16 to vector<18x1x8xbf16>
    %c0_8 = arith.constant 0 : index
    %c0_9 = arith.constant 0 : index
    %c0_10 = arith.constant 0 : index
    %15 = vector.load %arg7[%c0_8, %c0_9, %c0_10] : memref<18x18x8xbf16, #tpu.memory_space<vmem>>, vector<1x18x8xbf16>
    tpu.vector_store %arg7[%c0_8, %c0_9, %c0_10], %13 {strides = array<i32>} : memref<18x18x8xbf16, #tpu.memory_space<vmem>>, vector<1x18x8xbf16>,
    %c17 = arith.constant 17 : index
    %c0_11 = arith.constant 0 : index
    %c0_12 = arith.constant 0 : index
    %16 = vector.load %arg7[%c17, %c0_11, %c0_12] : memref<18x18x8xbf16, #tpu.memory_space<vmem>>, vector<1x18x8xbf16>
    tpu.vector_store %arg7[%c17, %c0_11, %c0_12], %13 {strides = array<i32>} : memref<18x18x8xbf16, #tpu.memory_space<vmem>>, vector<1x18x8xbf16>,
    %c0_13 = arith.constant 0 : index
    %c0_14 = arith.constant 0 : index
    %c0_15 = arith.constant 0 : index
    %17 = vector.load %arg7[%c0_13, %c0_14, %c0_15] : memref<18x18x8xbf16, #tpu.memory_space<vmem>>, vector<18x1x8xbf16>
    tpu.vector_store %arg7[%c0_13, %c0_14, %c0_15], %14 {strides = array<i32>} : memref<18x18x8xbf16, #tpu.memory_space<vmem>>, vector<18x1x8xbf16>,
    %c0_16 = arith.constant 0 : index
    %c17_17 = arith.constant 17 : index
    %c0_18 = arith.constant 0 : index
    %18 = vector.load %arg7[%c0_16, %c17_17, %c0_18] : memref<18x18x8xbf16, #tpu.memory_space<vmem>>, vector<18x1x8xbf16>
    tpu.vector_store %arg7[%c0_16, %c17_17, %c0_18], %14 {strides = array<i32>} : memref<18x18x8xbf16, #tpu.memory_space<vmem>>, vector<18x1x8xbf16>,
    %19 = arith.truncf %12 : vector<16x16x8xf32> to vector<16x16x8xbf16>
    %c1 = arith.constant 1 : index
    %c1_19 = arith.constant 1 : index
    %c0_20 = arith.constant 0 : index
    %20 = vector.load %arg7[%c1, %c1_19, %c0_20] : memref<18x18x8xbf16, #tpu.memory_space<vmem>>, vector<16x16x8xbf16>
    tpu.vector_store %arg7[%c1, %c1_19, %c0_20], %19 {strides = array<i32>} : memref<18x18x8xbf16, #tpu.memory_space<vmem>>, vector<16x16x8xbf16>,
    %cst_21 = arith.constant 0.000000e+00 : f32
    %21 = vector.broadcast %cst_21 : f32 to vector<256x8xf32>
    %c0_22 = arith.constant 0 : index
    %c0_23 = arith.constant 0 : index
    %c0_24 = arith.constant 0 : index
    %22 = vector.load %arg7[%c0_22, %c0_23, %c0_24] : memref<18x18x8xbf16, #tpu.memory_space<vmem>>, vector<16x16x8xbf16>
    %23 = vector.shape_cast %22 : vector<16x16x8xbf16> to vector<256x8xbf16>
    %c0_25 = arith.constant 0 : index
    %c0_26 = arith.constant 0 : index
    %c0_27 = arith.constant 0 : index
    %24 = vector.load %arg4[%c0_25, %c0_26, %c0_27] : memref<9x8x8xbf16, #tpu.memory_space<vmem>>, vector<1x8x8xbf16>
    %25 = vector.shape_cast %24 : vector<1x8x8xbf16> to vector<8x8xbf16>
    %cst_28 = arith.constant dense<0.000000e+00> : vector<256x8xf32>
    %26 = tpu.matmul %23, %25, %cst_28 {dimension_numbers = #tpu.dot_dimension_numbers<[1], [0], [0], [1], [0, 0, 1, 1], [], []>} : vector<256x8xbf16>, vector<8x8xbf16>, vector<256x8xf32> -> vector<256x8xf32>
    %27 = arith.addf %21, %26 : vector<256x8xf32>
    %c0_29 = arith.constant 0 : index
    %c1_30 = arith.constant 1 : index
    %c0_31 = arith.constant 0 : index
    %28 = vector.load %arg7[%c0_29, %c1_30, %c0_31] : memref<18x18x8xbf16, #tpu.memory_space<vmem>>, vector<16x16x8xbf16>
    %29 = vector.shape_cast %28 : vector<16x16x8xbf16> to vector<256x8xbf16>
    %c1_32 = arith.constant 1 : index
    %c0_33 = arith.constant 0 : index
    %c0_34 = arith.constant 0 : index
    %30 = vector.load %arg4[%c1_32, %c0_33, %c0_34] : memref<9x8x8xbf16, #tpu.memory_space<vmem>>, vector<1x8x8xbf16>
    %31 = vector.shape_cast %30 : vector<1x8x8xbf16> to vector<8x8xbf16>
    %cst_35 = arith.constant dense<0.000000e+00> : vector<256x8xf32>
    %32 = tpu.matmul %29, %31, %cst_35 {dimension_numbers = #tpu.dot_dimension_numbers<[1], [0], [0], [1], [0, 0, 1, 1], [], []>} : vector<256x8xbf16>, vector<8x8xbf16>, vector<256x8xf32> -> vector<256x8xf32>
    %33 = arith.addf %27, %32 : vector<256x8xf32>
    %c0_36 = arith.constant 0 : index
    %c2 = arith.constant 2 : index
    %c0_37 = arith.constant 0 : index
    %34 = vector.load %arg7[%c0_36, %c2, %c0_37] : memref<18x18x8xbf16, #tpu.memory_space<vmem>>, vector<16x16x8xbf16>
    %35 = vector.shape_cast %34 : vector<16x16x8xbf16> to vector<256x8xbf16>
    %c2_38 = arith.constant 2 : index
    %c0_39 = arith.constant 0 : index
    %c0_40 = arith.constant 0 : index
    %36 = vector.load %arg4[%c2_38, %c0_39, %c0_40] : memref<9x8x8xbf16, #tpu.memory_space<vmem>>, vector<1x8x8xbf16>
    %37 = vector.shape_cast %36 : vector<1x8x8xbf16> to vector<8x8xbf16>
    %cst_41 = arith.constant dense<0.000000e+00> : vector<256x8xf32>
    %38 = tpu.matmul %35, %37, %cst_41 {dimension_numbers = #tpu.dot_dimension_numbers<[1], [0], [0], [1], [0, 0, 1, 1], [], []>} : vector<256x8xbf16>, vector<8x8xbf16>, vector<256x8xf32> -> vector<256x8xf32>
    %39 = arith.addf %33, %38 : vector<256x8xf32>
    %c1_42 = arith.constant 1 : index
    %c0_43 = arith.constant 0 : index
    %c0_44 = arith.constant 0 : index
    %40 = vector.load %arg7[%c1_42, %c0_43, %c0_44] : memref<18x18x8xbf16, #tpu.memory_space<vmem>>, vector<16x16x8xbf16>
    %41 = vector.shape_cast %40 : vector<16x16x8xbf16> to vector<256x8xbf16>
    %c3 = arith.constant 3 : index
    %c0_45 = arith.constant 0 : index
    %c0_46 = arith.constant 0 : index
    %42 = vector.load %arg4[%c3, %c0_45, %c0_46] : memref<9x8x8xbf16, #tpu.memory_space<vmem>>, vector<1x8x8xbf16>
    %43 = vector.shape_cast %42 : vector<1x8x8xbf16> to vector<8x8xbf16>
    %cst_47 = arith.constant dense<0.000000e+00> : vector<256x8xf32>
    %44 = tpu.matmul %41, %43, %cst_47 {dimension_numbers = #tpu.dot_dimension_numbers<[1], [0], [0], [1], [0, 0, 1, 1], [], []>} : vector<256x8xbf16>, vector<8x8xbf16>, vector<256x8xf32> -> vector<256x8xf32>
    %45 = arith.addf %39, %44 : vector<256x8xf32>
    %c1_48 = arith.constant 1 : index
    %c1_49 = arith.constant 1 : index
    %c0_50 = arith.constant 0 : index
    %46 = vector.load %arg7[%c1_48, %c1_49, %c0_50] : memref<18x18x8xbf16, #tpu.memory_space<vmem>>, vector<16x16x8xbf16>
    %47 = vector.shape_cast %46 : vector<16x16x8xbf16> to vector<256x8xbf16>
    %c4 = arith.constant 4 : index
    %c0_51 = arith.constant 0 : index
    %c0_52 = arith.constant 0 : index
    %48 = vector.load %arg4[%c4, %c0_51, %c0_52] : memref<9x8x8xbf16, #tpu.memory_space<vmem>>, vector<1x8x8xbf16>
    %49 = vector.shape_cast %48 : vector<1x8x8xbf16> to vector<8x8xbf16>
    %cst_53 = arith.constant dense<0.000000e+00> : vector<256x8xf32>
    %50 = tpu.matmul %47, %49, %cst_53 {dimension_numbers = #tpu.dot_dimension_numbers<[1], [0], [0], [1], [0, 0, 1, 1], [], []>} : vector<256x8xbf16>, vector<8x8xbf16>, vector<256x8xf32> -> vector<256x8xf32>
    %51 = arith.addf %45, %50 : vector<256x8xf32>
    %c1_54 = arith.constant 1 : index
    %c2_55 = arith.constant 2 : index
    %c0_56 = arith.constant 0 : index
    %52 = vector.load %arg7[%c1_54, %c2_55, %c0_56] : memref<18x18x8xbf16, #tpu.memory_space<vmem>>, vector<16x16x8xbf16>
    %53 = vector.shape_cast %52 : vector<16x16x8xbf16> to vector<256x8xbf16>
    %c5 = arith.constant 5 : index
    %c0_57 = arith.constant 0 : index
    %c0_58 = arith.constant 0 : index
    %54 = vector.load %arg4[%c5, %c0_57, %c0_58] : memref<9x8x8xbf16, #tpu.memory_space<vmem>>, vector<1x8x8xbf16>
    %55 = vector.shape_cast %54 : vector<1x8x8xbf16> to vector<8x8xbf16>
    %cst_59 = arith.constant dense<0.000000e+00> : vector<256x8xf32>
    %56 = tpu.matmul %53, %55, %cst_59 {dimension_numbers = #tpu.dot_dimension_numbers<[1], [0], [0], [1], [0, 0, 1, 1], [], []>} : vector<256x8xbf16>, vector<8x8xbf16>, vector<256x8xf32> -> vector<256x8xf32>
    %57 = arith.addf %51, %56 : vector<256x8xf32>
    %c2_60 = arith.constant 2 : index
    %c0_61 = arith.constant 0 : index
    %c0_62 = arith.constant 0 : index
    %58 = vector.load %arg7[%c2_60, %c0_61, %c0_62] : memref<18x18x8xbf16, #tpu.memory_space<vmem>>, vector<16x16x8xbf16>
    %59 = vector.shape_cast %58 : vector<16x16x8xbf16> to vector<256x8xbf16>
    %c6 = arith.constant 6 : index
    %c0_63 = arith.constant 0 : index
    %c0_64 = arith.constant 0 : index
    %60 = vector.load %arg4[%c6, %c0_63, %c0_64] : memref<9x8x8xbf16, #tpu.memory_space<vmem>>, vector<1x8x8xbf16>
    %61 = vector.shape_cast %60 : vector<1x8x8xbf16> to vector<8x8xbf16>
    %cst_65 = arith.constant dense<0.000000e+00> : vector<256x8xf32>
    %62 = tpu.matmul %59, %61, %cst_65 {dimension_numbers = #tpu.dot_dimension_numbers<[1], [0], [0], [1], [0, 0, 1, 1], [], []>} : vector<256x8xbf16>, vector<8x8xbf16>, vector<256x8xf32> -> vector<256x8xf32>
    %63 = arith.addf %57, %62 : vector<256x8xf32>
    %c2_66 = arith.constant 2 : index
    %c1_67 = arith.constant 1 : index
    %c0_68 = arith.constant 0 : index
    %64 = vector.load %arg7[%c2_66, %c1_67, %c0_68] : memref<18x18x8xbf16, #tpu.memory_space<vmem>>, vector<16x16x8xbf16>
    %65 = vector.shape_cast %64 : vector<16x16x8xbf16> to vector<256x8xbf16>
    %c7 = arith.constant 7 : index
    %c0_69 = arith.constant 0 : index
    %c0_70 = arith.constant 0 : index
    %66 = vector.load %arg4[%c7, %c0_69, %c0_70] : memref<9x8x8xbf16, #tpu.memory_space<vmem>>, vector<1x8x8xbf16>
    %67 = vector.shape_cast %66 : vector<1x8x8xbf16> to vector<8x8xbf16>
    %cst_71 = arith.constant dense<0.000000e+00> : vector<256x8xf32>
    %68 = tpu.matmul %65, %67, %cst_71 {dimension_numbers = #tpu.dot_dimension_numbers<[1], [0], [0], [1], [0, 0, 1, 1], [], []>} : vector<256x8xbf16>, vector<8x8xbf16>, vector<256x8xf32> -> vector<256x8xf32>
    %69 = arith.addf %63, %68 : vector<256x8xf32>
    %c2_72 = arith.constant 2 : index
    %c2_73 = arith.constant 2 : index
    %c0_74 = arith.constant 0 : index
    %70 = vector.load %arg7[%c2_72, %c2_73, %c0_74] : memref<18x18x8xbf16, #tpu.memory_space<vmem>>, vector<16x16x8xbf16>
    %71 = vector.shape_cast %70 : vector<16x16x8xbf16> to vector<256x8xbf16>
    %c8 = arith.constant 8 : index
    %c0_75 = arith.constant 0 : index
    %c0_76 = arith.constant 0 : index
    %72 = vector.load %arg4[%c8, %c0_75, %c0_76] : memref<9x8x8xbf16, #tpu.memory_space<vmem>>, vector<1x8x8xbf16>
    %73 = vector.shape_cast %72 : vector<1x8x8xbf16> to vector<8x8xbf16>
    %cst_77 = arith.constant dense<0.000000e+00> : vector<256x8xf32>
    %74 = tpu.matmul %71, %73, %cst_77 {dimension_numbers = #tpu.dot_dimension_numbers<[1], [0], [0], [1], [0, 0, 1, 1], [], []>} : vector<256x8xbf16>, vector<8x8xbf16>, vector<256x8xf32> -> vector<256x8xf32>
    %75 = arith.addf %69, %74 : vector<256x8xf32>
    %cst_78 = arith.constant dense<0.000000e+00> : vector<8xf32>
    %76 = vector.multi_reduction <add>, %75, %cst_78 [0] : vector<256x8xf32> to vector<8xf32>
    %77 = vector.shape_cast %76 : vector<8xf32> to vector<1x8xf32>
    %cst_79 = arith.constant 3.906250e-03 : f32
    %78 = vector.broadcast %cst_79 : f32 to vector<1x8xf32>
    %79 = arith.mulf %77, %78 : vector<1x8xf32>
    %80 = vector.broadcast %79 : vector<1x8xf32> to vector<256x8xf32>
    %81 = arith.subf %75, %80 : vector<256x8xf32>
    %82 = arith.mulf %81, %81 : vector<256x8xf32>
    %cst_80 = arith.constant dense<0.000000e+00> : vector<8xf32>
    %83 = vector.multi_reduction <add>, %82, %cst_80 [0] : vector<256x8xf32> to vector<8xf32>
    %84 = vector.shape_cast %83 : vector<8xf32> to vector<1x8xf32>
    %85 = tpu.concatenate %77, %84 in 0 : vector<1x8xf32>, vector<1x8xf32> -> vector<2x8xf32>
    %86 = vector.shape_cast %85 : vector<2x8xf32> to vector<1x2x8xf32>
    %c0_81 = arith.constant 0 : index
    %c0_82 = arith.constant 0 : index
    %c0_83 = arith.constant 0 : index
    %87 = vector.load %arg6[%c0_81, %c0_82, %c0_83] : memref<1x2x8xf32, #tpu.memory_space<vmem>>, vector<1x2x8xf32>
    tpu.vector_store %arg6[%c0_81, %c0_82, %c0_83], %86 {strides = array<i32>} : memref<1x2x8xf32, #tpu.memory_space<vmem>>, vector<1x2x8xf32>,
    %88 = vector.shape_cast %75 : vector<256x8xf32> to vector<1x256x8xf32>
    %c0_84 = arith.constant 0 : index
    %c0_85 = arith.constant 0 : index
    %c0_86 = arith.constant 0 : index
    %89 = vector.load %arg5[%c0_84, %c0_85, %c0_86] : memref<1x256x8xf32, #tpu.memory_space<vmem>>, vector<1x256x8xf32>
    tpu.vector_store %arg5[%c0_84, %c0_85, %c0_86], %88 {strides = array<i32>} : memref<1x256x8xf32, #tpu.memory_space<vmem>>, vector<1x256x8xf32>,
    return
  }
  func.func @transform_0(%arg0: i32) -> (i32, i32, i32) {
    %c0_i32 = arith.constant 0 : i32
    %c0_i32_0 = arith.constant 0 : i32
    %c0_i32_1 = arith.constant 0 : i32
    return %arg0, %c0_i32, %c0_i32_0 : i32, i32, i32
  }
  func.func @transform_1(%arg0: i32) -> (i32, i32) {
    %c0_i32 = arith.constant 0 : i32
    %c0_i32_0 = arith.constant 0 : i32
    %c0_i32_1 = arith.constant 0 : i32
    return %c0_i32, %c0_i32_0 : i32, i32
  }
  func.func @transform_2(%arg0: i32) -> (i32, i32) {
    %c0_i32 = arith.constant 0 : i32
    %c0_i32_0 = arith.constant 0 : i32
    %c0_i32_1 = arith.constant 0 : i32
    return %c0_i32, %c0_i32_0 : i32, i32
  }
  func.func @transform_3(%arg0: i32) -> (i32, i32, i32) {
    %c0_i32 = arith.constant 0 : i32
    %c0_i32_0 = arith.constant 0 : i32
    %c0_i32_1 = arith.constant 0 : i32
    %c0_i32_2 = arith.constant 0 : i32
    return %c0_i32, %c0_i32_0, %c0_i32_1 : i32, i32, i32
  }
  func.func @transform_4(%arg0: i32) -> (i32, i32, i32) {
    %c0_i32 = arith.constant 0 : i32
    %c0_i32_0 = arith.constant 0 : i32
    %c0_i32_1 = arith.constant 0 : i32
    return %arg0, %c0_i32, %c0_i32_0 : i32, i32, i32
  }
  func.func @transform_5(%arg0: i32) -> (i32, i32, i32) {
    %c0_i32 = arith.constant 0 : i32
    %c0_i32_0 = arith.constant 0 : i32
    %c0_i32_1 = arith.constant 0 : i32
    return %arg0, %c0_i32, %c0_i32_0 : i32, i32, i32
  }
}

module attributes {stable_mosaic.version = 11 : i64} {
  func.func @_bn_relu_kernel(%arg0: i32, %arg1: memref<1x256x8xf32, #tpu.memory_space<vmem>>, %arg2: memref<1x8xf32, #tpu.memory_space<vmem>>, %arg3: memref<1x8xf32, #tpu.memory_space<vmem>>, %arg4: memref<1x256x8xf32, #tpu.memory_space<vmem>>) attributes {dimension_semantics = [#tpu.dimension_semantics<parallel>], iteration_bounds = array<i64: 2>, scalar_prefetch = 0 : i64, scratch_operands = 0 : i64, tpu.core_type = #tpu.core_type<tc>, window_params = [{transform_indices = @transform_0, window_bounds = array<i64: 1, 256, 8>}, {pipeline_mode = #tpu.pipeline_mode<synchronous>, transform_indices = @transform_1, window_bounds = array<i64: 1, 8>}, {pipeline_mode = #tpu.pipeline_mode<synchronous>, transform_indices = @transform_2, window_bounds = array<i64: 1, 8>}, {transform_indices = @transform_3, window_bounds = array<i64: 1, 256, 8>}]} {
    %c0 = arith.constant 0 : index
    %c0_0 = arith.constant 0 : index
    %0 = vector.load %arg2[%c0, %c0_0] : memref<1x8xf32, #tpu.memory_space<vmem>>, vector<1x8xf32>
    %1 = vector.shape_cast %0 : vector<1x8xf32> to vector<1x1x8xf32>
    %c0_1 = arith.constant 0 : index
    %c0_2 = arith.constant 0 : index
    %2 = vector.load %arg3[%c0_1, %c0_2] : memref<1x8xf32, #tpu.memory_space<vmem>>, vector<1x8xf32>
    %3 = vector.shape_cast %2 : vector<1x8xf32> to vector<1x1x8xf32>
    %c0_3 = arith.constant 0 : index
    %c0_4 = arith.constant 0 : index
    %c0_5 = arith.constant 0 : index
    %4 = vector.load %arg1[%c0_3, %c0_4, %c0_5] : memref<1x256x8xf32, #tpu.memory_space<vmem>>, vector<1x256x8xf32>
    %5 = vector.broadcast %1 : vector<1x1x8xf32> to vector<1x256x8xf32>
    %6 = arith.mulf %4, %5 : vector<1x256x8xf32>
    %7 = vector.broadcast %3 : vector<1x1x8xf32> to vector<1x256x8xf32>
    %8 = arith.addf %6, %7 : vector<1x256x8xf32>
    %cst = arith.constant 0.000000e+00 : f32
    %9 = vector.broadcast %cst : f32 to vector<1x256x8xf32>
    %10 = arith.maximumf %8, %9 : vector<1x256x8xf32>
    %c0_6 = arith.constant 0 : index
    %c0_7 = arith.constant 0 : index
    %c0_8 = arith.constant 0 : index
    %11 = vector.load %arg4[%c0_6, %c0_7, %c0_8] : memref<1x256x8xf32, #tpu.memory_space<vmem>>, vector<1x256x8xf32>
    tpu.vector_store %arg4[%c0_6, %c0_7, %c0_8], %10 {strides = array<i32>} : memref<1x256x8xf32, #tpu.memory_space<vmem>>, vector<1x256x8xf32>,
    return
  }
  func.func @transform_0(%arg0: i32) -> (i32, i32, i32) {
    %c0_i32 = arith.constant 0 : i32
    %c0_i32_0 = arith.constant 0 : i32
    %c0_i32_1 = arith.constant 0 : i32
    return %arg0, %c0_i32, %c0_i32_0 : i32, i32, i32
  }
  func.func @transform_1(%arg0: i32) -> (i32, i32) {
    %c0_i32 = arith.constant 0 : i32
    %c0_i32_0 = arith.constant 0 : i32
    %c0_i32_1 = arith.constant 0 : i32
    return %c0_i32, %c0_i32_0 : i32, i32
  }
  func.func @transform_2(%arg0: i32) -> (i32, i32) {
    %c0_i32 = arith.constant 0 : i32
    %c0_i32_0 = arith.constant 0 : i32
    %c0_i32_1 = arith.constant 0 : i32
    return %c0_i32, %c0_i32_0 : i32, i32
  }
  func.func @transform_3(%arg0: i32) -> (i32, i32, i32) {
    %c0_i32 = arith.constant 0 : i32
    %c0_i32_0 = arith.constant 0 : i32
    %c0_i32_1 = arith.constant 0 : i32
    return %arg0, %c0_i32, %c0_i32_0 : i32, i32, i32
  }
}

</mosaic_0001>

<llo_original>
// kernel: double_conv.5
$region0: #{double_conv.5}
  #allocation0 [shape = 'u32[]', space=smem, size = 0x4, offset = 0x4, fixed_abs, tag = 'smem constant byte address 0x4 - core index']
  #allocation1 [shape = 'u32[144,128]{1,0:T(1,128)}', space=vmem, size = 0x12000, scoped, tag = 'internal scratch']
  %s0 = inlined_call_operand.vmem [shape: f32[2,256,8], index: 0, kind: input, shape index: {}]
  %s1 = inlined_call_operand.vmem [shape: f32[1,8], index: 1, kind: input, shape index: {}]
  %s2 = inlined_call_operand.vmem [shape: f32[1,8], index: 2, kind: input, shape index: {}]
  %s3 = inlined_call_operand.vmem [shape: f32[2,256,8], index: 3, kind: output, shape index: {}]
  %s4 = sld [smem:[#allocation0]]
  $region45: #{double_conv.5} parent=0
    _
  %s6 = ssub.s32 1, %s4
  %s7 = scalar_select 0, %s6, %s4
  loop: start=0, step=1, limit=4
  $region2: #{double_conv.5} parent=0 // loop_pre_header
    _
  $region3: #{double_conv.5} parent=0 // loop_header
    %s9 = sphi 0, %s13
    %p10 = scmp.ge.s32.totalorder %s9, 4
    %s19 = sphi 0, %s21
    %s22 = sphi 0, %s19
    %s23 = sphi 0, %s22
    %s39 = sphi 0, %s23
    %s43 = sphi 0, %s43
    %s45 = sphi 0, %s43
    %s46 = sphi 0, %s45
    %s60 = sphi 0, %s46
    %s64 = sphi 0, %s64
    %s66 = sphi 0, %s64
    %s67 = sphi 0, %s66
    %s81 = sphi 0, %s67
    %s87 = sphi 0, %s89
    %s90 = sphi 0, %s87
    %s91 = sphi 0, %s90
    %s107 = sphi 0, %s91
  $region4: #{double_conv.5} parent=0 // loop_header_branch
    %12 = sbr.rel (%p10) target = $region8
  $region5: #{double_conv.5} parent=0 // loop_body
    %s14 = ssub.s32 %s9, 1
    %s15 = ssub.s32 %s9, 2
    %s16 = sadd.s32 %s9, 1
    %s17 = ssub.s32 %s9, %s16
    %p18 = scmp.eq.s32.totalorder %s17, 0
    %s20 = sadd.s32 %s19, 1
    %s21 = scalar_select %p18, %s19, %s20
    %p24 = pneg %p18
    %p25 = scmp.eq.s32.totalorder %s9, 1
    %p26 = por %p24, %p25
    %p27 = scmp.ne.s32.totalorder %s19, %s22
    %p28 = scmp.eq.s32.totalorder %s9, 0
    %p29 = por %p27, %p28
    %p30 = scmp.ne.s32.totalorder %s19, %s22
    %p31 = scmp.eq.s32.totalorder %s14, 1
    %p32 = por %p30, %p31
    %p33 = scmp.ne.s32.totalorder %s22, %s23
    %p34 = scmp.eq.s32.totalorder %s14, 0
    %p35 = por %p33, %p34
    %p36 = scmp.ne.s32.totalorder %s22, %s23
    %p37 = scmp.eq.s32.totalorder %s15, 1
    %p38 = por %p36, %p37
    %p40 = scmp.ne.s32.totalorder %s23, %s39
    %p41 = scmp.eq.s32.totalorder %s15, 0
    %p42 = por %p40, %p41
    %s44 = sadd.s32 %s43, 1
    %p47 = scmp.eq.s32.totalorder %s9, 1
    %p48 = scmp.ne.s32.totalorder %s43, %s45
    %p49 = scmp.eq.s32.totalorder %s9, 0
    %p50 = por %p48, %p49
    %p51 = scmp.ne.s32.totalorder %s43, %s45
    %p52 = scmp.eq.s32.totalorder %s14, 1
    %p53 = por %p51, %p52
    %p54 = scmp.ne.s32.totalorder %s45, %s46
    %p55 = scmp.eq.s32.totalorder %s14, 0
    %p56 = por %p54, %p55
    %p57 = scmp.ne.s32.totalorder %s45, %s46
    %p58 = scmp.eq.s32.totalorder %s15, 1
    %p59 = por %p57, %p58
    %p61 = scmp.ne.s32.totalorder %s46, %s60
    %p62 = scmp.eq.s32.totalorder %s15, 0
    %p63 = por %p61, %p62
    %s65 = sadd.s32 %s64, 1
    %p68 = scmp.eq.s32.totalorder %s9, 1
    %p69 = scmp.ne.s32.totalorder %s64, %s66
    %p70 = scmp.eq.s32.totalorder %s9, 0
    %p71 = por %p69, %p70
    %p72 = scmp.ne.s32.totalorder %s64, %s66
    %p73 = scmp.eq.s32.totalorder %s14, 1
    %p74 = por %p72, %p73
    %p75 = scmp.ne.s32.totalorder %s66, %s67
    %p76 = scmp.eq.s32.totalorder %s14, 0
    %p77 = por %p75, %p76
    %p78 = scmp.ne.s32.totalorder %s66, %s67
    %p79 = scmp.eq.s32.totalorder %s15, 1
    %p80 = por %p78, %p79
    %p82 = scmp.ne.s32.totalorder %s67, %s81
    %p83 = scmp.eq.s32.totalorder %s15, 0
    %p84 = por %p82, %p83
    %s85 = ssub.s32 %s9, %s16
    %p86 = scmp.eq.s32.totalorder %s85, 0
    %s88 = sadd.s32 %s87, 1
    %s89 = scalar_select %p86, %s87, %s88
    %p92 = pneg %p86
    %p93 = scmp.eq.s32.totalorder %s9, 1
    %p94 = por %p92, %p93
    %p95 = scmp.ne.s32.totalorder %s87, %s90
    %p96 = scmp.eq.s32.totalorder %s9, 0
    %p97 = por %p95, %p96
    %p98 = scmp.ne.s32.totalorder %s87, %s90
    %p99 = scmp.eq.s32.totalorder %s14, 1
    %p100 = por %p98, %p99
    %p101 = scmp.ne.s32.totalorder %s90, %s91
    %p102 = scmp.eq.s32.totalorder %s14, 0
    %p103 = por %p101, %p102
    %p104 = scmp.ne.s32.totalorder %s90, %s91
    %p105 = scmp.eq.s32.totalorder %s15, 1
    %p106 = por %p104, %p105
    %p108 = scmp.ne.s32.totalorder %s91, %s107
    %p109 = scmp.eq.s32.totalorder %s15, 0
    %p110 = por %p108, %p109
    %p111 = scmp.le.s32.totalorder 1, %s9
    %p112 = scmp.lt.s32.totalorder %s9, 3
    %p113 = pnand %p111, %p112
    %p114 = pneg %p113
    // Predicated region
    $region9: #{double_conv.5} parent=5 // pred_check
      _
    $region10: #{double_conv.5} parent=5 // pred_check_branch
      %116 = sbr.rel (%p113) target = $region12
    $region11: #{double_conv.5} parent=5 // pred_region
      %s117 = ssub.s32 %s9, 1
      // Predicated region
      $region13: #{double_conv.5} parent=11 // pred_check
        %p118 = pneg %p56
      $region14: #{double_conv.5} parent=11 // pred_check_branch
        %120 = sbr.rel (%p118) target = $region16
      $region15: #{double_conv.5} parent=11 // pred_region
        _
      $region16: #{double_conv.5} parent=11 // pred_fallthru
        _
      // Predicated region
      $region17: #{double_conv.5} parent=11 // pred_check
        %p121 = pneg %p77
      $region18: #{double_conv.5} parent=11 // pred_check_branch
        %123 = sbr.rel (%p121) target = $region20
      $region19: #{double_conv.5} parent=11 // pred_region
        _
      $region20: #{double_conv.5} parent=11 // pred_fallthru
        _
    $region12: #{double_conv.5} parent=5 // pred_fallthru
      _
    %p124 = scmp.lt.s32.totalorder %s9, 2
    // Predicated region
    $region21: #{double_conv.5} parent=5 // pred_check
      %p125 = pneg %p124
    $region22: #{double_conv.5} parent=5 // pred_check_branch
      %127 = sbr.rel (%p125) target = $region24
    $region23: #{double_conv.5} parent=5 // pred_region
      // Predicated region
      $region25: #{double_conv.5} parent=23 // pred_check
        %p128 = pneg %p29
      $region26: #{double_conv.5} parent=23 // pred_check_branch
        %130 = sbr.rel (%p128) target = $region28
      $region27: #{double_conv.5} parent=23 // pred_region
        %p131 = scmp.lt.s32.totalorder %s9, 1
        %s132 = scalar_select %p131, %s9, 1
        %s133 = smul.addr %s132, 32
        %s134 = smul.addr %s133, 8
        %s135 = scalar_lea.vmem %s0, %s134
      $region28: #{double_conv.5} parent=23 // pred_fallthru
        _
    $region24: #{double_conv.5} parent=5 // pred_fallthru
      _
    %p136 = scmp.le.s32.totalorder 1, %s9
    %p137 = scmp.lt.s32.totalorder %s9, 3
    %p138 = pnand %p136, %p137
    %p139 = pneg %p138
    // Predicated region
    $region29: #{double_conv.5} parent=5 // pred_check
      _
    $region30: #{double_conv.5} parent=5 // pred_check_branch
      %141 = sbr.rel (%p138) target = $region32
    $region31: #{double_conv.5} parent=5 // pred_region
      %s142 = ssub.s32 %s9, 1
      %p143 = scmp.lt.s32.totalorder %s14, 1
      %s144 = scalar_select %p143, %s14, 1
      %s145 = smul.addr %s144, 32
      %s146 = smul.addr %s145, 8
      %s147 = scalar_lea.vmem %s0, %s146
      %p148 = pneg %p35
      %p149 = pneg %p32
      %p150 = pneg %p56
      %p151 = pneg %p53
      %p152 = pneg %p77
      %p153 = pneg %p74
      %p154 = pneg %p103
      %p155 = pneg %p100
      %p156 = scmp.lt.s32.totalorder %s14, 1
      %s157 = scalar_select %p156, %s14, 1
      %s158 = smul.addr %s157, 32
      %s159 = smul.addr %s158, 8
      %s160 = scalar_lea.vmem %s3, %s159
      %p161 = scmp.lt.s32.totalorder %s14, 1
      %s162 = scalar_select %p161, %s14, 1
      %s163 = smul.addr %s162, 32
      %s164 = smul.addr %s163, 8
      %s165 = scalar_lea.vmem %s0, %s164
      %p166 = scmp.lt.s32.totalorder %s14, 1
      %s167 = scalar_select %p166, %s14, 1
      %s168 = smul.addr %s167, 32
      %s169 = smul.addr %s168, 8
      %s170 = scalar_lea.vmem %s3, %s169
      %v171 = vld [vmem:[%s1] sm:$0x1]
      %v172 = vld [vmem:[%s2] sm:$0x1]
      %v173 = vld [vmem:[%s165] sm:$0xff]
      %v174 = vld [vmem:[%s165 + $0x8] sm:$0xff]
      %v175 = vld [vmem:[%s165 + $0x10] sm:$0xff]
      %v176 = vld [vmem:[%s165 + $0x18] sm:$0xff]
      %v177 = vld [vmem:[%s165 + $0x20] sm:$0xff]
      %v178 = vld [vmem:[%s165 + $0x28] sm:$0xff]
      %v179 = vld [vmem:[%s165 + $0x30] sm:$0xff]
      %v180 = vld [vmem:[%s165 + $0x38] sm:$0xff]
      %v181 = vld [vmem:[%s165 + $0x40] sm:$0xff]
      %v182 = vld [vmem:[%s165 + $0x48] sm:$0xff]
      %v183 = vld [vmem:[%s165 + $0x50] sm:$0xff]
      %v184 = vld [vmem:[%s165 + $0x58] sm:$0xff]
      %v185 = vld [vmem:[%s165 + $0x60] sm:$0xff]
      %v186 = vld [vmem:[%s165 + $0x68] sm:$0xff]
      %v187 = vld [vmem:[%s165 + $0x70] sm:$0xff]
      %v188 = vld [vmem:[%s165 + $0x78] sm:$0xff]
      %v189 = vld [vmem:[%s165 + $0x80] sm:$0xff]
      %v190 = vld [vmem:[%s165 + $0x88] sm:$0xff]
      %v191 = vld [vmem:[%s165 + $0x90] sm:$0xff]
      %v192 = vld [vmem:[%s165 + $0x98] sm:$0xff]
      %v193 = vld [vmem:[%s165 + $0xa0] sm:$0xff]
      %v194 = vld [vmem:[%s165 + $0xa8] sm:$0xff]
      %v195 = vld [vmem:[%s165 + $0xb0] sm:$0xff]
      %v196 = vld [vmem:[%s165 + $0xb8] sm:$0xff]
      %v197 = vld [vmem:[%s165 + $0xc0] sm:$0xff]
      %v198 = vld [vmem:[%s165 + $0xc8] sm:$0xff]
      %v199 = vld [vmem:[%s165 + $0xd0] sm:$0xff]
      %v200 = vld [vmem:[%s165 + $0xd8] sm:$0xff]
      %v201 = vld [vmem:[%s165 + $0xe0] sm:$0xff]
      %v202 = vld [vmem:[%s165 + $0xe8] sm:$0xff]
      %v203 = vld [vmem:[%s165 + $0xf0] sm:$0xff]
      %v204 = vld [vmem:[%s165 + $0xf8] sm:$0xff]
      %v206 = vlaneseq
      %v207 = vshrl.u32 %v206, 7
      %v208 = vsub.s32 0, %v207
      %v209 = vrot.slane %v171, %v208
      %v211 = vmul.f32 %v173, %v209
      %v212 = vmul.f32 %v174, %v209
      %v213 = vmul.f32 %v175, %v209
      %v214 = vmul.f32 %v176, %v209
      %v215 = vmul.f32 %v177, %v209
      %v216 = vmul.f32 %v178, %v209
      %v217 = vmul.f32 %v179, %v209
      %v218 = vmul.f32 %v180, %v209
      %v219 = vmul.f32 %v181, %v209
      %v220 = vmul.f32 %v182, %v209
      %v221 = vmul.f32 %v183, %v209
      %v222 = vmul.f32 %v184, %v209
      %v223 = vmul.f32 %v185, %v209
      %v224 = vmul.f32 %v186, %v209
      %v225 = vmul.f32 %v187, %v209
      %v226 = vmul.f32 %v188, %v209
      %v227 = vmul.f32 %v189, %v209
      %v228 = vmul.f32 %v190, %v209
      %v229 = vmul.f32 %v191, %v209
      %v230 = vmul.f32 %v192, %v209
      %v231 = vmul.f32 %v193, %v209
      %v232 = vmul.f32 %v194, %v209
      %v233 = vmul.f32 %v195, %v209
      %v234 = vmul.f32 %v196, %v209
      %v235 = vmul.f32 %v197, %v209
      %v236 = vmul.f32 %v198, %v209
      %v237 = vmul.f32 %v199, %v209
      %v238 = vmul.f32 %v200, %v209
      %v239 = vmul.f32 %v201, %v209
      %v240 = vmul.f32 %v202, %v209
      %v241 = vmul.f32 %v203, %v209
      %v242 = vmul.f32 %v204, %v209
      %v244 = vlaneseq
      %v245 = vshrl.u32 %v244, 7
      %v246 = vsub.s32 0, %v245
      %v247 = vrot.slane %v172, %v246
      %v249 = vadd.f32 %v211, %v247
      %v250 = vadd.f32 %v212, %v247
      %v251 = vadd.f32 %v213, %v247
      %v252 = vadd.f32 %v214, %v247
      %v253 = vadd.f32 %v215, %v247
      %v254 = vadd.f32 %v216, %v247
      %v255 = vadd.f32 %v217, %v247
      %v256 = vadd.f32 %v218, %v247
      %v257 = vadd.f32 %v219, %v247
      %v258 = vadd.f32 %v220, %v247
      %v259 = vadd.f32 %v221, %v247
      %v260 = vadd.f32 %v222, %v247
      %v261 = vadd.f32 %v223, %v247
      %v262 = vadd.f32 %v224, %v247
      %v263 = vadd.f32 %v225, %v247
      %v264 = vadd.f32 %v226, %v247
      %v265 = vadd.f32 %v227, %v247
      %v266 = vadd.f32 %v228, %v247
      %v267 = vadd.f32 %v229, %v247
      %v268 = vadd.f32 %v230, %v247
      %v269 = vadd.f32 %v231, %v247
      %v270 = vadd.f32 %v232, %v247
      %v271 = vadd.f32 %v233, %v247
      %v272 = vadd.f32 %v234, %v247
      %v273 = vadd.f32 %v235, %v247
      %v274 = vadd.f32 %v236, %v247
      %v275 = vadd.f32 %v237, %v247
      %v276 = vadd.f32 %v238, %v247
      %v277 = vadd.f32 %v239, %v247
      %v278 = vadd.f32 %v240, %v247
      %v279 = vadd.f32 %v241, %v247
      %v280 = vadd.f32 %v242, %v247
      %v281 = vmax.f32 %v249, 0.0
      %v282 = vmax.f32 %v250, 0.0
      %v283 = vmax.f32 %v251, 0.0
      %v284 = vmax.f32 %v252, 0.0
      %v285 = vmax.f32 %v253, 0.0
      %v286 = vmax.f32 %v254, 0.0
      %v287 = vmax.f32 %v255, 0.0
      %v288 = vmax.f32 %v256, 0.0
      %v289 = vmax.f32 %v257, 0.0
      %v290 = vmax.f32 %v258, 0.0
      %v291 = vmax.f32 %v259, 0.0
      %v292 = vmax.f32 %v260, 0.0
      %v293 = vmax.f32 %v261, 0.0
      %v294 = vmax.f32 %v262, 0.0
      %v295 = vmax.f32 %v263, 0.0
      %v296 = vmax.f32 %v264, 0.0
      %v297 = vmax.f32 %v265, 0.0
      %v298 = vmax.f32 %v266, 0.0
      %v299 = vmax.f32 %v267, 0.0
      %v300 = vmax.f32 %v268, 0.0
      %v301 = vmax.f32 %v269, 0.0
      %v302 = vmax.f32 %v270, 0.0
      %v303 = vmax.f32 %v271, 0.0
      %v304 = vmax.f32 %v272, 0.0
      %v305 = vmax.f32 %v273, 0.0
      %v306 = vmax.f32 %v274, 0.0
      %v307 = vmax.f32 %v275, 0.0
      %v308 = vmax.f32 %v276, 0.0
      %v309 = vmax.f32 %v277, 0.0
      %v310 = vmax.f32 %v278, 0.0
      %v311 = vmax.f32 %v279, 0.0
      %v312 = vmax.f32 %v280, 0.0
      %vm313 = vcmask 64512
      %314 = vst.msk [vmem:[%s170] sm:$0xff] %vm313, %v281
      %315 = vst.msk [vmem:[%s170 + $0x8] sm:$0xff] %vm313, %v282
      %316 = vst.msk [vmem:[%s170 + $0x10] sm:$0xff] %vm313, %v283
      %317 = vst.msk [vmem:[%s170 + $0x18] sm:$0xff] %vm313, %v284
      %318 = vst.msk [vmem:[%s170 + $0x20] sm:$0xff] %vm313, %v285
      %319 = vst.msk [vmem:[%s170 + $0x28] sm:$0xff] %vm313, %v286
      %320 = vst.msk [vmem:[%s170 + $0x30] sm:$0xff] %vm313, %v287
      %321 = vst.msk [vmem:[%s170 + $0x38] sm:$0xff] %vm313, %v288
      %322 = vst.msk [vmem:[%s170 + $0x40] sm:$0xff] %vm313, %v289
      %323 = vst.msk [vmem:[%s170 + $0x48] sm:$0xff] %vm313, %v290
      %324 = vst.msk [vmem:[%s170 + $0x50] sm:$0xff] %vm313, %v291
      %325 = vst.msk [vmem:[%s170 + $0x58] sm:$0xff] %vm313, %v292
      %326 = vst.msk [vmem:[%s170 + $0x60] sm:$0xff] %vm313, %v293
      %327 = vst.msk [vmem:[%s170 + $0x68] sm:$0xff] %vm313, %v294
      %328 = vst.msk [vmem:[%s170 + $0x70] sm:$0xff] %vm313, %v295
      %329 = vst.msk [vmem:[%s170 + $0x78] sm:$0xff] %vm313, %v296
      %330 = vst.msk [vmem:[%s170 + $0x80] sm:$0xff] %vm313, %v297
      %331 = vst.msk [vmem:[%s170 + $0x88] sm:$0xff] %vm313, %v298
      %332 = vst.msk [vmem:[%s170 + $0x90] sm:$0xff] %vm313, %v299
      %333 = vst.msk [vmem:[%s170 + $0x98] sm:$0xff] %vm313, %v300
      %334 = vst.msk [vmem:[%s170 + $0xa0] sm:$0xff] %vm313, %v301
      %335 = vst.msk [vmem:[%s170 + $0xa8] sm:$0xff] %vm313, %v302
      %336 = vst.msk [vmem:[%s170 + $0xb0] sm:$0xff] %vm313, %v303
      %337 = vst.msk [vmem:[%s170 + $0xb8] sm:$0xff] %vm313, %v304
      %338 = vst.msk [vmem:[%s170 + $0xc0] sm:$0xff] %vm313, %v305
      %339 = vst.msk [vmem:[%s170 + $0xc8] sm:$0xff] %vm313, %v306
      %340 = vst.msk [vmem:[%s170 + $0xd0] sm:$0xff] %vm313, %v307
      %341 = vst.msk [vmem:[%s170 + $0xd8] sm:$0xff] %vm313, %v308
      %342 = vst.msk [vmem:[%s170 + $0xe0] sm:$0xff] %vm313, %v309
      %343 = vst.msk [vmem:[%s170 + $0xe8] sm:$0xff] %vm313, %v310
      %344 = vst.msk [vmem:[%s170 + $0xf0] sm:$0xff] %vm313, %v311
      %345 = vst.msk [vmem:[%s170 + $0xf8] sm:$0xff] %vm313, %v312
      %p346 = scmp.lt.s32.totalorder %s14, 1
      %s347 = scalar_select %p346, %s14, 1
      %s348 = smul.addr %s347, 32
      %s349 = smul.addr %s348, 8
      %s350 = scalar_lea.vmem %s3, %s349
      // Predicated region
      $region33: #{double_conv.5} parent=31 // pred_check
        %p351 = pneg %p100
      $region34: #{double_conv.5} parent=31 // pred_check_branch
        %353 = sbr.rel (%p351) target = $region36
      $region35: #{double_conv.5} parent=31 // pred_region
        _
      $region36: #{double_conv.5} parent=31 // pred_fallthru
        _
    $region32: #{double_conv.5} parent=5 // pred_fallthru
      _
    %p354 = scmp.le.s32.totalorder 2, %s9
    // Predicated region
    $region37: #{double_conv.5} parent=5 // pred_check
      %p355 = pneg %p354
    $region38: #{double_conv.5} parent=5 // pred_check_branch
      %357 = sbr.rel (%p355) target = $region40
    $region39: #{double_conv.5} parent=5 // pred_region
      %s358 = ssub.s32 %s9, 2
      // Predicated region
      $region41: #{double_conv.5} parent=39 // pred_check
        %p359 = pneg %p106
      $region42: #{double_conv.5} parent=39 // pred_check_branch
        %361 = sbr.rel (%p359) target = $region44
      $region43: #{double_conv.5} parent=39 // pred_region
        %p362 = scmp.lt.s32.totalorder %s15, 1
        %s363 = scalar_select %p362, %s15, 1
        %s364 = smul.addr %s363, 32
        %s365 = smul.addr %s364, 8
        %s366 = scalar_lea.vmem %s3, %s365
      $region44: #{double_conv.5} parent=39 // pred_fallthru
        _
    $region40: #{double_conv.5} parent=5 // pred_fallthru
      _
  $region6: #{double_conv.5} parent=0 // loop_footer
    %s13 = sadd.s32 1, %s9
  $region7: #{double_conv.5} parent=0 // loop_footer_branch
    %8 = sbr.rel target = $region3
  $region8: #{double_conv.5} parent=0 // loop_exit
    _

// kernel: double_conv.3
$region0: #{double_conv.3}
  #allocation0 [shape = 'u32[]', space=smem, size = 0x4, offset = 0x4, fixed_abs, tag = 'smem constant byte address 0x4 - core index']
  #allocation1 [shape = 'u32[144,128]{1,0:T(1,128)}', space=vmem, size = 0x12000, scoped, tag = 'internal scratch']
  #allocation2 [shape = 'bf16[18,18,4]{2,1,0:T(8,128)(2,1)}', space=vmem, size = 0x1b000, scoped, tag = 'scratch operand']
  %s0 = inlined_call_operand.vmem [shape: f32[2,256,4], index: 0, kind: input, shape index: {}]
  %s1 = inlined_call_operand.vmem [shape: f32[1,4], index: 1, kind: input, shape index: {}, may-alias: {1,2}]
  %s2 = inlined_call_operand.vmem [shape: f32[1,4], index: 2, kind: input, shape index: {}, may-alias: {1,2}]
  %s3 = inlined_call_operand.vmem [shape: bf16[9,4,8], index: 3, kind: input, shape index: {}]
  %s4 = inlined_call_operand.vmem [shape: f32[2,256,8], index: 4, kind: output, shape index: {0}]
  %s5 = inlined_call_operand.vmem [shape: f32[2,2,8], index: 5, kind: output, shape index: {1}]
  %6 = xla_tuple %s4, %s5
  %s7 = sld [smem:[#allocation0]]
  $region57: #{double_conv.3} parent=0
    _
  %s9 = ssub.s32 1, %s7
  %s10 = scalar_select 0, %s9, %s7
  loop: start=0, step=1, limit=4
  $region2: #{double_conv.3} parent=0 // loop_pre_header
    _
  $region3: #{double_conv.3} parent=0 // loop_header
    %s12 = sphi 0, %s16
    %p13 = scmp.ge.s32.totalorder %s12, 4
    %s22 = sphi 0, %s24
    %s25 = sphi 0, %s22
    %s26 = sphi 0, %s25
    %s42 = sphi 0, %s26
    %s46 = sphi 0, %s46
    %s48 = sphi 0, %s46
    %s49 = sphi 0, %s48
    %s63 = sphi 0, %s49
    %s67 = sphi 0, %s67
    %s69 = sphi 0, %s67
    %s70 = sphi 0, %s69
    %s84 = sphi 0, %s70
    %s88 = sphi 0, %s88
    %s90 = sphi 0, %s88
    %s91 = sphi 0, %s90
    %s105 = sphi 0, %s91
    %s111 = sphi 0, %s113
    %s114 = sphi 0, %s111
    %s115 = sphi 0, %s114
    %s131 = sphi 0, %s115
    %s137 = sphi 0, %s139
    %s140 = sphi 0, %s137
    %s141 = sphi 0, %s140
    %s157 = sphi 0, %s141
  $region4: #{double_conv.3} parent=0 // loop_header_branch
    %15 = sbr.rel (%p13) target = $region8
  $region5: #{double_conv.3} parent=0 // loop_body
    %s17 = ssub.s32 %s12, 1
    %s18 = ssub.s32 %s12, 2
    %s19 = sadd.s32 %s12, 1
    %s20 = ssub.s32 %s12, %s19
    %p21 = scmp.eq.s32.totalorder %s20, 0
    %s23 = sadd.s32 %s22, 1
    %s24 = scalar_select %p21, %s22, %s23
    %p27 = pneg %p21
    %p28 = scmp.eq.s32.totalorder %s12, 1
    %p29 = por %p27, %p28
    %p30 = scmp.ne.s32.totalorder %s22, %s25
    %p31 = scmp.eq.s32.totalorder %s12, 0
    %p32 = por %p30, %p31
    %p33 = scmp.ne.s32.totalorder %s22, %s25
    %p34 = scmp.eq.s32.totalorder %s17, 1
    %p35 = por %p33, %p34
    %p36 = scmp.ne.s32.totalorder %s25, %s26
    %p37 = scmp.eq.s32.totalorder %s17, 0
    %p38 = por %p36, %p37
    %p39 = scmp.ne.s32.totalorder %s25, %s26
    %p40 = scmp.eq.s32.totalorder %s18, 1
    %p41 = por %p39, %p40
    %p43 = scmp.ne.s32.totalorder %s26, %s42
    %p44 = scmp.eq.s32.totalorder %s18, 0
    %p45 = por %p43, %p44
    %s47 = sadd.s32 %s46, 1
    %p50 = scmp.eq.s32.totalorder %s12, 1
    %p51 = scmp.ne.s32.totalorder %s46, %s48
    %p52 = scmp.eq.s32.totalorder %s12, 0
    %p53 = por %p51, %p52
    %p54 = scmp.ne.s32.totalorder %s46, %s48
    %p55 = scmp.eq.s32.totalorder %s17, 1
    %p56 = por %p54, %p55
    %p57 = scmp.ne.s32.totalorder %s48, %s49
    %p58 = scmp.eq.s32.totalorder %s17, 0
    %p59 = por %p57, %p58
    %p60 = scmp.ne.s32.totalorder %s48, %s49
    %p61 = scmp.eq.s32.totalorder %s18, 1
    %p62 = por %p60, %p61
    %p64 = scmp.ne.s32.totalorder %s49, %s63
    %p65 = scmp.eq.s32.totalorder %s18, 0
    %p66 = por %p64, %p65
    %s68 = sadd.s32 %s67, 1
    %p71 = scmp.eq.s32.totalorder %s12, 1
    %p72 = scmp.ne.s32.totalorder %s67, %s69
    %p73 = scmp.eq.s32.totalorder %s12, 0
    %p74 = por %p72, %p73
    %p75 = scmp.ne.s32.totalorder %s67, %s69
    %p76 = scmp.eq.s32.totalorder %s17, 1
    %p77 = por %p75, %p76
    %p78 = scmp.ne.s32.totalorder %s69, %s70
    %p79 = scmp.eq.s32.totalorder %s17, 0
    %p80 = por %p78, %p79
    %p81 = scmp.ne.s32.totalorder %s69, %s70
    %p82 = scmp.eq.s32.totalorder %s18, 1
    %p83 = por %p81, %p82
    %p85 = scmp.ne.s32.totalorder %s70, %s84
    %p86 = scmp.eq.s32.totalorder %s18, 0
    %p87 = por %p85, %p86
    %s89 = sadd.s32 %s88, 1
    %p92 = scmp.eq.s32.totalorder %s12, 1
    %p93 = scmp.ne.s32.totalorder %s88, %s90
    %p94 = scmp.eq.s32.totalorder %s12, 0
    %p95 = por %p93, %p94
    %p96 = scmp.ne.s32.totalorder %s88, %s90
    %p97 = scmp.eq.s32.totalorder %s17, 1
    %p98 = por %p96, %p97
    %p99 = scmp.ne.s32.totalorder %s90, %s91
    %p100 = scmp.eq.s32.totalorder %s17, 0
    %p101 = por %p99, %p100
    %p102 = scmp.ne.s32.totalorder %s90, %s91
    %p103 = scmp.eq.s32.totalorder %s18, 1
    %p104 = por %p102, %p103
    %p106 = scmp.ne.s32.totalorder %s91, %s105
    %p107 = scmp.eq.s32.totalorder %s18, 0
    %p108 = por %p106, %p107
    %s109 = ssub.s32 %s12, %s19
    %p110 = scmp.eq.s32.totalorder %s109, 0
    %s112 = sadd.s32 %s111, 1
    %s113 = scalar_select %p110, %s111, %s112
    %p116 = pneg %p110
    %p117 = scmp.eq.s32.totalorder %s12, 1
    %p118 = por %p116, %p117
    %p119 = scmp.ne.s32.totalorder %s111, %s114
    %p120 = scmp.eq.s32.totalorder %s12, 0
    %p121 = por %p119, %p120
    %p122 = scmp.ne.s32.totalorder %s111, %s114
    %p123 = scmp.eq.s32.totalorder %s17, 1
    %p124 = por %p122, %p123
    %p125 = scmp.ne.s32.totalorder %s114, %s115
    %p126 = scmp.eq.s32.totalorder %s17, 0
    %p127 = por %p125, %p126
    %p128 = scmp.ne.s32.totalorder %s114, %s115
    %p129 = scmp.eq.s32.totalorder %s18, 1
    %p130 = por %p128, %p129
    %p132 = scmp.ne.s32.totalorder %s115, %s131
    %p133 = scmp.eq.s32.totalorder %s18, 0
    %p134 = por %p132, %p133
    %s135 = ssub.s32 %s12, %s19
    %p136 = scmp.eq.s32.totalorder %s135, 0
    %s138 = sadd.s32 %s137, 1
    %s139 = scalar_select %p136, %s137, %s138
    %p142 = pneg %p136
    %p143 = scmp.eq.s32.totalorder %s12, 1
    %p144 = por %p142, %p143
    %p145 = scmp.ne.s32.totalorder %s137, %s140
    %p146 = scmp.eq.s32.totalorder %s12, 0
    %p147 = por %p145, %p146
    %p148 = scmp.ne.s32.totalorder %s137, %s140
    %p149 = scmp.eq.s32.totalorder %s17, 1
    %p150 = por %p148, %p149
    %p151 = scmp.ne.s32.totalorder %s140, %s141
    %p152 = scmp.eq.s32.totalorder %s17, 0
    %p153 = por %p151, %p152
    %p154 = scmp.ne.s32.totalorder %s140, %s141
    %p155 = scmp.eq.s32.totalorder %s18, 1
    %p156 = por %p154, %p155
    %p158 = scmp.ne.s32.totalorder %s141, %s157
    %p159 = scmp.eq.s32.totalorder %s18, 0
    %p160 = por %p158, %p159
    %p161 = scmp.le.s32.totalorder 1, %s12
    %p162 = scmp.lt.s32.totalorder %s12, 3
    %p163 = pnand %p161, %p162
    %p164 = pneg %p163
    // Predicated region
    $region9: #{double_conv.3} parent=5 // pred_check
      _
    $region10: #{double_conv.3} parent=5 // pred_check_branch
      %166 = sbr.rel (%p163) target = $region12
    $region11: #{double_conv.3} parent=5 // pred_region
      %s167 = ssub.s32 %s12, 1
      // Predicated region
      $region13: #{double_conv.3} parent=11 // pred_check
        %p168 = pneg %p59
      $region14: #{double_conv.3} parent=11 // pred_check_branch
        %170 = sbr.rel (%p168) target = $region16
      $region15: #{double_conv.3} parent=11 // pred_region
        _
      $region16: #{double_conv.3} parent=11 // pred_fallthru
        _
      // Predicated region
      $region17: #{double_conv.3} parent=11 // pred_check
        %p171 = pneg %p80
      $region18: #{double_conv.3} parent=11 // pred_check_branch
        %173 = sbr.rel (%p171) target = $region20
      $region19: #{double_conv.3} parent=11 // pred_region
        _
      $region20: #{double_conv.3} parent=11 // pred_fallthru
        _
      // Predicated region
      $region21: #{double_conv.3} parent=11 // pred_check
        %p174 = pneg %p101
      $region22: #{double_conv.3} parent=11 // pred_check_branch
        %176 = sbr.rel (%p174) target = $region24
      $region23: #{double_conv.3} parent=11 // pred_region
        _
      $region24: #{double_conv.3} parent=11 // pred_fallthru
        _
    $region12: #{double_conv.3} parent=5 // pred_fallthru
      _
    %p177 = scmp.lt.s32.totalorder %s12, 2
    // Predicated region
    $region25: #{double_conv.3} parent=5 // pred_check
      %p178 = pneg %p177
    $region26: #{double_conv.3} parent=5 // pred_check_branch
      %180 = sbr.rel (%p178) target = $region28
    $region27: #{double_conv.3} parent=5 // pred_region
      // Predicated region
      $region29: #{double_conv.3} parent=27 // pred_check
        %p181 = pneg %p32
      $region30: #{double_conv.3} parent=27 // pred_check_branch
        %183 = sbr.rel (%p181) target = $region32
      $region31: #{double_conv.3} parent=27 // pred_region
        %p184 = scmp.lt.s32.totalorder %s12, 1
        %s185 = scalar_select %p184, %s12, 1
        %s186 = smul.addr %s185, 32
        %s187 = smul.addr %s186, 8
        %s188 = scalar_lea.vmem %s0, %s187
      $region32: #{double_conv.3} parent=27 // pred_fallthru
        _
    $region28: #{double_conv.3} parent=5 // pred_fallthru
      _
    %p189 = scmp.le.s32.totalorder 1, %s12
    %p190 = scmp.lt.s32.totalorder %s12, 3
    %p191 = pnand %p189, %p190
    %p192 = pneg %p191
    // Predicated region
    $region33: #{double_conv.3} parent=5 // pred_check
      _
    $region34: #{double_conv.3} parent=5 // pred_check_branch
      %194 = sbr.rel (%p191) target = $region36
    $region35: #{double_conv.3} parent=5 // pred_region
      %s195 = ssub.s32 %s12, 1
      %p196 = scmp.lt.s32.totalorder %s17, 1
      %s197 = scalar_select %p196, %s17, 1
      %s198 = smul.addr %s197, 32
      %s199 = smul.addr %s198, 8
      %s200 = scalar_lea.vmem %s0, %s199
      %p201 = pneg %p38
      %p202 = pneg %p35
      %p203 = pneg %p59
      %p204 = pneg %p56
      %p205 = pneg %p80
      %p206 = pneg %p77
      %p207 = pneg %p101
      %p208 = pneg %p98
      %p209 = pneg %p127
      %p210 = pneg %p124
      %p211 = scmp.lt.s32.totalorder %s17, 1
      %s212 = scalar_select %p211, %s17, 1
      %s213 = smul.addr %s212, 32
      %s214 = smul.addr %s213, 8
      %s215 = scalar_lea.vmem %s4, %s214
      %p216 = pneg %p153
      %p217 = pneg %p150
      %p218 = scmp.lt.s32.totalorder %s17, 1
      %s219 = scalar_select %p218, %s17, 1
      %s220 = smul.addr %s219, 2
      %s221 = scalar_lea.vmem %s5, %s220
      %p222 = scmp.lt.s32.totalorder %s17, 1
      %s223 = scalar_select %p222, %s17, 1
      %s224 = smul.addr %s223, 32
      %s225 = smul.addr %s224, 8
      %s226 = scalar_lea.vmem %s0, %s225
      %p227 = scmp.lt.s32.totalorder %s17, 1
      %s228 = scalar_select %p227, %s17, 1
      %s229 = smul.addr %s228, 32
      %s230 = smul.addr %s229, 8
      %s231 = scalar_lea.vmem %s4, %s230
      %p232 = scmp.lt.s32.totalorder %s17, 1
      %s233 = scalar_select %p232, %s17, 1
      %s234 = smul.addr %s233, 2
      %s235 = scalar_lea.vmem %s5, %s234
      %v237 = vld [vmem:[%s226] sm:$0xff]
      %v238 = vld [vmem:[%s226 + $0x8] sm:$0xff]
      %v239 = vld [vmem:[%s226 + $0x10] sm:$0xff]
      %v240 = vld [vmem:[%s226 + $0x18] sm:$0xff]
      %v241 = vld [vmem:[%s226 + $0x20] sm:$0xff]
      %v242 = vld [vmem:[%s226 + $0x28] sm:$0xff]
      %v243 = vld [vmem:[%s226 + $0x30] sm:$0xff]
      %v244 = vld [vmem:[%s226 + $0x38] sm:$0xff]
      %v245 = vld [vmem:[%s226 + $0x40] sm:$0xff]
      %v246 = vld [vmem:[%s226 + $0x48] sm:$0xff]
      %v247 = vld [vmem:[%s226 + $0x50] sm:$0xff]
      %v248 = vld [vmem:[%s226 + $0x58] sm:$0xff]
      %v249 = vld [vmem:[%s226 + $0x60] sm:$0xff]
      %v250 = vld [vmem:[%s226 + $0x68] sm:$0xff]
      %v251 = vld [vmem:[%s226 + $0x70] sm:$0xff]
      %v252 = vld [vmem:[%s226 + $0x78] sm:$0xff]
      %v253 = vld [vmem:[%s226 + $0x80] sm:$0xff]
      %v254 = vld [vmem:[%s226 + $0x88] sm:$0xff]
      %v255 = vld [vmem:[%s226 + $0x90] sm:$0xff]
      %v256 = vld [vmem:[%s226 + $0x98] sm:$0xff]
      %v257 = vld [vmem:[%s226 + $0xa0] sm:$0xff]
      %v258 = vld [vmem:[%s226 + $0xa8] sm:$0xff]
      %v259 = vld [vmem:[%s226 + $0xb0] sm:$0xff]
      %v260 = vld [vmem:[%s226 + $0xb8] sm:$0xff]
      %v261 = vld [vmem:[%s226 + $0xc0] sm:$0xff]
      %v262 = vld [vmem:[%s226 + $0xc8] sm:$0xff]
      %v263 = vld [vmem:[%s226 + $0xd0] sm:$0xff]
      %v264 = vld [vmem:[%s226 + $0xd8] sm:$0xff]
      %v265 = vld [vmem:[%s226 + $0xe0] sm:$0xff]
      %v266 = vld [vmem:[%s226 + $0xe8] sm:$0xff]
      %v267 = vld [vmem:[%s226 + $0xf0] sm:$0xff]
      %v268 = vld [vmem:[%s226 + $0xf8] sm:$0xff]
      %vm269 = vcmask 27648
      %270 = vst.msk [vmem:[#allocation2] sm:$0xf] %vm269, 0
      %271 = vst.msk [vmem:[#allocation2 + $0x4] sm:$0xf] %vm269, 0
      %vm272 = vcmask 24576
      %273 = vst.msk [vmem:[#allocation2 + $0x8] sm:$0x1] %vm272, 0
      %s274 = scalar_lea.vmem [#allocation2], 204
      %275 = vst.msk [vmem:[%s274] sm:$0xf] %vm269, 0
      %276 = vst.msk [vmem:[%s274 + $0x4] sm:$0xf] %vm269, 0
      %277 = vst.msk [vmem:[%s274 + $0x8] sm:$0x1] %vm272, 0
      %vm278 = vcmask 24576
      %vm279 = vsmask.f32 256
      %vm280 = vmand %vm278, %vm279
      %v281 = vld [vmem:[#allocation2] sm:$0x1]
      %v282 = vsel %vm280, 0, %v281
      %283 = vst [vmem:[#allocation2] sm:$0x1] %v282
      %v284 = vld [vmem:[#allocation2 + $0xc] sm:$0x1]
      %v285 = vsel %vm280, 0, %v284
      %286 = vst [vmem:[#allocation2 + $0xc] sm:$0x1] %v285
      %v287 = vld [vmem:[#allocation2 + $0x18] sm:$0x1]
      %v288 = vsel %vm280, 0, %v287
      %289 = vst [vmem:[#allocation2 + $0x18] sm:$0x1] %v288
      %v290 = vld [vmem:[#allocation2 + $0x24] sm:$0x1]
      %v291 = vsel %vm280, 0, %v290
      %292 = vst [vmem:[#allocation2 + $0x24] sm:$0x1] %v291
      %v293 = vld [vmem:[#allocation2 + $0x30] sm:$0x1]
      %v294 = vsel %vm280, 0, %v293
      %295 = vst [vmem:[#allocation2 + $0x30] sm:$0x1] %v294
      %v296 = vld [vmem:[#allocation2 + $0x3c] sm:$0x1]
      %v297 = vsel %vm280, 0, %v296
      %298 = vst [vmem:[#allocation2 + $0x3c] sm:$0x1] %v297
      %v299 = vld [vmem:[#allocation2 + $0x48] sm:$0x1]
      %v300 = vsel %vm280, 0, %v299
      %301 = vst [vmem:[#allocation2 + $0x48] sm:$0x1] %v300
      %v302 = vld [vmem:[#allocation2 + $0x54] sm:$0x1]
      %v303 = vsel %vm280, 0, %v302
      %304 = vst [vmem:[#allocation2 + $0x54] sm:$0x1] %v303
      %v305 = vld [vmem:[#allocation2 + $0x60] sm:$0x1]
      %v306 = vsel %vm280, 0, %v305
      %307 = vst [vmem:[#allocation2 + $0x60] sm:$0x1] %v306
      %v308 = vld [vmem:[#allocation2 + $0x6c] sm:$0x1]
      %v309 = vsel %vm280, 0, %v308
      %310 = vst [vmem:[#allocation2 + $0x6c] sm:$0x1] %v309
      %v311 = vld [vmem:[#allocation2 + $0x78] sm:$0x1]
      %v312 = vsel %vm280, 0, %v311
      %313 = vst [vmem:[#allocation2 + $0x78] sm:$0x1] %v312
      %v314 = vld [vmem:[#allocation2 + $0x84] sm:$0x1]
      %v315 = vsel %vm280, 0, %v314
      %316 = vst [vmem:[#allocation2 + $0x84] sm:$0x1] %v315
      %v317 = vld [vmem:[#allocation2 + $0x90] sm:$0x1]
      %v318 = vsel %vm280, 0, %v317
      %319 = vst [vmem:[#allocation2 + $0x90] sm:$0x1] %v318
      %v320 = vld [vmem:[#allocation2 + $0x9c] sm:$0x1]
      %v321 = vsel %vm280, 0, %v320
      %322 = vst [vmem:[#allocation2 + $0x9c] sm:$0x1] %v321
      %v323 = vld [vmem:[#allocation2 + $0xa8] sm:$0x1]
      %v324 = vsel %vm280, 0, %v323
      %325 = vst [vmem:[#allocation2 + $0xa8] sm:$0x1] %v324
      %v326 = vld [vmem:[#allocation2 + $0xb4] sm:$0x1]
      %v327 = vsel %vm280, 0, %v326
      %328 = vst [vmem:[#allocation2 + $0xb4] sm:$0x1] %v327
      %v329 = vld [vmem:[#allocation2 + $0xc0] sm:$0x1]
      %v330 = vsel %vm280, 0, %v329
      %331 = vst [vmem:[#allocation2 + $0xc0] sm:$0x1] %v330
      %v332 = vld [vmem:[#allocation2 + $0xcc] sm:$0x1]
      %v333 = vsel %vm280, 0, %v332
      %334 = vst [vmem:[#allocation2 + $0xcc] sm:$0x1] %v333
      %vm335 = vsmask.f32 7938
      %vm336 = vmand %vm278, %vm335
      %v337 = vld [vmem:[#allocation2 + $0x8] sm:$0x1]
      %v338 = vsel %vm336, 0, %v337
      %339 = vst [vmem:[#allocation2 + $0x8] sm:$0x1] %v338
      %v340 = vld [vmem:[#allocation2 + $0x14] sm:$0x1]
      %v341 = vsel %vm336, 0, %v340
      %342 = vst [vmem:[#allocation2 + $0x14] sm:$0x1] %v341
      %v343 = vld [vmem:[#allocation2 + $0x20] sm:$0x1]
      %v344 = vsel %vm336, 0, %v343
      %345 = vst [vmem:[#allocation2 + $0x20] sm:$0x1] %v344
      %v346 = vld [vmem:[#allocation2 + $0x2c] sm:$0x1]
      %v347 = vsel %vm336, 0, %v346
      %348 = vst [vmem:[#allocation2 + $0x2c] sm:$0x1] %v347
      %v349 = vld [vmem:[#allocation2 + $0x38] sm:$0x1]
      %v350 = vsel %vm336, 0, %v349
      %351 = vst [vmem:[#allocation2 + $0x38] sm:$0x1] %v350
      %v352 = vld [vmem:[#allocation2 + $0x44] sm:$0x1]
      %v353 = vsel %vm336, 0, %v352
      %354 = vst [vmem:[#allocation2 + $0x44] sm:$0x1] %v353
      %v355 = vld [vmem:[#allocation2 + $0x50] sm:$0x1]
      %v356 = vsel %vm336, 0, %v355
      %357 = vst [vmem:[#allocation2 + $0x50] sm:$0x1] %v356
      %v358 = vld [vmem:[#allocation2 + $0x5c] sm:$0x1]
      %v359 = vsel %vm336, 0, %v358
      %360 = vst [vmem:[#allocation2 + $0x5c] sm:$0x1] %v359
      %v361 = vld [vmem:[#allocation2 + $0x68] sm:$0x1]
      %v362 = vsel %vm336, 0, %v361
      %363 = vst [vmem:[#allocation2 + $0x68] sm:$0x1] %v362
      %v364 = vld [vmem:[#allocation2 + $0x74] sm:$0x1]
      %v365 = vsel %vm336, 0, %v364
      %366 = vst [vmem:[#allocation2 + $0x74] sm:$0x1] %v365
      %v367 = vld [vmem:[#allocation2 + $0x80] sm:$0x1]
      %v368 = vsel %vm336, 0, %v367
      %369 = vst [vmem:[#allocation2 + $0x80] sm:$0x1] %v368
      %v370 = vld [vmem:[#allocation2 + $0x8c] sm:$0x1]
      %v371 = vsel %vm336, 0, %v370
      %372 = vst [vmem:[#allocation2 + $0x8c] sm:$0x1] %v371
      %v373 = vld [vmem:[#allocation2 + $0x98] sm:$0x1]
      %v374 = vsel %vm336, 0, %v373
      %375 = vst [vmem:[#allocation2 + $0x98] sm:$0x1] %v374
      %v376 = vld [vmem:[#allocation2 + $0xa4] sm:$0x1]
      %v377 = vsel %vm336, 0, %v376
      %378 = vst [vmem:[#allocation2 + $0xa4] sm:$0x1] %v377
      %v379 = vld [vmem:[#allocation2 + $0xb0] sm:$0x1]
      %v380 = vsel %vm336, 0, %v379
      %381 = vst [vmem:[#allocation2 + $0xb0] sm:$0x1] %v380
      %v382 = vld [vmem:[#allocation2 + $0xbc] sm:$0x1]
      %v383 = vsel %vm336, 0, %v382
      %384 = vst [vmem:[#allocation2 + $0xbc] sm:$0x1] %v383
      %v385 = vld [vmem:[#allocation2 + $0xc8] sm:$0x1]
      %v386 = vsel %vm336, 0, %v385
      %387 = vst [vmem:[#allocation2 + $0xc8] sm:$0x1] %v386
      %v388 = vld [vmem:[#allocation2 + $0xd4] sm:$0x1]
      %v389 = vsel %vm336, 0, %v388
      %390 = vst [vmem:[#allocation2 + $0xd4] sm:$0x1] %v389
      %v391 = vpack.c.bf16 %v238, %v237
      %v392 = vpack.c.bf16 %v240, %v239
      %v393 = vpack.c.bf16 %v242, %v241
      %v394 = vpack.c.bf16 %v244, %v243
      %v395 = vpack.c.bf16 %v246, %v245
      %v396 = vpack.c.bf16 %v248, %v247
      %v397 = vpack.c.bf16 %v250, %v249
      %v398 = vpack.c.bf16 %v252, %v251
      %v399 = vpack.c.bf16 %v254, %v253
      %v400 = vpack.c.bf16 %v256, %v255
      %v401 = vpack.c.bf16 %v258, %v257
      %v402 = vpack.c.bf16 %v260, %v259
      %v403 = vpack.c.bf16 %v262, %v261
      %v404 = vpack.c.bf16 %v264, %v263
      %v405 = vpack.c.bf16 %v266, %v265
      %v406 = vpack.c.bf16 %v268, %v267
      %v423 = vunpack.c.l.b16 %v391
      %v424 = vunpack.c.h.b16 %v391
      %v425 = vunpack.c.l.b16 %v392
      %v426 = vunpack.c.h.b16 %v392
      %v427 = vunpack.c.l.b16 %v393
      %v428 = vunpack.c.h.b16 %v393
      %v429 = vunpack.c.l.b16 %v394
      %v430 = vunpack.c.h.b16 %v394
      %v431 = vunpack.c.l.b16 %v395
      %v432 = vunpack.c.h.b16 %v395
      %v433 = vunpack.c.l.b16 %v396
      %v434 = vunpack.c.h.b16 %v396
      %v435 = vunpack.c.l.b16 %v397
      %v436 = vunpack.c.h.b16 %v397
      %v437 = vunpack.c.l.b16 %v398
      %v438 = vunpack.c.h.b16 %v398
      %v439 = vunpack.c.l.b16 %v399
      %v440 = vunpack.c.h.b16 %v399
      %v441 = vunpack.c.l.b16 %v400
      %v442 = vunpack.c.h.b16 %v400
      %v443 = vunpack.c.l.b16 %v401
      %v444 = vunpack.c.h.b16 %v401
      %v445 = vunpack.c.l.b16 %v402
      %v446 = vunpack.c.h.b16 %v402
      %v447 = vunpack.c.l.b16 %v403
      %v448 = vunpack.c.h.b16 %v403
      %v449 = vunpack.c.l.b16 %v404
      %v450 = vunpack.c.h.b16 %v404
      %v451 = vunpack.c.l.b16 %v405
      %v452 = vunpack.c.h.b16 %v405
      %v453 = vunpack.c.l.b16 %v406
      %v454 = vunpack.c.h.b16 %v406
      %v455 = vpack.c.b16 %v423, %v423
      %v456 = vpack.c.b16 %v424, %v424
      %v457 = vpack.c.b16 %v425, %v425
      %v458 = vpack.c.b16 %v426, %v426
      %v459 = vpack.c.b16 %v427, %v427
      %v460 = vpack.c.b16 %v428, %v428
      %v461 = vpack.c.b16 %v429, %v429
      %v462 = vpack.c.b16 %v430, %v430
      %v463 = vpack.c.b16 %v431, %v431
      %v464 = vpack.c.b16 %v432, %v432
      %v465 = vpack.c.b16 %v433, %v433
      %v466 = vpack.c.b16 %v434, %v434
      %v467 = vpack.c.b16 %v435, %v435
      %v468 = vpack.c.b16 %v436, %v436
      %v469 = vpack.c.b16 %v437, %v437
      %v470 = vpack.c.b16 %v438, %v438
      %v471 = vpack.c.b16 %v439, %v439
      %v472 = vpack.c.b16 %v440, %v440
      %v473 = vpack.c.b16 %v441, %v441
      %v474 = vpack.c.b16 %v442, %v442
      %v475 = vpack.c.b16 %v443, %v443
      %v476 = vpack.c.b16 %v444, %v444
      %v477 = vpack.c.b16 %v445, %v445
      %v478 = vpack.c.b16 %v446, %v446
      %v479 = vpack.c.b16 %v447, %v447
      %v480 = vpack.c.b16 %v448, %v448
      %v481 = vpack.c.b16 %v449, %v449
      %v482 = vpack.c.b16 %v450, %v450
      %v483 = vpack.c.b16 %v451, %v451
      %v484 = vpack.c.b16 %v452, %v452
      %v485 = vpack.c.b16 %v453, %v453
      %v486 = vpack.c.b16 %v454, %v454
      %vm487 = vsmask.f32 4368
      %vm488 = vmor %vm279, %vm487
      %v490 = vshrl.u32 %v455, 16
      %v492 = vrot.slane %v490, 7
      %v493 = vshll.u32 %v455, 16
      %v495 = vor.u32 %v492, %v493
      %v496 = vrot.slane %v492, 4
      %v498 = vshrl.u32 %v456, 16
      %v500 = vrot.slane %v498, 7
      %v501 = vshll.u32 %v456, 16
      %v503 = vor.u32 %v500, %v501
      %v504 = vsel %vm488, %v496, %v503
      %v505 = vrot.slane %v500, 4
      %v507 = vshrl.u32 %v457, 16
      %v509 = vrot.slane %v507, 7
      %v510 = vshll.u32 %v457, 16
      %v512 = vor.u32 %v509, %v510
      %v513 = vrot.slane %v509, 4
      %v515 = vshrl.u32 %v458, 16
      %v517 = vrot.slane %v515, 7
      %v518 = vshll.u32 %v458, 16
      %v520 = vor.u32 %v517, %v518
      %v521 = vsel %vm488, %v513, %v520
      %v522 = vrot.slane %v517, 4
      %v524 = vshrl.u32 %v459, 16
      %v526 = vrot.slane %v524, 7
      %v527 = vshll.u32 %v459, 16
      %v529 = vor.u32 %v526, %v527
      %v530 = vrot.slane %v526, 4
      %v532 = vshrl.u32 %v460, 16
      %v534 = vrot.slane %v532, 7
      %v535 = vshll.u32 %v460, 16
      %v537 = vor.u32 %v534, %v535
      %v538 = vsel %vm488, %v530, %v537
      %v539 = vrot.slane %v534, 4
      %v541 = vshrl.u32 %v461, 16
      %v543 = vrot.slane %v541, 7
      %v544 = vshll.u32 %v461, 16
      %v546 = vor.u32 %v543, %v544
      %v547 = vrot.slane %v543, 4
      %v549 = vshrl.u32 %v462, 16
      %v551 = vrot.slane %v549, 7
      %v552 = vshll.u32 %v462, 16
      %v554 = vor.u32 %v551, %v552
      %v555 = vsel %vm488, %v547, %v554
      %v556 = vrot.slane %v551, 4
      %v558 = vshrl.u32 %v463, 16
      %v560 = vrot.slane %v558, 7
      %v561 = vshll.u32 %v463, 16
      %v563 = vor.u32 %v560, %v561
      %v564 = vrot.slane %v560, 4
      %v566 = vshrl.u32 %v464, 16
      %v568 = vrot.slane %v566, 7
      %v569 = vshll.u32 %v464, 16
      %v571 = vor.u32 %v568, %v569
      %v572 = vsel %vm488, %v564, %v571
      %v573 = vrot.slane %v568, 4
      %v575 = vshrl.u32 %v465, 16
      %v577 = vrot.slane %v575, 7
      %v578 = vshll.u32 %v465, 16
      %v580 = vor.u32 %v577, %v578
      %v581 = vrot.slane %v577, 4
      %v583 = vshrl.u32 %v466, 16
      %v585 = vrot.slane %v583, 7
      %v586 = vshll.u32 %v466, 16
      %v588 = vor.u32 %v585, %v586
      %v589 = vsel %vm488, %v581, %v588
      %v590 = vrot.slane %v585, 4
      %v592 = vshrl.u32 %v467, 16
      %v594 = vrot.slane %v592, 7
      %v595 = vshll.u32 %v467, 16
      %v597 = vor.u32 %v594, %v595
      %v598 = vrot.slane %v594, 4
      %v600 = vshrl.u32 %v468, 16
      %v602 = vrot.slane %v600, 7
      %v603 = vshll.u32 %v468, 16
      %v605 = vor.u32 %v602, %v603
      %v606 = vsel %vm488, %v598, %v605
      %v607 = vrot.slane %v602, 4
      %v609 = vshrl.u32 %v469, 16
      %v611 = vrot.slane %v609, 7
      %v612 = vshll.u32 %v469, 16
      %v614 = vor.u32 %v611, %v612
      %v615 = vrot.slane %v611, 4
      %v617 = vshrl.u32 %v470, 16
      %v619 = vrot.slane %v617, 7
      %v620 = vshll.u32 %v470, 16
      %v622 = vor.u32 %v619, %v620
      %v623 = vsel %vm488, %v615, %v622
      %v624 = vrot.slane %v619, 4
      %v626 = vshrl.u32 %v471, 16
      %v628 = vrot.slane %v626, 7
      %v629 = vshll.u32 %v471, 16
      %v631 = vor.u32 %v628, %v629
      %v632 = vrot.slane %v628, 4
      %v634 = vshrl.u32 %v472, 16
      %v636 = vrot.slane %v634, 7
      %v637 = vshll.u32 %v472, 16
      %v639 = vor.u32 %v636, %v637
      %v640 = vsel %vm488, %v632, %v639
      %v641 = vrot.slane %v636, 4
      %v643 = vshrl.u32 %v473, 16
      %v645 = vrot.slane %v643, 7
      %v646 = vshll.u32 %v473, 16
      %v648 = vor.u32 %v645, %v646
      %v649 = vrot.slane %v645, 4
      %v651 = vshrl.u32 %v474, 16
      %v653 = vrot.slane %v651, 7
      %v654 = vshll.u32 %v474, 16
      %v656 = vor.u32 %v653, %v654
      %v657 = vsel %vm488, %v649, %v656
      %v658 = vrot.slane %v653, 4
      %v660 = vshrl.u32 %v475, 16
      %v662 = vrot.slane %v660, 7
      %v663 = vshll.u32 %v475, 16
      %v665 = vor.u32 %v662, %v663
      %v666 = vrot.slane %v662, 4
      %v668 = vshrl.u32 %v476, 16
      %v670 = vrot.slane %v668, 7
      %v671 = vshll.u32 %v476, 16
      %v673 = vor.u32 %v670, %v671
      %v674 = vsel %vm488, %v666, %v673
      %v675 = vrot.slane %v670, 4
      %v677 = vshrl.u32 %v477, 16
      %v679 = vrot.slane %v677, 7
      %v680 = vshll.u32 %v477, 16
      %v682 = vor.u32 %v679, %v680
      %v683 = vrot.slane %v679, 4
      %v685 = vshrl.u32 %v478, 16
      %v687 = vrot.slane %v685, 7
      %v688 = vshll.u32 %v478, 16
      %v690 = vor.u32 %v687, %v688
      %v691 = vsel %vm488, %v683, %v690
      %v692 = vrot.slane %v687, 4
      %v694 = vshrl.u32 %v479, 16
      %v696 = vrot.slane %v694, 7
      %v697 = vshll.u32 %v479, 16
      %v699 = vor.u32 %v696, %v697
      %v700 = vrot.slane %v696, 4
      %v702 = vshrl.u32 %v480, 16
      %v704 = vrot.slane %v702, 7
      %v705 = vshll.u32 %v480, 16
      %v707 = vor.u32 %v704, %v705
      %v708 = vsel %vm488, %v700, %v707
      %v709 = vrot.slane %v704, 4
      %v711 = vshrl.u32 %v481, 16
      %v713 = vrot.slane %v711, 7
      %v714 = vshll.u32 %v481, 16
      %v716 = vor.u32 %v713, %v714
      %v717 = vrot.slane %v713, 4
      %v719 = vshrl.u32 %v482, 16
      %v721 = vrot.slane %v719, 7
      %v722 = vshll.u32 %v482, 16
      %v724 = vor.u32 %v721, %v722
      %v725 = vsel %vm488, %v717, %v724
      %v726 = vrot.slane %v721, 4
      %v728 = vshrl.u32 %v483, 16
      %v730 = vrot.slane %v728, 7
      %v731 = vshll.u32 %v483, 16
      %v733 = vor.u32 %v730, %v731
      %v734 = vrot.slane %v730, 4
      %v736 = vshrl.u32 %v484, 16
      %v738 = vrot.slane %v736, 7
      %v739 = vshll.u32 %v484, 16
      %v741 = vor.u32 %v738, %v739
      %v742 = vsel %vm488, %v734, %v741
      %v743 = vrot.slane %v738, 4
      %v745 = vshrl.u32 %v485, 16
      %v747 = vrot.slane %v745, 7
      %v748 = vshll.u32 %v485, 16
      %v750 = vor.u32 %v747, %v748
      %v751 = vrot.slane %v747, 4
      %v753 = vshrl.u32 %v486, 16
      %v755 = vrot.slane %v753, 7
      %v756 = vshll.u32 %v486, 16
      %v758 = vor.u32 %v755, %v756
      %v759 = vsel %vm488, %v751, %v758
      %v760 = vrot.slane %v755, 4
      %s809 = scalar_lea.vmem [#allocation2], 12
      %vm810 = vcmask 27648
      %vm811 = vmand %vm810, %vm335
      %v812 = vld [vmem:[%s809] sm:$0xf]
      %v813 = vsel %vm811, %v495, %v812
      %814 = vst [vmem:[%s809] sm:$0xf] %v813
      %815 = vst.msk [vmem:[%s809 + $0x4] sm:$0xf] %vm269, %v504
      %v816 = vld [vmem:[%s809 + $0x8] sm:$0x1]
      %v817 = vsel %vm280, %v505, %v816
      %818 = vst [vmem:[%s809 + $0x8] sm:$0x1] %v817
      %v819 = vld [vmem:[%s809 + $0xc] sm:$0xf]
      %v820 = vsel %vm811, %v512, %v819
      %821 = vst [vmem:[%s809 + $0xc] sm:$0xf] %v820
      %822 = vst.msk [vmem:[%s809 + $0x10] sm:$0xf] %vm269, %v521
      %v823 = vld [vmem:[%s809 + $0x14] sm:$0x1]
      %v824 = vsel %vm280, %v522, %v823
      %825 = vst [vmem:[%s809 + $0x14] sm:$0x1] %v824
      %v826 = vld [vmem:[%s809 + $0x18] sm:$0xf]
      %v827 = vsel %vm811, %v529, %v826
      %828 = vst [vmem:[%s809 + $0x18] sm:$0xf] %v827
      %829 = vst.msk [vmem:[%s809 + $0x1c] sm:$0xf] %vm269, %v538
      %v830 = vld [vmem:[%s809 + $0x20] sm:$0x1]
      %v831 = vsel %vm280, %v539, %v830
      %832 = vst [vmem:[%s809 + $0x20] sm:$0x1] %v831
      %v833 = vld [vmem:[%s809 + $0x24] sm:$0xf]
      %v834 = vsel %vm811, %v546, %v833
      %835 = vst [vmem:[%s809 + $0x24] sm:$0xf] %v834
      %836 = vst.msk [vmem:[%s809 + $0x28] sm:$0xf] %vm269, %v555
      %v837 = vld [vmem:[%s809 + $0x2c] sm:$0x1]
      %v838 = vsel %vm280, %v556, %v837
      %839 = vst [vmem:[%s809 + $0x2c] sm:$0x1] %v838
      %v840 = vld [vmem:[%s809 + $0x30] sm:$0xf]
      %v841 = vsel %vm811, %v563, %v840
      %842 = vst [vmem:[%s809 + $0x30] sm:$0xf] %v841
      %843 = vst.msk [vmem:[%s809 + $0x34] sm:$0xf] %vm269, %v572
      %v844 = vld [vmem:[%s809 + $0x38] sm:$0x1]
      %v845 = vsel %vm280, %v573, %v844
      %846 = vst [vmem:[%s809 + $0x38] sm:$0x1] %v845
      %v847 = vld [vmem:[%s809 + $0x3c] sm:$0xf]
      %v848 = vsel %vm811, %v580, %v847
      %849 = vst [vmem:[%s809 + $0x3c] sm:$0xf] %v848
      %850 = vst.msk [vmem:[%s809 + $0x40] sm:$0xf] %vm269, %v589
      %v851 = vld [vmem:[%s809 + $0x44] sm:$0x1]
      %v852 = vsel %vm280, %v590, %v851
      %853 = vst [vmem:[%s809 + $0x44] sm:$0x1] %v852
      %v854 = vld [vmem:[%s809 + $0x48] sm:$0xf]
      %v855 = vsel %vm811, %v597, %v854
      %856 = vst [vmem:[%s809 + $0x48] sm:$0xf] %v855
      %857 = vst.msk [vmem:[%s809 + $0x4c] sm:$0xf] %vm269, %v606
      %v858 = vld [vmem:[%s809 + $0x50] sm:$0x1]
      %v859 = vsel %vm280, %v607, %v858
      %860 = vst [vmem:[%s809 + $0x50] sm:$0x1] %v859
      %v861 = vld [vmem:[%s809 + $0x54] sm:$0xf]
      %v862 = vsel %vm811, %v614, %v861
      %863 = vst [vmem:[%s809 + $0x54] sm:$0xf] %v862
      %864 = vst.msk [vmem:[%s809 + $0x58] sm:$0xf] %vm269, %v623
      %v865 = vld [vmem:[%s809 + $0x5c] sm:$0x1]
      %v866 = vsel %vm280, %v624, %v865
      %867 = vst [vmem:[%s809 + $0x5c] sm:$0x1] %v866
      %v868 = vld [vmem:[%s809 + $0x60] sm:$0xf]
      %v869 = vsel %vm811, %v631, %v868
      %870 = vst [vmem:[%s809 + $0x60] sm:$0xf] %v869
      %871 = vst.msk [vmem:[%s809 + $0x64] sm:$0xf] %vm269, %v640
      %v872 = vld [vmem:[%s809 + $0x68] sm:$0x1]
      %v873 = vsel %vm280, %v641, %v872
      %874 = vst [vmem:[%s809 + $0x68] sm:$0x1] %v873
      %v875 = vld [vmem:[%s809 + $0x6c] sm:$0xf]
      %v876 = vsel %vm811, %v648, %v875
      %877 = vst [vmem:[%s809 + $0x6c] sm:$0xf] %v876
      %878 = vst.msk [vmem:[%s809 + $0x70] sm:$0xf] %vm269, %v657
      %v879 = vld [vmem:[%s809 + $0x74] sm:$0x1]
      %v880 = vsel %vm280, %v658, %v879
      %881 = vst [vmem:[%s809 + $0x74] sm:$0x1] %v880
      %v882 = vld [vmem:[%s809 + $0x78] sm:$0xf]
      %v883 = vsel %vm811, %v665, %v882
      %884 = vst [vmem:[%s809 + $0x78] sm:$0xf] %v883
      %885 = vst.msk [vmem:[%s809 + $0x7c] sm:$0xf] %vm269, %v674
      %v886 = vld [vmem:[%s809 + $0x80] sm:$0x1]
      %v887 = vsel %vm280, %v675, %v886
      %888 = vst [vmem:[%s809 + $0x80] sm:$0x1] %v887
      %v889 = vld [vmem:[%s809 + $0x84] sm:$0xf]
      %v890 = vsel %vm811, %v682, %v889
      %891 = vst [vmem:[%s809 + $0x84] sm:$0xf] %v890
      %892 = vst.msk [vmem:[%s809 + $0x88] sm:$0xf] %vm269, %v691
      %v893 = vld [vmem:[%s809 + $0x8c] sm:$0x1]
      %v894 = vsel %vm280, %v692, %v893
      %895 = vst [vmem:[%s809 + $0x8c] sm:$0x1] %v894
      %v896 = vld [vmem:[%s809 + $0x90] sm:$0xf]
      %v897 = vsel %vm811, %v699, %v896
      %898 = vst [vmem:[%s809 + $0x90] sm:$0xf] %v897
      %899 = vst.msk [vmem:[%s809 + $0x94] sm:$0xf] %vm269, %v708
      %v900 = vld [vmem:[%s809 + $0x98] sm:$0x1]
      %v901 = vsel %vm280, %v709, %v900
      %902 = vst [vmem:[%s809 + $0x98] sm:$0x1] %v901
      %v903 = vld [vmem:[%s809 + $0x9c] sm:$0xf]
      %v904 = vsel %vm811, %v716, %v903
      %905 = vst [vmem:[%s809 + $0x9c] sm:$0xf] %v904
      %906 = vst.msk [vmem:[%s809 + $0xa0] sm:$0xf] %vm269, %v725
      %v907 = vld [vmem:[%s809 + $0xa4] sm:$0x1]
      %v908 = vsel %vm280, %v726, %v907
      %909 = vst [vmem:[%s809 + $0xa4] sm:$0x1] %v908
      %v910 = vld [vmem:[%s809 + $0xa8] sm:$0xf]
      %v911 = vsel %vm811, %v733, %v910
      %912 = vst [vmem:[%s809 + $0xa8] sm:$0xf] %v911
      %913 = vst.msk [vmem:[%s809 + $0xac] sm:$0xf] %vm269, %v742
      %v914 = vld [vmem:[%s809 + $0xb0] sm:$0x1]
      %v915 = vsel %vm280, %v743, %v914
      %916 = vst [vmem:[%s809 + $0xb0] sm:$0x1] %v915
      %v917 = vld [vmem:[%s809 + $0xb4] sm:$0xf]
      %v918 = vsel %vm811, %v750, %v917
      %919 = vst [vmem:[%s809 + $0xb4] sm:$0xf] %v918
      %920 = vst.msk [vmem:[%s809 + $0xb8] sm:$0xf] %vm269, %v759
      %v921 = vld [vmem:[%s809 + $0xbc] sm:$0x1]
      %v922 = vsel %vm280, %v760, %v921
      %923 = vst [vmem:[%s809 + $0xbc] sm:$0x1] %v922
      %v924 = vld [vmem:[#allocation2] sm:$0xf]
      %v925 = vld [vmem:[#allocation2 + $0x4] sm:$0xf]
      %v926 = vld [vmem:[#allocation2 + $0xc] sm:$0xf]
      %v927 = vld [vmem:[#allocation2 + $0x10] sm:$0xf]
      %v928 = vld [vmem:[#allocation2 + $0x18] sm:$0xf]
      %v929 = vld [vmem:[#allocation2 + $0x1c] sm:$0xf]
      %v930 = vld [vmem:[#allocation2 + $0x24] sm:$0xf]
      %v931 = vld [vmem:[#allocation2 + $0x28] sm:$0xf]
      %v932 = vld [vmem:[#allocation2 + $0x30] sm:$0xf]
      %v933 = vld [vmem:[#allocation2 + $0x34] sm:$0xf]
      %v934 = vld [vmem:[#allocation2 + $0x3c] sm:$0xf]
      %v935 = vld [vmem:[#allocation2 + $0x40] sm:$0xf]
      %v936 = vld [vmem:[#allocation2 + $0x48] sm:$0xf]
      %v937 = vld [vmem:[#allocation2 + $0x4c] sm:$0xf]
      %v938 = vld [vmem:[#allocation2 + $0x54] sm:$0xf]
      %v939 = vld [vmem:[#allocation2 + $0x58] sm:$0xf]
      %v940 = vld [vmem:[#allocation2 + $0x60] sm:$0xf]
      %v941 = vld [vmem:[#allocation2 + $0x64] sm:$0xf]
      %v942 = vld [vmem:[#allocation2 + $0x6c] sm:$0xf]
      %v943 = vld [vmem:[#allocation2 + $0x70] sm:$0xf]
      %v944 = vld [vmem:[#allocation2 + $0x78] sm:$0xf]
      %v945 = vld [vmem:[#allocation2 + $0x7c] sm:$0xf]
      %v946 = vld [vmem:[#allocation2 + $0x84] sm:$0xf]
      %v947 = vld [vmem:[#allocation2 + $0x88] sm:$0xf]
      %v948 = vld [vmem:[#allocation2 + $0x90] sm:$0xf]
      %v949 = vld [vmem:[#allocation2 + $0x94] sm:$0xf]
      %v950 = vld [vmem:[#allocation2 + $0x9c] sm:$0xf]
      %v951 = vld [vmem:[#allocation2 + $0xa0] sm:$0xf]
      %v952 = vld [vmem:[#allocation2 + $0xa8] sm:$0xf]
      %v953 = vld [vmem:[#allocation2 + $0xac] sm:$0xf]
      %v954 = vld [vmem:[#allocation2 + $0xb4] sm:$0xf]
      %v955 = vld [vmem:[#allocation2 + $0xb8] sm:$0xf]
      %v956 = vld [vmem:[%s3] sm:$0x3]
      %v957 = vld [vmem:[#allocation2 + $0x8] sm:$0x1]
      %v958 = vld [vmem:[#allocation2 + $0x14] sm:$0x1]
      %v959 = vld [vmem:[#allocation2 + $0x20] sm:$0x1]
      %v960 = vld [vmem:[#allocation2 + $0x2c] sm:$0x1]
      %v961 = vld [vmem:[#allocation2 + $0x38] sm:$0x1]
      %v962 = vld [vmem:[#allocation2 + $0x44] sm:$0x1]
      %v963 = vld [vmem:[#allocation2 + $0x50] sm:$0x1]
      %v964 = vld [vmem:[#allocation2 + $0x5c] sm:$0x1]
      %v965 = vld [vmem:[#allocation2 + $0x68] sm:$0x1]
      %v966 = vld [vmem:[#allocation2 + $0x74] sm:$0x1]
      %v967 = vld [vmem:[#allocation2 + $0x80] sm:$0x1]
      %v968 = vld [vmem:[#allocation2 + $0x8c] sm:$0x1]
      %v969 = vld [vmem:[#allocation2 + $0x98] sm:$0x1]
      %v970 = vld [vmem:[#allocation2 + $0xa4] sm:$0x1]
      %v971 = vld [vmem:[#allocation2 + $0xb0] sm:$0x1]
      %v972 = vld [vmem:[#allocation2 + $0xbc] sm:$0x1]
      %vm973 = vsmask.f32 3328
      %vm974 = vsmask.f32 7440
      %vm975 = vmor %vm973, %vm974
      %v977 = vshrl.u32 %v924, 16
      %v979 = vrot.slane %v977, 4
      %v980 = vshll.u32 %v924, 16
      %v982 = vrot.slane %v980, 5
      %v983 = vor.u32 %v979, %v982
      %v984 = vrot.slane %v983, 4
      %v986 = vshll.u32 %v925, 16
      %v988 = vrot.slane %v986, 5
      %v989 = vsel %vm975, %v984, %v988
      %v990 = vshrl.u32 %v925, 16
      %v992 = vrot.slane %v990, 4
      %v993 = vor.u32 %v992, %v988
      %v994 = vrot.slane %v993, 4
      %v996 = vshll.u32 %v957, 16
      %v998 = vrot.slane %v996, 5
      %v999 = vsel %vm975, %v994, %v998
      %v1001 = vshrl.u32 %v926, 16
      %v1003 = vrot.slane %v1001, 4
      %v1004 = vshll.u32 %v926, 16
      %v1006 = vrot.slane %v1004, 5
      %v1007 = vor.u32 %v1003, %v1006
      %v1008 = vrot.slane %v1007, 4
      %v1010 = vshll.u32 %v927, 16
      %v1012 = vrot.slane %v1010, 5
      %v1013 = vsel %vm975, %v1008, %v1012
      %v1014 = vshrl.u32 %v927, 16
      %v1016 = vrot.slane %v1014, 4
      %v1017 = vor.u32 %v1016, %v1012
      %v1018 = vrot.slane %v1017, 4
      %v1020 = vshll.u32 %v958, 16
      %v1022 = vrot.slane %v1020, 5
      %v1023 = vsel %vm975, %v1018, %v1022
      %v1025 = vshrl.u32 %v928, 16
      %v1027 = vrot.slane %v1025, 4
      %v1028 = vshll.u32 %v928, 16
      %v1030 = vrot.slane %v1028, 5
      %v1031 = vor.u32 %v1027, %v1030
      %v1032 = vrot.slane %v1031, 4
      %v1034 = vshll.u32 %v929, 16
      %v1036 = vrot.slane %v1034, 5
      %v1037 = vsel %vm975, %v1032, %v1036
      %v1038 = vshrl.u32 %v929, 16
      %v1040 = vrot.slane %v1038, 4
      %v1041 = vor.u32 %v1040, %v1036
      %v1042 = vrot.slane %v1041, 4
      %v1044 = vshll.u32 %v959, 16
      %v1046 = vrot.slane %v1044, 5
      %v1047 = vsel %vm975, %v1042, %v1046
      %v1049 = vshrl.u32 %v930, 16
      %v1051 = vrot.slane %v1049, 4
      %v1052 = vshll.u32 %v930, 16
      %v1054 = vrot.slane %v1052, 5
      %v1055 = vor.u32 %v1051, %v1054
      %v1056 = vrot.slane %v1055, 4
      %v1058 = vshll.u32 %v931, 16
      %v1060 = vrot.slane %v1058, 5
      %v1061 = vsel %vm975, %v1056, %v1060
      %v1062 = vshrl.u32 %v931, 16
      %v1064 = vrot.slane %v1062, 4
      %v1065 = vor.u32 %v1064, %v1060
      %v1066 = vrot.slane %v1065, 4
      %v1068 = vshll.u32 %v960, 16
      %v1070 = vrot.slane %v1068, 5
      %v1071 = vsel %vm975, %v1066, %v1070
      %v1073 = vshrl.u32 %v932, 16
      %v1075 = vrot.slane %v1073, 4
      %v1076 = vshll.u32 %v932, 16
      %v1078 = vrot.slane %v1076, 5
      %v1079 = vor.u32 %v1075, %v1078
      %v1080 = vrot.slane %v1079, 4
      %v1082 = vshll.u32 %v933, 16
      %v1084 = vrot.slane %v1082, 5
      %v1085 = vsel %vm975, %v1080, %v1084
      %v1086 = vshrl.u32 %v933, 16
      %v1088 = vrot.slane %v1086, 4
      %v1089 = vor.u32 %v1088, %v1084
      %v1090 = vrot.slane %v1089, 4
      %v1092 = vshll.u32 %v961, 16
      %v1094 = vrot.slane %v1092, 5
      %v1095 = vsel %vm975, %v1090, %v1094
      %v1097 = vshrl.u32 %v934, 16
      %v1099 = vrot.slane %v1097, 4
      %v1100 = vshll.u32 %v934, 16
      %v1102 = vrot.slane %v1100, 5
      %v1103 = vor.u32 %v1099, %v1102
      %v1104 = vrot.slane %v1103, 4
      %v1106 = vshll.u32 %v935, 16
      %v1108 = vrot.slane %v1106, 5
      %v1109 = vsel %vm975, %v1104, %v1108
      %v1110 = vshrl.u32 %v935, 16
      %v1112 = vrot.slane %v1110, 4
      %v1113 = vor.u32 %v1112, %v1108
      %v1114 = vrot.slane %v1113, 4
      %v1116 = vshll.u32 %v962, 16
      %v1118 = vrot.slane %v1116, 5
      %v1119 = vsel %vm975, %v1114, %v1118
      %v1121 = vshrl.u32 %v936, 16
      %v1123 = vrot.slane %v1121, 4
      %v1124 = vshll.u32 %v936, 16
      %v1126 = vrot.slane %v1124, 5
      %v1127 = vor.u32 %v1123, %v1126
      %v1128 = vrot.slane %v1127, 4
      %v1130 = vshll.u32 %v937, 16
      %v1132 = vrot.slane %v1130, 5
      %v1133 = vsel %vm975, %v1128, %v1132
      %v1134 = vshrl.u32 %v937, 16
      %v1136 = vrot.slane %v1134, 4
      %v1137 = vor.u32 %v1136, %v1132
      %v1138 = vrot.slane %v1137, 4
      %v1140 = vshll.u32 %v963, 16
      %v1142 = vrot.slane %v1140, 5
      %v1143 = vsel %vm975, %v1138, %v1142
      %v1145 = vshrl.u32 %v938, 16
      %v1147 = vrot.slane %v1145, 4
      %v1148 = vshll.u32 %v938, 16
      %v1150 = vrot.slane %v1148, 5
      %v1151 = vor.u32 %v1147, %v1150
      %v1152 = vrot.slane %v1151, 4
      %v1154 = vshll.u32 %v939, 16
      %v1156 = vrot.slane %v1154, 5
      %v1157 = vsel %vm975, %v1152, %v1156
      %v1158 = vshrl.u32 %v939, 16
      %v1160 = vrot.slane %v1158, 4
      %v1161 = vor.u32 %v1160, %v1156
      %v1162 = vrot.slane %v1161, 4
      %v1164 = vshll.u32 %v964, 16
      %v1166 = vrot.slane %v1164, 5
      %v1167 = vsel %vm975, %v1162, %v1166
      %v1169 = vshrl.u32 %v940, 16
      %v1171 = vrot.slane %v1169, 4
      %v1172 = vshll.u32 %v940, 16
      %v1174 = vrot.slane %v1172, 5
      %v1175 = vor.u32 %v1171, %v1174
      %v1176 = vrot.slane %v1175, 4
      %v1178 = vshll.u32 %v941, 16
      %v1180 = vrot.slane %v1178, 5
      %v1181 = vsel %vm975, %v1176, %v1180
      %v1182 = vshrl.u32 %v941, 16
      %v1184 = vrot.slane %v1182, 4
      %v1185 = vor.u32 %v1184, %v1180
      %v1186 = vrot.slane %v1185, 4
      %v1188 = vshll.u32 %v965, 16
      %v1190 = vrot.slane %v1188, 5
      %v1191 = vsel %vm975, %v1186, %v1190
      %v1193 = vshrl.u32 %v942, 16
      %v1195 = vrot.slane %v1193, 4
      %v1196 = vshll.u32 %v942, 16
      %v1198 = vrot.slane %v1196, 5
      %v1199 = vor.u32 %v1195, %v1198
      %v1200 = vrot.slane %v1199, 4
      %v1202 = vshll.u32 %v943, 16
      %v1204 = vrot.slane %v1202, 5
      %v1205 = vsel %vm975, %v1200, %v1204
      %v1206 = vshrl.u32 %v943, 16
      %v1208 = vrot.slane %v1206, 4
      %v1209 = vor.u32 %v1208, %v1204
      %v1210 = vrot.slane %v1209, 4
      %v1212 = vshll.u32 %v966, 16
      %v1214 = vrot.slane %v1212, 5
      %v1215 = vsel %vm975, %v1210, %v1214
      %v1217 = vshrl.u32 %v944, 16
      %v1219 = vrot.slane %v1217, 4
      %v1220 = vshll.u32 %v944, 16
      %v1222 = vrot.slane %v1220, 5
      %v1223 = vor.u32 %v1219, %v1222
      %v1224 = vrot.slane %v1223, 4
      %v1226 = vshll.u32 %v945, 16
      %v1228 = vrot.slane %v1226, 5
      %v1229 = vsel %vm975, %v1224, %v1228
      %v1230 = vshrl.u32 %v945, 16
      %v1232 = vrot.slane %v1230, 4
      %v1233 = vor.u32 %v1232, %v1228
      %v1234 = vrot.slane %v1233, 4
      %v1236 = vshll.u32 %v967, 16
      %v1238 = vrot.slane %v1236, 5
      %v1239 = vsel %vm975, %v1234, %v1238
      %v1241 = vshrl.u32 %v946, 16
      %v1243 = vrot.slane %v1241, 4
      %v1244 = vshll.u32 %v946, 16
      %v1246 = vrot.slane %v1244, 5
      %v1247 = vor.u32 %v1243, %v1246
      %v1248 = vrot.slane %v1247, 4
      %v1250 = vshll.u32 %v947, 16
      %v1252 = vrot.slane %v1250, 5
      %v1253 = vsel %vm975, %v1248, %v1252
      %v1254 = vshrl.u32 %v947, 16
      %v1256 = vrot.slane %v1254, 4
      %v1257 = vor.u32 %v1256, %v1252
      %v1258 = vrot.slane %v1257, 4
      %v1260 = vshll.u32 %v968, 16
      %v1262 = vrot.slane %v1260, 5
      %v1263 = vsel %vm975, %v1258, %v1262
      %v1265 = vshrl.u32 %v948, 16
      %v1267 = vrot.slane %v1265, 4
      %v1268 = vshll.u32 %v948, 16
      %v1270 = vrot.slane %v1268, 5
      %v1271 = vor.u32 %v1267, %v1270
      %v1272 = vrot.slane %v1271, 4
      %v1274 = vshll.u32 %v949, 16
      %v1276 = vrot.slane %v1274, 5
      %v1277 = vsel %vm975, %v1272, %v1276
      %v1278 = vshrl.u32 %v949, 16
      %v1280 = vrot.slane %v1278, 4
      %v1281 = vor.u32 %v1280, %v1276
      %v1282 = vrot.slane %v1281, 4
      %v1284 = vshll.u32 %v969, 16
      %v1286 = vrot.slane %v1284, 5
      %v1287 = vsel %vm975, %v1282, %v1286
      %v1289 = vshrl.u32 %v950, 16
      %v1291 = vrot.slane %v1289, 4
      %v1292 = vshll.u32 %v950, 16
      %v1294 = vrot.slane %v1292, 5
      %v1295 = vor.u32 %v1291, %v1294
      %v1296 = vrot.slane %v1295, 4
      %v1298 = vshll.u32 %v951, 16
      %v1300 = vrot.slane %v1298, 5
      %v1301 = vsel %vm975, %v1296, %v1300
      %v1302 = vshrl.u32 %v951, 16
      %v1304 = vrot.slane %v1302, 4
      %v1305 = vor.u32 %v1304, %v1300
      %v1306 = vrot.slane %v1305, 4
      %v1308 = vshll.u32 %v970, 16
      %v1310 = vrot.slane %v1308, 5
      %v1311 = vsel %vm975, %v1306, %v1310
      %v1313 = vshrl.u32 %v952, 16
      %v1315 = vrot.slane %v1313, 4
      %v1316 = vshll.u32 %v952, 16
      %v1318 = vrot.slane %v1316, 5
      %v1319 = vor.u32 %v1315, %v1318
      %v1320 = vrot.slane %v1319, 4
      %v1322 = vshll.u32 %v953, 16
      %v1324 = vrot.slane %v1322, 5
      %v1325 = vsel %vm975, %v1320, %v1324
      %v1326 = vshrl.u32 %v953, 16
      %v1328 = vrot.slane %v1326, 4
      %v1329 = vor.u32 %v1328, %v1324
      %v1330 = vrot.slane %v1329, 4
      %v1332 = vshll.u32 %v971, 16
      %v1334 = vrot.slane %v1332, 5
      %v1335 = vsel %vm975, %v1330, %v1334
      %v1337 = vshrl.u32 %v954, 16
      %v1339 = vrot.slane %v1337, 4
      %v1340 = vshll.u32 %v954, 16
      %v1342 = vrot.slane %v1340, 5
      %v1343 = vor.u32 %v1339, %v1342
      %v1344 = vrot.slane %v1343, 4
      %v1346 = vshll.u32 %v955, 16
      %v1348 = vrot.slane %v1346, 5
      %v1349 = vsel %vm975, %v1344, %v1348
      %v1350 = vshrl.u32 %v955, 16
      %v1352 = vrot.slane %v1350, 4
      %v1353 = vor.u32 %v1352, %v1348
      %v1354 = vrot.slane %v1353, 4
      %v1356 = vshll.u32 %v972, 16
      %v1358 = vrot.slane %v1356, 5
      %v1359 = vsel %vm975, %v1354, %v1358
      %s1360 = scalar_lea.vmem %s3, 2
      %v1361 = vld [vmem:[%s1360] sm:$0x3]
      %v1362 = vunpack.c.l.b16 %v989
      %v1363 = vunpack.c.l.b16 %v999
      %v1364 = vunpack.c.l.b16 %v1013
      %v1365 = vunpack.c.l.b16 %v1023
      %v1366 = vunpack.c.l.b16 %v1037
      %v1367 = vunpack.c.l.b16 %v1047
      %v1368 = vunpack.c.l.b16 %v1061
      %v1369 = vunpack.c.l.b16 %v1071
      %v1370 = vunpack.c.l.b16 %v1085
      %v1371 = vunpack.c.l.b16 %v1095
      %v1372 = vunpack.c.l.b16 %v1109
      %v1373 = vunpack.c.l.b16 %v1119
      %v1374 = vunpack.c.l.b16 %v1133
      %v1375 = vunpack.c.l.b16 %v1143
      %v1376 = vunpack.c.l.b16 %v1157
      %v1377 = vunpack.c.l.b16 %v1167
      %v1378 = vunpack.c.l.b16 %v1181
      %v1379 = vunpack.c.l.b16 %v1191
      %v1380 = vunpack.c.l.b16 %v1205
      %v1381 = vunpack.c.l.b16 %v1215
      %v1382 = vunpack.c.l.b16 %v1229
      %v1383 = vunpack.c.l.b16 %v1239
      %v1384 = vunpack.c.l.b16 %v1253
      %v1385 = vunpack.c.l.b16 %v1263
      %v1386 = vunpack.c.l.b16 %v1277
      %v1387 = vunpack.c.l.b16 %v1287
      %v1388 = vunpack.c.l.b16 %v1301
      %v1389 = vunpack.c.l.b16 %v1311
      %v1390 = vunpack.c.l.b16 %v1325
      %v1391 = vunpack.c.l.b16 %v1335
      %v1392 = vunpack.c.l.b16 %v1349
      %v1393 = vunpack.c.l.b16 %v1359
      %v1394 = vpack.c.b16 %v1363, %v1362
      %v1395 = vpack.c.b16 %v1365, %v1364
      %v1396 = vpack.c.b16 %v1367, %v1366
      %v1397 = vpack.c.b16 %v1369, %v1368
      %v1398 = vpack.c.b16 %v1371, %v1370
      %v1399 = vpack.c.b16 %v1373, %v1372
      %v1400 = vpack.c.b16 %v1375, %v1374
      %v1401 = vpack.c.b16 %v1377, %v1376
      %v1402 = vpack.c.b16 %v1379, %v1378
      %v1403 = vpack.c.b16 %v1381, %v1380
      %v1404 = vpack.c.b16 %v1383, %v1382
      %v1405 = vpack.c.b16 %v1385, %v1384
      %v1406 = vpack.c.b16 %v1387, %v1386
      %v1407 = vpack.c.b16 %v1389, %v1388
      %v1408 = vpack.c.b16 %v1391, %v1390
      %v1409 = vpack.c.b16 %v1393, %v1392
      %vm1410 = vcmask 31744
      %v1412 = vsel %vm1410, %v1394, 0
      %v1415 = vsel %vm1410, %v1395, 0
      %v1418 = vsel %vm1410, %v1396, 0
      %v1421 = vsel %vm1410, %v1397, 0
      %v1424 = vsel %vm1410, %v1398, 0
      %v1427 = vsel %vm1410, %v1399, 0
      %v1430 = vsel %vm1410, %v1400, 0
      %v1433 = vsel %vm1410, %v1401, 0
      %v1436 = vsel %vm1410, %v1402, 0
      %v1439 = vsel %vm1410, %v1403, 0
      %v1442 = vsel %vm1410, %v1404, 0
      %v1445 = vsel %vm1410, %v1405, 0
      %v1448 = vsel %vm1410, %v1406, 0
      %v1451 = vsel %vm1410, %v1407, 0
      %v1454 = vsel %vm1410, %v1408, 0
      %v1457 = vsel %vm1410, %v1409, 0
      %vm1459 = vcmask 1041408
      %v1461 = vsel %vm1459, %v1361, 0
      %1463 = vmatprep.subr.bf16.mxu0 0
      %1464 = vmatpush1.bf16.msra.mxu0 0
      %1465 = vmatprep.subr.bf16.mxu0 0
      %1466 = vmatpush1.bf16.msra.mxu0 0
      %1467 = vmatprep.subr.bf16.mxu0 0
      %1468 = vmatpush1.bf16.msra.mxu0 0
      %1469 = vmatprep.subr.bf16.mxu0 0
      %1470 = vmatpush1.bf16.msra.mxu0 0
      %1471 = vmatprep.subr.bf16.mxu0 0
      %1472 = vmatpush1.bf16.msra.mxu0 0
      %1473 = vmatprep.subr.bf16.mxu0 0
      %1474 = vmatpush1.bf16.msra.mxu0 0
      %1475 = vmatprep.subr.bf16.mxu0 0
      %1476 = vmatpush1.bf16.msra.mxu0 0
      %1477 = vmatprep.subr.bf16.mxu0 0
      %1478 = vmatpush1.bf16.msra.mxu0 %v1461
      %1479 = vmatprep.subr.bf16.mxu0 0
      %1480 = vmatpush2.bf16.msra.mxu0 0
      %1481 = vmatprep.subr.bf16.mxu0 0
      %1482 = vmatpush2.bf16.msra.mxu0 0
      %1483 = vmatprep.subr.bf16.mxu0 0
      %1484 = vmatpush2.bf16.msra.mxu0 0
      %1485 = vmatprep.subr.bf16.mxu0 0
      %1486 = vmatpush2.bf16.msra.mxu0 0
      %1487 = vmatprep.subr.bf16.mxu0 0
      %1488 = vmatpush2.bf16.msra.mxu0 0
      %1489 = vmatprep.subr.bf16.mxu0 0
      %1490 = vmatpush2.bf16.msra.mxu0 0
      %1491 = vmatprep.subr.bf16.mxu0 0
      %1492 = vmatpush2.bf16.msra.mxu0 0
      %1493 = vmatprep.subr.bf16.mxu0 0
      %1494 = vmatpush2.bf16.msra.mxu0 0
      %1495 = vmatprep.mubr.bf16.mxu0 0
      %1496 = vmatmul.mubr.bf16.gmra.mxu0 %v1412
      %v1497 = vpop.f32.mrf.mxu0
      %v1498 = vadd.f32 0.0, %v1497
      %v1499 = vpop.f32.mrf.mxu0
      %v1500 = vpop.f32.mrf.mxu0
      %v1501 = vadd.f32 0.0, %v1500
      %v1502 = vpop.f32.mrf.mxu0
      %1503 = vmatprep.mubr.bf16.mxu0 0
      %1504 = vmatmul.mubr.bf16.gmra.mxu0 %v1415
      %v1505 = vpop.f32.mrf.mxu0
      %v1506 = vadd.f32 0.0, %v1505
      %v1507 = vpop.f32.mrf.mxu0
      %v1508 = vpop.f32.mrf.mxu0
      %v1509 = vadd.f32 0.0, %v1508
      %v1510 = vpop.f32.mrf.mxu0
      %1511 = vmatprep.mubr.bf16.mxu0 0
      %1512 = vmatmul.mubr.bf16.gmra.mxu0 %v1418
      %v1513 = vpop.f32.mrf.mxu0
      %v1514 = vadd.f32 0.0, %v1513
      %v1515 = vpop.f32.mrf.mxu0
      %v1516 = vpop.f32.mrf.mxu0
      %v1517 = vadd.f32 0.0, %v1516
      %v1518 = vpop.f32.mrf.mxu0
      %1519 = vmatprep.mubr.bf16.mxu0 0
      %1520 = vmatmul.mubr.bf16.gmra.mxu0 %v1421
      %v1521 = vpop.f32.mrf.mxu0
      %v1522 = vadd.f32 0.0, %v1521
      %v1523 = vpop.f32.mrf.mxu0
      %v1524 = vpop.f32.mrf.mxu0
      %v1525 = vadd.f32 0.0, %v1524
      %v1526 = vpop.f32.mrf.mxu0
      %1527 = vmatprep.mubr.bf16.mxu0 0
      %1528 = vmatmul.mubr.bf16.gmra.mxu0 %v1424
      %v1529 = vpop.f32.mrf.mxu0
      %v1530 = vadd.f32 0.0, %v1529
      %v1531 = vpop.f32.mrf.mxu0
      %v1532 = vpop.f32.mrf.mxu0
      %v1533 = vadd.f32 0.0, %v1532
      %v1534 = vpop.f32.mrf.mxu0
      %1535 = vmatprep.mubr.bf16.mxu0 0
      %1536 = vmatmul.mubr.bf16.gmra.mxu0 %v1427
      %v1537 = vpop.f32.mrf.mxu0
      %v1538 = vadd.f32 0.0, %v1537
      %v1539 = vpop.f32.mrf.mxu0
      %v1540 = vpop.f32.mrf.mxu0
      %v1541 = vadd.f32 0.0, %v1540
      %v1542 = vpop.f32.mrf.mxu0
      %1543 = vmatprep.mubr.bf16.mxu0 0
      %1544 = vmatmul.mubr.bf16.gmra.mxu0 %v1430
      %v1545 = vpop.f32.mrf.mxu0
      %v1546 = vadd.f32 0.0, %v1545
      %v1547 = vpop.f32.mrf.mxu0
      %v1548 = vpop.f32.mrf.mxu0
      %v1549 = vadd.f32 0.0, %v1548
      %v1550 = vpop.f32.mrf.mxu0
      %1551 = vmatprep.mubr.bf16.mxu0 0
      %1552 = vmatmul.mubr.bf16.gmra.mxu0 %v1433
      %v1553 = vpop.f32.mrf.mxu0
      %v1554 = vadd.f32 0.0, %v1553
      %v1555 = vpop.f32.mrf.mxu0
      %v1556 = vpop.f32.mrf.mxu0
      %v1557 = vadd.f32 0.0, %v1556
      %v1558 = vpop.f32.mrf.mxu0
      %1559 = vmatprep.mubr.bf16.mxu0 0
      %1560 = vmatmul.mubr.bf16.gmra.mxu0 %v1436
      %v1561 = vpop.f32.mrf.mxu0
      %v1562 = vadd.f32 0.0, %v1561
      %v1563 = vpop.f32.mrf.mxu0
      %v1564 = vpop.f32.mrf.mxu0
      %v1565 = vadd.f32 0.0, %v1564
      %v1566 = vpop.f32.mrf.mxu0
      %1567 = vmatprep.mubr.bf16.mxu0 0
      %1568 = vmatmul.mubr.bf16.gmra.mxu0 %v1439
      %v1569 = vpop.f32.mrf.mxu0
      %v1570 = vadd.f32 0.0, %v1569
      %v1571 = vpop.f32.mrf.mxu0
      %v1572 = vpop.f32.mrf.mxu0
      %v1573 = vadd.f32 0.0, %v1572
      %v1574 = vpop.f32.mrf.mxu0
      %1575 = vmatprep.mubr.bf16.mxu0 0
      %1576 = vmatmul.mubr.bf16.gmra.mxu0 %v1442
      %v1577 = vpop.f32.mrf.mxu0
      %v1578 = vadd.f32 0.0, %v1577
      %v1579 = vpop.f32.mrf.mxu0
      %v1580 = vpop.f32.mrf.mxu0
      %v1581 = vadd.f32 0.0, %v1580
      %v1582 = vpop.f32.mrf.mxu0
      %1583 = vmatprep.mubr.bf16.mxu0 0
      %1584 = vmatmul.mubr.bf16.gmra.mxu0 %v1445
      %v1585 = vpop.f32.mrf.mxu0
      %v1586 = vadd.f32 0.0, %v1585
      %v1587 = vpop.f32.mrf.mxu0
      %v1588 = vpop.f32.mrf.mxu0
      %v1589 = vadd.f32 0.0, %v1588
      %v1590 = vpop.f32.mrf.mxu0
      %1591 = vmatprep.mubr.bf16.mxu0 0
      %1592 = vmatmul.mubr.bf16.gmra.mxu0 %v1448
      %v1593 = vpop.f32.mrf.mxu0
      %v1594 = vadd.f32 0.0, %v1593
      %v1595 = vpop.f32.mrf.mxu0
      %v1596 = vpop.f32.mrf.mxu0
      %v1597 = vadd.f32 0.0, %v1596
      %v1598 = vpop.f32.mrf.mxu0
      %1599 = vmatprep.mubr.bf16.mxu0 0
      %1600 = vmatmul.mubr.bf16.gmra.mxu0 %v1451
      %v1601 = vpop.f32.mrf.mxu0
      %v1602 = vadd.f32 0.0, %v1601
      %v1603 = vpop.f32.mrf.mxu0
      %v1604 = vpop.f32.mrf.mxu0
      %v1605 = vadd.f32 0.0, %v1604
      %v1606 = vpop.f32.mrf.mxu0
      %1607 = vmatprep.mubr.bf16.mxu0 0
      %1608 = vmatmul.mubr.bf16.gmra.mxu0 %v1454
      %v1609 = vpop.f32.mrf.mxu0
      %v1610 = vadd.f32 0.0, %v1609
      %v1611 = vpop.f32.mrf.mxu0
      %v1612 = vpop.f32.mrf.mxu0
      %v1613 = vadd.f32 0.0, %v1612
      %v1614 = vpop.f32.mrf.mxu0
      %1615 = vmatprep.mubr.bf16.mxu0 0
      %1616 = vmatmul.mubr.bf16.gmra.mxu0 %v1457
      %v1617 = vpop.f32.mrf.mxu0
      %v1618 = vadd.f32 0.0, %v1617
      %v1619 = vpop.f32.mrf.mxu0
      %v1620 = vpop.f32.mrf.mxu0
      %v1621 = vadd.f32 0.0, %v1620
      %v1622 = vpop.f32.mrf.mxu0
      %1623 = vdwg.mxu0
      %v1656 = vunpack.c.l.b16 %v924
      %v1657 = vunpack.c.l.b16 %v925
      %v1658 = vunpack.c.l.b16 %v926
      %v1659 = vunpack.c.l.b16 %v927
      %v1660 = vunpack.c.l.b16 %v928
      %v1661 = vunpack.c.l.b16 %v929
      %v1662 = vunpack.c.l.b16 %v930
      %v1663 = vunpack.c.l.b16 %v931
      %v1664 = vunpack.c.l.b16 %v932
      %v1665 = vunpack.c.l.b16 %v933
      %v1666 = vunpack.c.l.b16 %v934
      %v1667 = vunpack.c.l.b16 %v935
      %v1668 = vunpack.c.l.b16 %v936
      %v1669 = vunpack.c.l.b16 %v937
      %v1670 = vunpack.c.l.b16 %v938
      %v1671 = vunpack.c.l.b16 %v939
      %v1672 = vunpack.c.l.b16 %v940
      %v1673 = vunpack.c.l.b16 %v941
      %v1674 = vunpack.c.l.b16 %v942
      %v1675 = vunpack.c.l.b16 %v943
      %v1676 = vunpack.c.l.b16 %v944
      %v1677 = vunpack.c.l.b16 %v945
      %v1678 = vunpack.c.l.b16 %v946
      %v1679 = vunpack.c.l.b16 %v947
      %v1680 = vunpack.c.l.b16 %v948
      %v1681 = vunpack.c.l.b16 %v949
      %v1682 = vunpack.c.l.b16 %v950
      %v1683 = vunpack.c.l.b16 %v951
      %v1684 = vunpack.c.l.b16 %v952
      %v1685 = vunpack.c.l.b16 %v953
      %v1686 = vunpack.c.l.b16 %v954
      %v1687 = vunpack.c.l.b16 %v955
      %v1688 = vpack.c.b16 %v1657, %v1656
      %v1689 = vpack.c.b16 %v1659, %v1658
      %v1690 = vpack.c.b16 %v1661, %v1660
      %v1691 = vpack.c.b16 %v1663, %v1662
      %v1692 = vpack.c.b16 %v1665, %v1664
      %v1693 = vpack.c.b16 %v1667, %v1666
      %v1694 = vpack.c.b16 %v1669, %v1668
      %v1695 = vpack.c.b16 %v1671, %v1670
      %v1696 = vpack.c.b16 %v1673, %v1672
      %v1697 = vpack.c.b16 %v1675, %v1674
      %v1698 = vpack.c.b16 %v1677, %v1676
      %v1699 = vpack.c.b16 %v1679, %v1678
      %v1700 = vpack.c.b16 %v1681, %v1680
      %v1701 = vpack.c.b16 %v1683, %v1682
      %v1702 = vpack.c.b16 %v1685, %v1684
      %v1703 = vpack.c.b16 %v1687, %v1686
      %v1705 = vsel %vm1410, %v1688, 0
      %v1708 = vsel %vm1410, %v1689, 0
      %v1711 = vsel %vm1410, %v1690, 0
      %v1714 = vsel %vm1410, %v1691, 0
      %v1717 = vsel %vm1410, %v1692, 0
      %v1720 = vsel %vm1410, %v1693, 0
      %v1723 = vsel %vm1410, %v1694, 0
      %v1726 = vsel %vm1410, %v1695, 0
      %v1729 = vsel %vm1410, %v1696, 0
      %v1732 = vsel %vm1410, %v1697, 0
      %v1735 = vsel %vm1410, %v1698, 0
      %v1738 = vsel %vm1410, %v1699, 0
      %v1741 = vsel %vm1410, %v1700, 0
      %v1744 = vsel %vm1410, %v1701, 0
      %v1747 = vsel %vm1410, %v1702, 0
      %v1750 = vsel %vm1410, %v1703, 0
      %v1753 = vsel %vm1459, %v956, 0
      %1755 = vmatprep.subr.bf16.mxu0 0
      %1756 = vmatpush1.bf16.msra.mxu0 0
      %1757 = vmatprep.subr.bf16.mxu0 0
      %1758 = vmatpush1.bf16.msra.mxu0 0
      %1759 = vmatprep.subr.bf16.mxu0 0
      %1760 = vmatpush1.bf16.msra.mxu0 0
      %1761 = vmatprep.subr.bf16.mxu0 0
      %1762 = vmatpush1.bf16.msra.mxu0 0
      %1763 = vmatprep.subr.bf16.mxu0 0
      %1764 = vmatpush1.bf16.msra.mxu0 0
      %1765 = vmatprep.subr.bf16.mxu0 0
      %1766 = vmatpush1.bf16.msra.mxu0 0
      %1767 = vmatprep.subr.bf16.mxu0 0
      %1768 = vmatpush1.bf16.msra.mxu0 0
      %1769 = vmatprep.subr.bf16.mxu0 0
      %1770 = vmatpush1.bf16.msra.mxu0 %v1753
      %1771 = vmatprep.subr.bf16.mxu0 0
      %1772 = vmatpush2.bf16.msra.mxu0 0
      %1773 = vmatprep.subr.bf16.mxu0 0
      %1774 = vmatpush2.bf16.msra.mxu0 0
      %1775 = vmatprep.subr.bf16.mxu0 0
      %1776 = vmatpush2.bf16.msra.mxu0 0
      %1777 = vmatprep.subr.bf16.mxu0 0
      %1778 = vmatpush2.bf16.msra.mxu0 0
      %1779 = vmatprep.subr.bf16.mxu0 0
      %1780 = vmatpush2.bf16.msra.mxu0 0
      %1781 = vmatprep.subr.bf16.mxu0 0
      %1782 = vmatpush2.bf16.msra.mxu0 0
      %1783 = vmatprep.subr.bf16.mxu0 0
      %1784 = vmatpush2.bf16.msra.mxu0 0
      %1785 = vmatprep.subr.bf16.mxu0 0
      %1786 = vmatpush2.bf16.msra.mxu0 0
      %1787 = vmatprep.mubr.bf16.mxu0 0
      %1788 = vmatmul.mubr.bf16.gmra.mxu0 %v1705
      %v1789 = vpop.f32.mrf.mxu0
      %v1790 = vadd.f32 %v1498, %v1789
      %v1791 = vpop.f32.mrf.mxu0
      %v1792 = vpop.f32.mrf.mxu0
      %v1793 = vadd.f32 %v1501, %v1792
      %v1794 = vpop.f32.mrf.mxu0
      %1795 = vmatprep.mubr.bf16.mxu0 0
      %1796 = vmatmul.mubr.bf16.gmra.mxu0 %v1708
      %v1797 = vpop.f32.mrf.mxu0
      %v1798 = vadd.f32 %v1506, %v1797
      %v1799 = vpop.f32.mrf.mxu0
      %v1800 = vpop.f32.mrf.mxu0
      %v1801 = vadd.f32 %v1509, %v1800
      %v1802 = vpop.f32.mrf.mxu0
      %1803 = vmatprep.mubr.bf16.mxu0 0
      %1804 = vmatmul.mubr.bf16.gmra.mxu0 %v1711
      %v1805 = vpop.f32.mrf.mxu0
      %v1806 = vadd.f32 %v1514, %v1805
      %v1807 = vpop.f32.mrf.mxu0
      %v1808 = vpop.f32.mrf.mxu0
      %v1809 = vadd.f32 %v1517, %v1808
      %v1810 = vpop.f32.mrf.mxu0
      %1811 = vmatprep.mubr.bf16.mxu0 0
      %1812 = vmatmul.mubr.bf16.gmra.mxu0 %v1714
      %v1813 = vpop.f32.mrf.mxu0
      %v1814 = vadd.f32 %v1522, %v1813
      %v1815 = vpop.f32.mrf.mxu0
      %v1816 = vpop.f32.mrf.mxu0
      %v1817 = vadd.f32 %v1525, %v1816
      %v1818 = vpop.f32.mrf.mxu0
      %1819 = vmatprep.mubr.bf16.mxu0 0
      %1820 = vmatmul.mubr.bf16.gmra.mxu0 %v1717
      %v1821 = vpop.f32.mrf.mxu0
      %v1822 = vadd.f32 %v1530, %v1821
      %v1823 = vpop.f32.mrf.mxu0
      %v1824 = vpop.f32.mrf.mxu0
      %v1825 = vadd.f32 %v1533, %v1824
      %v1826 = vpop.f32.mrf.mxu0
      %1827 = vmatprep.mubr.bf16.mxu0 0
      %1828 = vmatmul.mubr.bf16.gmra.mxu0 %v1720
      %v1829 = vpop.f32.mrf.mxu0
      %v1830 = vadd.f32 %v1538, %v1829
      %v1831 = vpop.f32.mrf.mxu0
      %v1832 = vpop.f32.mrf.mxu0
      %v1833 = vadd.f32 %v1541, %v1832
      %v1834 = vpop.f32.mrf.mxu0
      %1835 = vmatprep.mubr.bf16.mxu0 0
      %1836 = vmatmul.mubr.bf16.gmra.mxu0 %v1723
      %v1837 = vpop.f32.mrf.mxu0
      %v1838 = vadd.f32 %v1546, %v1837
      %v1839 = vpop.f32.mrf.mxu0
      %v1840 = vpop.f32.mrf.mxu0
      %v1841 = vadd.f32 %v1549, %v1840
      %v1842 = vpop.f32.mrf.mxu0
      %1843 = vmatprep.mubr.bf16.mxu0 0
      %1844 = vmatmul.mubr.bf16.gmra.mxu0 %v1726
      %v1845 = vpop.f32.mrf.mxu0
      %v1846 = vadd.f32 %v1554, %v1845
      %v1847 = vpop.f32.mrf.mxu0
      %v1848 = vpop.f32.mrf.mxu0
      %v1849 = vadd.f32 %v1557, %v1848
      %v1850 = vpop.f32.mrf.mxu0
      %1851 = vmatprep.mubr.bf16.mxu0 0
      %1852 = vmatmul.mubr.bf16.gmra.mxu0 %v1729
      %v1853 = vpop.f32.mrf.mxu0
      %v1854 = vadd.f32 %v1562, %v1853
      %v1855 = vpop.f32.mrf.mxu0
      %v1856 = vpop.f32.mrf.mxu0
      %v1857 = vadd.f32 %v1565, %v1856
      %v1858 = vpop.f32.mrf.mxu0
      %1859 = vmatprep.mubr.bf16.mxu0 0
      %1860 = vmatmul.mubr.bf16.gmra.mxu0 %v1732
      %v1861 = vpop.f32.mrf.mxu0
      %v1862 = vadd.f32 %v1570, %v1861
      %v1863 = vpop.f32.mrf.mxu0
      %v1864 = vpop.f32.mrf.mxu0
      %v1865 = vadd.f32 %v1573, %v1864
      %v1866 = vpop.f32.mrf.mxu0
      %1867 = vmatprep.mubr.bf16.mxu0 0
      %1868 = vmatmul.mubr.bf16.gmra.mxu0 %v1735
      %v1869 = vpop.f32.mrf.mxu0
      %v1870 = vadd.f32 %v1578, %v1869
      %v1871 = vpop.f32.mrf.mxu0
      %v1872 = vpop.f32.mrf.mxu0
      %v1873 = vadd.f32 %v1581, %v1872
      %v1874 = vpop.f32.mrf.mxu0
      %1875 = vmatprep.mubr.bf16.mxu0 0
      %1876 = vmatmul.mubr.bf16.gmra.mxu0 %v1738
      %v1877 = vpop.f32.mrf.mxu0
      %v1878 = vadd.f32 %v1586, %v1877
      %v1879 = vpop.f32.mrf.mxu0
      %v1880 = vpop.f32.mrf.mxu0
      %v1881 = vadd.f32 %v1589, %v1880
      %v1882 = vpop.f32.mrf.mxu0
      %1883 = vmatprep.mubr.bf16.mxu0 0
      %1884 = vmatmul.mubr.bf16.gmra.mxu0 %v1741
      %v1885 = vpop.f32.mrf.mxu0
      %v1886 = vadd.f32 %v1594, %v1885
      %v1887 = vpop.f32.mrf.mxu0
      %v1888 = vpop.f32.mrf.mxu0
      %v1889 = vadd.f32 %v1597, %v1888
      %v1890 = vpop.f32.mrf.mxu0
      %1891 = vmatprep.mubr.bf16.mxu0 0
      %1892 = vmatmul.mubr.bf16.gmra.mxu0 %v1744
      %v1893 = vpop.f32.mrf.mxu0
      %v1894 = vadd.f32 %v1602, %v1893
      %v1895 = vpop.f32.mrf.mxu0
      %v1896 = vpop.f32.mrf.mxu0
      %v1897 = vadd.f32 %v1605, %v1896
      %v1898 = vpop.f32.mrf.mxu0
      %1899 = vmatprep.mubr.bf16.mxu0 0
      %1900 = vmatmul.mubr.bf16.gmra.mxu0 %v1747
      %v1901 = vpop.f32.mrf.mxu0
      %v1902 = vadd.f32 %v1610, %v1901
      %v1903 = vpop.f32.mrf.mxu0
      %v1904 = vpop.f32.mrf.mxu0
      %v1905 = vadd.f32 %v1613, %v1904
      %v1906 = vpop.f32.mrf.mxu0
      %1907 = vmatprep.mubr.bf16.mxu0 0
      %1908 = vmatmul.mubr.bf16.gmra.mxu0 %v1750
      %v1909 = vpop.f32.mrf.mxu0
      %v1910 = vadd.f32 %v1618, %v1909
      %v1911 = vpop.f32.mrf.mxu0
      %v1912 = vpop.f32.mrf.mxu0
      %v1913 = vadd.f32 %v1621, %v1912
      %v1914 = vpop.f32.mrf.mxu0
      %1915 = vdwg.mxu0
      %v1916 = vld [vmem:[#allocation2] sm:$0xe]
      %v1917 = vld [vmem:[#allocation2 + $0xc] sm:$0xe]
      %v1918 = vld [vmem:[#allocation2 + $0x18] sm:$0xe]
      %v1919 = vld [vmem:[#allocation2 + $0x24] sm:$0xe]
      %v1920 = vld [vmem:[#allocation2 + $0x30] sm:$0xe]
      %v1921 = vld [vmem:[#allocation2 + $0x3c] sm:$0xe]
      %v1922 = vld [vmem:[#allocation2 + $0x48] sm:$0xe]
      %v1923 = vld [vmem:[#allocation2 + $0x54] sm:$0xe]
      %v1924 = vld [vmem:[#allocation2 + $0x60] sm:$0xe]
      %v1925 = vld [vmem:[#allocation2 + $0x6c] sm:$0xe]
      %v1926 = vld [vmem:[#allocation2 + $0x78] sm:$0xe]
      %v1927 = vld [vmem:[#allocation2 + $0x84] sm:$0xe]
      %v1928 = vld [vmem:[#allocation2 + $0x90] sm:$0xe]
      %v1929 = vld [vmem:[#allocation2 + $0x9c] sm:$0xe]
      %v1930 = vld [vmem:[#allocation2 + $0xa8] sm:$0xe]
      %v1931 = vld [vmem:[#allocation2 + $0xb4] sm:$0xe]
      %vm1964 = vcmask 1042432
      %vm1965 = vcmask 1046532
      %vm1966 = vmor %vm1964, %vm1965
      %v1967 = vrot.slane %v1916, 5
      %v1968 = vrot.slane %v1967, 4
      %v1969 = vrot.slane %v925, 5
      %v1970 = vsel %vm1966, %v1968, %v1969
      %v1971 = vrot.slane %v1969, 4
      %v1972 = vrot.slane %v957, 5
      %v1973 = vsel %vm1966, %v1971, %v1972
      %v1974 = vrot.slane %v1917, 5
      %v1975 = vrot.slane %v1974, 4
      %v1976 = vrot.slane %v927, 5
      %v1977 = vsel %vm1966, %v1975, %v1976
      %v1978 = vrot.slane %v1976, 4
      %v1979 = vrot.slane %v958, 5
      %v1980 = vsel %vm1966, %v1978, %v1979
      %v1981 = vrot.slane %v1918, 5
      %v1982 = vrot.slane %v1981, 4
      %v1983 = vrot.slane %v929, 5
      %v1984 = vsel %vm1966, %v1982, %v1983
      %v1985 = vrot.slane %v1983, 4
      %v1986 = vrot.slane %v959, 5
      %v1987 = vsel %vm1966, %v1985, %v1986
      %v1988 = vrot.slane %v1919, 5
      %v1989 = vrot.slane %v1988, 4
      %v1990 = vrot.slane %v931, 5
      %v1991 = vsel %vm1966, %v1989, %v1990
      %v1992 = vrot.slane %v1990, 4
      %v1993 = vrot.slane %v960, 5
      %v1994 = vsel %vm1966, %v1992, %v1993
      %v1995 = vrot.slane %v1920, 5
      %v1996 = vrot.slane %v1995, 4
      %v1997 = vrot.slane %v933, 5
      %v1998 = vsel %vm1966, %v1996, %v1997
      %v1999 = vrot.slane %v1997, 4
      %v2000 = vrot.slane %v961, 5
      %v2001 = vsel %vm1966, %v1999, %v2000
      %v2002 = vrot.slane %v1921, 5
      %v2003 = vrot.slane %v2002, 4
      %v2004 = vrot.slane %v935, 5
      %v2005 = vsel %vm1966, %v2003, %v2004
      %v2006 = vrot.slane %v2004, 4
      %v2007 = vrot.slane %v962, 5
      %v2008 = vsel %vm1966, %v2006, %v2007
      %v2009 = vrot.slane %v1922, 5
      %v2010 = vrot.slane %v2009, 4
      %v2011 = vrot.slane %v937, 5
      %v2012 = vsel %vm1966, %v2010, %v2011
      %v2013 = vrot.slane %v2011, 4
      %v2014 = vrot.slane %v963, 5
      %v2015 = vsel %vm1966, %v2013, %v2014
      %v2016 = vrot.slane %v1923, 5
      %v2017 = vrot.slane %v2016, 4
      %v2018 = vrot.slane %v939, 5
      %v2019 = vsel %vm1966, %v2017, %v2018
      %v2020 = vrot.slane %v2018, 4
      %v2021 = vrot.slane %v964, 5
      %v2022 = vsel %vm1966, %v2020, %v2021
      %v2023 = vrot.slane %v1924, 5
      %v2024 = vrot.slane %v2023, 4
      %v2025 = vrot.slane %v941, 5
      %v2026 = vsel %vm1966, %v2024, %v2025
      %v2027 = vrot.slane %v2025, 4
      %v2028 = vrot.slane %v965, 5
      %v2029 = vsel %vm1966, %v2027, %v2028
      %v2030 = vrot.slane %v1925, 5
      %v2031 = vrot.slane %v2030, 4
      %v2032 = vrot.slane %v943, 5
      %v2033 = vsel %vm1966, %v2031, %v2032
      %v2034 = vrot.slane %v2032, 4
      %v2035 = vrot.slane %v966, 5
      %v2036 = vsel %vm1966, %v2034, %v2035
      %v2037 = vrot.slane %v1926, 5
      %v2038 = vrot.slane %v2037, 4
      %v2039 = vrot.slane %v945, 5
      %v2040 = vsel %vm1966, %v2038, %v2039
      %v2041 = vrot.slane %v2039, 4
      %v2042 = vrot.slane %v967, 5
      %v2043 = vsel %vm1966, %v2041, %v2042
      %v2044 = vrot.slane %v1927, 5
      %v2045 = vrot.slane %v2044, 4
      %v2046 = vrot.slane %v947, 5
      %v2047 = vsel %vm1966, %v2045, %v2046
      %v2048 = vrot.slane %v2046, 4
      %v2049 = vrot.slane %v968, 5
      %v2050 = vsel %vm1966, %v2048, %v2049
      %v2051 = vrot.slane %v1928, 5
      %v2052 = vrot.slane %v2051, 4
      %v2053 = vrot.slane %v949, 5
      %v2054 = vsel %vm1966, %v2052, %v2053
      %v2055 = vrot.slane %v2053, 4
      %v2056 = vrot.slane %v969, 5
      %v2057 = vsel %vm1966, %v2055, %v2056
      %v2058 = vrot.slane %v1929, 5
      %v2059 = vrot.slane %v2058, 4
      %v2060 = vrot.slane %v951, 5
      %v2061 = vsel %vm1966, %v2059, %v2060
      %v2062 = vrot.slane %v2060, 4
      %v2063 = vrot.slane %v970, 5
      %v2064 = vsel %vm1966, %v2062, %v2063
      %v2065 = vrot.slane %v1930, 5
      %v2066 = vrot.slane %v2065, 4
      %v2067 = vrot.slane %v953, 5
      %v2068 = vsel %vm1966, %v2066, %v2067
      %v2069 = vrot.slane %v2067, 4
      %v2070 = vrot.slane %v971, 5
      %v2071 = vsel %vm1966, %v2069, %v2070
      %v2072 = vrot.slane %v1931, 5
      %v2073 = vrot.slane %v2072, 4
      %v2074 = vrot.slane %v955, 5
      %v2075 = vsel %vm1966, %v2073, %v2074
      %v2076 = vrot.slane %v2074, 4
      %v2077 = vrot.slane %v972, 5
      %v2078 = vsel %vm1966, %v2076, %v2077
      %s2079 = scalar_lea.vmem %s3, 4
      %v2080 = vld [vmem:[%s2079] sm:$0x3]
      %v2081 = vunpack.c.l.b16 %v1970
      %v2082 = vunpack.c.l.b16 %v1973
      %v2083 = vunpack.c.l.b16 %v1977
      %v2084 = vunpack.c.l.b16 %v1980
      %v2085 = vunpack.c.l.b16 %v1984
      %v2086 = vunpack.c.l.b16 %v1987
      %v2087 = vunpack.c.l.b16 %v1991
      %v2088 = vunpack.c.l.b16 %v1994
      %v2089 = vunpack.c.l.b16 %v1998
      %v2090 = vunpack.c.l.b16 %v2001
      %v2091 = vunpack.c.l.b16 %v2005
      %v2092 = vunpack.c.l.b16 %v2008
      %v2093 = vunpack.c.l.b16 %v2012
      %v2094 = vunpack.c.l.b16 %v2015
      %v2095 = vunpack.c.l.b16 %v2019
      %v2096 = vunpack.c.l.b16 %v2022
      %v2097 = vunpack.c.l.b16 %v2026
      %v2098 = vunpack.c.l.b16 %v2029
      %v2099 = vunpack.c.l.b16 %v2033
      %v2100 = vunpack.c.l.b16 %v2036
      %v2101 = vunpack.c.l.b16 %v2040
      %v2102 = vunpack.c.l.b16 %v2043
      %v2103 = vunpack.c.l.b16 %v2047
      %v2104 = vunpack.c.l.b16 %v2050
      %v2105 = vunpack.c.l.b16 %v2054
      %v2106 = vunpack.c.l.b16 %v2057
      %v2107 = vunpack.c.l.b16 %v2061
      %v2108 = vunpack.c.l.b16 %v2064
      %v2109 = vunpack.c.l.b16 %v2068
      %v2110 = vunpack.c.l.b16 %v2071
      %v2111 = vunpack.c.l.b16 %v2075
      %v2112 = vunpack.c.l.b16 %v2078
      %v2113 = vpack.c.b16 %v2082, %v2081
      %v2114 = vpack.c.b16 %v2084, %v2083
      %v2115 = vpack.c.b16 %v2086, %v2085
      %v2116 = vpack.c.b16 %v2088, %v2087
      %v2117 = vpack.c.b16 %v2090, %v2089
      %v2118 = vpack.c.b16 %v2092, %v2091
      %v2119 = vpack.c.b16 %v2094, %v2093
      %v2120 = vpack.c.b16 %v2096, %v2095
      %v2121 = vpack.c.b16 %v2098, %v2097
      %v2122 = vpack.c.b16 %v2100, %v2099
      %v2123 = vpack.c.b16 %v2102, %v2101
      %v2124 = vpack.c.b16 %v2104, %v2103
      %v2125 = vpack.c.b16 %v2106, %v2105
      %v2126 = vpack.c.b16 %v2108, %v2107
      %v2127 = vpack.c.b16 %v2110, %v2109
      %v2128 = vpack.c.b16 %v2112, %v2111
      %v2130 = vsel %vm1410, %v2113, 0
      %v2133 = vsel %vm1410, %v2114, 0
      %v2136 = vsel %vm1410, %v2115, 0
      %v2139 = vsel %vm1410, %v2116, 0
      %v2142 = vsel %vm1410, %v2117, 0
      %v2145 = vsel %vm1410, %v2118, 0
      %v2148 = vsel %vm1410, %v2119, 0
      %v2151 = vsel %vm1410, %v2120, 0
      %v2154 = vsel %vm1410, %v2121, 0
      %v2157 = vsel %vm1410, %v2122, 0
      %v2160 = vsel %vm1410, %v2123, 0
      %v2163 = vsel %vm1410, %v2124, 0
      %v2166 = vsel %vm1410, %v2125, 0
      %v2169 = vsel %vm1410, %v2126, 0
      %v2172 = vsel %vm1410, %v2127, 0
      %v2175 = vsel %vm1410, %v2128, 0
      %v2178 = vsel %vm1459, %v2080, 0
      %2180 = vmatprep.subr.bf16.mxu0 0
      %2181 = vmatpush1.bf16.msra.mxu0 0
      %2182 = vmatprep.subr.bf16.mxu0 0
      %2183 = vmatpush1.bf16.msra.mxu0 0
      %2184 = vmatprep.subr.bf16.mxu0 0
      %2185 = vmatpush1.bf16.msra.mxu0 0
      %2186 = vmatprep.subr.bf16.mxu0 0
      %2187 = vmatpush1.bf16.msra.mxu0 0
      %2188 = vmatprep.subr.bf16.mxu0 0
      %2189 = vmatpush1.bf16.msra.mxu0 0
      %2190 = vmatprep.subr.bf16.mxu0 0
      %2191 = vmatpush1.bf16.msra.mxu0 0
      %2192 = vmatprep.subr.bf16.mxu0 0
      %2193 = vmatpush1.bf16.msra.mxu0 0
      %2194 = vmatprep.subr.bf16.mxu0 0
      %2195 = vmatpush1.bf16.msra.mxu0 %v2178
      %2196 = vmatprep.subr.bf16.mxu0 0
      %2197 = vmatpush2.bf16.msra.mxu0 0
      %2198 = vmatprep.subr.bf16.mxu0 0
      %2199 = vmatpush2.bf16.msra.mxu0 0
      %2200 = vmatprep.subr.bf16.mxu0 0
      %2201 = vmatpush2.bf16.msra.mxu0 0
      %2202 = vmatprep.subr.bf16.mxu0 0
      %2203 = vmatpush2.bf16.msra.mxu0 0
      %2204 = vmatprep.subr.bf16.mxu0 0
      %2205 = vmatpush2.bf16.msra.mxu0 0
      %2206 = vmatprep.subr.bf16.mxu0 0
      %2207 = vmatpush2.bf16.msra.mxu0 0
      %2208 = vmatprep.subr.bf16.mxu0 0
      %2209 = vmatpush2.bf16.msra.mxu0 0
      %2210 = vmatprep.subr.bf16.mxu0 0
      %2211 = vmatpush2.bf16.msra.mxu0 0
      %2212 = vmatprep.mubr.bf16.mxu0 0
      %2213 = vmatmul.mubr.bf16.gmra.mxu0 %v2130
      %v2214 = vpop.f32.mrf.mxu0
      %v2215 = vadd.f32 0.0, %v2214
      %v2216 = vpop.f32.mrf.mxu0
      %v2217 = vpop.f32.mrf.mxu0
      %v2218 = vadd.f32 0.0, %v2217
      %v2219 = vpop.f32.mrf.mxu0
      %2220 = vmatprep.mubr.bf16.mxu0 0
      %2221 = vmatmul.mubr.bf16.gmra.mxu0 %v2133
      %v2222 = vpop.f32.mrf.mxu0
      %v2223 = vadd.f32 0.0, %v2222
      %v2224 = vpop.f32.mrf.mxu0
      %v2225 = vpop.f32.mrf.mxu0
      %v2226 = vadd.f32 0.0, %v2225
      %v2227 = vpop.f32.mrf.mxu0
      %2228 = vmatprep.mubr.bf16.mxu0 0
      %2229 = vmatmul.mubr.bf16.gmra.mxu0 %v2136
      %v2230 = vpop.f32.mrf.mxu0
      %v2231 = vadd.f32 0.0, %v2230
      %v2232 = vpop.f32.mrf.mxu0
      %v2233 = vpop.f32.mrf.mxu0
      %v2234 = vadd.f32 0.0, %v2233
      %v2235 = vpop.f32.mrf.mxu0
      %2236 = vmatprep.mubr.bf16.mxu0 0
      %2237 = vmatmul.mubr.bf16.gmra.mxu0 %v2139
      %v2238 = vpop.f32.mrf.mxu0
      %v2239 = vadd.f32 0.0, %v2238
      %v2240 = vpop.f32.mrf.mxu0
      %v2241 = vpop.f32.mrf.mxu0
      %v2242 = vadd.f32 0.0, %v2241
      %v2243 = vpop.f32.mrf.mxu0
      %2244 = vmatprep.mubr.bf16.mxu0 0
      %2245 = vmatmul.mubr.bf16.gmra.mxu0 %v2142
      %v2246 = vpop.f32.mrf.mxu0
      %v2247 = vadd.f32 0.0, %v2246
      %v2248 = vpop.f32.mrf.mxu0
      %v2249 = vpop.f32.mrf.mxu0
      %v2250 = vadd.f32 0.0, %v2249
      %v2251 = vpop.f32.mrf.mxu0
      %2252 = vmatprep.mubr.bf16.mxu0 0
      %2253 = vmatmul.mubr.bf16.gmra.mxu0 %v2145
      %v2254 = vpop.f32.mrf.mxu0
      %v2255 = vadd.f32 0.0, %v2254
      %v2256 = vpop.f32.mrf.mxu0
      %v2257 = vpop.f32.mrf.mxu0
      %v2258 = vadd.f32 0.0, %v2257
      %v2259 = vpop.f32.mrf.mxu0
      %2260 = vmatprep.mubr.bf16.mxu0 0
      %2261 = vmatmul.mubr.bf16.gmra.mxu0 %v2148
      %v2262 = vpop.f32.mrf.mxu0
      %v2263 = vadd.f32 0.0, %v2262
      %v2264 = vpop.f32.mrf.mxu0
      %v2265 = vpop.f32.mrf.mxu0
      %v2266 = vadd.f32 0.0, %v2265
      %v2267 = vpop.f32.mrf.mxu0
      %2268 = vmatprep.mubr.bf16.mxu0 0
      %2269 = vmatmul.mubr.bf16.gmra.mxu0 %v2151
      %v2270 = vpop.f32.mrf.mxu0
      %v2271 = vadd.f32 0.0, %v2270
      %v2272 = vpop.f32.mrf.mxu0
      %v2273 = vpop.f32.mrf.mxu0
      %v2274 = vadd.f32 0.0, %v2273
      %v2275 = vpop.f32.mrf.mxu0
      %2276 = vmatprep.mubr.bf16.mxu0 0
      %2277 = vmatmul.mubr.bf16.gmra.mxu0 %v2154
      %v2278 = vpop.f32.mrf.mxu0
      %v2279 = vadd.f32 0.0, %v2278
      %v2280 = vpop.f32.mrf.mxu0
      %v2281 = vpop.f32.mrf.mxu0
      %v2282 = vadd.f32 0.0, %v2281
      %v2283 = vpop.f32.mrf.mxu0
      %2284 = vmatprep.mubr.bf16.mxu0 0
      %2285 = vmatmul.mubr.bf16.gmra.mxu0 %v2157
      %v2286 = vpop.f32.mrf.mxu0
      %v2287 = vadd.f32 0.0, %v2286
      %v2288 = vpop.f32.mrf.mxu0
      %v2289 = vpop.f32.mrf.mxu0
      %v2290 = vadd.f32 0.0, %v2289
      %v2291 = vpop.f32.mrf.mxu0
      %2292 = vmatprep.mubr.bf16.mxu0 0
      %2293 = vmatmul.mubr.bf16.gmra.mxu0 %v2160
      %v2294 = vpop.f32.mrf.mxu0
      %v2295 = vadd.f32 0.0, %v2294
      %v2296 = vpop.f32.mrf.mxu0
      %v2297 = vpop.f32.mrf.mxu0
      %v2298 = vadd.f32 0.0, %v2297
      %v2299 = vpop.f32.mrf.mxu0
      %2300 = vmatprep.mubr.bf16.mxu0 0
      %2301 = vmatmul.mubr.bf16.gmra.mxu0 %v2163
      %v2302 = vpop.f32.mrf.mxu0
      %v2303 = vadd.f32 0.0, %v2302
      %v2304 = vpop.f32.mrf.mxu0
      %v2305 = vpop.f32.mrf.mxu0
      %v2306 = vadd.f32 0.0, %v2305
      %v2307 = vpop.f32.mrf.mxu0
      %2308 = vmatprep.mubr.bf16.mxu0 0
      %2309 = vmatmul.mubr.bf16.gmra.mxu0 %v2166
      %v2310 = vpop.f32.mrf.mxu0
      %v2311 = vadd.f32 0.0, %v2310
      %v2312 = vpop.f32.mrf.mxu0
      %v2313 = vpop.f32.mrf.mxu0
      %v2314 = vadd.f32 0.0, %v2313
      %v2315 = vpop.f32.mrf.mxu0
      %2316 = vmatprep.mubr.bf16.mxu0 0
      %2317 = vmatmul.mubr.bf16.gmra.mxu0 %v2169
      %v2318 = vpop.f32.mrf.mxu0
      %v2319 = vadd.f32 0.0, %v2318
      %v2320 = vpop.f32.mrf.mxu0
      %v2321 = vpop.f32.mrf.mxu0
      %v2322 = vadd.f32 0.0, %v2321
      %v2323 = vpop.f32.mrf.mxu0
      %2324 = vmatprep.mubr.bf16.mxu0 0
      %2325 = vmatmul.mubr.bf16.gmra.mxu0 %v2172
      %v2326 = vpop.f32.mrf.mxu0
      %v2327 = vadd.f32 0.0, %v2326
      %v2328 = vpop.f32.mrf.mxu0
      %v2329 = vpop.f32.mrf.mxu0
      %v2330 = vadd.f32 0.0, %v2329
      %v2331 = vpop.f32.mrf.mxu0
      %2332 = vmatprep.mubr.bf16.mxu0 0
      %2333 = vmatmul.mubr.bf16.gmra.mxu0 %v2175
      %v2334 = vpop.f32.mrf.mxu0
      %v2335 = vadd.f32 0.0, %v2334
      %v2336 = vpop.f32.mrf.mxu0
      %v2337 = vpop.f32.mrf.mxu0
      %v2338 = vadd.f32 0.0, %v2337
      %v2339 = vpop.f32.mrf.mxu0
      %2340 = vdwg.mxu0
      %v2341 = vadd.f32 %v1790, %v2215
      %v2342 = vadd.f32 %v1793, %v2218
      %v2343 = vadd.f32 %v1798, %v2223
      %v2344 = vadd.f32 %v1801, %v2226
      %v2345 = vadd.f32 %v1806, %v2231
      %v2346 = vadd.f32 %v1809, %v2234
      %v2347 = vadd.f32 %v1814, %v2239
      %v2348 = vadd.f32 %v1817, %v2242
      %v2349 = vadd.f32 %v1822, %v2247
      %v2350 = vadd.f32 %v1825, %v2250
      %v2351 = vadd.f32 %v1830, %v2255
      %v2352 = vadd.f32 %v1833, %v2258
      %v2353 = vadd.f32 %v1838, %v2263
      %v2354 = vadd.f32 %v1841, %v2266
      %v2355 = vadd.f32 %v1846, %v2271
      %v2356 = vadd.f32 %v1849, %v2274
      %v2357 = vadd.f32 %v1854, %v2279
      %v2358 = vadd.f32 %v1857, %v2282
      %v2359 = vadd.f32 %v1862, %v2287
      %v2360 = vadd.f32 %v1865, %v2290
      %v2361 = vadd.f32 %v1870, %v2295
      %v2362 = vadd.f32 %v1873, %v2298
      %v2363 = vadd.f32 %v1878, %v2303
      %v2364 = vadd.f32 %v1881, %v2306
      %v2365 = vadd.f32 %v1886, %v2311
      %v2366 = vadd.f32 %v1889, %v2314
      %v2367 = vadd.f32 %v1894, %v2319
      %v2368 = vadd.f32 %v1897, %v2322
      %v2369 = vadd.f32 %v1902, %v2327
      %v2370 = vadd.f32 %v1905, %v2330
      %v2371 = vadd.f32 %v1910, %v2335
      %v2372 = vadd.f32 %v1913, %v2338
      %v2373 = vld [vmem:[%s809] sm:$0xf]
      %v2374 = vld [vmem:[%s809 + $0x4] sm:$0xf]
      %v2375 = vld [vmem:[%s809 + $0xc] sm:$0xf]
      %v2376 = vld [vmem:[%s809 + $0x10] sm:$0xf]
      %v2377 = vld [vmem:[%s809 + $0x18] sm:$0xf]
      %v2378 = vld [vmem:[%s809 + $0x1c] sm:$0xf]
      %v2379 = vld [vmem:[%s809 + $0x24] sm:$0xf]
      %v2380 = vld [vmem:[%s809 + $0x28] sm:$0xf]
      %v2381 = vld [vmem:[%s809 + $0x30] sm:$0xf]
      %v2382 = vld [vmem:[%s809 + $0x34] sm:$0xf]
      %v2383 = vld [vmem:[%s809 + $0x3c] sm:$0xf]
      %v2384 = vld [vmem:[%s809 + $0x40] sm:$0xf]
      %v2385 = vld [vmem:[%s809 + $0x48] sm:$0xf]
      %v2386 = vld [vmem:[%s809 + $0x4c] sm:$0xf]
      %v2387 = vld [vmem:[%s809 + $0x54] sm:$0xf]
      %v2388 = vld [vmem:[%s809 + $0x58] sm:$0xf]
      %v2389 = vld [vmem:[%s809 + $0x60] sm:$0xf]
      %v2390 = vld [vmem:[%s809 + $0x64] sm:$0xf]
      %v2391 = vld [vmem:[%s809 + $0x6c] sm:$0xf]
      %v2392 = vld [vmem:[%s809 + $0x70] sm:$0xf]
      %v2393 = vld [vmem:[%s809 + $0x78] sm:$0xf]
      %v2394 = vld [vmem:[%s809 + $0x7c] sm:$0xf]
      %v2395 = vld [vmem:[%s809 + $0x84] sm:$0xf]
      %v2396 = vld [vmem:[%s809 + $0x88] sm:$0xf]
      %v2397 = vld [vmem:[%s809 + $0x90] sm:$0xf]
      %v2398 = vld [vmem:[%s809 + $0x94] sm:$0xf]
      %v2399 = vld [vmem:[%s809 + $0x9c] sm:$0xf]
      %v2400 = vld [vmem:[%s809 + $0xa0] sm:$0xf]
      %v2401 = vld [vmem:[%s809 + $0xa8] sm:$0xf]
      %v2402 = vld [vmem:[%s809 + $0xac] sm:$0xf]
      %v2403 = vld [vmem:[%s809 + $0xb4] sm:$0xf]
      %v2404 = vld [vmem:[%s809 + $0xb8] sm:$0xf]
      %s2405 = scalar_lea.vmem %s3, 6
      %v2406 = vld [vmem:[%s2405] sm:$0x3]
      %v2439 = vunpack.c.l.b16 %v2373
      %v2440 = vunpack.c.l.b16 %v2374
      %v2441 = vunpack.c.l.b16 %v2375
      %v2442 = vunpack.c.l.b16 %v2376
      %v2443 = vunpack.c.l.b16 %v2377
      %v2444 = vunpack.c.l.b16 %v2378
      %v2445 = vunpack.c.l.b16 %v2379
      %v2446 = vunpack.c.l.b16 %v2380
      %v2447 = vunpack.c.l.b16 %v2381
      %v2448 = vunpack.c.l.b16 %v2382
      %v2449 = vunpack.c.l.b16 %v2383
      %v2450 = vunpack.c.l.b16 %v2384
      %v2451 = vunpack.c.l.b16 %v2385
      %v2452 = vunpack.c.l.b16 %v2386
      %v2453 = vunpack.c.l.b16 %v2387
      %v2454 = vunpack.c.l.b16 %v2388
      %v2455 = vunpack.c.l.b16 %v2389
      %v2456 = vunpack.c.l.b16 %v2390
      %v2457 = vunpack.c.l.b16 %v2391
      %v2458 = vunpack.c.l.b16 %v2392
      %v2459 = vunpack.c.l.b16 %v2393
      %v2460 = vunpack.c.l.b16 %v2394
      %v2461 = vunpack.c.l.b16 %v2395
      %v2462 = vunpack.c.l.b16 %v2396
      %v2463 = vunpack.c.l.b16 %v2397
      %v2464 = vunpack.c.l.b16 %v2398
      %v2465 = vunpack.c.l.b16 %v2399
      %v2466 = vunpack.c.l.b16 %v2400
      %v2467 = vunpack.c.l.b16 %v2401
      %v2468 = vunpack.c.l.b16 %v2402
      %v2469 = vunpack.c.l.b16 %v2403
      %v2470 = vunpack.c.l.b16 %v2404
      %v2471 = vpack.c.b16 %v2440, %v2439
      %v2472 = vpack.c.b16 %v2442, %v2441
      %v2473 = vpack.c.b16 %v2444, %v2443
      %v2474 = vpack.c.b16 %v2446, %v2445
      %v2475 = vpack.c.b16 %v2448, %v2447
      %v2476 = vpack.c.b16 %v2450, %v2449
      %v2477 = vpack.c.b16 %v2452, %v2451
      %v2478 = vpack.c.b16 %v2454, %v2453
      %v2479 = vpack.c.b16 %v2456, %v2455
      %v2480 = vpack.c.b16 %v2458, %v2457
      %v2481 = vpack.c.b16 %v2460, %v2459
      %v2482 = vpack.c.b16 %v2462, %v2461
      %v2483 = vpack.c.b16 %v2464, %v2463
      %v2484 = vpack.c.b16 %v2466, %v2465
      %v2485 = vpack.c.b16 %v2468, %v2467
      %v2486 = vpack.c.b16 %v2470, %v2469
      %v2488 = vsel %vm1410, %v2471, 0
      %v2491 = vsel %vm1410, %v2472, 0
      %v2494 = vsel %vm1410, %v2473, 0
      %v2497 = vsel %vm1410, %v2474, 0
      %v2500 = vsel %vm1410, %v2475, 0
      %v2503 = vsel %vm1410, %v2476, 0
      %v2506 = vsel %vm1410, %v2477, 0
      %v2509 = vsel %vm1410, %v2478, 0
      %v2512 = vsel %vm1410, %v2479, 0
      %v2515 = vsel %vm1410, %v2480, 0
      %v2518 = vsel %vm1410, %v2481, 0
      %v2521 = vsel %vm1410, %v2482, 0
      %v2524 = vsel %vm1410, %v2483, 0
      %v2527 = vsel %vm1410, %v2484, 0
      %v2530 = vsel %vm1410, %v2485, 0
      %v2533 = vsel %vm1410, %v2486, 0
      %v2536 = vsel %vm1459, %v2406, 0
      %2538 = vmatprep.subr.bf16.mxu0 0
      %2539 = vmatpush1.bf16.msra.mxu0 0
      %2540 = vmatprep.subr.bf16.mxu0 0
      %2541 = vmatpush1.bf16.msra.mxu0 0
      %2542 = vmatprep.subr.bf16.mxu0 0
      %2543 = vmatpush1.bf16.msra.mxu0 0
      %2544 = vmatprep.subr.bf16.mxu0 0
      %2545 = vmatpush1.bf16.msra.mxu0 0
      %2546 = vmatprep.subr.bf16.mxu0 0
      %2547 = vmatpush1.bf16.msra.mxu0 0
      %2548 = vmatprep.subr.bf16.mxu0 0
      %2549 = vmatpush1.bf16.msra.mxu0 0
      %2550 = vmatprep.subr.bf16.mxu0 0
      %2551 = vmatpush1.bf16.msra.mxu0 0
      %2552 = vmatprep.subr.bf16.mxu0 0
      %2553 = vmatpush1.bf16.msra.mxu0 %v2536
      %2554 = vmatprep.subr.bf16.mxu0 0
      %2555 = vmatpush2.bf16.msra.mxu0 0
      %2556 = vmatprep.subr.bf16.mxu0 0
      %2557 = vmatpush2.bf16.msra.mxu0 0
      %2558 = vmatprep.subr.bf16.mxu0 0
      %2559 = vmatpush2.bf16.msra.mxu0 0
      %2560 = vmatprep.subr.bf16.mxu0 0
      %2561 = vmatpush2.bf16.msra.mxu0 0
      %2562 = vmatprep.subr.bf16.mxu0 0
      %2563 = vmatpush2.bf16.msra.mxu0 0
      %2564 = vmatprep.subr.bf16.mxu0 0
      %2565 = vmatpush2.bf16.msra.mxu0 0
      %2566 = vmatprep.subr.bf16.mxu0 0
      %2567 = vmatpush2.bf16.msra.mxu0 0
      %2568 = vmatprep.subr.bf16.mxu0 0
      %2569 = vmatpush2.bf16.msra.mxu0 0
      %2570 = vmatprep.mubr.bf16.mxu0 0
      %2571 = vmatmul.mubr.bf16.gmra.mxu0 %v2488
      %v2572 = vpop.f32.mrf.mxu0
      %v2573 = vadd.f32 0.0, %v2572
      %v2574 = vpop.f32.mrf.mxu0
      %v2575 = vpop.f32.mrf.mxu0
      %v2576 = vadd.f32 0.0, %v2575
      %v2577 = vpop.f32.mrf.mxu0
      %2578 = vmatprep.mubr.bf16.mxu0 0
      %2579 = vmatmul.mubr.bf16.gmra.mxu0 %v2491
      %v2580 = vpop.f32.mrf.mxu0
      %v2581 = vadd.f32 0.0, %v2580
      %v2582 = vpop.f32.mrf.mxu0
      %v2583 = vpop.f32.mrf.mxu0
      %v2584 = vadd.f32 0.0, %v2583
      %v2585 = vpop.f32.mrf.mxu0
      %2586 = vmatprep.mubr.bf16.mxu0 0
      %2587 = vmatmul.mubr.bf16.gmra.mxu0 %v2494
      %v2588 = vpop.f32.mrf.mxu0
      %v2589 = vadd.f32 0.0, %v2588
      %v2590 = vpop.f32.mrf.mxu0
      %v2591 = vpop.f32.mrf.mxu0
      %v2592 = vadd.f32 0.0, %v2591
      %v2593 = vpop.f32.mrf.mxu0
      %2594 = vmatprep.mubr.bf16.mxu0 0
      %2595 = vmatmul.mubr.bf16.gmra.mxu0 %v2497
      %v2596 = vpop.f32.mrf.mxu0
      %v2597 = vadd.f32 0.0, %v2596
      %v2598 = vpop.f32.mrf.mxu0
      %v2599 = vpop.f32.mrf.mxu0
      %v2600 = vadd.f32 0.0, %v2599
      %v2601 = vpop.f32.mrf.mxu0
      %2602 = vmatprep.mubr.bf16.mxu0 0
      %2603 = vmatmul.mubr.bf16.gmra.mxu0 %v2500
      %v2604 = vpop.f32.mrf.mxu0
      %v2605 = vadd.f32 0.0, %v2604
      %v2606 = vpop.f32.mrf.mxu0
      %v2607 = vpop.f32.mrf.mxu0
      %v2608 = vadd.f32 0.0, %v2607
      %v2609 = vpop.f32.mrf.mxu0
      %2610 = vmatprep.mubr.bf16.mxu0 0
      %2611 = vmatmul.mubr.bf16.gmra.mxu0 %v2503
      %v2612 = vpop.f32.mrf.mxu0
      %v2613 = vadd.f32 0.0, %v2612
      %v2614 = vpop.f32.mrf.mxu0
      %v2615 = vpop.f32.mrf.mxu0
      %v2616 = vadd.f32 0.0, %v2615
      %v2617 = vpop.f32.mrf.mxu0
      %2618 = vmatprep.mubr.bf16.mxu0 0
      %2619 = vmatmul.mubr.bf16.gmra.mxu0 %v2506
      %v2620 = vpop.f32.mrf.mxu0
      %v2621 = vadd.f32 0.0, %v2620
      %v2622 = vpop.f32.mrf.mxu0
      %v2623 = vpop.f32.mrf.mxu0
      %v2624 = vadd.f32 0.0, %v2623
      %v2625 = vpop.f32.mrf.mxu0
      %2626 = vmatprep.mubr.bf16.mxu0 0
      %2627 = vmatmul.mubr.bf16.gmra.mxu0 %v2509
      %v2628 = vpop.f32.mrf.mxu0
      %v2629 = vadd.f32 0.0, %v2628
      %v2630 = vpop.f32.mrf.mxu0
      %v2631 = vpop.f32.mrf.mxu0
      %v2632 = vadd.f32 0.0, %v2631
      %v2633 = vpop.f32.mrf.mxu0
      %2634 = vmatprep.mubr.bf16.mxu0 0
      %2635 = vmatmul.mubr.bf16.gmra.mxu0 %v2512
      %v2636 = vpop.f32.mrf.mxu0
      %v2637 = vadd.f32 0.0, %v2636
      %v2638 = vpop.f32.mrf.mxu0
      %v2639 = vpop.f32.mrf.mxu0
      %v2640 = vadd.f32 0.0, %v2639
      %v2641 = vpop.f32.mrf.mxu0
      %2642 = vmatprep.mubr.bf16.mxu0 0
      %2643 = vmatmul.mubr.bf16.gmra.mxu0 %v2515
      %v2644 = vpop.f32.mrf.mxu0
      %v2645 = vadd.f32 0.0, %v2644
      %v2646 = vpop.f32.mrf.mxu0
      %v2647 = vpop.f32.mrf.mxu0
      %v2648 = vadd.f32 0.0, %v2647
      %v2649 = vpop.f32.mrf.mxu0
      %2650 = vmatprep.mubr.bf16.mxu0 0
      %2651 = vmatmul.mubr.bf16.gmra.mxu0 %v2518
      %v2652 = vpop.f32.mrf.mxu0
      %v2653 = vadd.f32 0.0, %v2652
      %v2654 = vpop.f32.mrf.mxu0
      %v2655 = vpop.f32.mrf.mxu0
      %v2656 = vadd.f32 0.0, %v2655
      %v2657 = vpop.f32.mrf.mxu0
      %2658 = vmatprep.mubr.bf16.mxu0 0
      %2659 = vmatmul.mubr.bf16.gmra.mxu0 %v2521
      %v2660 = vpop.f32.mrf.mxu0
      %v2661 = vadd.f32 0.0, %v2660
      %v2662 = vpop.f32.mrf.mxu0
      %v2663 = vpop.f32.mrf.mxu0
      %v2664 = vadd.f32 0.0, %v2663
      %v2665 = vpop.f32.mrf.mxu0
      %2666 = vmatprep.mubr.bf16.mxu0 0
      %2667 = vmatmul.mubr.bf16.gmra.mxu0 %v2524
      %v2668 = vpop.f32.mrf.mxu0
      %v2669 = vadd.f32 0.0, %v2668
      %v2670 = vpop.f32.mrf.mxu0
      %v2671 = vpop.f32.mrf.mxu0
      %v2672 = vadd.f32 0.0, %v2671
      %v2673 = vpop.f32.mrf.mxu0
      %2674 = vmatprep.mubr.bf16.mxu0 0
      %2675 = vmatmul.mubr.bf16.gmra.mxu0 %v2527
      %v2676 = vpop.f32.mrf.mxu0
      %v2677 = vadd.f32 0.0, %v2676
      %v2678 = vpop.f32.mrf.mxu0
      %v2679 = vpop.f32.mrf.mxu0
      %v2680 = vadd.f32 0.0, %v2679
      %v2681 = vpop.f32.mrf.mxu0
      %2682 = vmatprep.mubr.bf16.mxu0 0
      %2683 = vmatmul.mubr.bf16.gmra.mxu0 %v2530
      %v2684 = vpop.f32.mrf.mxu0
      %v2685 = vadd.f32 0.0, %v2684
      %v2686 = vpop.f32.mrf.mxu0
      %v2687 = vpop.f32.mrf.mxu0
      %v2688 = vadd.f32 0.0, %v2687
      %v2689 = vpop.f32.mrf.mxu0
      %2690 = vmatprep.mubr.bf16.mxu0 0
      %2691 = vmatmul.mubr.bf16.gmra.mxu0 %v2533
      %v2692 = vpop.f32.mrf.mxu0
      %v2693 = vadd.f32 0.0, %v2692
      %v2694 = vpop.f32.mrf.mxu0
      %v2695 = vpop.f32.mrf.mxu0
      %v2696 = vadd.f32 0.0, %v2695
      %v2697 = vpop.f32.mrf.mxu0
      %2698 = vdwg.mxu0
      %v2699 = vadd.f32 %v2341, %v2573
      %v2700 = vadd.f32 %v2342, %v2576
      %v2701 = vadd.f32 %v2343, %v2581
      %v2702 = vadd.f32 %v2344, %v2584
      %v2703 = vadd.f32 %v2345, %v2589
      %v2704 = vadd.f32 %v2346, %v2592
      %v2705 = vadd.f32 %v2347, %v2597
      %v2706 = vadd.f32 %v2348, %v2600
      %v2707 = vadd.f32 %v2349, %v2605
      %v2708 = vadd.f32 %v2350, %v2608
      %v2709 = vadd.f32 %v2351, %v2613
      %v2710 = vadd.f32 %v2352, %v2616
      %v2711 = vadd.f32 %v2353, %v2621
      %v2712 = vadd.f32 %v2354, %v2624
      %v2713 = vadd.f32 %v2355, %v2629
      %v2714 = vadd.f32 %v2356, %v2632
      %v2715 = vadd.f32 %v2357, %v2637
      %v2716 = vadd.f32 %v2358, %v2640
      %v2717 = vadd.f32 %v2359, %v2645
      %v2718 = vadd.f32 %v2360, %v2648
      %v2719 = vadd.f32 %v2361, %v2653
      %v2720 = vadd.f32 %v2362, %v2656
      %v2721 = vadd.f32 %v2363, %v2661
      %v2722 = vadd.f32 %v2364, %v2664
      %v2723 = vadd.f32 %v2365, %v2669
      %v2724 = vadd.f32 %v2366, %v2672
      %v2725 = vadd.f32 %v2367, %v2677
      %v2726 = vadd.f32 %v2368, %v2680
      %v2727 = vadd.f32 %v2369, %v2685
      %v2728 = vadd.f32 %v2370, %v2688
      %v2729 = vadd.f32 %v2371, %v2693
      %v2730 = vadd.f32 %v2372, %v2696
      %v2731 = vld [vmem:[%s809] sm:$0xf]
      %v2732 = vld [vmem:[%s809 + $0x4] sm:$0xf]
      %v2733 = vld [vmem:[%s809 + $0x8] sm:$0x1]
      %v2734 = vld [vmem:[%s809 + $0xc] sm:$0xf]
      %v2735 = vld [vmem:[%s809 + $0x10] sm:$0xf]
      %v2736 = vld [vmem:[%s809 + $0x14] sm:$0x1]
      %v2737 = vld [vmem:[%s809 + $0x18] sm:$0xf]
      %v2738 = vld [vmem:[%s809 + $0x1c] sm:$0xf]
      %v2739 = vld [vmem:[%s809 + $0x20] sm:$0x1]
      %v2740 = vld [vmem:[%s809 + $0x24] sm:$0xf]
      %v2741 = vld [vmem:[%s809 + $0x28] sm:$0xf]
      %v2742 = vld [vmem:[%s809 + $0x2c] sm:$0x1]
      %v2743 = vld [vmem:[%s809 + $0x30] sm:$0xf]
      %v2744 = vld [vmem:[%s809 + $0x34] sm:$0xf]
      %v2745 = vld [vmem:[%s809 + $0x38] sm:$0x1]
      %v2746 = vld [vmem:[%s809 + $0x3c] sm:$0xf]
      %v2747 = vld [vmem:[%s809 + $0x40] sm:$0xf]
      %v2748 = vld [vmem:[%s809 + $0x44] sm:$0x1]
      %v2749 = vld [vmem:[%s809 + $0x48] sm:$0xf]
      %v2750 = vld [vmem:[%s809 + $0x4c] sm:$0xf]
      %v2751 = vld [vmem:[%s809 + $0x50] sm:$0x1]
      %v2752 = vld [vmem:[%s809 + $0x54] sm:$0xf]
      %v2753 = vld [vmem:[%s809 + $0x58] sm:$0xf]
      %v2754 = vld [vmem:[%s809 + $0x5c] sm:$0x1]
      %v2755 = vld [vmem:[%s809 + $0x60] sm:$0xf]
      %v2756 = vld [vmem:[%s809 + $0x64] sm:$0xf]
      %v2757 = vld [vmem:[%s809 + $0x68] sm:$0x1]
      %v2758 = vld [vmem:[%s809 + $0x6c] sm:$0xf]
      %v2759 = vld [vmem:[%s809 + $0x70] sm:$0xf]
      %v2760 = vld [vmem:[%s809 + $0x74] sm:$0x1]
      %v2761 = vld [vmem:[%s809 + $0x78] sm:$0xf]
      %v2762 = vld [vmem:[%s809 + $0x7c] sm:$0xf]
      %v2763 = vld [vmem:[%s809 + $0x80] sm:$0x1]
      %v2764 = vld [vmem:[%s809 + $0x84] sm:$0xf]
      %v2765 = vld [vmem:[%s809 + $0x88] sm:$0xf]
      %v2766 = vld [vmem:[%s809 + $0x8c] sm:$0x1]
      %v2767 = vld [vmem:[%s809 + $0x90] sm:$0xf]
      %v2768 = vld [vmem:[%s809 + $0x94] sm:$0xf]
      %v2769 = vld [vmem:[%s809 + $0x98] sm:$0x1]
      %v2770 = vld [vmem:[%s809 + $0x9c] sm:$0xf]
      %v2771 = vld [vmem:[%s809 + $0xa0] sm:$0xf]
      %v2772 = vld [vmem:[%s809 + $0xa4] sm:$0x1]
      %v2773 = vld [vmem:[%s809 + $0xa8] sm:$0xf]
      %v2774 = vld [vmem:[%s809 + $0xac] sm:$0xf]
      %v2775 = vld [vmem:[%s809 + $0xb0] sm:$0x1]
      %v2776 = vld [vmem:[%s809 + $0xb4] sm:$0xf]
      %v2777 = vld [vmem:[%s809 + $0xb8] sm:$0xf]
      %v2778 = vld [vmem:[%s809 + $0xbc] sm:$0x1]
      %v2780 = vshrl.u32 %v2731, 16
      %v2782 = vrot.slane %v2780, 4
      %v2783 = vshll.u32 %v2731, 16
      %v2785 = vrot.slane %v2783, 5
      %v2786 = vor.u32 %v2782, %v2785
      %v2787 = vrot.slane %v2786, 4
      %v2789 = vshll.u32 %v2732, 16
      %v2791 = vrot.slane %v2789, 5
      %v2792 = vsel %vm975, %v2787, %v2791
      %v2793 = vshrl.u32 %v2732, 16
      %v2795 = vrot.slane %v2793, 4
      %v2796 = vor.u32 %v2795, %v2791
      %v2797 = vrot.slane %v2796, 4
      %v2799 = vshll.u32 %v2733, 16
      %v2801 = vrot.slane %v2799, 5
      %v2802 = vsel %vm975, %v2797, %v2801
      %v2804 = vshrl.u32 %v2734, 16
      %v2806 = vrot.slane %v2804, 4
      %v2807 = vshll.u32 %v2734, 16
      %v2809 = vrot.slane %v2807, 5
      %v2810 = vor.u32 %v2806, %v2809
      %v2811 = vrot.slane %v2810, 4
      %v2813 = vshll.u32 %v2735, 16
      %v2815 = vrot.slane %v2813, 5
      %v2816 = vsel %vm975, %v2811, %v2815
      %v2817 = vshrl.u32 %v2735, 16
      %v2819 = vrot.slane %v2817, 4
      %v2820 = vor.u32 %v2819, %v2815
      %v2821 = vrot.slane %v2820, 4
      %v2823 = vshll.u32 %v2736, 16
      %v2825 = vrot.slane %v2823, 5
      %v2826 = vsel %vm975, %v2821, %v2825
      %v2828 = vshrl.u32 %v2737, 16
      %v2830 = vrot.slane %v2828, 4
      %v2831 = vshll.u32 %v2737, 16
      %v2833 = vrot.slane %v2831, 5
      %v2834 = vor.u32 %v2830, %v2833
      %v2835 = vrot.slane %v2834, 4
      %v2837 = vshll.u32 %v2738, 16
      %v2839 = vrot.slane %v2837, 5
      %v2840 = vsel %vm975, %v2835, %v2839
      %v2841 = vshrl.u32 %v2738, 16
      %v2843 = vrot.slane %v2841, 4
      %v2844 = vor.u32 %v2843, %v2839
      %v2845 = vrot.slane %v2844, 4
      %v2847 = vshll.u32 %v2739, 16
      %v2849 = vrot.slane %v2847, 5
      %v2850 = vsel %vm975, %v2845, %v2849
      %v2852 = vshrl.u32 %v2740, 16
      %v2854 = vrot.slane %v2852, 4
      %v2855 = vshll.u32 %v2740, 16
      %v2857 = vrot.slane %v2855, 5
      %v2858 = vor.u32 %v2854, %v2857
      %v2859 = vrot.slane %v2858, 4
      %v2861 = vshll.u32 %v2741, 16
      %v2863 = vrot.slane %v2861, 5
      %v2864 = vsel %vm975, %v2859, %v2863
      %v2865 = vshrl.u32 %v2741, 16
      %v2867 = vrot.slane %v2865, 4
      %v2868 = vor.u32 %v2867, %v2863
      %v2869 = vrot.slane %v2868, 4
      %v2871 = vshll.u32 %v2742, 16
      %v2873 = vrot.slane %v2871, 5
      %v2874 = vsel %vm975, %v2869, %v2873
      %v2876 = vshrl.u32 %v2743, 16
      %v2878 = vrot.slane %v2876, 4
      %v2879 = vshll.u32 %v2743, 16
      %v2881 = vrot.slane %v2879, 5
      %v2882 = vor.u32 %v2878, %v2881
      %v2883 = vrot.slane %v2882, 4
      %v2885 = vshll.u32 %v2744, 16
      %v2887 = vrot.slane %v2885, 5
      %v2888 = vsel %vm975, %v2883, %v2887
      %v2889 = vshrl.u32 %v2744, 16
      %v2891 = vrot.slane %v2889, 4
      %v2892 = vor.u32 %v2891, %v2887
      %v2893 = vrot.slane %v2892, 4
      %v2895 = vshll.u32 %v2745, 16
      %v2897 = vrot.slane %v2895, 5
      %v2898 = vsel %vm975, %v2893, %v2897
      %v2900 = vshrl.u32 %v2746, 16
      %v2902 = vrot.slane %v2900, 4
      %v2903 = vshll.u32 %v2746, 16
      %v2905 = vrot.slane %v2903, 5
      %v2906 = vor.u32 %v2902, %v2905
      %v2907 = vrot.slane %v2906, 4
      %v2909 = vshll.u32 %v2747, 16
      %v2911 = vrot.slane %v2909, 5
      %v2912 = vsel %vm975, %v2907, %v2911
      %v2913 = vshrl.u32 %v2747, 16
      %v2915 = vrot.slane %v2913, 4
      %v2916 = vor.u32 %v2915, %v2911
      %v2917 = vrot.slane %v2916, 4
      %v2919 = vshll.u32 %v2748, 16
      %v2921 = vrot.slane %v2919, 5
      %v2922 = vsel %vm975, %v2917, %v2921
      %v2924 = vshrl.u32 %v2749, 16
      %v2926 = vrot.slane %v2924, 4
      %v2927 = vshll.u32 %v2749, 16
      %v2929 = vrot.slane %v2927, 5
      %v2930 = vor.u32 %v2926, %v2929
      %v2931 = vrot.slane %v2930, 4
      %v2933 = vshll.u32 %v2750, 16
      %v2935 = vrot.slane %v2933, 5
      %v2936 = vsel %vm975, %v2931, %v2935
      %v2937 = vshrl.u32 %v2750, 16
      %v2939 = vrot.slane %v2937, 4
      %v2940 = vor.u32 %v2939, %v2935
      %v2941 = vrot.slane %v2940, 4
      %v2943 = vshll.u32 %v2751, 16
      %v2945 = vrot.slane %v2943, 5
      %v2946 = vsel %vm975, %v2941, %v2945
      %v2948 = vshrl.u32 %v2752, 16
      %v2950 = vrot.slane %v2948, 4
      %v2951 = vshll.u32 %v2752, 16
      %v2953 = vrot.slane %v2951, 5
      %v2954 = vor.u32 %v2950, %v2953
      %v2955 = vrot.slane %v2954, 4
      %v2957 = vshll.u32 %v2753, 16
      %v2959 = vrot.slane %v2957, 5
      %v2960 = vsel %vm975, %v2955, %v2959
      %v2961 = vshrl.u32 %v2753, 16
      %v2963 = vrot.slane %v2961, 4
      %v2964 = vor.u32 %v2963, %v2959
      %v2965 = vrot.slane %v2964, 4
      %v2967 = vshll.u32 %v2754, 16
      %v2969 = vrot.slane %v2967, 5
      %v2970 = vsel %vm975, %v2965, %v2969
      %v2972 = vshrl.u32 %v2755, 16
      %v2974 = vrot.slane %v2972, 4
      %v2975 = vshll.u32 %v2755, 16
      %v2977 = vrot.slane %v2975, 5
      %v2978 = vor.u32 %v2974, %v2977
      %v2979 = vrot.slane %v2978, 4
      %v2981 = vshll.u32 %v2756, 16
      %v2983 = vrot.slane %v2981, 5
      %v2984 = vsel %vm975, %v2979, %v2983
      %v2985 = vshrl.u32 %v2756, 16
      %v2987 = vrot.slane %v2985, 4
      %v2988 = vor.u32 %v2987, %v2983
      %v2989 = vrot.slane %v2988, 4
      %v2991 = vshll.u32 %v2757, 16
      %v2993 = vrot.slane %v2991, 5
      %v2994 = vsel %vm975, %v2989, %v2993
      %v2996 = vshrl.u32 %v2758, 16
      %v2998 = vrot.slane %v2996, 4
      %v2999 = vshll.u32 %v2758, 16
      %v3001 = vrot.slane %v2999, 5
      %v3002 = vor.u32 %v2998, %v3001
      %v3003 = vrot.slane %v3002, 4
      %v3005 = vshll.u32 %v2759, 16
      %v3007 = vrot.slane %v3005, 5
      %v3008 = vsel %vm975, %v3003, %v3007
      %v3009 = vshrl.u32 %v2759, 16
      %v3011 = vrot.slane %v3009, 4
      %v3012 = vor.u32 %v3011, %v3007
      %v3013 = vrot.slane %v3012, 4
      %v3015 = vshll.u32 %v2760, 16
      %v3017 = vrot.slane %v3015, 5
      %v3018 = vsel %vm975, %v3013, %v3017
      %v3020 = vshrl.u32 %v2761, 16
      %v3022 = vrot.slane %v3020, 4
      %v3023 = vshll.u32 %v2761, 16
      %v3025 = vrot.slane %v3023, 5
      %v3026 = vor.u32 %v3022, %v3025
      %v3027 = vrot.slane %v3026, 4
      %v3029 = vshll.u32 %v2762, 16
      %v3031 = vrot.slane %v3029, 5
      %v3032 = vsel %vm975, %v3027, %v3031
      %v3033 = vshrl.u32 %v2762, 16
      %v3035 = vrot.slane %v3033, 4
      %v3036 = vor.u32 %v3035, %v3031
      %v3037 = vrot.slane %v3036, 4
      %v3039 = vshll.u32 %v2763, 16
      %v3041 = vrot.slane %v3039, 5
      %v3042 = vsel %vm975, %v3037, %v3041
      %v3044 = vshrl.u32 %v2764, 16
      %v3046 = vrot.slane %v3044, 4
      %v3047 = vshll.u32 %v2764, 16
      %v3049 = vrot.slane %v3047, 5
      %v3050 = vor.u32 %v3046, %v3049
      %v3051 = vrot.slane %v3050, 4
      %v3053 = vshll.u32 %v2765, 16
      %v3055 = vrot.slane %v3053, 5
      %v3056 = vsel %vm975, %v3051, %v3055
      %v3057 = vshrl.u32 %v2765, 16
      %v3059 = vrot.slane %v3057, 4
      %v3060 = vor.u32 %v3059, %v3055
      %v3061 = vrot.slane %v3060, 4
      %v3063 = vshll.u32 %v2766, 16
      %v3065 = vrot.slane %v3063, 5
      %v3066 = vsel %vm975, %v3061, %v3065
      %v3068 = vshrl.u32 %v2767, 16
      %v3070 = vrot.slane %v3068, 4
      %v3071 = vshll.u32 %v2767, 16
      %v3073 = vrot.slane %v3071, 5
      %v3074 = vor.u32 %v3070, %v3073
      %v3075 = vrot.slane %v3074, 4
      %v3077 = vshll.u32 %v2768, 16
      %v3079 = vrot.slane %v3077, 5
      %v3080 = vsel %vm975, %v3075, %v3079
      %v3081 = vshrl.u32 %v2768, 16
      %v3083 = vrot.slane %v3081, 4
      %v3084 = vor.u32 %v3083, %v3079
      %v3085 = vrot.slane %v3084, 4
      %v3087 = vshll.u32 %v2769, 16
      %v3089 = vrot.slane %v3087, 5
      %v3090 = vsel %vm975, %v3085, %v3089
      %v3092 = vshrl.u32 %v2770, 16
      %v3094 = vrot.slane %v3092, 4
      %v3095 = vshll.u32 %v2770, 16
      %v3097 = vrot.slane %v3095, 5
      %v3098 = vor.u32 %v3094, %v3097
      %v3099 = vrot.slane %v3098, 4
      %v3101 = vshll.u32 %v2771, 16
      %v3103 = vrot.slane %v3101, 5
      %v3104 = vsel %vm975, %v3099, %v3103
      %v3105 = vshrl.u32 %v2771, 16
      %v3107 = vrot.slane %v3105, 4
      %v3108 = vor.u32 %v3107, %v3103
      %v3109 = vrot.slane %v3108, 4
      %v3111 = vshll.u32 %v2772, 16
      %v3113 = vrot.slane %v3111, 5
      %v3114 = vsel %vm975, %v3109, %v3113
      %v3116 = vshrl.u32 %v2773, 16
      %v3118 = vrot.slane %v3116, 4
      %v3119 = vshll.u32 %v2773, 16
      %v3121 = vrot.slane %v3119, 5
      %v3122 = vor.u32 %v3118, %v3121
      %v3123 = vrot.slane %v3122, 4
      %v3125 = vshll.u32 %v2774, 16
      %v3127 = vrot.slane %v3125, 5
      %v3128 = vsel %vm975, %v3123, %v3127
      %v3129 = vshrl.u32 %v2774, 16
      %v3131 = vrot.slane %v3129, 4
      %v3132 = vor.u32 %v3131, %v3127
      %v3133 = vrot.slane %v3132, 4
      %v3135 = vshll.u32 %v2775, 16
      %v3137 = vrot.slane %v3135, 5
      %v3138 = vsel %vm975, %v3133, %v3137
      %v3140 = vshrl.u32 %v2776, 16
      %v3142 = vrot.slane %v3140, 4
      %v3143 = vshll.u32 %v2776, 16
      %v3145 = vrot.slane %v3143, 5
      %v3146 = vor.u32 %v3142, %v3145
      %v3147 = vrot.slane %v3146, 4
      %v3149 = vshll.u32 %v2777, 16
      %v3151 = vrot.slane %v3149, 5
      %v3152 = vsel %vm975, %v3147, %v3151
      %v3153 = vshrl.u32 %v2777, 16
      %v3155 = vrot.slane %v3153, 4
      %v3156 = vor.u32 %v3155, %v3151
      %v3157 = vrot.slane %v3156, 4
      %v3159 = vshll.u32 %v2778, 16
      %v3161 = vrot.slane %v3159, 5
      %v3162 = vsel %vm975, %v3157, %v3161
      %s3163 = scalar_lea.vmem %s3, 8
      %v3164 = vld [vmem:[%s3163] sm:$0x3]
      %v3165 = vunpack.c.l.b16 %v2792
      %v3166 = vunpack.c.l.b16 %v2802
      %v3167 = vunpack.c.l.b16 %v2816
      %v3168 = vunpack.c.l.b16 %v2826
      %v3169 = vunpack.c.l.b16 %v2840
      %v3170 = vunpack.c.l.b16 %v2850
      %v3171 = vunpack.c.l.b16 %v2864
      %v3172 = vunpack.c.l.b16 %v2874
      %v3173 = vunpack.c.l.b16 %v2888
      %v3174 = vunpack.c.l.b16 %v2898
      %v3175 = vunpack.c.l.b16 %v2912
      %v3176 = vunpack.c.l.b16 %v2922
      %v3177 = vunpack.c.l.b16 %v2936
      %v3178 = vunpack.c.l.b16 %v2946
      %v3179 = vunpack.c.l.b16 %v2960
      %v3180 = vunpack.c.l.b16 %v2970
      %v3181 = vunpack.c.l.b16 %v2984
      %v3182 = vunpack.c.l.b16 %v2994
      %v3183 = vunpack.c.l.b16 %v3008
      %v3184 = vunpack.c.l.b16 %v3018
      %v3185 = vunpack.c.l.b16 %v3032
      %v3186 = vunpack.c.l.b16 %v3042
      %v3187 = vunpack.c.l.b16 %v3056
      %v3188 = vunpack.c.l.b16 %v3066
      %v3189 = vunpack.c.l.b16 %v3080
      %v3190 = vunpack.c.l.b16 %v3090
      %v3191 = vunpack.c.l.b16 %v3104
      %v3192 = vunpack.c.l.b16 %v3114
      %v3193 = vunpack.c.l.b16 %v3128
      %v3194 = vunpack.c.l.b16 %v3138
      %v3195 = vunpack.c.l.b16 %v3152
      %v3196 = vunpack.c.l.b16 %v3162
      %v3197 = vpack.c.b16 %v3166, %v3165
      %v3198 = vpack.c.b16 %v3168, %v3167
      %v3199 = vpack.c.b16 %v3170, %v3169
      %v3200 = vpack.c.b16 %v3172, %v3171
      %v3201 = vpack.c.b16 %v3174, %v3173
      %v3202 = vpack.c.b16 %v3176, %v3175
      %v3203 = vpack.c.b16 %v3178, %v3177
      %v3204 = vpack.c.b16 %v3180, %v3179
      %v3205 = vpack.c.b16 %v3182, %v3181
      %v3206 = vpack.c.b16 %v3184, %v3183
      %v3207 = vpack.c.b16 %v3186, %v3185
      %v3208 = vpack.c.b16 %v3188, %v3187
      %v3209 = vpack.c.b16 %v3190, %v3189
      %v3210 = vpack.c.b16 %v3192, %v3191
      %v3211 = vpack.c.b16 %v3194, %v3193
      %v3212 = vpack.c.b16 %v3196, %v3195
      %v3214 = vsel %vm1410, %v3197, 0
      %v3217 = vsel %vm1410, %v3198, 0
      %v3220 = vsel %vm1410, %v3199, 0
      %v3223 = vsel %vm1410, %v3200, 0
      %v3226 = vsel %vm1410, %v3201, 0
      %v3229 = vsel %vm1410, %v3202, 0
      %v3232 = vsel %vm1410, %v3203, 0
      %v3235 = vsel %vm1410, %v3204, 0
      %v3238 = vsel %vm1410, %v3205, 0
      %v3241 = vsel %vm1410, %v3206, 0
      %v3244 = vsel %vm1410, %v3207, 0
      %v3247 = vsel %vm1410, %v3208, 0
      %v3250 = vsel %vm1410, %v3209, 0
      %v3253 = vsel %vm1410, %v3210, 0
      %v3256 = vsel %vm1410, %v3211, 0
      %v3259 = vsel %vm1410, %v3212, 0
      %v3262 = vsel %vm1459, %v3164, 0
      %3264 = vmatprep.subr.bf16.mxu0 0
      %3265 = vmatpush1.bf16.msra.mxu0 0
      %3266 = vmatprep.subr.bf16.mxu0 0
      %3267 = vmatpush1.bf16.msra.mxu0 0
      %3268 = vmatprep.subr.bf16.mxu0 0
      %3269 = vmatpush1.bf16.msra.mxu0 0
      %3270 = vmatprep.subr.bf16.mxu0 0
      %3271 = vmatpush1.bf16.msra.mxu0 0
      %3272 = vmatprep.subr.bf16.mxu0 0
      %3273 = vmatpush1.bf16.msra.mxu0 0
      %3274 = vmatprep.subr.bf16.mxu0 0
      %3275 = vmatpush1.bf16.msra.mxu0 0
      %3276 = vmatprep.subr.bf16.mxu0 0
      %3277 = vmatpush1.bf16.msra.mxu0 0
      %3278 = vmatprep.subr.bf16.mxu0 0
      %3279 = vmatpush1.bf16.msra.mxu0 %v3262
      %3280 = vmatprep.subr.bf16.mxu0 0
      %3281 = vmatpush2.bf16.msra.mxu0 0
      %3282 = vmatprep.subr.bf16.mxu0 0
      %3283 = vmatpush2.bf16.msra.mxu0 0
      %3284 = vmatprep.subr.bf16.mxu0 0
      %3285 = vmatpush2.bf16.msra.mxu0 0
      %3286 = vmatprep.subr.bf16.mxu0 0
      %3287 = vmatpush2.bf16.msra.mxu0 0
      %3288 = vmatprep.subr.bf16.mxu0 0
      %3289 = vmatpush2.bf16.msra.mxu0 0
      %3290 = vmatprep.subr.bf16.mxu0 0
      %3291 = vmatpush2.bf16.msra.mxu0 0
      %3292 = vmatprep.subr.bf16.mxu0 0
      %3293 = vmatpush2.bf16.msra.mxu0 0
      %3294 = vmatprep.subr.bf16.mxu0 0
      %3295 = vmatpush2.bf16.msra.mxu0 0
      %3296 = vmatprep.mubr.bf16.mxu0 0
      %3297 = vmatmul.mubr.bf16.gmra.mxu0 %v3214
      %v3298 = vpop.f32.mrf.mxu0
      %v3299 = vadd.f32 0.0, %v3298
      %v3300 = vpop.f32.mrf.mxu0
      %v3301 = vpop.f32.mrf.mxu0
      %v3302 = vadd.f32 0.0, %v3301
      %v3303 = vpop.f32.mrf.mxu0
      %3304 = vmatprep.mubr.bf16.mxu0 0
      %3305 = vmatmul.mubr.bf16.gmra.mxu0 %v3217
      %v3306 = vpop.f32.mrf.mxu0
      %v3307 = vadd.f32 0.0, %v3306
      %v3308 = vpop.f32.mrf.mxu0
      %v3309 = vpop.f32.mrf.mxu0
      %v3310 = vadd.f32 0.0, %v3309
      %v3311 = vpop.f32.mrf.mxu0
      %3312 = vmatprep.mubr.bf16.mxu0 0
      %3313 = vmatmul.mubr.bf16.gmra.mxu0 %v3220
      %v3314 = vpop.f32.mrf.mxu0
      %v3315 = vadd.f32 0.0, %v3314
      %v3316 = vpop.f32.mrf.mxu0
      %v3317 = vpop.f32.mrf.mxu0
      %v3318 = vadd.f32 0.0, %v3317
      %v3319 = vpop.f32.mrf.mxu0
      %3320 = vmatprep.mubr.bf16.mxu0 0
      %3321 = vmatmul.mubr.bf16.gmra.mxu0 %v3223
      %v3322 = vpop.f32.mrf.mxu0
      %v3323 = vadd.f32 0.0, %v3322
      %v3324 = vpop.f32.mrf.mxu0
      %v3325 = vpop.f32.mrf.mxu0
      %v3326 = vadd.f32 0.0, %v3325
      %v3327 = vpop.f32.mrf.mxu0
      %3328 = vmatprep.mubr.bf16.mxu0 0
      %3329 = vmatmul.mubr.bf16.gmra.mxu0 %v3226
      %v3330 = vpop.f32.mrf.mxu0
      %v3331 = vadd.f32 0.0, %v3330
      %v3332 = vpop.f32.mrf.mxu0
      %v3333 = vpop.f32.mrf.mxu0
      %v3334 = vadd.f32 0.0, %v3333
      %v3335 = vpop.f32.mrf.mxu0
      %3336 = vmatprep.mubr.bf16.mxu0 0
      %3337 = vmatmul.mubr.bf16.gmra.mxu0 %v3229
      %v3338 = vpop.f32.mrf.mxu0
      %v3339 = vadd.f32 0.0, %v3338
      %v3340 = vpop.f32.mrf.mxu0
      %v3341 = vpop.f32.mrf.mxu0
      %v3342 = vadd.f32 0.0, %v3341
      %v3343 = vpop.f32.mrf.mxu0
      %3344 = vmatprep.mubr.bf16.mxu0 0
      %3345 = vmatmul.mubr.bf16.gmra.mxu0 %v3232
      %v3346 = vpop.f32.mrf.mxu0
      %v3347 = vadd.f32 0.0, %v3346
      %v3348 = vpop.f32.mrf.mxu0
      %v3349 = vpop.f32.mrf.mxu0
      %v3350 = vadd.f32 0.0, %v3349
      %v3351 = vpop.f32.mrf.mxu0
      %3352 = vmatprep.mubr.bf16.mxu0 0
      %3353 = vmatmul.mubr.bf16.gmra.mxu0 %v3235
      %v3354 = vpop.f32.mrf.mxu0
      %v3355 = vadd.f32 0.0, %v3354
      %v3356 = vpop.f32.mrf.mxu0
      %v3357 = vpop.f32.mrf.mxu0
      %v3358 = vadd.f32 0.0, %v3357
      %v3359 = vpop.f32.mrf.mxu0
      %3360 = vmatprep.mubr.bf16.mxu0 0
      %3361 = vmatmul.mubr.bf16.gmra.mxu0 %v3238
      %v3362 = vpop.f32.mrf.mxu0
      %v3363 = vadd.f32 0.0, %v3362
      %v3364 = vpop.f32.mrf.mxu0
      %v3365 = vpop.f32.mrf.mxu0
      %v3366 = vadd.f32 0.0, %v3365
      %v3367 = vpop.f32.mrf.mxu0
      %3368 = vmatprep.mubr.bf16.mxu0 0
      %3369 = vmatmul.mubr.bf16.gmra.mxu0 %v3241
      %v3370 = vpop.f32.mrf.mxu0
      %v3371 = vadd.f32 0.0, %v3370
      %v3372 = vpop.f32.mrf.mxu0
      %v3373 = vpop.f32.mrf.mxu0
      %v3374 = vadd.f32 0.0, %v3373
      %v3375 = vpop.f32.mrf.mxu0
      %3376 = vmatprep.mubr.bf16.mxu0 0
      %3377 = vmatmul.mubr.bf16.gmra.mxu0 %v3244
      %v3378 = vpop.f32.mrf.mxu0
      %v3379 = vadd.f32 0.0, %v3378
      %v3380 = vpop.f32.mrf.mxu0
      %v3381 = vpop.f32.mrf.mxu0
      %v3382 = vadd.f32 0.0, %v3381
      %v3383 = vpop.f32.mrf.mxu0
      %3384 = vmatprep.mubr.bf16.mxu0 0
      %3385 = vmatmul.mubr.bf16.gmra.mxu0 %v3247
      %v3386 = vpop.f32.mrf.mxu0
      %v3387 = vadd.f32 0.0, %v3386
      %v3388 = vpop.f32.mrf.mxu0
      %v3389 = vpop.f32.mrf.mxu0
      %v3390 = vadd.f32 0.0, %v3389
      %v3391 = vpop.f32.mrf.mxu0
      %3392 = vmatprep.mubr.bf16.mxu0 0
      %3393 = vmatmul.mubr.bf16.gmra.mxu0 %v3250
      %v3394 = vpop.f32.mrf.mxu0
      %v3395 = vadd.f32 0.0, %v3394
      %v3396 = vpop.f32.mrf.mxu0
      %v3397 = vpop.f32.mrf.mxu0
      %v3398 = vadd.f32 0.0, %v3397
      %v3399 = vpop.f32.mrf.mxu0
      %3400 = vmatprep.mubr.bf16.mxu0 0
      %3401 = vmatmul.mubr.bf16.gmra.mxu0 %v3253
      %v3402 = vpop.f32.mrf.mxu0
      %v3403 = vadd.f32 0.0, %v3402
      %v3404 = vpop.f32.mrf.mxu0
      %v3405 = vpop.f32.mrf.mxu0
      %v3406 = vadd.f32 0.0, %v3405
      %v3407 = vpop.f32.mrf.mxu0
      %3408 = vmatprep.mubr.bf16.mxu0 0
      %3409 = vmatmul.mubr.bf16.gmra.mxu0 %v3256
      %v3410 = vpop.f32.mrf.mxu0
      %v3411 = vadd.f32 0.0, %v3410
      %v3412 = vpop.f32.mrf.mxu0
      %v3413 = vpop.f32.mrf.mxu0
      %v3414 = vadd.f32 0.0, %v3413
      %v3415 = vpop.f32.mrf.mxu0
      %3416 = vmatprep.mubr.bf16.mxu0 0
      %3417 = vmatmul.mubr.bf16.gmra.mxu0 %v3259
      %v3418 = vpop.f32.mrf.mxu0
      %v3419 = vadd.f32 0.0, %v3418
      %v3420 = vpop.f32.mrf.mxu0
      %v3421 = vpop.f32.mrf.mxu0
      %v3422 = vadd.f32 0.0, %v3421
      %v3423 = vpop.f32.mrf.mxu0
      %3424 = vdwg.mxu0
      %v3425 = vadd.f32 %v2699, %v3299
      %v3426 = vadd.f32 %v2700, %v3302
      %v3427 = vadd.f32 %v2701, %v3307
      %v3428 = vadd.f32 %v2702, %v3310
      %v3429 = vadd.f32 %v2703, %v3315
      %v3430 = vadd.f32 %v2704, %v3318
      %v3431 = vadd.f32 %v2705, %v3323
      %v3432 = vadd.f32 %v2706, %v3326
      %v3433 = vadd.f32 %v2707, %v3331
      %v3434 = vadd.f32 %v2708, %v3334
      %v3435 = vadd.f32 %v2709, %v3339
      %v3436 = vadd.f32 %v2710, %v3342
      %v3437 = vadd.f32 %v2711, %v3347
      %v3438 = vadd.f32 %v2712, %v3350
      %v3439 = vadd.f32 %v2713, %v3355
      %v3440 = vadd.f32 %v2714, %v3358
      %v3441 = vadd.f32 %v2715, %v3363
      %v3442 = vadd.f32 %v2716, %v3366
      %v3443 = vadd.f32 %v2717, %v3371
      %v3444 = vadd.f32 %v2718, %v3374
      %v3445 = vadd.f32 %v2719, %v3379
      %v3446 = vadd.f32 %v2720, %v3382
      %v3447 = vadd.f32 %v2721, %v3387
      %v3448 = vadd.f32 %v2722, %v3390
      %v3449 = vadd.f32 %v2723, %v3395
      %v3450 = vadd.f32 %v2724, %v3398
      %v3451 = vadd.f32 %v2725, %v3403
      %v3452 = vadd.f32 %v2726, %v3406
      %v3453 = vadd.f32 %v2727, %v3411
      %v3454 = vadd.f32 %v2728, %v3414
      %v3455 = vadd.f32 %v2729, %v3419
      %v3456 = vadd.f32 %v2730, %v3422
      %v3457 = vld [vmem:[%s809] sm:$0xe]
      %v3458 = vld [vmem:[%s809 + $0xc] sm:$0xe]
      %v3459 = vld [vmem:[%s809 + $0x18] sm:$0xe]
      %v3460 = vld [vmem:[%s809 + $0x24] sm:$0xe]
      %v3461 = vld [vmem:[%s809 + $0x30] sm:$0xe]
      %v3462 = vld [vmem:[%s809 + $0x3c] sm:$0xe]
      %v3463 = vld [vmem:[%s809 + $0x48] sm:$0xe]
      %v3464 = vld [vmem:[%s809 + $0x54] sm:$0xe]
      %v3465 = vld [vmem:[%s809 + $0x60] sm:$0xe]
      %v3466 = vld [vmem:[%s809 + $0x6c] sm:$0xe]
      %v3467 = vld [vmem:[%s809 + $0x78] sm:$0xe]
      %v3468 = vld [vmem:[%s809 + $0x84] sm:$0xe]
      %v3469 = vld [vmem:[%s809 + $0x90] sm:$0xe]
      %v3470 = vld [vmem:[%s809 + $0x9c] sm:$0xe]
      %v3471 = vld [vmem:[%s809 + $0xa8] sm:$0xe]
      %v3472 = vld [vmem:[%s809 + $0xb4] sm:$0xe]
      %v3521 = vrot.slane %v3457, 5
      %v3522 = vrot.slane %v3521, 4
      %v3523 = vrot.slane %v2732, 5
      %v3524 = vsel %vm1966, %v3522, %v3523
      %v3525 = vrot.slane %v3523, 4
      %v3526 = vrot.slane %v2733, 5
      %v3527 = vsel %vm1966, %v3525, %v3526
      %v3528 = vrot.slane %v3458, 5
      %v3529 = vrot.slane %v3528, 4
      %v3530 = vrot.slane %v2735, 5
      %v3531 = vsel %vm1966, %v3529, %v3530
      %v3532 = vrot.slane %v3530, 4
      %v3533 = vrot.slane %v2736, 5
      %v3534 = vsel %vm1966, %v3532, %v3533
      %v3535 = vrot.slane %v3459, 5
      %v3536 = vrot.slane %v3535, 4
      %v3537 = vrot.slane %v2738, 5
      %v3538 = vsel %vm1966, %v3536, %v3537
      %v3539 = vrot.slane %v3537, 4
      %v3540 = vrot.slane %v2739, 5
      %v3541 = vsel %vm1966, %v3539, %v3540
      %v3542 = vrot.slane %v3460, 5
      %v3543 = vrot.slane %v3542, 4
      %v3544 = vrot.slane %v2741, 5
      %v3545 = vsel %vm1966, %v3543, %v3544
      %v3546 = vrot.slane %v3544, 4
      %v3547 = vrot.slane %v2742, 5
      %v3548 = vsel %vm1966, %v3546, %v3547
      %v3549 = vrot.slane %v3461, 5
      %v3550 = vrot.slane %v3549, 4
      %v3551 = vrot.slane %v2744, 5
      %v3552 = vsel %vm1966, %v3550, %v3551
      %v3553 = vrot.slane %v3551, 4
      %v3554 = vrot.slane %v2745, 5
      %v3555 = vsel %vm1966, %v3553, %v3554
      %v3556 = vrot.slane %v3462, 5
      %v3557 = vrot.slane %v3556, 4
      %v3558 = vrot.slane %v2747, 5
      %v3559 = vsel %vm1966, %v3557, %v3558
      %v3560 = vrot.slane %v3558, 4
      %v3561 = vrot.slane %v2748, 5
      %v3562 = vsel %vm1966, %v3560, %v3561
      %v3563 = vrot.slane %v3463, 5
      %v3564 = vrot.slane %v3563, 4
      %v3565 = vrot.slane %v2750, 5
      %v3566 = vsel %vm1966, %v3564, %v3565
      %v3567 = vrot.slane %v3565, 4
      %v3568 = vrot.slane %v2751, 5
      %v3569 = vsel %vm1966, %v3567, %v3568
      %v3570 = vrot.slane %v3464, 5
      %v3571 = vrot.slane %v3570, 4
      %v3572 = vrot.slane %v2753, 5
      %v3573 = vsel %vm1966, %v3571, %v3572
      %v3574 = vrot.slane %v3572, 4
      %v3575 = vrot.slane %v2754, 5
      %v3576 = vsel %vm1966, %v3574, %v3575
      %v3577 = vrot.slane %v3465, 5
      %v3578 = vrot.slane %v3577, 4
      %v3579 = vrot.slane %v2756, 5
      %v3580 = vsel %vm1966, %v3578, %v3579
      %v3581 = vrot.slane %v3579, 4
      %v3582 = vrot.slane %v2757, 5
      %v3583 = vsel %vm1966, %v3581, %v3582
      %v3584 = vrot.slane %v3466, 5
      %v3585 = vrot.slane %v3584, 4
      %v3586 = vrot.slane %v2759, 5
      %v3587 = vsel %vm1966, %v3585, %v3586
      %v3588 = vrot.slane %v3586, 4
      %v3589 = vrot.slane %v2760, 5
      %v3590 = vsel %vm1966, %v3588, %v3589
      %v3591 = vrot.slane %v3467, 5
      %v3592 = vrot.slane %v3591, 4
      %v3593 = vrot.slane %v2762, 5
      %v3594 = vsel %vm1966, %v3592, %v3593
      %v3595 = vrot.slane %v3593, 4
      %v3596 = vrot.slane %v2763, 5
      %v3597 = vsel %vm1966, %v3595, %v3596
      %v3598 = vrot.slane %v3468, 5
      %v3599 = vrot.slane %v3598, 4
      %v3600 = vrot.slane %v2765, 5
      %v3601 = vsel %vm1966, %v3599, %v3600
      %v3602 = vrot.slane %v3600, 4
      %v3603 = vrot.slane %v2766, 5
      %v3604 = vsel %vm1966, %v3602, %v3603
      %v3605 = vrot.slane %v3469, 5
      %v3606 = vrot.slane %v3605, 4
      %v3607 = vrot.slane %v2768, 5
      %v3608 = vsel %vm1966, %v3606, %v3607
      %v3609 = vrot.slane %v3607, 4
      %v3610 = vrot.slane %v2769, 5
      %v3611 = vsel %vm1966, %v3609, %v3610
      %v3612 = vrot.slane %v3470, 5
      %v3613 = vrot.slane %v3612, 4
      %v3614 = vrot.slane %v2771, 5
      %v3615 = vsel %vm1966, %v3613, %v3614
      %v3616 = vrot.slane %v3614, 4
      %v3617 = vrot.slane %v2772, 5
      %v3618 = vsel %vm1966, %v3616, %v3617
      %v3619 = vrot.slane %v3471, 5
      %v3620 = vrot.slane %v3619, 4
      %v3621 = vrot.slane %v2774, 5
      %v3622 = vsel %vm1966, %v3620, %v3621
      %v3623 = vrot.slane %v3621, 4
      %v3624 = vrot.slane %v2775, 5
      %v3625 = vsel %vm1966, %v3623, %v3624
      %v3626 = vrot.slane %v3472, 5
      %v3627 = vrot.slane %v3626, 4
      %v3628 = vrot.slane %v2777, 5
      %v3629 = vsel %vm1966, %v3627, %v3628
      %v3630 = vrot.slane %v3628, 4
      %v3631 = vrot.slane %v2778, 5
      %v3632 = vsel %vm1966, %v3630, %v3631
      %s3633 = scalar_lea.vmem %s3, 10
      %v3634 = vld [vmem:[%s3633] sm:$0x3]
      %v3635 = vunpack.c.l.b16 %v3524
      %v3636 = vunpack.c.l.b16 %v3527
      %v3637 = vunpack.c.l.b16 %v3531
      %v3638 = vunpack.c.l.b16 %v3534
      %v3639 = vunpack.c.l.b16 %v3538
      %v3640 = vunpack.c.l.b16 %v3541
      %v3641 = vunpack.c.l.b16 %v3545
      %v3642 = vunpack.c.l.b16 %v3548
      %v3643 = vunpack.c.l.b16 %v3552
      %v3644 = vunpack.c.l.b16 %v3555
      %v3645 = vunpack.c.l.b16 %v3559
      %v3646 = vunpack.c.l.b16 %v3562
      %v3647 = vunpack.c.l.b16 %v3566
      %v3648 = vunpack.c.l.b16 %v3569
      %v3649 = vunpack.c.l.b16 %v3573
      %v3650 = vunpack.c.l.b16 %v3576
      %v3651 = vunpack.c.l.b16 %v3580
      %v3652 = vunpack.c.l.b16 %v3583
      %v3653 = vunpack.c.l.b16 %v3587
      %v3654 = vunpack.c.l.b16 %v3590
      %v3655 = vunpack.c.l.b16 %v3594
      %v3656 = vunpack.c.l.b16 %v3597
      %v3657 = vunpack.c.l.b16 %v3601
      %v3658 = vunpack.c.l.b16 %v3604
      %v3659 = vunpack.c.l.b16 %v3608
      %v3660 = vunpack.c.l.b16 %v3611
      %v3661 = vunpack.c.l.b16 %v3615
      %v3662 = vunpack.c.l.b16 %v3618
      %v3663 = vunpack.c.l.b16 %v3622
      %v3664 = vunpack.c.l.b16 %v3625
      %v3665 = vunpack.c.l.b16 %v3629
      %v3666 = vunpack.c.l.b16 %v3632
      %v3667 = vpack.c.b16 %v3636, %v3635
      %v3668 = vpack.c.b16 %v3638, %v3637
      %v3669 = vpack.c.b16 %v3640, %v3639
      %v3670 = vpack.c.b16 %v3642, %v3641
      %v3671 = vpack.c.b16 %v3644, %v3643
      %v3672 = vpack.c.b16 %v3646, %v3645
      %v3673 = vpack.c.b16 %v3648, %v3647
      %v3674 = vpack.c.b16 %v3650, %v3649
      %v3675 = vpack.c.b16 %v3652, %v3651
      %v3676 = vpack.c.b16 %v3654, %v3653
      %v3677 = vpack.c.b16 %v3656, %v3655
      %v3678 = vpack.c.b16 %v3658, %v3657
      %v3679 = vpack.c.b16 %v3660, %v3659
      %v3680 = vpack.c.b16 %v3662, %v3661
      %v3681 = vpack.c.b16 %v3664, %v3663
      %v3682 = vpack.c.b16 %v3666, %v3665
      %v3684 = vsel %vm1410, %v3667, 0
      %v3687 = vsel %vm1410, %v3668, 0
      %v3690 = vsel %vm1410, %v3669, 0
      %v3693 = vsel %vm1410, %v3670, 0
      %v3696 = vsel %vm1410, %v3671, 0
      %v3699 = vsel %vm1410, %v3672, 0
      %v3702 = vsel %vm1410, %v3673, 0
      %v3705 = vsel %vm1410, %v3674, 0
      %v3708 = vsel %vm1410, %v3675, 0
      %v3711 = vsel %vm1410, %v3676, 0
      %v3714 = vsel %vm1410, %v3677, 0
      %v3717 = vsel %vm1410, %v3678, 0
      %v3720 = vsel %vm1410, %v3679, 0
      %v3723 = vsel %vm1410, %v3680, 0
      %v3726 = vsel %vm1410, %v3681, 0
      %v3729 = vsel %vm1410, %v3682, 0
      %v3732 = vsel %vm1459, %v3634, 0
      %3734 = vmatprep.subr.bf16.mxu0 0
      %3735 = vmatpush1.bf16.msra.mxu0 0
      %3736 = vmatprep.subr.bf16.mxu0 0
      %3737 = vmatpush1.bf16.msra.mxu0 0
      %3738 = vmatprep.subr.bf16.mxu0 0
      %3739 = vmatpush1.bf16.msra.mxu0 0
      %3740 = vmatprep.subr.bf16.mxu0 0
      %3741 = vmatpush1.bf16.msra.mxu0 0
      %3742 = vmatprep.subr.bf16.mxu0 0
      %3743 = vmatpush1.bf16.msra.mxu0 0
      %3744 = vmatprep.subr.bf16.mxu0 0
      %3745 = vmatpush1.bf16.msra.mxu0 0
      %3746 = vmatprep.subr.bf16.mxu0 0
      %3747 = vmatpush1.bf16.msra.mxu0 0
      %3748 = vmatprep.subr.bf16.mxu0 0
      %3749 = vmatpush1.bf16.msra.mxu0 %v3732
      %3750 = vmatprep.subr.bf16.mxu0 0
      %3751 = vmatpush2.bf16.msra.mxu0 0
      %3752 = vmatprep.subr.bf16.mxu0 0
      %3753 = vmatpush2.bf16.msra.mxu0 0
      %3754 = vmatprep.subr.bf16.mxu0 0
      %3755 = vmatpush2.bf16.msra.mxu0 0
      %3756 = vmatprep.subr.bf16.mxu0 0
      %3757 = vmatpush2.bf16.msra.mxu0 0
      %3758 = vmatprep.subr.bf16.mxu0 0
      %3759 = vmatpush2.bf16.msra.mxu0 0
      %3760 = vmatprep.subr.bf16.mxu0 0
      %3761 = vmatpush2.bf16.msra.mxu0 0
      %3762 = vmatprep.subr.bf16.mxu0 0
      %3763 = vmatpush2.bf16.msra.mxu0 0
      %3764 = vmatprep.subr.bf16.mxu0 0
      %3765 = vmatpush2.bf16.msra.mxu0 0
      %3766 = vmatprep.mubr.bf16.mxu0 0
      %3767 = vmatmul.mubr.bf16.gmra.mxu0 %v3684
      %v3768 = vpop.f32.mrf.mxu0
      %v3769 = vadd.f32 0.0, %v3768
      %v3770 = vpop.f32.mrf.mxu0
      %v3771 = vpop.f32.mrf.mxu0
      %v3772 = vadd.f32 0.0, %v3771
      %v3773 = vpop.f32.mrf.mxu0
      %3774 = vmatprep.mubr.bf16.mxu0 0
      %3775 = vmatmul.mubr.bf16.gmra.mxu0 %v3687
      %v3776 = vpop.f32.mrf.mxu0
      %v3777 = vadd.f32 0.0, %v3776
      %v3778 = vpop.f32.mrf.mxu0
      %v3779 = vpop.f32.mrf.mxu0
      %v3780 = vadd.f32 0.0, %v3779
      %v3781 = vpop.f32.mrf.mxu0
      %3782 = vmatprep.mubr.bf16.mxu0 0
      %3783 = vmatmul.mubr.bf16.gmra.mxu0 %v3690
      %v3784 = vpop.f32.mrf.mxu0
      %v3785 = vadd.f32 0.0, %v3784
      %v3786 = vpop.f32.mrf.mxu0
      %v3787 = vpop.f32.mrf.mxu0
      %v3788 = vadd.f32 0.0, %v3787
      %v3789 = vpop.f32.mrf.mxu0
      %3790 = vmatprep.mubr.bf16.mxu0 0
      %3791 = vmatmul.mubr.bf16.gmra.mxu0 %v3693
      %v3792 = vpop.f32.mrf.mxu0
      %v3793 = vadd.f32 0.0, %v3792
      %v3794 = vpop.f32.mrf.mxu0
      %v3795 = vpop.f32.mrf.mxu0
      %v3796 = vadd.f32 0.0, %v3795
      %v3797 = vpop.f32.mrf.mxu0
      %3798 = vmatprep.mubr.bf16.mxu0 0
      %3799 = vmatmul.mubr.bf16.gmra.mxu0 %v3696
      %v3800 = vpop.f32.mrf.mxu0
      %v3801 = vadd.f32 0.0, %v3800
      %v3802 = vpop.f32.mrf.mxu0
      %v3803 = vpop.f32.mrf.mxu0
      %v3804 = vadd.f32 0.0, %v3803
      %v3805 = vpop.f32.mrf.mxu0
      %3806 = vmatprep.mubr.bf16.mxu0 0
      %3807 = vmatmul.mubr.bf16.gmra.mxu0 %v3699
      %v3808 = vpop.f32.mrf.mxu0
      %v3809 = vadd.f32 0.0, %v3808
      %v3810 = vpop.f32.mrf.mxu0
      %v3811 = vpop.f32.mrf.mxu0
      %v3812 = vadd.f32 0.0, %v3811
      %v3813 = vpop.f32.mrf.mxu0
      %3814 = vmatprep.mubr.bf16.mxu0 0
      %3815 = vmatmul.mubr.bf16.gmra.mxu0 %v3702
      %v3816 = vpop.f32.mrf.mxu0
      %v3817 = vadd.f32 0.0, %v3816
      %v3818 = vpop.f32.mrf.mxu0
      %v3819 = vpop.f32.mrf.mxu0
      %v3820 = vadd.f32 0.0, %v3819
      %v3821 = vpop.f32.mrf.mxu0
      %3822 = vmatprep.mubr.bf16.mxu0 0
      %3823 = vmatmul.mubr.bf16.gmra.mxu0 %v3705
      %v3824 = vpop.f32.mrf.mxu0
      %v3825 = vadd.f32 0.0, %v3824
      %v3826 = vpop.f32.mrf.mxu0
      %v3827 = vpop.f32.mrf.mxu0
      %v3828 = vadd.f32 0.0, %v3827
      %v3829 = vpop.f32.mrf.mxu0
      %3830 = vmatprep.mubr.bf16.mxu0 0
      %3831 = vmatmul.mubr.bf16.gmra.mxu0 %v3708
      %v3832 = vpop.f32.mrf.mxu0
      %v3833 = vadd.f32 0.0, %v3832
      %v3834 = vpop.f32.mrf.mxu0
      %v3835 = vpop.f32.mrf.mxu0
      %v3836 = vadd.f32 0.0, %v3835
      %v3837 = vpop.f32.mrf.mxu0
      %3838 = vmatprep.mubr.bf16.mxu0 0
      %3839 = vmatmul.mubr.bf16.gmra.mxu0 %v3711
      %v3840 = vpop.f32.mrf.mxu0
      %v3841 = vadd.f32 0.0, %v3840
      %v3842 = vpop.f32.mrf.mxu0
      %v3843 = vpop.f32.mrf.mxu0
      %v3844 = vadd.f32 0.0, %v3843
      %v3845 = vpop.f32.mrf.mxu0
      %3846 = vmatprep.mubr.bf16.mxu0 0
      %3847 = vmatmul.mubr.bf16.gmra.mxu0 %v3714
      %v3848 = vpop.f32.mrf.mxu0
      %v3849 = vadd.f32 0.0, %v3848
      %v3850 = vpop.f32.mrf.mxu0
      %v3851 = vpop.f32.mrf.mxu0
      %v3852 = vadd.f32 0.0, %v3851
      %v3853 = vpop.f32.mrf.mxu0
      %3854 = vmatprep.mubr.bf16.mxu0 0
      %3855 = vmatmul.mubr.bf16.gmra.mxu0 %v3717
      %v3856 = vpop.f32.mrf.mxu0
      %v3857 = vadd.f32 0.0, %v3856
      %v3858 = vpop.f32.mrf.mxu0
      %v3859 = vpop.f32.mrf.mxu0
      %v3860 = vadd.f32 0.0, %v3859
      %v3861 = vpop.f32.mrf.mxu0
      %3862 = vmatprep.mubr.bf16.mxu0 0
      %3863 = vmatmul.mubr.bf16.gmra.mxu0 %v3720
      %v3864 = vpop.f32.mrf.mxu0
      %v3865 = vadd.f32 0.0, %v3864
      %v3866 = vpop.f32.mrf.mxu0
      %v3867 = vpop.f32.mrf.mxu0
      %v3868 = vadd.f32 0.0, %v3867
      %v3869 = vpop.f32.mrf.mxu0
      %3870 = vmatprep.mubr.bf16.mxu0 0
      %3871 = vmatmul.mubr.bf16.gmra.mxu0 %v3723
      %v3872 = vpop.f32.mrf.mxu0
      %v3873 = vadd.f32 0.0, %v3872
      %v3874 = vpop.f32.mrf.mxu0
      %v3875 = vpop.f32.mrf.mxu0
      %v3876 = vadd.f32 0.0, %v3875
      %v3877 = vpop.f32.mrf.mxu0
      %3878 = vmatprep.mubr.bf16.mxu0 0
      %3879 = vmatmul.mubr.bf16.gmra.mxu0 %v3726
      %v3880 = vpop.f32.mrf.mxu0
      %v3881 = vadd.f32 0.0, %v3880
      %v3882 = vpop.f32.mrf.mxu0
      %v3883 = vpop.f32.mrf.mxu0
      %v3884 = vadd.f32 0.0, %v3883
      %v3885 = vpop.f32.mrf.mxu0
      %3886 = vmatprep.mubr.bf16.mxu0 0
      %3887 = vmatmul.mubr.bf16.gmra.mxu0 %v3729
      %v3888 = vpop.f32.mrf.mxu0
      %v3889 = vadd.f32 0.0, %v3888
      %v3890 = vpop.f32.mrf.mxu0
      %v3891 = vpop.f32.mrf.mxu0
      %v3892 = vadd.f32 0.0, %v3891
      %v3893 = vpop.f32.mrf.mxu0
      %3894 = vdwg.mxu0
      %v3895 = vadd.f32 %v3425, %v3769
      %v3896 = vadd.f32 %v3426, %v3772
      %v3897 = vadd.f32 %v3427, %v3777
      %v3898 = vadd.f32 %v3428, %v3780
      %v3899 = vadd.f32 %v3429, %v3785
      %v3900 = vadd.f32 %v3430, %v3788
      %v3901 = vadd.f32 %v3431, %v3793
      %v3902 = vadd.f32 %v3432, %v3796
      %v3903 = vadd.f32 %v3433, %v3801
      %v3904 = vadd.f32 %v3434, %v3804
      %v3905 = vadd.f32 %v3435, %v3809
      %v3906 = vadd.f32 %v3436, %v3812
      %v3907 = vadd.f32 %v3437, %v3817
      %v3908 = vadd.f32 %v3438, %v3820
      %v3909 = vadd.f32 %v3439, %v3825
      %v3910 = vadd.f32 %v3440, %v3828
      %v3911 = vadd.f32 %v3441, %v3833
      %v3912 = vadd.f32 %v3442, %v3836
      %v3913 = vadd.f32 %v3443, %v3841
      %v3914 = vadd.f32 %v3444, %v3844
      %v3915 = vadd.f32 %v3445, %v3849
      %v3916 = vadd.f32 %v3446, %v3852
      %v3917 = vadd.f32 %v3447, %v3857
      %v3918 = vadd.f32 %v3448, %v3860
      %v3919 = vadd.f32 %v3449, %v3865
      %v3920 = vadd.f32 %v3450, %v3868
      %v3921 = vadd.f32 %v3451, %v3873
      %v3922 = vadd.f32 %v3452, %v3876
      %v3923 = vadd.f32 %v3453, %v3881
      %v3924 = vadd.f32 %v3454, %v3884
      %v3925 = vadd.f32 %v3455, %v3889
      %v3926 = vadd.f32 %v3456, %v3892
      %s3927 = scalar_lea.vmem [#allocation2], 24
      %v3928 = vld [vmem:[%s3927] sm:$0xf]
      %v3929 = vld [vmem:[%s3927 + $0x4] sm:$0xf]
      %v3930 = vld [vmem:[%s3927 + $0xc] sm:$0xf]
      %v3931 = vld [vmem:[%s3927 + $0x10] sm:$0xf]
      %v3932 = vld [vmem:[%s3927 + $0x18] sm:$0xf]
      %v3933 = vld [vmem:[%s3927 + $0x1c] sm:$0xf]
      %v3934 = vld [vmem:[%s3927 + $0x24] sm:$0xf]
      %v3935 = vld [vmem:[%s3927 + $0x28] sm:$0xf]
      %v3936 = vld [vmem:[%s3927 + $0x30] sm:$0xf]
      %v3937 = vld [vmem:[%s3927 + $0x34] sm:$0xf]
      %v3938 = vld [vmem:[%s3927 + $0x3c] sm:$0xf]
      %v3939 = vld [vmem:[%s3927 + $0x40] sm:$0xf]
      %v3940 = vld [vmem:[%s3927 + $0x48] sm:$0xf]
      %v3941 = vld [vmem:[%s3927 + $0x4c] sm:$0xf]
      %v3942 = vld [vmem:[%s3927 + $0x54] sm:$0xf]
      %v3943 = vld [vmem:[%s3927 + $0x58] sm:$0xf]
      %v3944 = vld [vmem:[%s3927 + $0x60] sm:$0xf]
      %v3945 = vld [vmem:[%s3927 + $0x64] sm:$0xf]
      %v3946 = vld [vmem:[%s3927 + $0x6c] sm:$0xf]
      %v3947 = vld [vmem:[%s3927 + $0x70] sm:$0xf]
      %v3948 = vld [vmem:[%s3927 + $0x78] sm:$0xf]
      %v3949 = vld [vmem:[%s3927 + $0x7c] sm:$0xf]
      %v3950 = vld [vmem:[%s3927 + $0x84] sm:$0xf]
      %v3951 = vld [vmem:[%s3927 + $0x88] sm:$0xf]
      %v3952 = vld [vmem:[%s3927 + $0x90] sm:$0xf]
      %v3953 = vld [vmem:[%s3927 + $0x94] sm:$0xf]
      %v3954 = vld [vmem:[%s3927 + $0x9c] sm:$0xf]
      %v3955 = vld [vmem:[%s3927 + $0xa0] sm:$0xf]
      %v3956 = vld [vmem:[%s3927 + $0xa8] sm:$0xf]
      %v3957 = vld [vmem:[%s3927 + $0xac] sm:$0xf]
      %v3958 = vld [vmem:[%s3927 + $0xb4] sm:$0xf]
      %v3959 = vld [vmem:[%s3927 + $0xb8] sm:$0xf]
      %s3960 = scalar_lea.vmem %s3, 12
      %v3961 = vld [vmem:[%s3960] sm:$0x3]
      %v3994 = vunpack.c.l.b16 %v3928
      %v3995 = vunpack.c.l.b16 %v3929
      %v3996 = vunpack.c.l.b16 %v3930
      %v3997 = vunpack.c.l.b16 %v3931
      %v3998 = vunpack.c.l.b16 %v3932
      %v3999 = vunpack.c.l.b16 %v3933
      %v4000 = vunpack.c.l.b16 %v3934
      %v4001 = vunpack.c.l.b16 %v3935
      %v4002 = vunpack.c.l.b16 %v3936
      %v4003 = vunpack.c.l.b16 %v3937
      %v4004 = vunpack.c.l.b16 %v3938
      %v4005 = vunpack.c.l.b16 %v3939
      %v4006 = vunpack.c.l.b16 %v3940
      %v4007 = vunpack.c.l.b16 %v3941
      %v4008 = vunpack.c.l.b16 %v3942
      %v4009 = vunpack.c.l.b16 %v3943
      %v4010 = vunpack.c.l.b16 %v3944
      %v4011 = vunpack.c.l.b16 %v3945
      %v4012 = vunpack.c.l.b16 %v3946
      %v4013 = vunpack.c.l.b16 %v3947
      %v4014 = vunpack.c.l.b16 %v3948
      %v4015 = vunpack.c.l.b16 %v3949
      %v4016 = vunpack.c.l.b16 %v3950
      %v4017 = vunpack.c.l.b16 %v3951
      %v4018 = vunpack.c.l.b16 %v3952
      %v4019 = vunpack.c.l.b16 %v3953
      %v4020 = vunpack.c.l.b16 %v3954
      %v4021 = vunpack.c.l.b16 %v3955
      %v4022 = vunpack.c.l.b16 %v3956
      %v4023 = vunpack.c.l.b16 %v3957
      %v4024 = vunpack.c.l.b16 %v3958
      %v4025 = vunpack.c.l.b16 %v3959
      %v4026 = vpack.c.b16 %v3995, %v3994
      %v4027 = vpack.c.b16 %v3997, %v3996
      %v4028 = vpack.c.b16 %v3999, %v3998
      %v4029 = vpack.c.b16 %v4001, %v4000
      %v4030 = vpack.c.b16 %v4003, %v4002
      %v4031 = vpack.c.b16 %v4005, %v4004
      %v4032 = vpack.c.b16 %v4007, %v4006
      %v4033 = vpack.c.b16 %v4009, %v4008
      %v4034 = vpack.c.b16 %v4011, %v4010
      %v4035 = vpack.c.b16 %v4013, %v4012
      %v4036 = vpack.c.b16 %v4015, %v4014
      %v4037 = vpack.c.b16 %v4017, %v4016
      %v4038 = vpack.c.b16 %v4019, %v4018
      %v4039 = vpack.c.b16 %v4021, %v4020
      %v4040 = vpack.c.b16 %v4023, %v4022
      %v4041 = vpack.c.b16 %v4025, %v4024
      %v4043 = vsel %vm1410, %v4026, 0
      %v4046 = vsel %vm1410, %v4027, 0
      %v4049 = vsel %vm1410, %v4028, 0
      %v4052 = vsel %vm1410, %v4029, 0
      %v4055 = vsel %vm1410, %v4030, 0
      %v4058 = vsel %vm1410, %v4031, 0
      %v4061 = vsel %vm1410, %v4032, 0
      %v4064 = vsel %vm1410, %v4033, 0
      %v4067 = vsel %vm1410, %v4034, 0
      %v4070 = vsel %vm1410, %v4035, 0
      %v4073 = vsel %vm1410, %v4036, 0
      %v4076 = vsel %vm1410, %v4037, 0
      %v4079 = vsel %vm1410, %v4038, 0
      %v4082 = vsel %vm1410, %v4039, 0
      %v4085 = vsel %vm1410, %v4040, 0
      %v4088 = vsel %vm1410, %v4041, 0
      %v4091 = vsel %vm1459, %v3961, 0
      %4093 = vmatprep.subr.bf16.mxu0 0
      %4094 = vmatpush1.bf16.msra.mxu0 0
      %4095 = vmatprep.subr.bf16.mxu0 0
      %4096 = vmatpush1.bf16.msra.mxu0 0
      %4097 = vmatprep.subr.bf16.mxu0 0
      %4098 = vmatpush1.bf16.msra.mxu0 0
      %4099 = vmatprep.subr.bf16.mxu0 0
      %4100 = vmatpush1.bf16.msra.mxu0 0
      %4101 = vmatprep.subr.bf16.mxu0 0
      %4102 = vmatpush1.bf16.msra.mxu0 0
      %4103 = vmatprep.subr.bf16.mxu0 0
      %4104 = vmatpush1.bf16.msra.mxu0 0
      %4105 = vmatprep.subr.bf16.mxu0 0
      %4106 = vmatpush1.bf16.msra.mxu0 0
      %4107 = vmatprep.subr.bf16.mxu0 0
      %4108 = vmatpush1.bf16.msra.mxu0 %v4091
      %4109 = vmatprep.subr.bf16.mxu0 0
      %4110 = vmatpush2.bf16.msra.mxu0 0
      %4111 = vmatprep.subr.bf16.mxu0 0
      %4112 = vmatpush2.bf16.msra.mxu0 0
      %4113 = vmatprep.subr.bf16.mxu0 0
      %4114 = vmatpush2.bf16.msra.mxu0 0
      %4115 = vmatprep.subr.bf16.mxu0 0
      %4116 = vmatpush2.bf16.msra.mxu0 0
      %4117 = vmatprep.subr.bf16.mxu0 0
      %4118 = vmatpush2.bf16.msra.mxu0 0
      %4119 = vmatprep.subr.bf16.mxu0 0
      %4120 = vmatpush2.bf16.msra.mxu0 0
      %4121 = vmatprep.subr.bf16.mxu0 0
      %4122 = vmatpush2.bf16.msra.mxu0 0
      %4123 = vmatprep.subr.bf16.mxu0 0
      %4124 = vmatpush2.bf16.msra.mxu0 0
      %4125 = vmatprep.mubr.bf16.mxu0 0
      %4126 = vmatmul.mubr.bf16.gmra.mxu0 %v4043
      %v4127 = vpop.f32.mrf.mxu0
      %v4128 = vadd.f32 0.0, %v4127
      %v4129 = vpop.f32.mrf.mxu0
      %v4130 = vpop.f32.mrf.mxu0
      %v4131 = vadd.f32 0.0, %v4130
      %v4132 = vpop.f32.mrf.mxu0
      %4133 = vmatprep.mubr.bf16.mxu0 0
      %4134 = vmatmul.mubr.bf16.gmra.mxu0 %v4046
      %v4135 = vpop.f32.mrf.mxu0
      %v4136 = vadd.f32 0.0, %v4135
      %v4137 = vpop.f32.mrf.mxu0
      %v4138 = vpop.f32.mrf.mxu0
      %v4139 = vadd.f32 0.0, %v4138
      %v4140 = vpop.f32.mrf.mxu0
      %4141 = vmatprep.mubr.bf16.mxu0 0
      %4142 = vmatmul.mubr.bf16.gmra.mxu0 %v4049
      %v4143 = vpop.f32.mrf.mxu0
      %v4144 = vadd.f32 0.0, %v4143
      %v4145 = vpop.f32.mrf.mxu0
      %v4146 = vpop.f32.mrf.mxu0
      %v4147 = vadd.f32 0.0, %v4146
      %v4148 = vpop.f32.mrf.mxu0
      %4149 = vmatprep.mubr.bf16.mxu0 0
      %4150 = vmatmul.mubr.bf16.gmra.mxu0 %v4052
      %v4151 = vpop.f32.mrf.mxu0
      %v4152 = vadd.f32 0.0, %v4151
      %v4153 = vpop.f32.mrf.mxu0
      %v4154 = vpop.f32.mrf.mxu0
      %v4155 = vadd.f32 0.0, %v4154
      %v4156 = vpop.f32.mrf.mxu0
      %4157 = vmatprep.mubr.bf16.mxu0 0
      %4158 = vmatmul.mubr.bf16.gmra.mxu0 %v4055
      %v4159 = vpop.f32.mrf.mxu0
      %v4160 = vadd.f32 0.0, %v4159
      %v4161 = vpop.f32.mrf.mxu0
      %v4162 = vpop.f32.mrf.mxu0
      %v4163 = vadd.f32 0.0, %v4162
      %v4164 = vpop.f32.mrf.mxu0
      %4165 = vmatprep.mubr.bf16.mxu0 0
      %4166 = vmatmul.mubr.bf16.gmra.mxu0 %v4058
      %v4167 = vpop.f32.mrf.mxu0
      %v4168 = vadd.f32 0.0, %v4167
      %v4169 = vpop.f32.mrf.mxu0
      %v4170 = vpop.f32.mrf.mxu0
      %v4171 = vadd.f32 0.0, %v4170
      %v4172 = vpop.f32.mrf.mxu0
      %4173 = vmatprep.mubr.bf16.mxu0 0
      %4174 = vmatmul.mubr.bf16.gmra.mxu0 %v4061
      %v4175 = vpop.f32.mrf.mxu0
      %v4176 = vadd.f32 0.0, %v4175
      %v4177 = vpop.f32.mrf.mxu0
      %v4178 = vpop.f32.mrf.mxu0
      %v4179 = vadd.f32 0.0, %v4178
      %v4180 = vpop.f32.mrf.mxu0
      %4181 = vmatprep.mubr.bf16.mxu0 0
      %4182 = vmatmul.mubr.bf16.gmra.mxu0 %v4064
      %v4183 = vpop.f32.mrf.mxu0
      %v4184 = vadd.f32 0.0, %v4183
      %v4185 = vpop.f32.mrf.mxu0
      %v4186 = vpop.f32.mrf.mxu0
      %v4187 = vadd.f32 0.0, %v4186
      %v4188 = vpop.f32.mrf.mxu0
      %4189 = vmatprep.mubr.bf16.mxu0 0
      %4190 = vmatmul.mubr.bf16.gmra.mxu0 %v4067
      %v4191 = vpop.f32.mrf.mxu0
      %v4192 = vadd.f32 0.0, %v4191
      %v4193 = vpop.f32.mrf.mxu0
      %v4194 = vpop.f32.mrf.mxu0
      %v4195 = vadd.f32 0.0, %v4194
      %v4196 = vpop.f32.mrf.mxu0
      %4197 = vmatprep.mubr.bf16.mxu0 0
      %4198 = vmatmul.mubr.bf16.gmra.mxu0 %v4070
      %v4199 = vpop.f32.mrf.mxu0
      %v4200 = vadd.f32 0.0, %v4199
      %v4201 = vpop.f32.mrf.mxu0
      %v4202 = vpop.f32.mrf.mxu0
      %v4203 = vadd.f32 0.0, %v4202
      %v4204 = vpop.f32.mrf.mxu0
      %4205 = vmatprep.mubr.bf16.mxu0 0
      %4206 = vmatmul.mubr.bf16.gmra.mxu0 %v4073
      %v4207 = vpop.f32.mrf.mxu0
      %v4208 = vadd.f32 0.0, %v4207
      %v4209 = vpop.f32.mrf.mxu0
      %v4210 = vpop.f32.mrf.mxu0
      %v4211 = vadd.f32 0.0, %v4210
      %v4212 = vpop.f32.mrf.mxu0
      %4213 = vmatprep.mubr.bf16.mxu0 0
      %4214 = vmatmul.mubr.bf16.gmra.mxu0 %v4076
      %v4215 = vpop.f32.mrf.mxu0
      %v4216 = vadd.f32 0.0, %v4215
      %v4217 = vpop.f32.mrf.mxu0
      %v4218 = vpop.f32.mrf.mxu0
      %v4219 = vadd.f32 0.0, %v4218
      %v4220 = vpop.f32.mrf.mxu0
      %4221 = vmatprep.mubr.bf16.mxu0 0
      %4222 = vmatmul.mubr.bf16.gmra.mxu0 %v4079
      %v4223 = vpop.f32.mrf.mxu0
      %v4224 = vadd.f32 0.0, %v4223
      %v4225 = vpop.f32.mrf.mxu0
      %v4226 = vpop.f32.mrf.mxu0
      %v4227 = vadd.f32 0.0, %v4226
      %v4228 = vpop.f32.mrf.mxu0
      %4229 = vmatprep.mubr.bf16.mxu0 0
      %4230 = vmatmul.mubr.bf16.gmra.mxu0 %v4082
      %v4231 = vpop.f32.mrf.mxu0
      %v4232 = vadd.f32 0.0, %v4231
      %v4233 = vpop.f32.mrf.mxu0
      %v4234 = vpop.f32.mrf.mxu0
      %v4235 = vadd.f32 0.0, %v4234
      %v4236 = vpop.f32.mrf.mxu0
      %4237 = vmatprep.mubr.bf16.mxu0 0
      %4238 = vmatmul.mubr.bf16.gmra.mxu0 %v4085
      %v4239 = vpop.f32.mrf.mxu0
      %v4240 = vadd.f32 0.0, %v4239
      %v4241 = vpop.f32.mrf.mxu0
      %v4242 = vpop.f32.mrf.mxu0
      %v4243 = vadd.f32 0.0, %v4242
      %v4244 = vpop.f32.mrf.mxu0
      %4245 = vmatprep.mubr.bf16.mxu0 0
      %4246 = vmatmul.mubr.bf16.gmra.mxu0 %v4088
      %v4247 = vpop.f32.mrf.mxu0
      %v4248 = vadd.f32 0.0, %v4247
      %v4249 = vpop.f32.mrf.mxu0
      %v4250 = vpop.f32.mrf.mxu0
      %v4251 = vadd.f32 0.0, %v4250
      %v4252 = vpop.f32.mrf.mxu0
      %4253 = vdwg.mxu0
      %v4254 = vadd.f32 %v3895, %v4128
      %v4255 = vadd.f32 %v3896, %v4131
      %v4256 = vadd.f32 %v3897, %v4136
      %v4257 = vadd.f32 %v3898, %v4139
      %v4258 = vadd.f32 %v3899, %v4144
      %v4259 = vadd.f32 %v3900, %v4147
      %v4260 = vadd.f32 %v3901, %v4152
      %v4261 = vadd.f32 %v3902, %v4155
      %v4262 = vadd.f32 %v3903, %v4160
      %v4263 = vadd.f32 %v3904, %v4163
      %v4264 = vadd.f32 %v3905, %v4168
      %v4265 = vadd.f32 %v3906, %v4171
      %v4266 = vadd.f32 %v3907, %v4176
      %v4267 = vadd.f32 %v3908, %v4179
      %v4268 = vadd.f32 %v3909, %v4184
      %v4269 = vadd.f32 %v3910, %v4187
      %v4270 = vadd.f32 %v3911, %v4192
      %v4271 = vadd.f32 %v3912, %v4195
      %v4272 = vadd.f32 %v3913, %v4200
      %v4273 = vadd.f32 %v3914, %v4203
      %v4274 = vadd.f32 %v3915, %v4208
      %v4275 = vadd.f32 %v3916, %v4211
      %v4276 = vadd.f32 %v3917, %v4216
      %v4277 = vadd.f32 %v3918, %v4219
      %v4278 = vadd.f32 %v3919, %v4224
      %v4279 = vadd.f32 %v3920, %v4227
      %v4280 = vadd.f32 %v3921, %v4232
      %v4281 = vadd.f32 %v3922, %v4235
      %v4282 = vadd.f32 %v3923, %v4240
      %v4283 = vadd.f32 %v3924, %v4243
      %v4284 = vadd.f32 %v3925, %v4248
      %v4285 = vadd.f32 %v3926, %v4251
      %v4286 = vld [vmem:[%s3927] sm:$0xf]
      %v4287 = vld [vmem:[%s3927 + $0x4] sm:$0xf]
      %v4288 = vld [vmem:[%s3927 + $0x8] sm:$0x1]
      %v4289 = vld [vmem:[%s3927 + $0xc] sm:$0xf]
      %v4290 = vld [vmem:[%s3927 + $0x10] sm:$0xf]
      %v4291 = vld [vmem:[%s3927 + $0x14] sm:$0x1]
      %v4292 = vld [vmem:[%s3927 + $0x18] sm:$0xf]
      %v4293 = vld [vmem:[%s3927 + $0x1c] sm:$0xf]
      %v4294 = vld [vmem:[%s3927 + $0x20] sm:$0x1]
      %v4295 = vld [vmem:[%s3927 + $0x24] sm:$0xf]
      %v4296 = vld [vmem:[%s3927 + $0x28] sm:$0xf]
      %v4297 = vld [vmem:[%s3927 + $0x2c] sm:$0x1]
      %v4298 = vld [vmem:[%s3927 + $0x30] sm:$0xf]
      %v4299 = vld [vmem:[%s3927 + $0x34] sm:$0xf]
      %v4300 = vld [vmem:[%s3927 + $0x38] sm:$0x1]
      %v4301 = vld [vmem:[%s3927 + $0x3c] sm:$0xf]
      %v4302 = vld [vmem:[%s3927 + $0x40] sm:$0xf]
      %v4303 = vld [vmem:[%s3927 + $0x44] sm:$0x1]
      %v4304 = vld [vmem:[%s3927 + $0x48] sm:$0xf]
      %v4305 = vld [vmem:[%s3927 + $0x4c] sm:$0xf]
      %v4306 = vld [vmem:[%s3927 + $0x50] sm:$0x1]
      %v4307 = vld [vmem:[%s3927 + $0x54] sm:$0xf]
      %v4308 = vld [vmem:[%s3927 + $0x58] sm:$0xf]
      %v4309 = vld [vmem:[%s3927 + $0x5c] sm:$0x1]
      %v4310 = vld [vmem:[%s3927 + $0x60] sm:$0xf]
      %v4311 = vld [vmem:[%s3927 + $0x64] sm:$0xf]
      %v4312 = vld [vmem:[%s3927 + $0x68] sm:$0x1]
      %v4313 = vld [vmem:[%s3927 + $0x6c] sm:$0xf]
      %v4314 = vld [vmem:[%s3927 + $0x70] sm:$0xf]
      %v4315 = vld [vmem:[%s3927 + $0x74] sm:$0x1]
      %v4316 = vld [vmem:[%s3927 + $0x78] sm:$0xf]
      %v4317 = vld [vmem:[%s3927 + $0x7c] sm:$0xf]
      %v4318 = vld [vmem:[%s3927 + $0x80] sm:$0x1]
      %v4319 = vld [vmem:[%s3927 + $0x84] sm:$0xf]
      %v4320 = vld [vmem:[%s3927 + $0x88] sm:$0xf]
      %v4321 = vld [vmem:[%s3927 + $0x8c] sm:$0x1]
      %v4322 = vld [vmem:[%s3927 + $0x90] sm:$0xf]
      %v4323 = vld [vmem:[%s3927 + $0x94] sm:$0xf]
      %v4324 = vld [vmem:[%s3927 + $0x98] sm:$0x1]
      %v4325 = vld [vmem:[%s3927 + $0x9c] sm:$0xf]
      %v4326 = vld [vmem:[%s3927 + $0xa0] sm:$0xf]
      %v4327 = vld [vmem:[%s3927 + $0xa4] sm:$0x1]
      %v4328 = vld [vmem:[%s3927 + $0xa8] sm:$0xf]
      %v4329 = vld [vmem:[%s3927 + $0xac] sm:$0xf]
      %v4330 = vld [vmem:[%s3927 + $0xb0] sm:$0x1]
      %v4331 = vld [vmem:[%s3927 + $0xb4] sm:$0xf]
      %v4332 = vld [vmem:[%s3927 + $0xb8] sm:$0xf]
      %v4333 = vld [vmem:[%s3927 + $0xbc] sm:$0x1]
      %v4335 = vshrl.u32 %v4286, 16
      %v4337 = vrot.slane %v4335, 4
      %v4338 = vshll.u32 %v4286, 16
      %v4340 = vrot.slane %v4338, 5
      %v4341 = vor.u32 %v4337, %v4340
      %v4342 = vrot.slane %v4341, 4
      %v4344 = vshll.u32 %v4287, 16
      %v4346 = vrot.slane %v4344, 5
      %v4347 = vsel %vm975, %v4342, %v4346
      %v4348 = vshrl.u32 %v4287, 16
      %v4350 = vrot.slane %v4348, 4
      %v4351 = vor.u32 %v4350, %v4346
      %v4352 = vrot.slane %v4351, 4
      %v4354 = vshll.u32 %v4288, 16
      %v4356 = vrot.slane %v4354, 5
      %v4357 = vsel %vm975, %v4352, %v4356
      %v4359 = vshrl.u32 %v4289, 16
      %v4361 = vrot.slane %v4359, 4
      %v4362 = vshll.u32 %v4289, 16
      %v4364 = vrot.slane %v4362, 5
      %v4365 = vor.u32 %v4361, %v4364
      %v4366 = vrot.slane %v4365, 4
      %v4368 = vshll.u32 %v4290, 16
      %v4370 = vrot.slane %v4368, 5
      %v4371 = vsel %vm975, %v4366, %v4370
      %v4372 = vshrl.u32 %v4290, 16
      %v4374 = vrot.slane %v4372, 4
      %v4375 = vor.u32 %v4374, %v4370
      %v4376 = vrot.slane %v4375, 4
      %v4378 = vshll.u32 %v4291, 16
      %v4380 = vrot.slane %v4378, 5
      %v4381 = vsel %vm975, %v4376, %v4380
      %v4383 = vshrl.u32 %v4292, 16
      %v4385 = vrot.slane %v4383, 4
      %v4386 = vshll.u32 %v4292, 16
      %v4388 = vrot.slane %v4386, 5
      %v4389 = vor.u32 %v4385, %v4388
      %v4390 = vrot.slane %v4389, 4
      %v4392 = vshll.u32 %v4293, 16
      %v4394 = vrot.slane %v4392, 5
      %v4395 = vsel %vm975, %v4390, %v4394
      %v4396 = vshrl.u32 %v4293, 16
      %v4398 = vrot.slane %v4396, 4
      %v4399 = vor.u32 %v4398, %v4394
      %v4400 = vrot.slane %v4399, 4
      %v4402 = vshll.u32 %v4294, 16
      %v4404 = vrot.slane %v4402, 5
      %v4405 = vsel %vm975, %v4400, %v4404
      %v4407 = vshrl.u32 %v4295, 16
      %v4409 = vrot.slane %v4407, 4
      %v4410 = vshll.u32 %v4295, 16
      %v4412 = vrot.slane %v4410, 5
      %v4413 = vor.u32 %v4409, %v4412
      %v4414 = vrot.slane %v4413, 4
      %v4416 = vshll.u32 %v4296, 16
      %v4418 = vrot.slane %v4416, 5
      %v4419 = vsel %vm975, %v4414, %v4418
      %v4420 = vshrl.u32 %v4296, 16
      %v4422 = vrot.slane %v4420, 4
      %v4423 = vor.u32 %v4422, %v4418
      %v4424 = vrot.slane %v4423, 4
      %v4426 = vshll.u32 %v4297, 16
      %v4428 = vrot.slane %v4426, 5
      %v4429 = vsel %vm975, %v4424, %v4428
      %v4431 = vshrl.u32 %v4298, 16
      %v4433 = vrot.slane %v4431, 4
      %v4434 = vshll.u32 %v4298, 16
      %v4436 = vrot.slane %v4434, 5
      %v4437 = vor.u32 %v4433, %v4436
      %v4438 = vrot.slane %v4437, 4
      %v4440 = vshll.u32 %v4299, 16
      %v4442 = vrot.slane %v4440, 5
      %v4443 = vsel %vm975, %v4438, %v4442
      %v4444 = vshrl.u32 %v4299, 16
      %v4446 = vrot.slane %v4444, 4
      %v4447 = vor.u32 %v4446, %v4442
      %v4448 = vrot.slane %v4447, 4
      %v4450 = vshll.u32 %v4300, 16
      %v4452 = vrot.slane %v4450, 5
      %v4453 = vsel %vm975, %v4448, %v4452
      %v4455 = vshrl.u32 %v4301, 16
      %v4457 = vrot.slane %v4455, 4
      %v4458 = vshll.u32 %v4301, 16
      %v4460 = vrot.slane %v4458, 5
      %v4461 = vor.u32 %v4457, %v4460
      %v4462 = vrot.slane %v4461, 4
      %v4464 = vshll.u32 %v4302, 16
      %v4466 = vrot.slane %v4464, 5
      %v4467 = vsel %vm975, %v4462, %v4466
      %v4468 = vshrl.u32 %v4302, 16
      %v4470 = vrot.slane %v4468, 4
      %v4471 = vor.u32 %v4470, %v4466
      %v4472 = vrot.slane %v4471, 4
      %v4474 = vshll.u32 %v4303, 16
      %v4476 = vrot.slane %v4474, 5
      %v4477 = vsel %vm975, %v4472, %v4476
      %v4479 = vshrl.u32 %v4304, 16
      %v4481 = vrot.slane %v4479, 4
      %v4482 = vshll.u32 %v4304, 16
      %v4484 = vrot.slane %v4482, 5
      %v4485 = vor.u32 %v4481, %v4484
      %v4486 = vrot.slane %v4485, 4
      %v4488 = vshll.u32 %v4305, 16
      %v4490 = vrot.slane %v4488, 5
      %v4491 = vsel %vm975, %v4486, %v4490
      %v4492 = vshrl.u32 %v4305, 16
      %v4494 = vrot.slane %v4492, 4
      %v4495 = vor.u32 %v4494, %v4490
      %v4496 = vrot.slane %v4495, 4
      %v4498 = vshll.u32 %v4306, 16
      %v4500 = vrot.slane %v4498, 5
      %v4501 = vsel %vm975, %v4496, %v4500
      %v4503 = vshrl.u32 %v4307, 16
      %v4505 = vrot.slane %v4503, 4
      %v4506 = vshll.u32 %v4307, 16
      %v4508 = vrot.slane %v4506, 5
      %v4509 = vor.u32 %v4505, %v4508
      %v4510 = vrot.slane %v4509, 4
      %v4512 = vshll.u32 %v4308, 16
      %v4514 = vrot.slane %v4512, 5
      %v4515 = vsel %vm975, %v4510, %v4514
      %v4516 = vshrl.u32 %v4308, 16
      %v4518 = vrot.slane %v4516, 4
      %v4519 = vor.u32 %v4518, %v4514
      %v4520 = vrot.slane %v4519, 4
      %v4522 = vshll.u32 %v4309, 16
      %v4524 = vrot.slane %v4522, 5
      %v4525 = vsel %vm975, %v4520, %v4524
      %v4527 = vshrl.u32 %v4310, 16
      %v4529 = vrot.slane %v4527, 4
      %v4530 = vshll.u32 %v4310, 16
      %v4532 = vrot.slane %v4530, 5
      %v4533 = vor.u32 %v4529, %v4532
      %v4534 = vrot.slane %v4533, 4
      %v4536 = vshll.u32 %v4311, 16
      %v4538 = vrot.slane %v4536, 5
      %v4539 = vsel %vm975, %v4534, %v4538
      %v4540 = vshrl.u32 %v4311, 16
      %v4542 = vrot.slane %v4540, 4
      %v4543 = vor.u32 %v4542, %v4538
      %v4544 = vrot.slane %v4543, 4
      %v4546 = vshll.u32 %v4312, 16
      %v4548 = vrot.slane %v4546, 5
      %v4549 = vsel %vm975, %v4544, %v4548
      %v4551 = vshrl.u32 %v4313, 16
      %v4553 = vrot.slane %v4551, 4
      %v4554 = vshll.u32 %v4313, 16
      %v4556 = vrot.slane %v4554, 5
      %v4557 = vor.u32 %v4553, %v4556
      %v4558 = vrot.slane %v4557, 4
      %v4560 = vshll.u32 %v4314, 16
      %v4562 = vrot.slane %v4560, 5
      %v4563 = vsel %vm975, %v4558, %v4562
      %v4564 = vshrl.u32 %v4314, 16
      %v4566 = vrot.slane %v4564, 4
      %v4567 = vor.u32 %v4566, %v4562
      %v4568 = vrot.slane %v4567, 4
      %v4570 = vshll.u32 %v4315, 16
      %v4572 = vrot.slane %v4570, 5
      %v4573 = vsel %vm975, %v4568, %v4572
      %v4575 = vshrl.u32 %v4316, 16
      %v4577 = vrot.slane %v4575, 4
      %v4578 = vshll.u32 %v4316, 16
      %v4580 = vrot.slane %v4578, 5
      %v4581 = vor.u32 %v4577, %v4580
      %v4582 = vrot.slane %v4581, 4
      %v4584 = vshll.u32 %v4317, 16
      %v4586 = vrot.slane %v4584, 5
      %v4587 = vsel %vm975, %v4582, %v4586
      %v4588 = vshrl.u32 %v4317, 16
      %v4590 = vrot.slane %v4588, 4
      %v4591 = vor.u32 %v4590, %v4586
      %v4592 = vrot.slane %v4591, 4
      %v4594 = vshll.u32 %v4318, 16
      %v4596 = vrot.slane %v4594, 5
      %v4597 = vsel %vm975, %v4592, %v4596
      %v4599 = vshrl.u32 %v4319, 16
      %v4601 = vrot.slane %v4599, 4
      %v4602 = vshll.u32 %v4319, 16
      %v4604 = vrot.slane %v4602, 5
      %v4605 = vor.u32 %v4601, %v4604
      %v4606 = vrot.slane %v4605, 4
      %v4608 = vshll.u32 %v4320, 16
      %v4610 = vrot.slane %v4608, 5
      %v4611 = vsel %vm975, %v4606, %v4610
      %v4612 = vshrl.u32 %v4320, 16
      %v4614 = vrot.slane %v4612, 4
      %v4615 = vor.u32 %v4614, %v4610
      %v4616 = vrot.slane %v4615, 4
      %v4618 = vshll.u32 %v4321, 16
      %v4620 = vrot.slane %v4618, 5
      %v4621 = vsel %vm975, %v4616, %v4620
      %v4623 = vshrl.u32 %v4322, 16
      %v4625 = vrot.slane %v4623, 4
      %v4626 = vshll.u32 %v4322, 16
      %v4628 = vrot.slane %v4626, 5
      %v4629 = vor.u32 %v4625, %v4628
      %v4630 = vrot.slane %v4629, 4
      %v4632 = vshll.u32 %v4323, 16
      %v4634 = vrot.slane %v4632, 5
      %v4635 = vsel %vm975, %v4630, %v4634
      %v4636 = vshrl.u32 %v4323, 16
      %v4638 = vrot.slane %v4636, 4
      %v4639 = vor.u32 %v4638, %v4634
      %v4640 = vrot.slane %v4639, 4
      %v4642 = vshll.u32 %v4324, 16
      %v4644 = vrot.slane %v4642, 5
      %v4645 = vsel %vm975, %v4640, %v4644
      %v4647 = vshrl.u32 %v4325, 16
      %v4649 = vrot.slane %v4647, 4
      %v4650 = vshll.u32 %v4325, 16
      %v4652 = vrot.slane %v4650, 5
      %v4653 = vor.u32 %v4649, %v4652
      %v4654 = vrot.slane %v4653, 4
      %v4656 = vshll.u32 %v4326, 16
      %v4658 = vrot.slane %v4656, 5
      %v4659 = vsel %vm975, %v4654, %v4658
      %v4660 = vshrl.u32 %v4326, 16
      %v4662 = vrot.slane %v4660, 4
      %v4663 = vor.u32 %v4662, %v4658
      %v4664 = vrot.slane %v4663, 4
      %v4666 = vshll.u32 %v4327, 16
      %v4668 = vrot.slane %v4666, 5
      %v4669 = vsel %vm975, %v4664, %v4668
      %v4671 = vshrl.u32 %v4328, 16
      %v4673 = vrot.slane %v4671, 4
      %v4674 = vshll.u32 %v4328, 16
      %v4676 = vrot.slane %v4674, 5
      %v4677 = vor.u32 %v4673, %v4676
      %v4678 = vrot.slane %v4677, 4
      %v4680 = vshll.u32 %v4329, 16
      %v4682 = vrot.slane %v4680, 5
      %v4683 = vsel %vm975, %v4678, %v4682
      %v4684 = vshrl.u32 %v4329, 16
      %v4686 = vrot.slane %v4684, 4
      %v4687 = vor.u32 %v4686, %v4682
      %v4688 = vrot.slane %v4687, 4
      %v4690 = vshll.u32 %v4330, 16
      %v4692 = vrot.slane %v4690, 5
      %v4693 = vsel %vm975, %v4688, %v4692
      %v4695 = vshrl.u32 %v4331, 16
      %v4697 = vrot.slane %v4695, 4
      %v4698 = vshll.u32 %v4331, 16
      %v4700 = vrot.slane %v4698, 5
      %v4701 = vor.u32 %v4697, %v4700
      %v4702 = vrot.slane %v4701, 4
      %v4704 = vshll.u32 %v4332, 16
      %v4706 = vrot.slane %v4704, 5
      %v4707 = vsel %vm975, %v4702, %v4706
      %v4708 = vshrl.u32 %v4332, 16
      %v4710 = vrot.slane %v4708, 4
      %v4711 = vor.u32 %v4710, %v4706
      %v4712 = vrot.slane %v4711, 4
      %v4714 = vshll.u32 %v4333, 16
      %v4716 = vrot.slane %v4714, 5
      %v4717 = vsel %vm975, %v4712, %v4716
      %s4718 = scalar_lea.vmem %s3, 14
      %v4719 = vld [vmem:[%s4718] sm:$0x3]
      %v4720 = vunpack.c.l.b16 %v4347
      %v4721 = vunpack.c.l.b16 %v4357
      %v4722 = vunpack.c.l.b16 %v4371
      %v4723 = vunpack.c.l.b16 %v4381
      %v4724 = vunpack.c.l.b16 %v4395
      %v4725 = vunpack.c.l.b16 %v4405
      %v4726 = vunpack.c.l.b16 %v4419
      %v4727 = vunpack.c.l.b16 %v4429
      %v4728 = vunpack.c.l.b16 %v4443
      %v4729 = vunpack.c.l.b16 %v4453
      %v4730 = vunpack.c.l.b16 %v4467
      %v4731 = vunpack.c.l.b16 %v4477
      %v4732 = vunpack.c.l.b16 %v4491
      %v4733 = vunpack.c.l.b16 %v4501
      %v4734 = vunpack.c.l.b16 %v4515
      %v4735 = vunpack.c.l.b16 %v4525
      %v4736 = vunpack.c.l.b16 %v4539
      %v4737 = vunpack.c.l.b16 %v4549
      %v4738 = vunpack.c.l.b16 %v4563
      %v4739 = vunpack.c.l.b16 %v4573
      %v4740 = vunpack.c.l.b16 %v4587
      %v4741 = vunpack.c.l.b16 %v4597
      %v4742 = vunpack.c.l.b16 %v4611
      %v4743 = vunpack.c.l.b16 %v4621
      %v4744 = vunpack.c.l.b16 %v4635
      %v4745 = vunpack.c.l.b16 %v4645
      %v4746 = vunpack.c.l.b16 %v4659
      %v4747 = vunpack.c.l.b16 %v4669
      %v4748 = vunpack.c.l.b16 %v4683
      %v4749 = vunpack.c.l.b16 %v4693
      %v4750 = vunpack.c.l.b16 %v4707
      %v4751 = vunpack.c.l.b16 %v4717
      %v4752 = vpack.c.b16 %v4721, %v4720
      %v4753 = vpack.c.b16 %v4723, %v4722
      %v4754 = vpack.c.b16 %v4725, %v4724
      %v4755 = vpack.c.b16 %v4727, %v4726
      %v4756 = vpack.c.b16 %v4729, %v4728
      %v4757 = vpack.c.b16 %v4731, %v4730
      %v4758 = vpack.c.b16 %v4733, %v4732
      %v4759 = vpack.c.b16 %v4735, %v4734
      %v4760 = vpack.c.b16 %v4737, %v4736
      %v4761 = vpack.c.b16 %v4739, %v4738
      %v4762 = vpack.c.b16 %v4741, %v4740
      %v4763 = vpack.c.b16 %v4743, %v4742
      %v4764 = vpack.c.b16 %v4745, %v4744
      %v4765 = vpack.c.b16 %v4747, %v4746
      %v4766 = vpack.c.b16 %v4749, %v4748
      %v4767 = vpack.c.b16 %v4751, %v4750
      %v4769 = vsel %vm1410, %v4752, 0
      %v4772 = vsel %vm1410, %v4753, 0
      %v4775 = vsel %vm1410, %v4754, 0
      %v4778 = vsel %vm1410, %v4755, 0
      %v4781 = vsel %vm1410, %v4756, 0
      %v4784 = vsel %vm1410, %v4757, 0
      %v4787 = vsel %vm1410, %v4758, 0
      %v4790 = vsel %vm1410, %v4759, 0
      %v4793 = vsel %vm1410, %v4760, 0
      %v4796 = vsel %vm1410, %v4761, 0
      %v4799 = vsel %vm1410, %v4762, 0
      %v4802 = vsel %vm1410, %v4763, 0
      %v4805 = vsel %vm1410, %v4764, 0
      %v4808 = vsel %vm1410, %v4765, 0
      %v4811 = vsel %vm1410, %v4766, 0
      %v4814 = vsel %vm1410, %v4767, 0
      %v4817 = vsel %vm1459, %v4719, 0
      %4819 = vmatprep.subr.bf16.mxu0 0
      %4820 = vmatpush1.bf16.msra.mxu0 0
      %4821 = vmatprep.subr.bf16.mxu0 0
      %4822 = vmatpush1.bf16.msra.mxu0 0
      %4823 = vmatprep.subr.bf16.mxu0 0
      %4824 = vmatpush1.bf16.msra.mxu0 0
      %4825 = vmatprep.subr.bf16.mxu0 0
      %4826 = vmatpush1.bf16.msra.mxu0 0
      %4827 = vmatprep.subr.bf16.mxu0 0
      %4828 = vmatpush1.bf16.msra.mxu0 0
      %4829 = vmatprep.subr.bf16.mxu0 0
      %4830 = vmatpush1.bf16.msra.mxu0 0
      %4831 = vmatprep.subr.bf16.mxu0 0
      %4832 = vmatpush1.bf16.msra.mxu0 0
      %4833 = vmatprep.subr.bf16.mxu0 0
      %4834 = vmatpush1.bf16.msra.mxu0 %v4817
      %4835 = vmatprep.subr.bf16.mxu0 0
      %4836 = vmatpush2.bf16.msra.mxu0 0
      %4837 = vmatprep.subr.bf16.mxu0 0
      %4838 = vmatpush2.bf16.msra.mxu0 0
      %4839 = vmatprep.subr.bf16.mxu0 0
      %4840 = vmatpush2.bf16.msra.mxu0 0
      %4841 = vmatprep.subr.bf16.mxu0 0
      %4842 = vmatpush2.bf16.msra.mxu0 0
      %4843 = vmatprep.subr.bf16.mxu0 0
      %4844 = vmatpush2.bf16.msra.mxu0 0
      %4845 = vmatprep.subr.bf16.mxu0 0
      %4846 = vmatpush2.bf16.msra.mxu0 0
      %4847 = vmatprep.subr.bf16.mxu0 0
      %4848 = vmatpush2.bf16.msra.mxu0 0
      %4849 = vmatprep.subr.bf16.mxu0 0
      %4850 = vmatpush2.bf16.msra.mxu0 0
      %4851 = vmatprep.mubr.bf16.mxu0 0
      %4852 = vmatmul.mubr.bf16.gmra.mxu0 %v4769
      %v4853 = vpop.f32.mrf.mxu0
      %v4854 = vadd.f32 0.0, %v4853
      %v4855 = vpop.f32.mrf.mxu0
      %v4856 = vpop.f32.mrf.mxu0
      %v4857 = vadd.f32 0.0, %v4856
      %v4858 = vpop.f32.mrf.mxu0
      %4859 = vmatprep.mubr.bf16.mxu0 0
      %4860 = vmatmul.mubr.bf16.gmra.mxu0 %v4772
      %v4861 = vpop.f32.mrf.mxu0
      %v4862 = vadd.f32 0.0, %v4861
      %v4863 = vpop.f32.mrf.mxu0
      %v4864 = vpop.f32.mrf.mxu0
      %v4865 = vadd.f32 0.0, %v4864
      %v4866 = vpop.f32.mrf.mxu0
      %4867 = vmatprep.mubr.bf16.mxu0 0
      %4868 = vmatmul.mubr.bf16.gmra.mxu0 %v4775
      %v4869 = vpop.f32.mrf.mxu0
      %v4870 = vadd.f32 0.0, %v4869
      %v4871 = vpop.f32.mrf.mxu0
      %v4872 = vpop.f32.mrf.mxu0
      %v4873 = vadd.f32 0.0, %v4872
      %v4874 = vpop.f32.mrf.mxu0
      %4875 = vmatprep.mubr.bf16.mxu0 0
      %4876 = vmatmul.mubr.bf16.gmra.mxu0 %v4778
      %v4877 = vpop.f32.mrf.mxu0
      %v4878 = vadd.f32 0.0, %v4877
      %v4879 = vpop.f32.mrf.mxu0
      %v4880 = vpop.f32.mrf.mxu0
      %v4881 = vadd.f32 0.0, %v4880
      %v4882 = vpop.f32.mrf.mxu0
      %4883 = vmatprep.mubr.bf16.mxu0 0
      %4884 = vmatmul.mubr.bf16.gmra.mxu0 %v4781
      %v4885 = vpop.f32.mrf.mxu0
      %v4886 = vadd.f32 0.0, %v4885
      %v4887 = vpop.f32.mrf.mxu0
      %v4888 = vpop.f32.mrf.mxu0
      %v4889 = vadd.f32 0.0, %v4888
      %v4890 = vpop.f32.mrf.mxu0
      %4891 = vmatprep.mubr.bf16.mxu0 0
      %4892 = vmatmul.mubr.bf16.gmra.mxu0 %v4784
      %v4893 = vpop.f32.mrf.mxu0
      %v4894 = vadd.f32 0.0, %v4893
      %v4895 = vpop.f32.mrf.mxu0
      %v4896 = vpop.f32.mrf.mxu0
      %v4897 = vadd.f32 0.0, %v4896
      %v4898 = vpop.f32.mrf.mxu0
      %4899 = vmatprep.mubr.bf16.mxu0 0
      %4900 = vmatmul.mubr.bf16.gmra.mxu0 %v4787
      %v4901 = vpop.f32.mrf.mxu0
      %v4902 = vadd.f32 0.0, %v4901
      %v4903 = vpop.f32.mrf.mxu0
      %v4904 = vpop.f32.mrf.mxu0
      %v4905 = vadd.f32 0.0, %v4904
      %v4906 = vpop.f32.mrf.mxu0
      %4907 = vmatprep.mubr.bf16.mxu0 0
      %4908 = vmatmul.mubr.bf16.gmra.mxu0 %v4790
      %v4909 = vpop.f32.mrf.mxu0
      %v4910 = vadd.f32 0.0, %v4909
      %v4911 = vpop.f32.mrf.mxu0
      %v4912 = vpop.f32.mrf.mxu0
      %v4913 = vadd.f32 0.0, %v4912
      %v4914 = vpop.f32.mrf.mxu0
      %4915 = vmatprep.mubr.bf16.mxu0 0
      %4916 = vmatmul.mubr.bf16.gmra.mxu0 %v4793
      %v4917 = vpop.f32.mrf.mxu0
      %v4918 = vadd.f32 0.0, %v4917
      %v4919 = vpop.f32.mrf.mxu0
      %v4920 = vpop.f32.mrf.mxu0
      %v4921 = vadd.f32 0.0, %v4920
      %v4922 = vpop.f32.mrf.mxu0
      %4923 = vmatprep.mubr.bf16.mxu0 0
      %4924 = vmatmul.mubr.bf16.gmra.mxu0 %v4796
      %v4925 = vpop.f32.mrf.mxu0
      %v4926 = vadd.f32 0.0, %v4925
      %v4927 = vpop.f32.mrf.mxu0
      %v4928 = vpop.f32.mrf.mxu0
      %v4929 = vadd.f32 0.0, %v4928
      %v4930 = vpop.f32.mrf.mxu0
      %4931 = vmatprep.mubr.bf16.mxu0 0
      %4932 = vmatmul.mubr.bf16.gmra.mxu0 %v4799
      %v4933 = vpop.f32.mrf.mxu0
      %v4934 = vadd.f32 0.0, %v4933
      %v4935 = vpop.f32.mrf.mxu0
      %v4936 = vpop.f32.mrf.mxu0
      %v4937 = vadd.f32 0.0, %v4936
      %v4938 = vpop.f32.mrf.mxu0
      %4939 = vmatprep.mubr.bf16.mxu0 0
      %4940 = vmatmul.mubr.bf16.gmra.mxu0 %v4802
      %v4941 = vpop.f32.mrf.mxu0
      %v4942 = vadd.f32 0.0, %v4941
      %v4943 = vpop.f32.mrf.mxu0
      %v4944 = vpop.f32.mrf.mxu0
      %v4945 = vadd.f32 0.0, %v4944
      %v4946 = vpop.f32.mrf.mxu0
      %4947 = vmatprep.mubr.bf16.mxu0 0
      %4948 = vmatmul.mubr.bf16.gmra.mxu0 %v4805
      %v4949 = vpop.f32.mrf.mxu0
      %v4950 = vadd.f32 0.0, %v4949
      %v4951 = vpop.f32.mrf.mxu0
      %v4952 = vpop.f32.mrf.mxu0
      %v4953 = vadd.f32 0.0, %v4952
      %v4954 = vpop.f32.mrf.mxu0
      %4955 = vmatprep.mubr.bf16.mxu0 0
      %4956 = vmatmul.mubr.bf16.gmra.mxu0 %v4808
      %v4957 = vpop.f32.mrf.mxu0
      %v4958 = vadd.f32 0.0, %v4957
      %v4959 = vpop.f32.mrf.mxu0
      %v4960 = vpop.f32.mrf.mxu0
      %v4961 = vadd.f32 0.0, %v4960
      %v4962 = vpop.f32.mrf.mxu0
      %4963 = vmatprep.mubr.bf16.mxu0 0
      %4964 = vmatmul.mubr.bf16.gmra.mxu0 %v4811
      %v4965 = vpop.f32.mrf.mxu0
      %v4966 = vadd.f32 0.0, %v4965
      %v4967 = vpop.f32.mrf.mxu0
      %v4968 = vpop.f32.mrf.mxu0
      %v4969 = vadd.f32 0.0, %v4968
      %v4970 = vpop.f32.mrf.mxu0
      %4971 = vmatprep.mubr.bf16.mxu0 0
      %4972 = vmatmul.mubr.bf16.gmra.mxu0 %v4814
      %v4973 = vpop.f32.mrf.mxu0
      %v4974 = vadd.f32 0.0, %v4973
      %v4975 = vpop.f32.mrf.mxu0
      %v4976 = vpop.f32.mrf.mxu0
      %v4977 = vadd.f32 0.0, %v4976
      %v4978 = vpop.f32.mrf.mxu0
      %4979 = vdwg.mxu0
      %v4980 = vadd.f32 %v4254, %v4854
      %v4981 = vadd.f32 %v4255, %v4857
      %v4982 = vadd.f32 %v4256, %v4862
      %v4983 = vadd.f32 %v4257, %v4865
      %v4984 = vadd.f32 %v4258, %v4870
      %v4985 = vadd.f32 %v4259, %v4873
      %v4986 = vadd.f32 %v4260, %v4878
      %v4987 = vadd.f32 %v4261, %v4881
      %v4988 = vadd.f32 %v4262, %v4886
      %v4989 = vadd.f32 %v4263, %v4889
      %v4990 = vadd.f32 %v4264, %v4894
      %v4991 = vadd.f32 %v4265, %v4897
      %v4992 = vadd.f32 %v4266, %v4902
      %v4993 = vadd.f32 %v4267, %v4905
      %v4994 = vadd.f32 %v4268, %v4910
      %v4995 = vadd.f32 %v4269, %v4913
      %v4996 = vadd.f32 %v4270, %v4918
      %v4997 = vadd.f32 %v4271, %v4921
      %v4998 = vadd.f32 %v4272, %v4926
      %v4999 = vadd.f32 %v4273, %v4929
      %v5000 = vadd.f32 %v4274, %v4934
      %v5001 = vadd.f32 %v4275, %v4937
      %v5002 = vadd.f32 %v4276, %v4942
      %v5003 = vadd.f32 %v4277, %v4945
      %v5004 = vadd.f32 %v4278, %v4950
      %v5005 = vadd.f32 %v4279, %v4953
      %v5006 = vadd.f32 %v4280, %v4958
      %v5007 = vadd.f32 %v4281, %v4961
      %v5008 = vadd.f32 %v4282, %v4966
      %v5009 = vadd.f32 %v4283, %v4969
      %v5010 = vadd.f32 %v4284, %v4974
      %v5011 = vadd.f32 %v4285, %v4977
      %v5012 = vld [vmem:[%s3927] sm:$0xe]
      %v5013 = vld [vmem:[%s3927 + $0xc] sm:$0xe]
      %v5014 = vld [vmem:[%s3927 + $0x18] sm:$0xe]
      %v5015 = vld [vmem:[%s3927 + $0x24] sm:$0xe]
      %v5016 = vld [vmem:[%s3927 + $0x30] sm:$0xe]
      %v5017 = vld [vmem:[%s3927 + $0x3c] sm:$0xe]
      %v5018 = vld [vmem:[%s3927 + $0x48] sm:$0xe]
      %v5019 = vld [vmem:[%s3927 + $0x54] sm:$0xe]
      %v5020 = vld [vmem:[%s3927 + $0x60] sm:$0xe]
      %v5021 = vld [vmem:[%s3927 + $0x6c] sm:$0xe]
      %v5022 = vld [vmem:[%s3927 + $0x78] sm:$0xe]
      %v5023 = vld [vmem:[%s3927 + $0x84] sm:$0xe]
      %v5024 = vld [vmem:[%s3927 + $0x90] sm:$0xe]
      %v5025 = vld [vmem:[%s3927 + $0x9c] sm:$0xe]
      %v5026 = vld [vmem:[%s3927 + $0xa8] sm:$0xe]
      %v5027 = vld [vmem:[%s3927 + $0xb4] sm:$0xe]
      %v5076 = vrot.slane %v5012, 5
      %v5077 = vrot.slane %v5076, 4
      %v5078 = vrot.slane %v4287, 5
      %v5079 = vsel %vm1966, %v5077, %v5078
      %v5080 = vrot.slane %v5078, 4
      %v5081 = vrot.slane %v4288, 5
      %v5082 = vsel %vm1966, %v5080, %v5081
      %v5083 = vrot.slane %v5013, 5
      %v5084 = vrot.slane %v5083, 4
      %v5085 = vrot.slane %v4290, 5
      %v5086 = vsel %vm1966, %v5084, %v5085
      %v5087 = vrot.slane %v5085, 4
      %v5088 = vrot.slane %v4291, 5
      %v5089 = vsel %vm1966, %v5087, %v5088
      %v5090 = vrot.slane %v5014, 5
      %v5091 = vrot.slane %v5090, 4
      %v5092 = vrot.slane %v4293, 5
      %v5093 = vsel %vm1966, %v5091, %v5092
      %v5094 = vrot.slane %v5092, 4
      %v5095 = vrot.slane %v4294, 5
      %v5096 = vsel %vm1966, %v5094, %v5095
      %v5097 = vrot.slane %v5015, 5
      %v5098 = vrot.slane %v5097, 4
      %v5099 = vrot.slane %v4296, 5
      %v5100 = vsel %vm1966, %v5098, %v5099
      %v5101 = vrot.slane %v5099, 4
      %v5102 = vrot.slane %v4297, 5
      %v5103 = vsel %vm1966, %v5101, %v5102
      %v5104 = vrot.slane %v5016, 5
      %v5105 = vrot.slane %v5104, 4
      %v5106 = vrot.slane %v4299, 5
      %v5107 = vsel %vm1966, %v5105, %v5106
      %v5108 = vrot.slane %v5106, 4
      %v5109 = vrot.slane %v4300, 5
      %v5110 = vsel %vm1966, %v5108, %v5109
      %v5111 = vrot.slane %v5017, 5
      %v5112 = vrot.slane %v5111, 4
      %v5113 = vrot.slane %v4302, 5
      %v5114 = vsel %vm1966, %v5112, %v5113
      %v5115 = vrot.slane %v5113, 4
      %v5116 = vrot.slane %v4303, 5
      %v5117 = vsel %vm1966, %v5115, %v5116
      %v5118 = vrot.slane %v5018, 5
      %v5119 = vrot.slane %v5118, 4
      %v5120 = vrot.slane %v4305, 5
      %v5121 = vsel %vm1966, %v5119, %v5120
      %v5122 = vrot.slane %v5120, 4
      %v5123 = vrot.slane %v4306, 5
      %v5124 = vsel %vm1966, %v5122, %v5123
      %v5125 = vrot.slane %v5019, 5
      %v5126 = vrot.slane %v5125, 4
      %v5127 = vrot.slane %v4308, 5
      %v5128 = vsel %vm1966, %v5126, %v5127
      %v5129 = vrot.slane %v5127, 4
      %v5130 = vrot.slane %v4309, 5
      %v5131 = vsel %vm1966, %v5129, %v5130
      %v5132 = vrot.slane %v5020, 5
      %v5133 = vrot.slane %v5132, 4
      %v5134 = vrot.slane %v4311, 5
      %v5135 = vsel %vm1966, %v5133, %v5134
      %v5136 = vrot.slane %v5134, 4
      %v5137 = vrot.slane %v4312, 5
      %v5138 = vsel %vm1966, %v5136, %v5137
      %v5139 = vrot.slane %v5021, 5
      %v5140 = vrot.slane %v5139, 4
      %v5141 = vrot.slane %v4314, 5
      %v5142 = vsel %vm1966, %v5140, %v5141
      %v5143 = vrot.slane %v5141, 4
      %v5144 = vrot.slane %v4315, 5
      %v5145 = vsel %vm1966, %v5143, %v5144
      %v5146 = vrot.slane %v5022, 5
      %v5147 = vrot.slane %v5146, 4
      %v5148 = vrot.slane %v4317, 5
      %v5149 = vsel %vm1966, %v5147, %v5148
      %v5150 = vrot.slane %v5148, 4
      %v5151 = vrot.slane %v4318, 5
      %v5152 = vsel %vm1966, %v5150, %v5151
      %v5153 = vrot.slane %v5023, 5
      %v5154 = vrot.slane %v5153, 4
      %v5155 = vrot.slane %v4320, 5
      %v5156 = vsel %vm1966, %v5154, %v5155
      %v5157 = vrot.slane %v5155, 4
      %v5158 = vrot.slane %v4321, 5
      %v5159 = vsel %vm1966, %v5157, %v5158
      %v5160 = vrot.slane %v5024, 5
      %v5161 = vrot.slane %v5160, 4
      %v5162 = vrot.slane %v4323, 5
      %v5163 = vsel %vm1966, %v5161, %v5162
      %v5164 = vrot.slane %v5162, 4
      %v5165 = vrot.slane %v4324, 5
      %v5166 = vsel %vm1966, %v5164, %v5165
      %v5167 = vrot.slane %v5025, 5
      %v5168 = vrot.slane %v5167, 4
      %v5169 = vrot.slane %v4326, 5
      %v5170 = vsel %vm1966, %v5168, %v5169
      %v5171 = vrot.slane %v5169, 4
      %v5172 = vrot.slane %v4327, 5
      %v5173 = vsel %vm1966, %v5171, %v5172
      %v5174 = vrot.slane %v5026, 5
      %v5175 = vrot.slane %v5174, 4
      %v5176 = vrot.slane %v4329, 5
      %v5177 = vsel %vm1966, %v5175, %v5176
      %v5178 = vrot.slane %v5176, 4
      %v5179 = vrot.slane %v4330, 5
      %v5180 = vsel %vm1966, %v5178, %v5179
      %v5181 = vrot.slane %v5027, 5
      %v5182 = vrot.slane %v5181, 4
      %v5183 = vrot.slane %v4332, 5
      %v5184 = vsel %vm1966, %v5182, %v5183
      %v5185 = vrot.slane %v5183, 4
      %v5186 = vrot.slane %v4333, 5
      %v5187 = vsel %vm1966, %v5185, %v5186
      %s5188 = scalar_lea.vmem %s3, 16
      %v5189 = vld [vmem:[%s5188] sm:$0x3]
      %v5190 = vunpack.c.l.b16 %v5079
      %v5191 = vunpack.c.l.b16 %v5082
      %v5192 = vunpack.c.l.b16 %v5086
      %v5193 = vunpack.c.l.b16 %v5089
      %v5194 = vunpack.c.l.b16 %v5093
      %v5195 = vunpack.c.l.b16 %v5096
      %v5196 = vunpack.c.l.b16 %v5100
      %v5197 = vunpack.c.l.b16 %v5103
      %v5198 = vunpack.c.l.b16 %v5107
      %v5199 = vunpack.c.l.b16 %v5110
      %v5200 = vunpack.c.l.b16 %v5114
      %v5201 = vunpack.c.l.b16 %v5117
      %v5202 = vunpack.c.l.b16 %v5121
      %v5203 = vunpack.c.l.b16 %v5124
      %v5204 = vunpack.c.l.b16 %v5128
      %v5205 = vunpack.c.l.b16 %v5131
      %v5206 = vunpack.c.l.b16 %v5135
      %v5207 = vunpack.c.l.b16 %v5138
      %v5208 = vunpack.c.l.b16 %v5142
      %v5209 = vunpack.c.l.b16 %v5145
      %v5210 = vunpack.c.l.b16 %v5149
      %v5211 = vunpack.c.l.b16 %v5152
      %v5212 = vunpack.c.l.b16 %v5156
      %v5213 = vunpack.c.l.b16 %v5159
      %v5214 = vunpack.c.l.b16 %v5163
      %v5215 = vunpack.c.l.b16 %v5166
      %v5216 = vunpack.c.l.b16 %v5170
      %v5217 = vunpack.c.l.b16 %v5173
      %v5218 = vunpack.c.l.b16 %v5177
      %v5219 = vunpack.c.l.b16 %v5180
      %v5220 = vunpack.c.l.b16 %v5184
      %v5221 = vunpack.c.l.b16 %v5187
      %v5222 = vpack.c.b16 %v5191, %v5190
      %v5223 = vpack.c.b16 %v5193, %v5192
      %v5224 = vpack.c.b16 %v5195, %v5194
      %v5225 = vpack.c.b16 %v5197, %v5196
      %v5226 = vpack.c.b16 %v5199, %v5198
      %v5227 = vpack.c.b16 %v5201, %v5200
      %v5228 = vpack.c.b16 %v5203, %v5202
      %v5229 = vpack.c.b16 %v5205, %v5204
      %v5230 = vpack.c.b16 %v5207, %v5206
      %v5231 = vpack.c.b16 %v5209, %v5208
      %v5232 = vpack.c.b16 %v5211, %v5210
      %v5233 = vpack.c.b16 %v5213, %v5212
      %v5234 = vpack.c.b16 %v5215, %v5214
      %v5235 = vpack.c.b16 %v5217, %v5216
      %v5236 = vpack.c.b16 %v5219, %v5218
      %v5237 = vpack.c.b16 %v5221, %v5220
      %v5239 = vsel %vm1410, %v5222, 0
      %v5242 = vsel %vm1410, %v5223, 0
      %v5245 = vsel %vm1410, %v5224, 0
      %v5248 = vsel %vm1410, %v5225, 0
      %v5251 = vsel %vm1410, %v5226, 0
      %v5254 = vsel %vm1410, %v5227, 0
      %v5257 = vsel %vm1410, %v5228, 0
      %v5260 = vsel %vm1410, %v5229, 0
      %v5263 = vsel %vm1410, %v5230, 0
      %v5266 = vsel %vm1410, %v5231, 0
      %v5269 = vsel %vm1410, %v5232, 0
      %v5272 = vsel %vm1410, %v5233, 0
      %v5275 = vsel %vm1410, %v5234, 0
      %v5278 = vsel %vm1410, %v5235, 0
      %v5281 = vsel %vm1410, %v5236, 0
      %v5284 = vsel %vm1410, %v5237, 0
      %v5287 = vsel %vm1459, %v5189, 0
      %5289 = vmatprep.subr.bf16.mxu0 0
      %5290 = vmatpush1.bf16.msra.mxu0 0
      %5291 = vmatprep.subr.bf16.mxu0 0
      %5292 = vmatpush1.bf16.msra.mxu0 0
      %5293 = vmatprep.subr.bf16.mxu0 0
      %5294 = vmatpush1.bf16.msra.mxu0 0
      %5295 = vmatprep.subr.bf16.mxu0 0
      %5296 = vmatpush1.bf16.msra.mxu0 0
      %5297 = vmatprep.subr.bf16.mxu0 0
      %5298 = vmatpush1.bf16.msra.mxu0 0
      %5299 = vmatprep.subr.bf16.mxu0 0
      %5300 = vmatpush1.bf16.msra.mxu0 0
      %5301 = vmatprep.subr.bf16.mxu0 0
      %5302 = vmatpush1.bf16.msra.mxu0 0
      %5303 = vmatprep.subr.bf16.mxu0 0
      %5304 = vmatpush1.bf16.msra.mxu0 %v5287
      %5305 = vmatprep.subr.bf16.mxu0 0
      %5306 = vmatpush2.bf16.msra.mxu0 0
      %5307 = vmatprep.subr.bf16.mxu0 0
      %5308 = vmatpush2.bf16.msra.mxu0 0
      %5309 = vmatprep.subr.bf16.mxu0 0
      %5310 = vmatpush2.bf16.msra.mxu0 0
      %5311 = vmatprep.subr.bf16.mxu0 0
      %5312 = vmatpush2.bf16.msra.mxu0 0
      %5313 = vmatprep.subr.bf16.mxu0 0
      %5314 = vmatpush2.bf16.msra.mxu0 0
      %5315 = vmatprep.subr.bf16.mxu0 0
      %5316 = vmatpush2.bf16.msra.mxu0 0
      %5317 = vmatprep.subr.bf16.mxu0 0
      %5318 = vmatpush2.bf16.msra.mxu0 0
      %5319 = vmatprep.subr.bf16.mxu0 0
      %5320 = vmatpush2.bf16.msra.mxu0 0
      %5321 = vmatprep.mubr.bf16.mxu0 0
      %5322 = vmatmul.mubr.bf16.gmra.mxu0 %v5239
      %v5323 = vpop.f32.mrf.mxu0
      %v5324 = vadd.f32 0.0, %v5323
      %v5325 = vpop.f32.mrf.mxu0
      %v5326 = vpop.f32.mrf.mxu0
      %v5327 = vadd.f32 0.0, %v5326
      %v5328 = vpop.f32.mrf.mxu0
      %5329 = vmatprep.mubr.bf16.mxu0 0
      %5330 = vmatmul.mubr.bf16.gmra.mxu0 %v5242
      %v5331 = vpop.f32.mrf.mxu0
      %v5332 = vadd.f32 0.0, %v5331
      %v5333 = vpop.f32.mrf.mxu0
      %v5334 = vpop.f32.mrf.mxu0
      %v5335 = vadd.f32 0.0, %v5334
      %v5336 = vpop.f32.mrf.mxu0
      %5337 = vmatprep.mubr.bf16.mxu0 0
      %5338 = vmatmul.mubr.bf16.gmra.mxu0 %v5245
      %v5339 = vpop.f32.mrf.mxu0
      %v5340 = vadd.f32 0.0, %v5339
      %v5341 = vpop.f32.mrf.mxu0
      %v5342 = vpop.f32.mrf.mxu0
      %v5343 = vadd.f32 0.0, %v5342
      %v5344 = vpop.f32.mrf.mxu0
      %5345 = vmatprep.mubr.bf16.mxu0 0
      %5346 = vmatmul.mubr.bf16.gmra.mxu0 %v5248
      %v5347 = vpop.f32.mrf.mxu0
      %v5348 = vadd.f32 0.0, %v5347
      %v5349 = vpop.f32.mrf.mxu0
      %v5350 = vpop.f32.mrf.mxu0
      %v5351 = vadd.f32 0.0, %v5350
      %v5352 = vpop.f32.mrf.mxu0
      %5353 = vmatprep.mubr.bf16.mxu0 0
      %5354 = vmatmul.mubr.bf16.gmra.mxu0 %v5251
      %v5355 = vpop.f32.mrf.mxu0
      %v5356 = vadd.f32 0.0, %v5355
      %v5357 = vpop.f32.mrf.mxu0
      %v5358 = vpop.f32.mrf.mxu0
      %v5359 = vadd.f32 0.0, %v5358
      %v5360 = vpop.f32.mrf.mxu0
      %5361 = vmatprep.mubr.bf16.mxu0 0
      %5362 = vmatmul.mubr.bf16.gmra.mxu0 %v5254
      %v5363 = vpop.f32.mrf.mxu0
      %v5364 = vadd.f32 0.0, %v5363
      %v5365 = vpop.f32.mrf.mxu0
      %v5366 = vpop.f32.mrf.mxu0
      %v5367 = vadd.f32 0.0, %v5366
      %v5368 = vpop.f32.mrf.mxu0
      %5369 = vmatprep.mubr.bf16.mxu0 0
      %5370 = vmatmul.mubr.bf16.gmra.mxu0 %v5257
      %v5371 = vpop.f32.mrf.mxu0
      %v5372 = vadd.f32 0.0, %v5371
      %v5373 = vpop.f32.mrf.mxu0
      %v5374 = vpop.f32.mrf.mxu0
      %v5375 = vadd.f32 0.0, %v5374
      %v5376 = vpop.f32.mrf.mxu0
      %5377 = vmatprep.mubr.bf16.mxu0 0
      %5378 = vmatmul.mubr.bf16.gmra.mxu0 %v5260
      %v5379 = vpop.f32.mrf.mxu0
      %v5380 = vadd.f32 0.0, %v5379
      %v5381 = vpop.f32.mrf.mxu0
      %v5382 = vpop.f32.mrf.mxu0
      %v5383 = vadd.f32 0.0, %v5382
      %v5384 = vpop.f32.mrf.mxu0
      %5385 = vmatprep.mubr.bf16.mxu0 0
      %5386 = vmatmul.mubr.bf16.gmra.mxu0 %v5263
      %v5387 = vpop.f32.mrf.mxu0
      %v5388 = vadd.f32 0.0, %v5387
      %v5389 = vpop.f32.mrf.mxu0
      %v5390 = vpop.f32.mrf.mxu0
      %v5391 = vadd.f32 0.0, %v5390
      %v5392 = vpop.f32.mrf.mxu0
      %5393 = vmatprep.mubr.bf16.mxu0 0
      %5394 = vmatmul.mubr.bf16.gmra.mxu0 %v5266
      %v5395 = vpop.f32.mrf.mxu0
      %v5396 = vadd.f32 0.0, %v5395
      %v5397 = vpop.f32.mrf.mxu0
      %v5398 = vpop.f32.mrf.mxu0
      %v5399 = vadd.f32 0.0, %v5398
      %v5400 = vpop.f32.mrf.mxu0
      %5401 = vmatprep.mubr.bf16.mxu0 0
      %5402 = vmatmul.mubr.bf16.gmra.mxu0 %v5269
      %v5403 = vpop.f32.mrf.mxu0
      %v5404 = vadd.f32 0.0, %v5403
      %v5405 = vpop.f32.mrf.mxu0
      %v5406 = vpop.f32.mrf.mxu0
      %v5407 = vadd.f32 0.0, %v5406
      %v5408 = vpop.f32.mrf.mxu0
      %5409 = vmatprep.mubr.bf16.mxu0 0
      %5410 = vmatmul.mubr.bf16.gmra.mxu0 %v5272
      %v5411 = vpop.f32.mrf.mxu0
      %v5412 = vadd.f32 0.0, %v5411
      %v5413 = vpop.f32.mrf.mxu0
      %v5414 = vpop.f32.mrf.mxu0
      %v5415 = vadd.f32 0.0, %v5414
      %v5416 = vpop.f32.mrf.mxu0
      %5417 = vmatprep.mubr.bf16.mxu0 0
      %5418 = vmatmul.mubr.bf16.gmra.mxu0 %v5275
      %v5419 = vpop.f32.mrf.mxu0
      %v5420 = vadd.f32 0.0, %v5419
      %v5421 = vpop.f32.mrf.mxu0
      %v5422 = vpop.f32.mrf.mxu0
      %v5423 = vadd.f32 0.0, %v5422
      %v5424 = vpop.f32.mrf.mxu0
      %5425 = vmatprep.mubr.bf16.mxu0 0
      %5426 = vmatmul.mubr.bf16.gmra.mxu0 %v5278
      %v5427 = vpop.f32.mrf.mxu0
      %v5428 = vadd.f32 0.0, %v5427
      %v5429 = vpop.f32.mrf.mxu0
      %v5430 = vpop.f32.mrf.mxu0
      %v5431 = vadd.f32 0.0, %v5430
      %v5432 = vpop.f32.mrf.mxu0
      %5433 = vmatprep.mubr.bf16.mxu0 0
      %5434 = vmatmul.mubr.bf16.gmra.mxu0 %v5281
      %v5435 = vpop.f32.mrf.mxu0
      %v5436 = vadd.f32 0.0, %v5435
      %v5437 = vpop.f32.mrf.mxu0
      %v5438 = vpop.f32.mrf.mxu0
      %v5439 = vadd.f32 0.0, %v5438
      %v5440 = vpop.f32.mrf.mxu0
      %5441 = vmatprep.mubr.bf16.mxu0 0
      %5442 = vmatmul.mubr.bf16.gmra.mxu0 %v5284
      %v5443 = vpop.f32.mrf.mxu0
      %v5444 = vadd.f32 0.0, %v5443
      %v5445 = vpop.f32.mrf.mxu0
      %v5446 = vpop.f32.mrf.mxu0
      %v5447 = vadd.f32 0.0, %v5446
      %v5448 = vpop.f32.mrf.mxu0
      %5449 = vdwg.mxu0
      %v5450 = vadd.f32 %v4980, %v5324
      %v5451 = vadd.f32 %v4981, %v5327
      %v5452 = vadd.f32 %v4982, %v5332
      %v5453 = vadd.f32 %v4983, %v5335
      %v5454 = vadd.f32 %v4984, %v5340
      %v5455 = vadd.f32 %v4985, %v5343
      %v5456 = vadd.f32 %v4986, %v5348
      %v5457 = vadd.f32 %v4987, %v5351
      %v5458 = vadd.f32 %v4988, %v5356
      %v5459 = vadd.f32 %v4989, %v5359
      %v5460 = vadd.f32 %v4990, %v5364
      %v5461 = vadd.f32 %v4991, %v5367
      %v5462 = vadd.f32 %v4992, %v5372
      %v5463 = vadd.f32 %v4993, %v5375
      %v5464 = vadd.f32 %v4994, %v5380
      %v5465 = vadd.f32 %v4995, %v5383
      %v5466 = vadd.f32 %v4996, %v5388
      %v5467 = vadd.f32 %v4997, %v5391
      %v5468 = vadd.f32 %v4998, %v5396
      %v5469 = vadd.f32 %v4999, %v5399
      %v5470 = vadd.f32 %v5000, %v5404
      %v5471 = vadd.f32 %v5001, %v5407
      %v5472 = vadd.f32 %v5002, %v5412
      %v5473 = vadd.f32 %v5003, %v5415
      %v5474 = vadd.f32 %v5004, %v5420
      %v5475 = vadd.f32 %v5005, %v5423
      %v5476 = vadd.f32 %v5006, %v5428
      %v5477 = vadd.f32 %v5007, %v5431
      %v5478 = vadd.f32 %v5008, %v5436
      %v5479 = vadd.f32 %v5009, %v5439
      %v5480 = vadd.f32 %v5010, %v5444
      %v5481 = vadd.f32 %v5011, %v5447
      %vm5482 = vcmask 64512
      %v5483 = vsel %vm5482, %v5450, 0.0
      %v5484 = vsel %vm5482, %v5451, 0.0
      %v5485 = vadd.f32 %v5483, %v5484
      %v5486 = vsel %vm5482, %v5452, 0.0
      %v5487 = vadd.f32 %v5485, %v5486
      %v5488 = vsel %vm5482, %v5453, 0.0
      %v5489 = vadd.f32 %v5487, %v5488
      %v5490 = vsel %vm5482, %v5454, 0.0
      %v5491 = vadd.f32 %v5489, %v5490
      %v5492 = vsel %vm5482, %v5455, 0.0
      %v5493 = vadd.f32 %v5491, %v5492
      %v5494 = vsel %vm5482, %v5456, 0.0
      %v5495 = vadd.f32 %v5493, %v5494
      %v5496 = vsel %vm5482, %v5457, 0.0
      %v5497 = vadd.f32 %v5495, %v5496
      %v5498 = vsel %vm5482, %v5458, 0.0
      %v5499 = vadd.f32 %v5497, %v5498
      %v5500 = vsel %vm5482, %v5459, 0.0
      %v5501 = vadd.f32 %v5499, %v5500
      %v5502 = vsel %vm5482, %v5460, 0.0
      %v5503 = vadd.f32 %v5501, %v5502
      %v5504 = vsel %vm5482, %v5461, 0.0
      %v5505 = vadd.f32 %v5503, %v5504
      %v5506 = vsel %vm5482, %v5462, 0.0
      %v5507 = vadd.f32 %v5505, %v5506
      %v5508 = vsel %vm5482, %v5463, 0.0
      %v5509 = vadd.f32 %v5507, %v5508
      %v5510 = vsel %vm5482, %v5464, 0.0
      %v5511 = vadd.f32 %v5509, %v5510
      %v5512 = vsel %vm5482, %v5465, 0.0
      %v5513 = vadd.f32 %v5511, %v5512
      %v5514 = vsel %vm5482, %v5466, 0.0
      %v5515 = vadd.f32 %v5513, %v5514
      %v5516 = vsel %vm5482, %v5467, 0.0
      %v5517 = vadd.f32 %v5515, %v5516
      %v5518 = vsel %vm5482, %v5468, 0.0
      %v5519 = vadd.f32 %v5517, %v5518
      %v5520 = vsel %vm5482, %v5469, 0.0
      %v5521 = vadd.f32 %v5519, %v5520
      %v5522 = vsel %vm5482, %v5470, 0.0
      %v5523 = vadd.f32 %v5521, %v5522
      %v5524 = vsel %vm5482, %v5471, 0.0
      %v5525 = vadd.f32 %v5523, %v5524
      %v5526 = vsel %vm5482, %v5472, 0.0
      %v5527 = vadd.f32 %v5525, %v5526
      %v5528 = vsel %vm5482, %v5473, 0.0
      %v5529 = vadd.f32 %v5527, %v5528
      %v5530 = vsel %vm5482, %v5474, 0.0
      %v5531 = vadd.f32 %v5529, %v5530
      %v5532 = vsel %vm5482, %v5475, 0.0
      %v5533 = vadd.f32 %v5531, %v5532
      %v5534 = vsel %vm5482, %v5476, 0.0
      %v5535 = vadd.f32 %v5533, %v5534
      %v5536 = vsel %vm5482, %v5477, 0.0
      %v5537 = vadd.f32 %v5535, %v5536
      %v5538 = vsel %vm5482, %v5478, 0.0
      %v5539 = vadd.f32 %v5537, %v5538
      %v5540 = vsel %vm5482, %v5479, 0.0
      %v5541 = vadd.f32 %v5539, %v5540
      %v5542 = vsel %vm5482, %v5480, 0.0
      %v5543 = vadd.f32 %v5541, %v5542
      %v5544 = vsel %vm5482, %v5481, 0.0
      %v5545 = vadd.f32 %v5543, %v5544
      %v5546 = vrot.slane %v5545, 4
      %v5547 = vadd.f32 %v5545, %v5546
      %v5548 = vrot.slane %v5547, 2
      %v5549 = vadd.f32 %v5547, %v5548
      %v5550 = vrot.slane %v5549, 1
      %v5551 = vadd.f32 %v5549, %v5550
      %v5552 = vmul.f32 %v5551, 0.00390625
      %v5553 = vsub.f32 %v5450, %v5552
      %v5554 = vsub.f32 %v5451, %v5552
      %v5555 = vsub.f32 %v5452, %v5552
      %v5556 = vsub.f32 %v5453, %v5552
      %v5557 = vsub.f32 %v5454, %v5552
      %v5558 = vsub.f32 %v5455, %v5552
      %v5559 = vsub.f32 %v5456, %v5552
      %v5560 = vsub.f32 %v5457, %v5552
      %v5561 = vsub.f32 %v5458, %v5552
      %v5562 = vsub.f32 %v5459, %v5552
      %v5563 = vsub.f32 %v5460, %v5552
      %v5564 = vsub.f32 %v5461, %v5552
      %v5565 = vsub.f32 %v5462, %v5552
      %v5566 = vsub.f32 %v5463, %v5552
      %v5567 = vsub.f32 %v5464, %v5552
      %v5568 = vsub.f32 %v5465, %v5552
      %v5569 = vsub.f32 %v5466, %v5552
      %v5570 = vsub.f32 %v5467, %v5552
      %v5571 = vsub.f32 %v5468, %v5552
      %v5572 = vsub.f32 %v5469, %v5552
      %v5573 = vsub.f32 %v5470, %v5552
      %v5574 = vsub.f32 %v5471, %v5552
      %v5575 = vsub.f32 %v5472, %v5552
      %v5576 = vsub.f32 %v5473, %v5552
      %v5577 = vsub.f32 %v5474, %v5552
      %v5578 = vsub.f32 %v5475, %v5552
      %v5579 = vsub.f32 %v5476, %v5552
      %v5580 = vsub.f32 %v5477, %v5552
      %v5581 = vsub.f32 %v5478, %v5552
      %v5582 = vsub.f32 %v5479, %v5552
      %v5583 = vsub.f32 %v5480, %v5552
      %v5584 = vsub.f32 %v5481, %v5552
      %v5585 = vmul.f32 %v5553, %v5553
      %v5586 = vmul.f32 %v5554, %v5554
      %v5587 = vmul.f32 %v5555, %v5555
      %v5588 = vmul.f32 %v5556, %v5556
      %v5589 = vmul.f32 %v5557, %v5557
      %v5590 = vmul.f32 %v5558, %v5558
      %v5591 = vmul.f32 %v5559, %v5559
      %v5592 = vmul.f32 %v5560, %v5560
      %v5593 = vmul.f32 %v5561, %v5561
      %v5594 = vmul.f32 %v5562, %v5562
      %v5595 = vmul.f32 %v5563, %v5563
      %v5596 = vmul.f32 %v5564, %v5564
      %v5597 = vmul.f32 %v5565, %v5565
      %v5598 = vmul.f32 %v5566, %v5566
      %v5599 = vmul.f32 %v5567, %v5567
      %v5600 = vmul.f32 %v5568, %v5568
      %v5601 = vmul.f32 %v5569, %v5569
      %v5602 = vmul.f32 %v5570, %v5570
      %v5603 = vmul.f32 %v5571, %v5571
      %v5604 = vmul.f32 %v5572, %v5572
      %v5605 = vmul.f32 %v5573, %v5573
      %v5606 = vmul.f32 %v5574, %v5574
      %v5607 = vmul.f32 %v5575, %v5575
      %v5608 = vmul.f32 %v5576, %v5576
      %v5609 = vmul.f32 %v5577, %v5577
      %v5610 = vmul.f32 %v5578, %v5578
      %v5611 = vmul.f32 %v5579, %v5579
      %v5612 = vmul.f32 %v5580, %v5580
      %v5613 = vmul.f32 %v5581, %v5581
      %v5614 = vmul.f32 %v5582, %v5582
      %v5615 = vmul.f32 %v5583, %v5583
      %v5616 = vmul.f32 %v5584, %v5584
      %v5617 = vsel %vm5482, %v5585, 0.0
      %v5618 = vsel %vm5482, %v5586, 0.0
      %v5619 = vadd.f32 %v5617, %v5618
      %v5620 = vsel %vm5482, %v5587, 0.0
      %v5621 = vadd.f32 %v5619, %v5620
      %v5622 = vsel %vm5482, %v5588, 0.0
      %v5623 = vadd.f32 %v5621, %v5622
      %v5624 = vsel %vm5482, %v5589, 0.0
      %v5625 = vadd.f32 %v5623, %v5624
      %v5626 = vsel %vm5482, %v5590, 0.0
      %v5627 = vadd.f32 %v5625, %v5626
      %v5628 = vsel %vm5482, %v5591, 0.0
      %v5629 = vadd.f32 %v5627, %v5628
      %v5630 = vsel %vm5482, %v5592, 0.0
      %v5631 = vadd.f32 %v5629, %v5630
      %v5632 = vsel %vm5482, %v5593, 0.0
      %v5633 = vadd.f32 %v5631, %v5632
      %v5634 = vsel %vm5482, %v5594, 0.0
      %v5635 = vadd.f32 %v5633, %v5634
      %v5636 = vsel %vm5482, %v5595, 0.0
      %v5637 = vadd.f32 %v5635, %v5636
      %v5638 = vsel %vm5482, %v5596, 0.0
      %v5639 = vadd.f32 %v5637, %v5638
      %v5640 = vsel %vm5482, %v5597, 0.0
      %v5641 = vadd.f32 %v5639, %v5640
      %v5642 = vsel %vm5482, %v5598, 0.0
      %v5643 = vadd.f32 %v5641, %v5642
      %v5644 = vsel %vm5482, %v5599, 0.0
      %v5645 = vadd.f32 %v5643, %v5644
      %v5646 = vsel %vm5482, %v5600, 0.0
      %v5647 = vadd.f32 %v5645, %v5646
      %v5648 = vsel %vm5482, %v5601, 0.0
      %v5649 = vadd.f32 %v5647, %v5648
      %v5650 = vsel %vm5482, %v5602, 0.0
      %v5651 = vadd.f32 %v5649, %v5650
      %v5652 = vsel %vm5482, %v5603, 0.0
      %v5653 = vadd.f32 %v5651, %v5652
      %v5654 = vsel %vm5482, %v5604, 0.0
      %v5655 = vadd.f32 %v5653, %v5654
      %v5656 = vsel %vm5482, %v5605, 0.0
      %v5657 = vadd.f32 %v5655, %v5656
      %v5658 = vsel %vm5482, %v5606, 0.0
      %v5659 = vadd.f32 %v5657, %v5658
      %v5660 = vsel %vm5482, %v5607, 0.0
      %v5661 = vadd.f32 %v5659, %v5660
      %v5662 = vsel %vm5482, %v5608, 0.0
      %v5663 = vadd.f32 %v5661, %v5662
      %v5664 = vsel %vm5482, %v5609, 0.0
      %v5665 = vadd.f32 %v5663, %v5664
      %v5666 = vsel %vm5482, %v5610, 0.0
      %v5667 = vadd.f32 %v5665, %v5666
      %v5668 = vsel %vm5482, %v5611, 0.0
      %v5669 = vadd.f32 %v5667, %v5668
      %v5670 = vsel %vm5482, %v5612, 0.0
      %v5671 = vadd.f32 %v5669, %v5670
      %v5672 = vsel %vm5482, %v5613, 0.0
      %v5673 = vadd.f32 %v5671, %v5672
      %v5674 = vsel %vm5482, %v5614, 0.0
      %v5675 = vadd.f32 %v5673, %v5674
      %v5676 = vsel %vm5482, %v5615, 0.0
      %v5677 = vadd.f32 %v5675, %v5676
      %v5678 = vsel %vm5482, %v5616, 0.0
      %v5679 = vadd.f32 %v5677, %v5678
      %v5680 = vrot.slane %v5679, 4
      %v5681 = vadd.f32 %v5679, %v5680
      %v5682 = vrot.slane %v5681, 2
      %v5683 = vadd.f32 %v5681, %v5682
      %v5684 = vrot.slane %v5683, 1
      %v5685 = vadd.f32 %v5683, %v5684
      %vm5686 = vcmask 1040384
      %v5687 = vsel %vm5686, %v5551, %v5685
      %vm5688 = vcmask 58368
      %5689 = vst.msk [vmem:[%s235] sm:$0x3] %vm5688, %v5687
      %5690 = vst.msk [vmem:[%s231] sm:$0xff] %vm5482, %v5450
      %5691 = vst.msk [vmem:[%s231 + $0x8] sm:$0xff] %vm5482, %v5451
      %5692 = vst.msk [vmem:[%s231 + $0x10] sm:$0xff] %vm5482, %v5452
      %5693 = vst.msk [vmem:[%s231 + $0x18] sm:$0xff] %vm5482, %v5453
      %5694 = vst.msk [vmem:[%s231 + $0x20] sm:$0xff] %vm5482, %v5454
      %5695 = vst.msk [vmem:[%s231 + $0x28] sm:$0xff] %vm5482, %v5455
      %5696 = vst.msk [vmem:[%s231 + $0x30] sm:$0xff] %vm5482, %v5456
      %5697 = vst.msk [vmem:[%s231 + $0x38] sm:$0xff] %vm5482, %v5457
      %5698 = vst.msk [vmem:[%s231 + $0x40] sm:$0xff] %vm5482, %v5458
      %5699 = vst.msk [vmem:[%s231 + $0x48] sm:$0xff] %vm5482, %v5459
      %5700 = vst.msk [vmem:[%s231 + $0x50] sm:$0xff] %vm5482, %v5460
      %5701 = vst.msk [vmem:[%s231 + $0x58] sm:$0xff] %vm5482, %v5461
      %5702 = vst.msk [vmem:[%s231 + $0x60] sm:$0xff] %vm5482, %v5462
      %5703 = vst.msk [vmem:[%s231 + $0x68] sm:$0xff] %vm5482, %v5463
      %5704 = vst.msk [vmem:[%s231 + $0x70] sm:$0xff] %vm5482, %v5464
      %5705 = vst.msk [vmem:[%s231 + $0x78] sm:$0xff] %vm5482, %v5465
      %5706 = vst.msk [vmem:[%s231 + $0x80] sm:$0xff] %vm5482, %v5466
      %5707 = vst.msk [vmem:[%s231 + $0x88] sm:$0xff] %vm5482, %v5467
      %5708 = vst.msk [vmem:[%s231 + $0x90] sm:$0xff] %vm5482, %v5468
      %5709 = vst.msk [vmem:[%s231 + $0x98] sm:$0xff] %vm5482, %v5469
      %5710 = vst.msk [vmem:[%s231 + $0xa0] sm:$0xff] %vm5482, %v5470
      %5711 = vst.msk [vmem:[%s231 + $0xa8] sm:$0xff] %vm5482, %v5471
      %5712 = vst.msk [vmem:[%s231 + $0xb0] sm:$0xff] %vm5482, %v5472
      %5713 = vst.msk [vmem:[%s231 + $0xb8] sm:$0xff] %vm5482, %v5473
      %5714 = vst.msk [vmem:[%s231 + $0xc0] sm:$0xff] %vm5482, %v5474
      %5715 = vst.msk [vmem:[%s231 + $0xc8] sm:$0xff] %vm5482, %v5475
      %5716 = vst.msk [vmem:[%s231 + $0xd0] sm:$0xff] %vm5482, %v5476
      %5717 = vst.msk [vmem:[%s231 + $0xd8] sm:$0xff] %vm5482, %v5477
      %5718 = vst.msk [vmem:[%s231 + $0xe0] sm:$0xff] %vm5482, %v5478
      %5719 = vst.msk [vmem:[%s231 + $0xe8] sm:$0xff] %vm5482, %v5479
      %5720 = vst.msk [vmem:[%s231 + $0xf0] sm:$0xff] %vm5482, %v5480
      %5721 = vst.msk [vmem:[%s231 + $0xf8] sm:$0xff] %vm5482, %v5481
      %p5722 = scmp.lt.s32.totalorder %s17, 1
      %s5723 = scalar_select %p5722, %s17, 1
      %s5724 = smul.addr %s5723, 32
      %s5725 = smul.addr %s5724, 8
      %s5726 = scalar_lea.vmem %s4, %s5725
      %p5727 = scmp.lt.s32.totalorder %s17, 1
      %s5728 = scalar_select %p5727, %s17, 1
      %s5729 = smul.addr %s5728, 2
      %s5730 = scalar_lea.vmem %s5, %s5729
      // Predicated region
      $region37: #{double_conv.3} parent=35 // pred_check
        %p5731 = pneg %p124
      $region38: #{double_conv.3} parent=35 // pred_check_branch
        %5733 = sbr.rel (%p5731) target = $region40
      $region39: #{double_conv.3} parent=35 // pred_region
        _
      $region40: #{double_conv.3} parent=35 // pred_fallthru
        _
      // Predicated region
      $region41: #{double_conv.3} parent=35 // pred_check
        %p5734 = pneg %p150
      $region42: #{double_conv.3} parent=35 // pred_check_branch
        %5736 = sbr.rel (%p5734) target = $region44
      $region43: #{double_conv.3} parent=35 // pred_region
        _
      $region44: #{double_conv.3} parent=35 // pred_fallthru
        _
    $region36: #{double_conv.3} parent=5 // pred_fallthru
      _
    %p5737 = scmp.le.s32.totalorder 2, %s12
    // Predicated region
    $region45: #{double_conv.3} parent=5 // pred_check
      %p5738 = pneg %p5737
    $region46: #{double_conv.3} parent=5 // pred_check_branch
      %5740 = sbr.rel (%p5738) target = $region48
    $region47: #{double_conv.3} parent=5 // pred_region
      %s5741 = ssub.s32 %s12, 2
      // Predicated region
      $region49: #{double_conv.3} parent=47 // pred_check
        %p5742 = pneg %p130
      $region50: #{double_conv.3} parent=47 // pred_check_branch
        %5744 = sbr.rel (%p5742) target = $region52
      $region51: #{double_conv.3} parent=47 // pred_region
        %p5745 = scmp.lt.s32.totalorder %s18, 1
        %s5746 = scalar_select %p5745, %s18, 1
        %s5747 = smul.addr %s5746, 32
        %s5748 = smul.addr %s5747, 8
        %s5749 = scalar_lea.vmem %s4, %s5748
      $region52: #{double_conv.3} parent=47 // pred_fallthru
        _
      // Predicated region
      $region53: #{double_conv.3} parent=47 // pred_check
        %p5750 = pneg %p156
      $region54: #{double_conv.3} parent=47 // pred_check_branch
        %5752 = sbr.rel (%p5750) target = $region56
      $region55: #{double_conv.3} parent=47 // pred_region
        %p5753 = scmp.lt.s32.totalorder %s18, 1
        %s5754 = scalar_select %p5753, %s18, 1
        %s5755 = smul.addr %s5754, 2
        %s5756 = scalar_lea.vmem %s5, %s5755
      $region56: #{double_conv.3} parent=47 // pred_fallthru
        _
    $region48: #{double_conv.3} parent=5 // pred_fallthru
      _
  $region6: #{double_conv.3} parent=0 // loop_footer
    %s16 = sadd.s32 1, %s12
  $region7: #{double_conv.3} parent=0 // loop_footer_branch
    %11 = sbr.rel target = $region3
  $region8: #{double_conv.3} parent=0 // loop_exit
    _

// kernel: double_conv.4
$region0: #{double_conv.4}
  #allocation0 [shape = 'u32[]', space=smem, size = 0x4, offset = 0x4, fixed_abs, tag = 'smem constant byte address 0x4 - core index']
  #allocation1 [shape = 'u32[144,128]{1,0:T(1,128)}', space=vmem, size = 0x12000, scoped, tag = 'internal scratch']
  #allocation2 [shape = 'bf16[18,18,8]{2,1,0:T(8,128)(2,1)}', space=vmem, size = 0x1b000, scoped, tag = 'scratch operand']
  %s0 = inlined_call_operand.vmem [shape: f32[2,256,8], index: 0, kind: input, shape index: {}]
  %s1 = inlined_call_operand.vmem [shape: f32[1,8], index: 1, kind: input, shape index: {}]
  %s2 = inlined_call_operand.vmem [shape: f32[1,8], index: 2, kind: input, shape index: {}]
  %s3 = inlined_call_operand.vmem [shape: bf16[9,8,8], index: 3, kind: input, shape index: {}]
  %s4 = inlined_call_operand.vmem [shape: f32[2,256,8], index: 4, kind: output, shape index: {0}]
  %s5 = inlined_call_operand.vmem [shape: f32[2,2,8], index: 5, kind: output, shape index: {1}]
  %6 = xla_tuple %s4, %s5
  %s7 = sld [smem:[#allocation0]]
  $region57: #{double_conv.4} parent=0
    _
  %s9 = ssub.s32 1, %s7
  %s10 = scalar_select 0, %s9, %s7
  loop: start=0, step=1, limit=4
  $region2: #{double_conv.4} parent=0 // loop_pre_header
    _
  $region3: #{double_conv.4} parent=0 // loop_header
    %s12 = sphi 0, %s16
    %p13 = scmp.ge.s32.totalorder %s12, 4
    %s22 = sphi 0, %s24
    %s25 = sphi 0, %s22
    %s26 = sphi 0, %s25
    %s42 = sphi 0, %s26
    %s46 = sphi 0, %s46
    %s48 = sphi 0, %s46
    %s49 = sphi 0, %s48
    %s63 = sphi 0, %s49
    %s67 = sphi 0, %s67
    %s69 = sphi 0, %s67
    %s70 = sphi 0, %s69
    %s84 = sphi 0, %s70
    %s88 = sphi 0, %s88
    %s90 = sphi 0, %s88
    %s91 = sphi 0, %s90
    %s105 = sphi 0, %s91
    %s111 = sphi 0, %s113
    %s114 = sphi 0, %s111
    %s115 = sphi 0, %s114
    %s131 = sphi 0, %s115
    %s137 = sphi 0, %s139
    %s140 = sphi 0, %s137
    %s141 = sphi 0, %s140
    %s157 = sphi 0, %s141
  $region4: #{double_conv.4} parent=0 // loop_header_branch
    %15 = sbr.rel (%p13) target = $region8
  $region5: #{double_conv.4} parent=0 // loop_body
    %s17 = ssub.s32 %s12, 1
    %s18 = ssub.s32 %s12, 2
    %s19 = sadd.s32 %s12, 1
    %s20 = ssub.s32 %s12, %s19
    %p21 = scmp.eq.s32.totalorder %s20, 0
    %s23 = sadd.s32 %s22, 1
    %s24 = scalar_select %p21, %s22, %s23
    %p27 = pneg %p21
    %p28 = scmp.eq.s32.totalorder %s12, 1
    %p29 = por %p27, %p28
    %p30 = scmp.ne.s32.totalorder %s22, %s25
    %p31 = scmp.eq.s32.totalorder %s12, 0
    %p32 = por %p30, %p31
    %p33 = scmp.ne.s32.totalorder %s22, %s25
    %p34 = scmp.eq.s32.totalorder %s17, 1
    %p35 = por %p33, %p34
    %p36 = scmp.ne.s32.totalorder %s25, %s26
    %p37 = scmp.eq.s32.totalorder %s17, 0
    %p38 = por %p36, %p37
    %p39 = scmp.ne.s32.totalorder %s25, %s26
    %p40 = scmp.eq.s32.totalorder %s18, 1
    %p41 = por %p39, %p40
    %p43 = scmp.ne.s32.totalorder %s26, %s42
    %p44 = scmp.eq.s32.totalorder %s18, 0
    %p45 = por %p43, %p44
    %s47 = sadd.s32 %s46, 1
    %p50 = scmp.eq.s32.totalorder %s12, 1
    %p51 = scmp.ne.s32.totalorder %s46, %s48
    %p52 = scmp.eq.s32.totalorder %s12, 0
    %p53 = por %p51, %p52
    %p54 = scmp.ne.s32.totalorder %s46, %s48
    %p55 = scmp.eq.s32.totalorder %s17, 1
    %p56 = por %p54, %p55
    %p57 = scmp.ne.s32.totalorder %s48, %s49
    %p58 = scmp.eq.s32.totalorder %s17, 0
    %p59 = por %p57, %p58
    %p60 = scmp.ne.s32.totalorder %s48, %s49
    %p61 = scmp.eq.s32.totalorder %s18, 1
    %p62 = por %p60, %p61
    %p64 = scmp.ne.s32.totalorder %s49, %s63
    %p65 = scmp.eq.s32.totalorder %s18, 0
    %p66 = por %p64, %p65
    %s68 = sadd.s32 %s67, 1
    %p71 = scmp.eq.s32.totalorder %s12, 1
    %p72 = scmp.ne.s32.totalorder %s67, %s69
    %p73 = scmp.eq.s32.totalorder %s12, 0
    %p74 = por %p72, %p73
    %p75 = scmp.ne.s32.totalorder %s67, %s69
    %p76 = scmp.eq.s32.totalorder %s17, 1
    %p77 = por %p75, %p76
    %p78 = scmp.ne.s32.totalorder %s69, %s70
    %p79 = scmp.eq.s32.totalorder %s17, 0
    %p80 = por %p78, %p79
    %p81 = scmp.ne.s32.totalorder %s69, %s70
    %p82 = scmp.eq.s32.totalorder %s18, 1
    %p83 = por %p81, %p82
    %p85 = scmp.ne.s32.totalorder %s70, %s84
    %p86 = scmp.eq.s32.totalorder %s18, 0
    %p87 = por %p85, %p86
    %s89 = sadd.s32 %s88, 1
    %p92 = scmp.eq.s32.totalorder %s12, 1
    %p93 = scmp.ne.s32.totalorder %s88, %s90
    %p94 = scmp.eq.s32.totalorder %s12, 0
    %p95 = por %p93, %p94
    %p96 = scmp.ne.s32.totalorder %s88, %s90
    %p97 = scmp.eq.s32.totalorder %s17, 1
    %p98 = por %p96, %p97
    %p99 = scmp.ne.s32.totalorder %s90, %s91
    %p100 = scmp.eq.s32.totalorder %s17, 0
    %p101 = por %p99, %p100
    %p102 = scmp.ne.s32.totalorder %s90, %s91
    %p103 = scmp.eq.s32.totalorder %s18, 1
    %p104 = por %p102, %p103
    %p106 = scmp.ne.s32.totalorder %s91, %s105
    %p107 = scmp.eq.s32.totalorder %s18, 0
    %p108 = por %p106, %p107
    %s109 = ssub.s32 %s12, %s19
    %p110 = scmp.eq.s32.totalorder %s109, 0
    %s112 = sadd.s32 %s111, 1
    %s113 = scalar_select %p110, %s111, %s112
    %p116 = pneg %p110
    %p117 = scmp.eq.s32.totalorder %s12, 1
    %p118 = por %p116, %p117
    %p119 = scmp.ne.s32.totalorder %s111, %s114
    %p120 = scmp.eq.s32.totalorder %s12, 0
    %p121 = por %p119, %p120
    %p122 = scmp.ne.s32.totalorder %s111, %s114
    %p123 = scmp.eq.s32.totalorder %s17, 1
    %p124 = por %p122, %p123
    %p125 = scmp.ne.s32.totalorder %s114, %s115
    %p126 = scmp.eq.s32.totalorder %s17, 0
    %p127 = por %p125, %p126
    %p128 = scmp.ne.s32.totalorder %s114, %s115
    %p129 = scmp.eq.s32.totalorder %s18, 1
    %p130 = por %p128, %p129
    %p132 = scmp.ne.s32.totalorder %s115, %s131
    %p133 = scmp.eq.s32.totalorder %s18, 0
    %p134 = por %p132, %p133
    %s135 = ssub.s32 %s12, %s19
    %p136 = scmp.eq.s32.totalorder %s135, 0
    %s138 = sadd.s32 %s137, 1
    %s139 = scalar_select %p136, %s137, %s138
    %p142 = pneg %p136
    %p143 = scmp.eq.s32.totalorder %s12, 1
    %p144 = por %p142, %p143
    %p145 = scmp.ne.s32.totalorder %s137, %s140
    %p146 = scmp.eq.s32.totalorder %s12, 0
    %p147 = por %p145, %p146
    %p148 = scmp.ne.s32.totalorder %s137, %s140
    %p149 = scmp.eq.s32.totalorder %s17, 1
    %p150 = por %p148, %p149
    %p151 = scmp.ne.s32.totalorder %s140, %s141
    %p152 = scmp.eq.s32.totalorder %s17, 0
    %p153 = por %p151, %p152
    %p154 = scmp.ne.s32.totalorder %s140, %s141
    %p155 = scmp.eq.s32.totalorder %s18, 1
    %p156 = por %p154, %p155
    %p158 = scmp.ne.s32.totalorder %s141, %s157
    %p159 = scmp.eq.s32.totalorder %s18, 0
    %p160 = por %p158, %p159
    %p161 = scmp.le.s32.totalorder 1, %s12
    %p162 = scmp.lt.s32.totalorder %s12, 3
    %p163 = pnand %p161, %p162
    %p164 = pneg %p163
    // Predicated region
    $region9: #{double_conv.4} parent=5 // pred_check
      _
    $region10: #{double_conv.4} parent=5 // pred_check_branch
      %166 = sbr.rel (%p163) target = $region12
    $region11: #{double_conv.4} parent=5 // pred_region
      %s167 = ssub.s32 %s12, 1
      // Predicated region
      $region13: #{double_conv.4} parent=11 // pred_check
        %p168 = pneg %p59
      $region14: #{double_conv.4} parent=11 // pred_check_branch
        %170 = sbr.rel (%p168) target = $region16
      $region15: #{double_conv.4} parent=11 // pred_region
        _
      $region16: #{double_conv.4} parent=11 // pred_fallthru
        _
      // Predicated region
      $region17: #{double_conv.4} parent=11 // pred_check
        %p171 = pneg %p80
      $region18: #{double_conv.4} parent=11 // pred_check_branch
        %173 = sbr.rel (%p171) target = $region20
      $region19: #{double_conv.4} parent=11 // pred_region
        _
      $region20: #{double_conv.4} parent=11 // pred_fallthru
        _
      // Predicated region
      $region21: #{double_conv.4} parent=11 // pred_check
        %p174 = pneg %p101
      $region22: #{double_conv.4} parent=11 // pred_check_branch
        %176 = sbr.rel (%p174) target = $region24
      $region23: #{double_conv.4} parent=11 // pred_region
        _
      $region24: #{double_conv.4} parent=11 // pred_fallthru
        _
    $region12: #{double_conv.4} parent=5 // pred_fallthru
      _
    %p177 = scmp.lt.s32.totalorder %s12, 2
    // Predicated region
    $region25: #{double_conv.4} parent=5 // pred_check
      %p178 = pneg %p177
    $region26: #{double_conv.4} parent=5 // pred_check_branch
      %180 = sbr.rel (%p178) target = $region28
    $region27: #{double_conv.4} parent=5 // pred_region
      // Predicated region
      $region29: #{double_conv.4} parent=27 // pred_check
        %p181 = pneg %p32
      $region30: #{double_conv.4} parent=27 // pred_check_branch
        %183 = sbr.rel (%p181) target = $region32
      $region31: #{double_conv.4} parent=27 // pred_region
        %p184 = scmp.lt.s32.totalorder %s12, 1
        %s185 = scalar_select %p184, %s12, 1
        %s186 = smul.addr %s185, 32
        %s187 = smul.addr %s186, 8
        %s188 = scalar_lea.vmem %s0, %s187
      $region32: #{double_conv.4} parent=27 // pred_fallthru
        _
    $region28: #{double_conv.4} parent=5 // pred_fallthru
      _
    %p189 = scmp.le.s32.totalorder 1, %s12
    %p190 = scmp.lt.s32.totalorder %s12, 3
    %p191 = pnand %p189, %p190
    %p192 = pneg %p191
    // Predicated region
    $region33: #{double_conv.4} parent=5 // pred_check
      _
    $region34: #{double_conv.4} parent=5 // pred_check_branch
      %194 = sbr.rel (%p191) target = $region36
    $region35: #{double_conv.4} parent=5 // pred_region
      %s195 = ssub.s32 %s12, 1
      %p196 = scmp.lt.s32.totalorder %s17, 1
      %s197 = scalar_select %p196, %s17, 1
      %s198 = smul.addr %s197, 32
      %s199 = smul.addr %s198, 8
      %s200 = scalar_lea.vmem %s0, %s199
      %p201 = pneg %p38
      %p202 = pneg %p35
      %p203 = pneg %p59
      %p204 = pneg %p56
      %p205 = pneg %p80
      %p206 = pneg %p77
      %p207 = pneg %p101
      %p208 = pneg %p98
      %p209 = pneg %p127
      %p210 = pneg %p124
      %p211 = scmp.lt.s32.totalorder %s17, 1
      %s212 = scalar_select %p211, %s17, 1
      %s213 = smul.addr %s212, 32
      %s214 = smul.addr %s213, 8
      %s215 = scalar_lea.vmem %s4, %s214
      %p216 = pneg %p153
      %p217 = pneg %p150
      %p218 = scmp.lt.s32.totalorder %s17, 1
      %s219 = scalar_select %p218, %s17, 1
      %s220 = smul.addr %s219, 2
      %s221 = scalar_lea.vmem %s5, %s220
      %p222 = scmp.lt.s32.totalorder %s17, 1
      %s223 = scalar_select %p222, %s17, 1
      %s224 = smul.addr %s223, 32
      %s225 = smul.addr %s224, 8
      %s226 = scalar_lea.vmem %s0, %s225
      %p227 = scmp.lt.s32.totalorder %s17, 1
      %s228 = scalar_select %p227, %s17, 1
      %s229 = smul.addr %s228, 32
      %s230 = smul.addr %s229, 8
      %s231 = scalar_lea.vmem %s4, %s230
      %p232 = scmp.lt.s32.totalorder %s17, 1
      %s233 = scalar_select %p232, %s17, 1
      %s234 = smul.addr %s233, 2
      %s235 = scalar_lea.vmem %s5, %s234
      %v237 = vld [vmem:[%s226] sm:$0xff]
      %v238 = vld [vmem:[%s226 + $0x8] sm:$0xff]
      %v239 = vld [vmem:[%s226 + $0x10] sm:$0xff]
      %v240 = vld [vmem:[%s226 + $0x18] sm:$0xff]
      %v241 = vld [vmem:[%s226 + $0x20] sm:$0xff]
      %v242 = vld [vmem:[%s226 + $0x28] sm:$0xff]
      %v243 = vld [vmem:[%s226 + $0x30] sm:$0xff]
      %v244 = vld [vmem:[%s226 + $0x38] sm:$0xff]
      %v245 = vld [vmem:[%s226 + $0x40] sm:$0xff]
      %v246 = vld [vmem:[%s226 + $0x48] sm:$0xff]
      %v247 = vld [vmem:[%s226 + $0x50] sm:$0xff]
      %v248 = vld [vmem:[%s226 + $0x58] sm:$0xff]
      %v249 = vld [vmem:[%s226 + $0x60] sm:$0xff]
      %v250 = vld [vmem:[%s226 + $0x68] sm:$0xff]
      %v251 = vld [vmem:[%s226 + $0x70] sm:$0xff]
      %v252 = vld [vmem:[%s226 + $0x78] sm:$0xff]
      %v253 = vld [vmem:[%s226 + $0x80] sm:$0xff]
      %v254 = vld [vmem:[%s226 + $0x88] sm:$0xff]
      %v255 = vld [vmem:[%s226 + $0x90] sm:$0xff]
      %v256 = vld [vmem:[%s226 + $0x98] sm:$0xff]
      %v257 = vld [vmem:[%s226 + $0xa0] sm:$0xff]
      %v258 = vld [vmem:[%s226 + $0xa8] sm:$0xff]
      %v259 = vld [vmem:[%s226 + $0xb0] sm:$0xff]
      %v260 = vld [vmem:[%s226 + $0xb8] sm:$0xff]
      %v261 = vld [vmem:[%s226 + $0xc0] sm:$0xff]
      %v262 = vld [vmem:[%s226 + $0xc8] sm:$0xff]
      %v263 = vld [vmem:[%s226 + $0xd0] sm:$0xff]
      %v264 = vld [vmem:[%s226 + $0xd8] sm:$0xff]
      %v265 = vld [vmem:[%s226 + $0xe0] sm:$0xff]
      %v266 = vld [vmem:[%s226 + $0xe8] sm:$0xff]
      %v267 = vld [vmem:[%s226 + $0xf0] sm:$0xff]
      %v268 = vld [vmem:[%s226 + $0xf8] sm:$0xff]
      %v269 = vld [vmem:[%s1] sm:$0x1]
      %v270 = vld [vmem:[%s2] sm:$0x1]
      %v272 = vlaneseq
      %v273 = vshrl.u32 %v272, 7
      %v274 = vsub.s32 0, %v273
      %v275 = vrot.slane %v269, %v274
      %v277 = vmul.f32 %v237, %v275
      %v278 = vmul.f32 %v238, %v275
      %v279 = vmul.f32 %v239, %v275
      %v280 = vmul.f32 %v240, %v275
      %v281 = vmul.f32 %v241, %v275
      %v282 = vmul.f32 %v242, %v275
      %v283 = vmul.f32 %v243, %v275
      %v284 = vmul.f32 %v244, %v275
      %v285 = vmul.f32 %v245, %v275
      %v286 = vmul.f32 %v246, %v275
      %v287 = vmul.f32 %v247, %v275
      %v288 = vmul.f32 %v248, %v275
      %v289 = vmul.f32 %v249, %v275
      %v290 = vmul.f32 %v250, %v275
      %v291 = vmul.f32 %v251, %v275
      %v292 = vmul.f32 %v252, %v275
      %v293 = vmul.f32 %v253, %v275
      %v294 = vmul.f32 %v254, %v275
      %v295 = vmul.f32 %v255, %v275
      %v296 = vmul.f32 %v256, %v275
      %v297 = vmul.f32 %v257, %v275
      %v298 = vmul.f32 %v258, %v275
      %v299 = vmul.f32 %v259, %v275
      %v300 = vmul.f32 %v260, %v275
      %v301 = vmul.f32 %v261, %v275
      %v302 = vmul.f32 %v262, %v275
      %v303 = vmul.f32 %v263, %v275
      %v304 = vmul.f32 %v264, %v275
      %v305 = vmul.f32 %v265, %v275
      %v306 = vmul.f32 %v266, %v275
      %v307 = vmul.f32 %v267, %v275
      %v308 = vmul.f32 %v268, %v275
      %v310 = vlaneseq
      %v311 = vshrl.u32 %v310, 7
      %v312 = vsub.s32 0, %v311
      %v313 = vrot.slane %v270, %v312
      %v315 = vadd.f32 %v277, %v313
      %v316 = vadd.f32 %v278, %v313
      %v317 = vadd.f32 %v279, %v313
      %v318 = vadd.f32 %v280, %v313
      %v319 = vadd.f32 %v281, %v313
      %v320 = vadd.f32 %v282, %v313
      %v321 = vadd.f32 %v283, %v313
      %v322 = vadd.f32 %v284, %v313
      %v323 = vadd.f32 %v285, %v313
      %v324 = vadd.f32 %v286, %v313
      %v325 = vadd.f32 %v287, %v313
      %v326 = vadd.f32 %v288, %v313
      %v327 = vadd.f32 %v289, %v313
      %v328 = vadd.f32 %v290, %v313
      %v329 = vadd.f32 %v291, %v313
      %v330 = vadd.f32 %v292, %v313
      %v331 = vadd.f32 %v293, %v313
      %v332 = vadd.f32 %v294, %v313
      %v333 = vadd.f32 %v295, %v313
      %v334 = vadd.f32 %v296, %v313
      %v335 = vadd.f32 %v297, %v313
      %v336 = vadd.f32 %v298, %v313
      %v337 = vadd.f32 %v299, %v313
      %v338 = vadd.f32 %v300, %v313
      %v339 = vadd.f32 %v301, %v313
      %v340 = vadd.f32 %v302, %v313
      %v341 = vadd.f32 %v303, %v313
      %v342 = vadd.f32 %v304, %v313
      %v343 = vadd.f32 %v305, %v313
      %v344 = vadd.f32 %v306, %v313
      %v345 = vadd.f32 %v307, %v313
      %v346 = vadd.f32 %v308, %v313
      %v347 = vmax.f32 %v315, 0.0
      %v348 = vmax.f32 %v316, 0.0
      %v349 = vmax.f32 %v317, 0.0
      %v350 = vmax.f32 %v318, 0.0
      %v351 = vmax.f32 %v319, 0.0
      %v352 = vmax.f32 %v320, 0.0
      %v353 = vmax.f32 %v321, 0.0
      %v354 = vmax.f32 %v322, 0.0
      %v355 = vmax.f32 %v323, 0.0
      %v356 = vmax.f32 %v324, 0.0
      %v357 = vmax.f32 %v325, 0.0
      %v358 = vmax.f32 %v326, 0.0
      %v359 = vmax.f32 %v327, 0.0
      %v360 = vmax.f32 %v328, 0.0
      %v361 = vmax.f32 %v329, 0.0
      %v362 = vmax.f32 %v330, 0.0
      %v363 = vmax.f32 %v331, 0.0
      %v364 = vmax.f32 %v332, 0.0
      %v365 = vmax.f32 %v333, 0.0
      %v366 = vmax.f32 %v334, 0.0
      %v367 = vmax.f32 %v335, 0.0
      %v368 = vmax.f32 %v336, 0.0
      %v369 = vmax.f32 %v337, 0.0
      %v370 = vmax.f32 %v338, 0.0
      %v371 = vmax.f32 %v339, 0.0
      %v372 = vmax.f32 %v340, 0.0
      %v373 = vmax.f32 %v341, 0.0
      %v374 = vmax.f32 %v342, 0.0
      %v375 = vmax.f32 %v343, 0.0
      %v376 = vmax.f32 %v344, 0.0
      %v377 = vmax.f32 %v345, 0.0
      %v378 = vmax.f32 %v346, 0.0
      %vm379 = vcmask 60416
      %380 = vst.msk [vmem:[#allocation2] sm:$0xf] %vm379, 0
      %381 = vst.msk [vmem:[#allocation2 + $0x4] sm:$0xf] %vm379, 0
      %vm382 = vcmask 57344
      %383 = vst.msk [vmem:[#allocation2 + $0x8] sm:$0x1] %vm382, 0
      %s384 = scalar_lea.vmem [#allocation2], 204
      %385 = vst.msk [vmem:[%s384] sm:$0xf] %vm379, 0
      %386 = vst.msk [vmem:[%s384 + $0x4] sm:$0xf] %vm379, 0
      %387 = vst.msk [vmem:[%s384 + $0x8] sm:$0x1] %vm382, 0
      %vm388 = vcmask 57344
      %vm389 = vsmask.f32 256
      %vm390 = vmand %vm388, %vm389
      %v391 = vld [vmem:[#allocation2] sm:$0x1]
      %v392 = vsel %vm390, 0, %v391
      %393 = vst [vmem:[#allocation2] sm:$0x1] %v392
      %v394 = vld [vmem:[#allocation2 + $0xc] sm:$0x1]
      %v395 = vsel %vm390, 0, %v394
      %396 = vst [vmem:[#allocation2 + $0xc] sm:$0x1] %v395
      %v397 = vld [vmem:[#allocation2 + $0x18] sm:$0x1]
      %v398 = vsel %vm390, 0, %v397
      %399 = vst [vmem:[#allocation2 + $0x18] sm:$0x1] %v398
      %v400 = vld [vmem:[#allocation2 + $0x24] sm:$0x1]
      %v401 = vsel %vm390, 0, %v400
      %402 = vst [vmem:[#allocation2 + $0x24] sm:$0x1] %v401
      %v403 = vld [vmem:[#allocation2 + $0x30] sm:$0x1]
      %v404 = vsel %vm390, 0, %v403
      %405 = vst [vmem:[#allocation2 + $0x30] sm:$0x1] %v404
      %v406 = vld [vmem:[#allocation2 + $0x3c] sm:$0x1]
      %v407 = vsel %vm390, 0, %v406
      %408 = vst [vmem:[#allocation2 + $0x3c] sm:$0x1] %v407
      %v409 = vld [vmem:[#allocation2 + $0x48] sm:$0x1]
      %v410 = vsel %vm390, 0, %v409
      %411 = vst [vmem:[#allocation2 + $0x48] sm:$0x1] %v410
      %v412 = vld [vmem:[#allocation2 + $0x54] sm:$0x1]
      %v413 = vsel %vm390, 0, %v412
      %414 = vst [vmem:[#allocation2 + $0x54] sm:$0x1] %v413
      %v415 = vld [vmem:[#allocation2 + $0x60] sm:$0x1]
      %v416 = vsel %vm390, 0, %v415
      %417 = vst [vmem:[#allocation2 + $0x60] sm:$0x1] %v416
      %v418 = vld [vmem:[#allocation2 + $0x6c] sm:$0x1]
      %v419 = vsel %vm390, 0, %v418
      %420 = vst [vmem:[#allocation2 + $0x6c] sm:$0x1] %v419
      %v421 = vld [vmem:[#allocation2 + $0x78] sm:$0x1]
      %v422 = vsel %vm390, 0, %v421
      %423 = vst [vmem:[#allocation2 + $0x78] sm:$0x1] %v422
      %v424 = vld [vmem:[#allocation2 + $0x84] sm:$0x1]
      %v425 = vsel %vm390, 0, %v424
      %426 = vst [vmem:[#allocation2 + $0x84] sm:$0x1] %v425
      %v427 = vld [vmem:[#allocation2 + $0x90] sm:$0x1]
      %v428 = vsel %vm390, 0, %v427
      %429 = vst [vmem:[#allocation2 + $0x90] sm:$0x1] %v428
      %v430 = vld [vmem:[#allocation2 + $0x9c] sm:$0x1]
      %v431 = vsel %vm390, 0, %v430
      %432 = vst [vmem:[#allocation2 + $0x9c] sm:$0x1] %v431
      %v433 = vld [vmem:[#allocation2 + $0xa8] sm:$0x1]
      %v434 = vsel %vm390, 0, %v433
      %435 = vst [vmem:[#allocation2 + $0xa8] sm:$0x1] %v434
      %v436 = vld [vmem:[#allocation2 + $0xb4] sm:$0x1]
      %v437 = vsel %vm390, 0, %v436
      %438 = vst [vmem:[#allocation2 + $0xb4] sm:$0x1] %v437
      %v439 = vld [vmem:[#allocation2 + $0xc0] sm:$0x1]
      %v440 = vsel %vm390, 0, %v439
      %441 = vst [vmem:[#allocation2 + $0xc0] sm:$0x1] %v440
      %v442 = vld [vmem:[#allocation2 + $0xcc] sm:$0x1]
      %v443 = vsel %vm390, 0, %v442
      %444 = vst [vmem:[#allocation2 + $0xcc] sm:$0x1] %v443
      %vm445 = vsmask.f32 7938
      %vm446 = vmand %vm388, %vm445
      %v447 = vld [vmem:[#allocation2 + $0x8] sm:$0x1]
      %v448 = vsel %vm446, 0, %v447
      %449 = vst [vmem:[#allocation2 + $0x8] sm:$0x1] %v448
      %v450 = vld [vmem:[#allocation2 + $0x14] sm:$0x1]
      %v451 = vsel %vm446, 0, %v450
      %452 = vst [vmem:[#allocation2 + $0x14] sm:$0x1] %v451
      %v453 = vld [vmem:[#allocation2 + $0x20] sm:$0x1]
      %v454 = vsel %vm446, 0, %v453
      %455 = vst [vmem:[#allocation2 + $0x20] sm:$0x1] %v454
      %v456 = vld [vmem:[#allocation2 + $0x2c] sm:$0x1]
      %v457 = vsel %vm446, 0, %v456
      %458 = vst [vmem:[#allocation2 + $0x2c] sm:$0x1] %v457
      %v459 = vld [vmem:[#allocation2 + $0x38] sm:$0x1]
      %v460 = vsel %vm446, 0, %v459
      %461 = vst [vmem:[#allocation2 + $0x38] sm:$0x1] %v460
      %v462 = vld [vmem:[#allocation2 + $0x44] sm:$0x1]
      %v463 = vsel %vm446, 0, %v462
      %464 = vst [vmem:[#allocation2 + $0x44] sm:$0x1] %v463
      %v465 = vld [vmem:[#allocation2 + $0x50] sm:$0x1]
      %v466 = vsel %vm446, 0, %v465
      %467 = vst [vmem:[#allocation2 + $0x50] sm:$0x1] %v466
      %v468 = vld [vmem:[#allocation2 + $0x5c] sm:$0x1]
      %v469 = vsel %vm446, 0, %v468
      %470 = vst [vmem:[#allocation2 + $0x5c] sm:$0x1] %v469
      %v471 = vld [vmem:[#allocation2 + $0x68] sm:$0x1]
      %v472 = vsel %vm446, 0, %v471
      %473 = vst [vmem:[#allocation2 + $0x68] sm:$0x1] %v472
      %v474 = vld [vmem:[#allocation2 + $0x74] sm:$0x1]
      %v475 = vsel %vm446, 0, %v474
      %476 = vst [vmem:[#allocation2 + $0x74] sm:$0x1] %v475
      %v477 = vld [vmem:[#allocation2 + $0x80] sm:$0x1]
      %v478 = vsel %vm446, 0, %v477
      %479 = vst [vmem:[#allocation2 + $0x80] sm:$0x1] %v478
      %v480 = vld [vmem:[#allocation2 + $0x8c] sm:$0x1]
      %v481 = vsel %vm446, 0, %v480
      %482 = vst [vmem:[#allocation2 + $0x8c] sm:$0x1] %v481
      %v483 = vld [vmem:[#allocation2 + $0x98] sm:$0x1]
      %v484 = vsel %vm446, 0, %v483
      %485 = vst [vmem:[#allocation2 + $0x98] sm:$0x1] %v484
      %v486 = vld [vmem:[#allocation2 + $0xa4] sm:$0x1]
      %v487 = vsel %vm446, 0, %v486
      %488 = vst [vmem:[#allocation2 + $0xa4] sm:$0x1] %v487
      %v489 = vld [vmem:[#allocation2 + $0xb0] sm:$0x1]
      %v490 = vsel %vm446, 0, %v489
      %491 = vst [vmem:[#allocation2 + $0xb0] sm:$0x1] %v490
      %v492 = vld [vmem:[#allocation2 + $0xbc] sm:$0x1]
      %v493 = vsel %vm446, 0, %v492
      %494 = vst [vmem:[#allocation2 + $0xbc] sm:$0x1] %v493
      %v495 = vld [vmem:[#allocation2 + $0xc8] sm:$0x1]
      %v496 = vsel %vm446, 0, %v495
      %497 = vst [vmem:[#allocation2 + $0xc8] sm:$0x1] %v496
      %v498 = vld [vmem:[#allocation2 + $0xd4] sm:$0x1]
      %v499 = vsel %vm446, 0, %v498
      %500 = vst [vmem:[#allocation2 + $0xd4] sm:$0x1] %v499
      %v501 = vpack.c.bf16 %v348, %v347
      %v502 = vpack.c.bf16 %v350, %v349
      %v503 = vpack.c.bf16 %v352, %v351
      %v504 = vpack.c.bf16 %v354, %v353
      %v505 = vpack.c.bf16 %v356, %v355
      %v506 = vpack.c.bf16 %v358, %v357
      %v507 = vpack.c.bf16 %v360, %v359
      %v508 = vpack.c.bf16 %v362, %v361
      %v509 = vpack.c.bf16 %v364, %v363
      %v510 = vpack.c.bf16 %v366, %v365
      %v511 = vpack.c.bf16 %v368, %v367
      %v512 = vpack.c.bf16 %v370, %v369
      %v513 = vpack.c.bf16 %v372, %v371
      %v514 = vpack.c.bf16 %v374, %v373
      %v515 = vpack.c.bf16 %v376, %v375
      %v516 = vpack.c.bf16 %v378, %v377
      %v533 = vunpack.c.l.b16 %v501
      %v534 = vunpack.c.h.b16 %v501
      %v535 = vunpack.c.l.b16 %v502
      %v536 = vunpack.c.h.b16 %v502
      %v537 = vunpack.c.l.b16 %v503
      %v538 = vunpack.c.h.b16 %v503
      %v539 = vunpack.c.l.b16 %v504
      %v540 = vunpack.c.h.b16 %v504
      %v541 = vunpack.c.l.b16 %v505
      %v542 = vunpack.c.h.b16 %v505
      %v543 = vunpack.c.l.b16 %v506
      %v544 = vunpack.c.h.b16 %v506
      %v545 = vunpack.c.l.b16 %v507
      %v546 = vunpack.c.h.b16 %v507
      %v547 = vunpack.c.l.b16 %v508
      %v548 = vunpack.c.h.b16 %v508
      %v549 = vunpack.c.l.b16 %v509
      %v550 = vunpack.c.h.b16 %v509
      %v551 = vunpack.c.l.b16 %v510
      %v552 = vunpack.c.h.b16 %v510
      %v553 = vunpack.c.l.b16 %v511
      %v554 = vunpack.c.h.b16 %v511
      %v555 = vunpack.c.l.b16 %v512
      %v556 = vunpack.c.h.b16 %v512
      %v557 = vunpack.c.l.b16 %v513
      %v558 = vunpack.c.h.b16 %v513
      %v559 = vunpack.c.l.b16 %v514
      %v560 = vunpack.c.h.b16 %v514
      %v561 = vunpack.c.l.b16 %v515
      %v562 = vunpack.c.h.b16 %v515
      %v563 = vunpack.c.l.b16 %v516
      %v564 = vunpack.c.h.b16 %v516
      %v565 = vpack.c.b16 %v533, %v533
      %v566 = vpack.c.b16 %v534, %v534
      %v567 = vpack.c.b16 %v535, %v535
      %v568 = vpack.c.b16 %v536, %v536
      %v569 = vpack.c.b16 %v537, %v537
      %v570 = vpack.c.b16 %v538, %v538
      %v571 = vpack.c.b16 %v539, %v539
      %v572 = vpack.c.b16 %v540, %v540
      %v573 = vpack.c.b16 %v541, %v541
      %v574 = vpack.c.b16 %v542, %v542
      %v575 = vpack.c.b16 %v543, %v543
      %v576 = vpack.c.b16 %v544, %v544
      %v577 = vpack.c.b16 %v545, %v545
      %v578 = vpack.c.b16 %v546, %v546
      %v579 = vpack.c.b16 %v547, %v547
      %v580 = vpack.c.b16 %v548, %v548
      %v581 = vpack.c.b16 %v549, %v549
      %v582 = vpack.c.b16 %v550, %v550
      %v583 = vpack.c.b16 %v551, %v551
      %v584 = vpack.c.b16 %v552, %v552
      %v585 = vpack.c.b16 %v553, %v553
      %v586 = vpack.c.b16 %v554, %v554
      %v587 = vpack.c.b16 %v555, %v555
      %v588 = vpack.c.b16 %v556, %v556
      %v589 = vpack.c.b16 %v557, %v557
      %v590 = vpack.c.b16 %v558, %v558
      %v591 = vpack.c.b16 %v559, %v559
      %v592 = vpack.c.b16 %v560, %v560
      %v593 = vpack.c.b16 %v561, %v561
      %v594 = vpack.c.b16 %v562, %v562
      %v595 = vpack.c.b16 %v563, %v563
      %v596 = vpack.c.b16 %v564, %v564
      %vm597 = vsmask.f32 4368
      %vm598 = vmor %vm389, %vm597
      %v600 = vshrl.u32 %v565, 16
      %v602 = vrot.slane %v600, 7
      %v603 = vshll.u32 %v565, 16
      %v605 = vor.u32 %v602, %v603
      %v606 = vrot.slane %v602, 4
      %v608 = vshrl.u32 %v566, 16
      %v610 = vrot.slane %v608, 7
      %v611 = vshll.u32 %v566, 16
      %v613 = vor.u32 %v610, %v611
      %v614 = vsel %vm598, %v606, %v613
      %v615 = vrot.slane %v610, 4
      %v617 = vshrl.u32 %v567, 16
      %v619 = vrot.slane %v617, 7
      %v620 = vshll.u32 %v567, 16
      %v622 = vor.u32 %v619, %v620
      %v623 = vrot.slane %v619, 4
      %v625 = vshrl.u32 %v568, 16
      %v627 = vrot.slane %v625, 7
      %v628 = vshll.u32 %v568, 16
      %v630 = vor.u32 %v627, %v628
      %v631 = vsel %vm598, %v623, %v630
      %v632 = vrot.slane %v627, 4
      %v634 = vshrl.u32 %v569, 16
      %v636 = vrot.slane %v634, 7
      %v637 = vshll.u32 %v569, 16
      %v639 = vor.u32 %v636, %v637
      %v640 = vrot.slane %v636, 4
      %v642 = vshrl.u32 %v570, 16
      %v644 = vrot.slane %v642, 7
      %v645 = vshll.u32 %v570, 16
      %v647 = vor.u32 %v644, %v645
      %v648 = vsel %vm598, %v640, %v647
      %v649 = vrot.slane %v644, 4
      %v651 = vshrl.u32 %v571, 16
      %v653 = vrot.slane %v651, 7
      %v654 = vshll.u32 %v571, 16
      %v656 = vor.u32 %v653, %v654
      %v657 = vrot.slane %v653, 4
      %v659 = vshrl.u32 %v572, 16
      %v661 = vrot.slane %v659, 7
      %v662 = vshll.u32 %v572, 16
      %v664 = vor.u32 %v661, %v662
      %v665 = vsel %vm598, %v657, %v664
      %v666 = vrot.slane %v661, 4
      %v668 = vshrl.u32 %v573, 16
      %v670 = vrot.slane %v668, 7
      %v671 = vshll.u32 %v573, 16
      %v673 = vor.u32 %v670, %v671
      %v674 = vrot.slane %v670, 4
      %v676 = vshrl.u32 %v574, 16
      %v678 = vrot.slane %v676, 7
      %v679 = vshll.u32 %v574, 16
      %v681 = vor.u32 %v678, %v679
      %v682 = vsel %vm598, %v674, %v681
      %v683 = vrot.slane %v678, 4
      %v685 = vshrl.u32 %v575, 16
      %v687 = vrot.slane %v685, 7
      %v688 = vshll.u32 %v575, 16
      %v690 = vor.u32 %v687, %v688
      %v691 = vrot.slane %v687, 4
      %v693 = vshrl.u32 %v576, 16
      %v695 = vrot.slane %v693, 7
      %v696 = vshll.u32 %v576, 16
      %v698 = vor.u32 %v695, %v696
      %v699 = vsel %vm598, %v691, %v698
      %v700 = vrot.slane %v695, 4
      %v702 = vshrl.u32 %v577, 16
      %v704 = vrot.slane %v702, 7
      %v705 = vshll.u32 %v577, 16
      %v707 = vor.u32 %v704, %v705
      %v708 = vrot.slane %v704, 4
      %v710 = vshrl.u32 %v578, 16
      %v712 = vrot.slane %v710, 7
      %v713 = vshll.u32 %v578, 16
      %v715 = vor.u32 %v712, %v713
      %v716 = vsel %vm598, %v708, %v715
      %v717 = vrot.slane %v712, 4
      %v719 = vshrl.u32 %v579, 16
      %v721 = vrot.slane %v719, 7
      %v722 = vshll.u32 %v579, 16
      %v724 = vor.u32 %v721, %v722
      %v725 = vrot.slane %v721, 4
      %v727 = vshrl.u32 %v580, 16
      %v729 = vrot.slane %v727, 7
      %v730 = vshll.u32 %v580, 16
      %v732 = vor.u32 %v729, %v730
      %v733 = vsel %vm598, %v725, %v732
      %v734 = vrot.slane %v729, 4
      %v736 = vshrl.u32 %v581, 16
      %v738 = vrot.slane %v736, 7
      %v739 = vshll.u32 %v581, 16
      %v741 = vor.u32 %v738, %v739
      %v742 = vrot.slane %v738, 4
      %v744 = vshrl.u32 %v582, 16
      %v746 = vrot.slane %v744, 7
      %v747 = vshll.u32 %v582, 16
      %v749 = vor.u32 %v746, %v747
      %v750 = vsel %vm598, %v742, %v749
      %v751 = vrot.slane %v746, 4
      %v753 = vshrl.u32 %v583, 16
      %v755 = vrot.slane %v753, 7
      %v756 = vshll.u32 %v583, 16
      %v758 = vor.u32 %v755, %v756
      %v759 = vrot.slane %v755, 4
      %v761 = vshrl.u32 %v584, 16
      %v763 = vrot.slane %v761, 7
      %v764 = vshll.u32 %v584, 16
      %v766 = vor.u32 %v763, %v764
      %v767 = vsel %vm598, %v759, %v766
      %v768 = vrot.slane %v763, 4
      %v770 = vshrl.u32 %v585, 16
      %v772 = vrot.slane %v770, 7
      %v773 = vshll.u32 %v585, 16
      %v775 = vor.u32 %v772, %v773
      %v776 = vrot.slane %v772, 4
      %v778 = vshrl.u32 %v586, 16
      %v780 = vrot.slane %v778, 7
      %v781 = vshll.u32 %v586, 16
      %v783 = vor.u32 %v780, %v781
      %v784 = vsel %vm598, %v776, %v783
      %v785 = vrot.slane %v780, 4
      %v787 = vshrl.u32 %v587, 16
      %v789 = vrot.slane %v787, 7
      %v790 = vshll.u32 %v587, 16
      %v792 = vor.u32 %v789, %v790
      %v793 = vrot.slane %v789, 4
      %v795 = vshrl.u32 %v588, 16
      %v797 = vrot.slane %v795, 7
      %v798 = vshll.u32 %v588, 16
      %v800 = vor.u32 %v797, %v798
      %v801 = vsel %vm598, %v793, %v800
      %v802 = vrot.slane %v797, 4
      %v804 = vshrl.u32 %v589, 16
      %v806 = vrot.slane %v804, 7
      %v807 = vshll.u32 %v589, 16
      %v809 = vor.u32 %v806, %v807
      %v810 = vrot.slane %v806, 4
      %v812 = vshrl.u32 %v590, 16
      %v814 = vrot.slane %v812, 7
      %v815 = vshll.u32 %v590, 16
      %v817 = vor.u32 %v814, %v815
      %v818 = vsel %vm598, %v810, %v817
      %v819 = vrot.slane %v814, 4
      %v821 = vshrl.u32 %v591, 16
      %v823 = vrot.slane %v821, 7
      %v824 = vshll.u32 %v591, 16
      %v826 = vor.u32 %v823, %v824
      %v827 = vrot.slane %v823, 4
      %v829 = vshrl.u32 %v592, 16
      %v831 = vrot.slane %v829, 7
      %v832 = vshll.u32 %v592, 16
      %v834 = vor.u32 %v831, %v832
      %v835 = vsel %vm598, %v827, %v834
      %v836 = vrot.slane %v831, 4
      %v838 = vshrl.u32 %v593, 16
      %v840 = vrot.slane %v838, 7
      %v841 = vshll.u32 %v593, 16
      %v843 = vor.u32 %v840, %v841
      %v844 = vrot.slane %v840, 4
      %v846 = vshrl.u32 %v594, 16
      %v848 = vrot.slane %v846, 7
      %v849 = vshll.u32 %v594, 16
      %v851 = vor.u32 %v848, %v849
      %v852 = vsel %vm598, %v844, %v851
      %v853 = vrot.slane %v848, 4
      %v855 = vshrl.u32 %v595, 16
      %v857 = vrot.slane %v855, 7
      %v858 = vshll.u32 %v595, 16
      %v860 = vor.u32 %v857, %v858
      %v861 = vrot.slane %v857, 4
      %v863 = vshrl.u32 %v596, 16
      %v865 = vrot.slane %v863, 7
      %v866 = vshll.u32 %v596, 16
      %v868 = vor.u32 %v865, %v866
      %v869 = vsel %vm598, %v861, %v868
      %v870 = vrot.slane %v865, 4
      %s919 = scalar_lea.vmem [#allocation2], 12
      %vm920 = vcmask 60416
      %vm921 = vmand %vm920, %vm445
      %v922 = vld [vmem:[%s919] sm:$0xf]
      %v923 = vsel %vm921, %v605, %v922
      %924 = vst [vmem:[%s919] sm:$0xf] %v923
      %925 = vst.msk [vmem:[%s919 + $0x4] sm:$0xf] %vm379, %v614
      %v926 = vld [vmem:[%s919 + $0x8] sm:$0x1]
      %v927 = vsel %vm390, %v615, %v926
      %928 = vst [vmem:[%s919 + $0x8] sm:$0x1] %v927
      %v929 = vld [vmem:[%s919 + $0xc] sm:$0xf]
      %v930 = vsel %vm921, %v622, %v929
      %931 = vst [vmem:[%s919 + $0xc] sm:$0xf] %v930
      %932 = vst.msk [vmem:[%s919 + $0x10] sm:$0xf] %vm379, %v631
      %v933 = vld [vmem:[%s919 + $0x14] sm:$0x1]
      %v934 = vsel %vm390, %v632, %v933
      %935 = vst [vmem:[%s919 + $0x14] sm:$0x1] %v934
      %v936 = vld [vmem:[%s919 + $0x18] sm:$0xf]
      %v937 = vsel %vm921, %v639, %v936
      %938 = vst [vmem:[%s919 + $0x18] sm:$0xf] %v937
      %939 = vst.msk [vmem:[%s919 + $0x1c] sm:$0xf] %vm379, %v648
      %v940 = vld [vmem:[%s919 + $0x20] sm:$0x1]
      %v941 = vsel %vm390, %v649, %v940
      %942 = vst [vmem:[%s919 + $0x20] sm:$0x1] %v941
      %v943 = vld [vmem:[%s919 + $0x24] sm:$0xf]
      %v944 = vsel %vm921, %v656, %v943
      %945 = vst [vmem:[%s919 + $0x24] sm:$0xf] %v944
      %946 = vst.msk [vmem:[%s919 + $0x28] sm:$0xf] %vm379, %v665
      %v947 = vld [vmem:[%s919 + $0x2c] sm:$0x1]
      %v948 = vsel %vm390, %v666, %v947
      %949 = vst [vmem:[%s919 + $0x2c] sm:$0x1] %v948
      %v950 = vld [vmem:[%s919 + $0x30] sm:$0xf]
      %v951 = vsel %vm921, %v673, %v950
      %952 = vst [vmem:[%s919 + $0x30] sm:$0xf] %v951
      %953 = vst.msk [vmem:[%s919 + $0x34] sm:$0xf] %vm379, %v682
      %v954 = vld [vmem:[%s919 + $0x38] sm:$0x1]
      %v955 = vsel %vm390, %v683, %v954
      %956 = vst [vmem:[%s919 + $0x38] sm:$0x1] %v955
      %v957 = vld [vmem:[%s919 + $0x3c] sm:$0xf]
      %v958 = vsel %vm921, %v690, %v957
      %959 = vst [vmem:[%s919 + $0x3c] sm:$0xf] %v958
      %960 = vst.msk [vmem:[%s919 + $0x40] sm:$0xf] %vm379, %v699
      %v961 = vld [vmem:[%s919 + $0x44] sm:$0x1]
      %v962 = vsel %vm390, %v700, %v961
      %963 = vst [vmem:[%s919 + $0x44] sm:$0x1] %v962
      %v964 = vld [vmem:[%s919 + $0x48] sm:$0xf]
      %v965 = vsel %vm921, %v707, %v964
      %966 = vst [vmem:[%s919 + $0x48] sm:$0xf] %v965
      %967 = vst.msk [vmem:[%s919 + $0x4c] sm:$0xf] %vm379, %v716
      %v968 = vld [vmem:[%s919 + $0x50] sm:$0x1]
      %v969 = vsel %vm390, %v717, %v968
      %970 = vst [vmem:[%s919 + $0x50] sm:$0x1] %v969
      %v971 = vld [vmem:[%s919 + $0x54] sm:$0xf]
      %v972 = vsel %vm921, %v724, %v971
      %973 = vst [vmem:[%s919 + $0x54] sm:$0xf] %v972
      %974 = vst.msk [vmem:[%s919 + $0x58] sm:$0xf] %vm379, %v733
      %v975 = vld [vmem:[%s919 + $0x5c] sm:$0x1]
      %v976 = vsel %vm390, %v734, %v975
      %977 = vst [vmem:[%s919 + $0x5c] sm:$0x1] %v976
      %v978 = vld [vmem:[%s919 + $0x60] sm:$0xf]
      %v979 = vsel %vm921, %v741, %v978
      %980 = vst [vmem:[%s919 + $0x60] sm:$0xf] %v979
      %981 = vst.msk [vmem:[%s919 + $0x64] sm:$0xf] %vm379, %v750
      %v982 = vld [vmem:[%s919 + $0x68] sm:$0x1]
      %v983 = vsel %vm390, %v751, %v982
      %984 = vst [vmem:[%s919 + $0x68] sm:$0x1] %v983
      %v985 = vld [vmem:[%s919 + $0x6c] sm:$0xf]
      %v986 = vsel %vm921, %v758, %v985
      %987 = vst [vmem:[%s919 + $0x6c] sm:$0xf] %v986
      %988 = vst.msk [vmem:[%s919 + $0x70] sm:$0xf] %vm379, %v767
      %v989 = vld [vmem:[%s919 + $0x74] sm:$0x1]
      %v990 = vsel %vm390, %v768, %v989
      %991 = vst [vmem:[%s919 + $0x74] sm:$0x1] %v990
      %v992 = vld [vmem:[%s919 + $0x78] sm:$0xf]
      %v993 = vsel %vm921, %v775, %v992
      %994 = vst [vmem:[%s919 + $0x78] sm:$0xf] %v993
      %995 = vst.msk [vmem:[%s919 + $0x7c] sm:$0xf] %vm379, %v784
      %v996 = vld [vmem:[%s919 + $0x80] sm:$0x1]
      %v997 = vsel %vm390, %v785, %v996
      %998 = vst [vmem:[%s919 + $0x80] sm:$0x1] %v997
      %v999 = vld [vmem:[%s919 + $0x84] sm:$0xf]
      %v1000 = vsel %vm921, %v792, %v999
      %1001 = vst [vmem:[%s919 + $0x84] sm:$0xf] %v1000
      %1002 = vst.msk [vmem:[%s919 + $0x88] sm:$0xf] %vm379, %v801
      %v1003 = vld [vmem:[%s919 + $0x8c] sm:$0x1]
      %v1004 = vsel %vm390, %v802, %v1003
      %1005 = vst [vmem:[%s919 + $0x8c] sm:$0x1] %v1004
      %v1006 = vld [vmem:[%s919 + $0x90] sm:$0xf]
      %v1007 = vsel %vm921, %v809, %v1006
      %1008 = vst [vmem:[%s919 + $0x90] sm:$0xf] %v1007
      %1009 = vst.msk [vmem:[%s919 + $0x94] sm:$0xf] %vm379, %v818
      %v1010 = vld [vmem:[%s919 + $0x98] sm:$0x1]
      %v1011 = vsel %vm390, %v819, %v1010
      %1012 = vst [vmem:[%s919 + $0x98] sm:$0x1] %v1011
      %v1013 = vld [vmem:[%s919 + $0x9c] sm:$0xf]
      %v1014 = vsel %vm921, %v826, %v1013
      %1015 = vst [vmem:[%s919 + $0x9c] sm:$0xf] %v1014
      %1016 = vst.msk [vmem:[%s919 + $0xa0] sm:$0xf] %vm379, %v835
      %v1017 = vld [vmem:[%s919 + $0xa4] sm:$0x1]
      %v1018 = vsel %vm390, %v836, %v1017
      %1019 = vst [vmem:[%s919 + $0xa4] sm:$0x1] %v1018
      %v1020 = vld [vmem:[%s919 + $0xa8] sm:$0xf]
      %v1021 = vsel %vm921, %v843, %v1020
      %1022 = vst [vmem:[%s919 + $0xa8] sm:$0xf] %v1021
      %1023 = vst.msk [vmem:[%s919 + $0xac] sm:$0xf] %vm379, %v852
      %v1024 = vld [vmem:[%s919 + $0xb0] sm:$0x1]
      %v1025 = vsel %vm390, %v853, %v1024
      %1026 = vst [vmem:[%s919 + $0xb0] sm:$0x1] %v1025
      %v1027 = vld [vmem:[%s919 + $0xb4] sm:$0xf]
      %v1028 = vsel %vm921, %v860, %v1027
      %1029 = vst [vmem:[%s919 + $0xb4] sm:$0xf] %v1028
      %1030 = vst.msk [vmem:[%s919 + $0xb8] sm:$0xf] %vm379, %v869
      %v1031 = vld [vmem:[%s919 + $0xbc] sm:$0x1]
      %v1032 = vsel %vm390, %v870, %v1031
      %1033 = vst [vmem:[%s919 + $0xbc] sm:$0x1] %v1032
      %v1034 = vld [vmem:[#allocation2] sm:$0xf]
      %v1035 = vld [vmem:[#allocation2 + $0x4] sm:$0xf]
      %v1036 = vld [vmem:[#allocation2 + $0xc] sm:$0xf]
      %v1037 = vld [vmem:[#allocation2 + $0x10] sm:$0xf]
      %v1038 = vld [vmem:[#allocation2 + $0x18] sm:$0xf]
      %v1039 = vld [vmem:[#allocation2 + $0x1c] sm:$0xf]
      %v1040 = vld [vmem:[#allocation2 + $0x24] sm:$0xf]
      %v1041 = vld [vmem:[#allocation2 + $0x28] sm:$0xf]
      %v1042 = vld [vmem:[#allocation2 + $0x30] sm:$0xf]
      %v1043 = vld [vmem:[#allocation2 + $0x34] sm:$0xf]
      %v1044 = vld [vmem:[#allocation2 + $0x3c] sm:$0xf]
      %v1045 = vld [vmem:[#allocation2 + $0x40] sm:$0xf]
      %v1046 = vld [vmem:[#allocation2 + $0x48] sm:$0xf]
      %v1047 = vld [vmem:[#allocation2 + $0x4c] sm:$0xf]
      %v1048 = vld [vmem:[#allocation2 + $0x54] sm:$0xf]
      %v1049 = vld [vmem:[#allocation2 + $0x58] sm:$0xf]
      %v1050 = vld [vmem:[#allocation2 + $0x60] sm:$0xf]
      %v1051 = vld [vmem:[#allocation2 + $0x64] sm:$0xf]
      %v1052 = vld [vmem:[#allocation2 + $0x6c] sm:$0xf]
      %v1053 = vld [vmem:[#allocation2 + $0x70] sm:$0xf]
      %v1054 = vld [vmem:[#allocation2 + $0x78] sm:$0xf]
      %v1055 = vld [vmem:[#allocation2 + $0x7c] sm:$0xf]
      %v1056 = vld [vmem:[#allocation2 + $0x84] sm:$0xf]
      %v1057 = vld [vmem:[#allocation2 + $0x88] sm:$0xf]
      %v1058 = vld [vmem:[#allocation2 + $0x90] sm:$0xf]
      %v1059 = vld [vmem:[#allocation2 + $0x94] sm:$0xf]
      %v1060 = vld [vmem:[#allocation2 + $0x9c] sm:$0xf]
      %v1061 = vld [vmem:[#allocation2 + $0xa0] sm:$0xf]
      %v1062 = vld [vmem:[#allocation2 + $0xa8] sm:$0xf]
      %v1063 = vld [vmem:[#allocation2 + $0xac] sm:$0xf]
      %v1064 = vld [vmem:[#allocation2 + $0xb4] sm:$0xf]
      %v1065 = vld [vmem:[#allocation2 + $0xb8] sm:$0xf]
      %v1066 = vld [vmem:[%s3] sm:$0xf]
      %v1067 = vld [vmem:[#allocation2 + $0x8] sm:$0x1]
      %v1068 = vld [vmem:[#allocation2 + $0x14] sm:$0x1]
      %v1069 = vld [vmem:[#allocation2 + $0x20] sm:$0x1]
      %v1070 = vld [vmem:[#allocation2 + $0x2c] sm:$0x1]
      %v1071 = vld [vmem:[#allocation2 + $0x38] sm:$0x1]
      %v1072 = vld [vmem:[#allocation2 + $0x44] sm:$0x1]
      %v1073 = vld [vmem:[#allocation2 + $0x50] sm:$0x1]
      %v1074 = vld [vmem:[#allocation2 + $0x5c] sm:$0x1]
      %v1075 = vld [vmem:[#allocation2 + $0x68] sm:$0x1]
      %v1076 = vld [vmem:[#allocation2 + $0x74] sm:$0x1]
      %v1077 = vld [vmem:[#allocation2 + $0x80] sm:$0x1]
      %v1078 = vld [vmem:[#allocation2 + $0x8c] sm:$0x1]
      %v1079 = vld [vmem:[#allocation2 + $0x98] sm:$0x1]
      %v1080 = vld [vmem:[#allocation2 + $0xa4] sm:$0x1]
      %v1081 = vld [vmem:[#allocation2 + $0xb0] sm:$0x1]
      %v1082 = vld [vmem:[#allocation2 + $0xbc] sm:$0x1]
      %vm1083 = vsmask.f32 3328
      %vm1084 = vsmask.f32 7440
      %vm1085 = vmor %vm1083, %vm1084
      %v1087 = vshrl.u32 %v1034, 16
      %v1089 = vrot.slane %v1087, 4
      %v1090 = vshll.u32 %v1034, 16
      %v1092 = vrot.slane %v1090, 5
      %v1093 = vor.u32 %v1089, %v1092
      %v1094 = vrot.slane %v1093, 4
      %v1096 = vshll.u32 %v1035, 16
      %v1098 = vrot.slane %v1096, 5
      %v1099 = vsel %vm1085, %v1094, %v1098
      %v1100 = vshrl.u32 %v1035, 16
      %v1102 = vrot.slane %v1100, 4
      %v1103 = vor.u32 %v1102, %v1098
      %v1104 = vrot.slane %v1103, 4
      %v1106 = vshll.u32 %v1067, 16
      %v1108 = vrot.slane %v1106, 5
      %v1109 = vsel %vm1085, %v1104, %v1108
      %v1111 = vshrl.u32 %v1036, 16
      %v1113 = vrot.slane %v1111, 4
      %v1114 = vshll.u32 %v1036, 16
      %v1116 = vrot.slane %v1114, 5
      %v1117 = vor.u32 %v1113, %v1116
      %v1118 = vrot.slane %v1117, 4
      %v1120 = vshll.u32 %v1037, 16
      %v1122 = vrot.slane %v1120, 5
      %v1123 = vsel %vm1085, %v1118, %v1122
      %v1124 = vshrl.u32 %v1037, 16
      %v1126 = vrot.slane %v1124, 4
      %v1127 = vor.u32 %v1126, %v1122
      %v1128 = vrot.slane %v1127, 4
      %v1130 = vshll.u32 %v1068, 16
      %v1132 = vrot.slane %v1130, 5
      %v1133 = vsel %vm1085, %v1128, %v1132
      %v1135 = vshrl.u32 %v1038, 16
      %v1137 = vrot.slane %v1135, 4
      %v1138 = vshll.u32 %v1038, 16
      %v1140 = vrot.slane %v1138, 5
      %v1141 = vor.u32 %v1137, %v1140
      %v1142 = vrot.slane %v1141, 4
      %v1144 = vshll.u32 %v1039, 16
      %v1146 = vrot.slane %v1144, 5
      %v1147 = vsel %vm1085, %v1142, %v1146
      %v1148 = vshrl.u32 %v1039, 16
      %v1150 = vrot.slane %v1148, 4
      %v1151 = vor.u32 %v1150, %v1146
      %v1152 = vrot.slane %v1151, 4
      %v1154 = vshll.u32 %v1069, 16
      %v1156 = vrot.slane %v1154, 5
      %v1157 = vsel %vm1085, %v1152, %v1156
      %v1159 = vshrl.u32 %v1040, 16
      %v1161 = vrot.slane %v1159, 4
      %v1162 = vshll.u32 %v1040, 16
      %v1164 = vrot.slane %v1162, 5
      %v1165 = vor.u32 %v1161, %v1164
      %v1166 = vrot.slane %v1165, 4
      %v1168 = vshll.u32 %v1041, 16
      %v1170 = vrot.slane %v1168, 5
      %v1171 = vsel %vm1085, %v1166, %v1170
      %v1172 = vshrl.u32 %v1041, 16
      %v1174 = vrot.slane %v1172, 4
      %v1175 = vor.u32 %v1174, %v1170
      %v1176 = vrot.slane %v1175, 4
      %v1178 = vshll.u32 %v1070, 16
      %v1180 = vrot.slane %v1178, 5
      %v1181 = vsel %vm1085, %v1176, %v1180
      %v1183 = vshrl.u32 %v1042, 16
      %v1185 = vrot.slane %v1183, 4
      %v1186 = vshll.u32 %v1042, 16
      %v1188 = vrot.slane %v1186, 5
      %v1189 = vor.u32 %v1185, %v1188
      %v1190 = vrot.slane %v1189, 4
      %v1192 = vshll.u32 %v1043, 16
      %v1194 = vrot.slane %v1192, 5
      %v1195 = vsel %vm1085, %v1190, %v1194
      %v1196 = vshrl.u32 %v1043, 16
      %v1198 = vrot.slane %v1196, 4
      %v1199 = vor.u32 %v1198, %v1194
      %v1200 = vrot.slane %v1199, 4
      %v1202 = vshll.u32 %v1071, 16
      %v1204 = vrot.slane %v1202, 5
      %v1205 = vsel %vm1085, %v1200, %v1204
      %v1207 = vshrl.u32 %v1044, 16
      %v1209 = vrot.slane %v1207, 4
      %v1210 = vshll.u32 %v1044, 16
      %v1212 = vrot.slane %v1210, 5
      %v1213 = vor.u32 %v1209, %v1212
      %v1214 = vrot.slane %v1213, 4
      %v1216 = vshll.u32 %v1045, 16
      %v1218 = vrot.slane %v1216, 5
      %v1219 = vsel %vm1085, %v1214, %v1218
      %v1220 = vshrl.u32 %v1045, 16
      %v1222 = vrot.slane %v1220, 4
      %v1223 = vor.u32 %v1222, %v1218
      %v1224 = vrot.slane %v1223, 4
      %v1226 = vshll.u32 %v1072, 16
      %v1228 = vrot.slane %v1226, 5
      %v1229 = vsel %vm1085, %v1224, %v1228
      %v1231 = vshrl.u32 %v1046, 16
      %v1233 = vrot.slane %v1231, 4
      %v1234 = vshll.u32 %v1046, 16
      %v1236 = vrot.slane %v1234, 5
      %v1237 = vor.u32 %v1233, %v1236
      %v1238 = vrot.slane %v1237, 4
      %v1240 = vshll.u32 %v1047, 16
      %v1242 = vrot.slane %v1240, 5
      %v1243 = vsel %vm1085, %v1238, %v1242
      %v1244 = vshrl.u32 %v1047, 16
      %v1246 = vrot.slane %v1244, 4
      %v1247 = vor.u32 %v1246, %v1242
      %v1248 = vrot.slane %v1247, 4
      %v1250 = vshll.u32 %v1073, 16
      %v1252 = vrot.slane %v1250, 5
      %v1253 = vsel %vm1085, %v1248, %v1252
      %v1255 = vshrl.u32 %v1048, 16
      %v1257 = vrot.slane %v1255, 4
      %v1258 = vshll.u32 %v1048, 16
      %v1260 = vrot.slane %v1258, 5
      %v1261 = vor.u32 %v1257, %v1260
      %v1262 = vrot.slane %v1261, 4
      %v1264 = vshll.u32 %v1049, 16
      %v1266 = vrot.slane %v1264, 5
      %v1267 = vsel %vm1085, %v1262, %v1266
      %v1268 = vshrl.u32 %v1049, 16
      %v1270 = vrot.slane %v1268, 4
      %v1271 = vor.u32 %v1270, %v1266
      %v1272 = vrot.slane %v1271, 4
      %v1274 = vshll.u32 %v1074, 16
      %v1276 = vrot.slane %v1274, 5
      %v1277 = vsel %vm1085, %v1272, %v1276
      %v1279 = vshrl.u32 %v1050, 16
      %v1281 = vrot.slane %v1279, 4
      %v1282 = vshll.u32 %v1050, 16
      %v1284 = vrot.slane %v1282, 5
      %v1285 = vor.u32 %v1281, %v1284
      %v1286 = vrot.slane %v1285, 4
      %v1288 = vshll.u32 %v1051, 16
      %v1290 = vrot.slane %v1288, 5
      %v1291 = vsel %vm1085, %v1286, %v1290
      %v1292 = vshrl.u32 %v1051, 16
      %v1294 = vrot.slane %v1292, 4
      %v1295 = vor.u32 %v1294, %v1290
      %v1296 = vrot.slane %v1295, 4
      %v1298 = vshll.u32 %v1075, 16
      %v1300 = vrot.slane %v1298, 5
      %v1301 = vsel %vm1085, %v1296, %v1300
      %v1303 = vshrl.u32 %v1052, 16
      %v1305 = vrot.slane %v1303, 4
      %v1306 = vshll.u32 %v1052, 16
      %v1308 = vrot.slane %v1306, 5
      %v1309 = vor.u32 %v1305, %v1308
      %v1310 = vrot.slane %v1309, 4
      %v1312 = vshll.u32 %v1053, 16
      %v1314 = vrot.slane %v1312, 5
      %v1315 = vsel %vm1085, %v1310, %v1314
      %v1316 = vshrl.u32 %v1053, 16
      %v1318 = vrot.slane %v1316, 4
      %v1319 = vor.u32 %v1318, %v1314
      %v1320 = vrot.slane %v1319, 4
      %v1322 = vshll.u32 %v1076, 16
      %v1324 = vrot.slane %v1322, 5
      %v1325 = vsel %vm1085, %v1320, %v1324
      %v1327 = vshrl.u32 %v1054, 16
      %v1329 = vrot.slane %v1327, 4
      %v1330 = vshll.u32 %v1054, 16
      %v1332 = vrot.slane %v1330, 5
      %v1333 = vor.u32 %v1329, %v1332
      %v1334 = vrot.slane %v1333, 4
      %v1336 = vshll.u32 %v1055, 16
      %v1338 = vrot.slane %v1336, 5
      %v1339 = vsel %vm1085, %v1334, %v1338
      %v1340 = vshrl.u32 %v1055, 16
      %v1342 = vrot.slane %v1340, 4
      %v1343 = vor.u32 %v1342, %v1338
      %v1344 = vrot.slane %v1343, 4
      %v1346 = vshll.u32 %v1077, 16
      %v1348 = vrot.slane %v1346, 5
      %v1349 = vsel %vm1085, %v1344, %v1348
      %v1351 = vshrl.u32 %v1056, 16
      %v1353 = vrot.slane %v1351, 4
      %v1354 = vshll.u32 %v1056, 16
      %v1356 = vrot.slane %v1354, 5
      %v1357 = vor.u32 %v1353, %v1356
      %v1358 = vrot.slane %v1357, 4
      %v1360 = vshll.u32 %v1057, 16
      %v1362 = vrot.slane %v1360, 5
      %v1363 = vsel %vm1085, %v1358, %v1362
      %v1364 = vshrl.u32 %v1057, 16
      %v1366 = vrot.slane %v1364, 4
      %v1367 = vor.u32 %v1366, %v1362
      %v1368 = vrot.slane %v1367, 4
      %v1370 = vshll.u32 %v1078, 16
      %v1372 = vrot.slane %v1370, 5
      %v1373 = vsel %vm1085, %v1368, %v1372
      %v1375 = vshrl.u32 %v1058, 16
      %v1377 = vrot.slane %v1375, 4
      %v1378 = vshll.u32 %v1058, 16
      %v1380 = vrot.slane %v1378, 5
      %v1381 = vor.u32 %v1377, %v1380
      %v1382 = vrot.slane %v1381, 4
      %v1384 = vshll.u32 %v1059, 16
      %v1386 = vrot.slane %v1384, 5
      %v1387 = vsel %vm1085, %v1382, %v1386
      %v1388 = vshrl.u32 %v1059, 16
      %v1390 = vrot.slane %v1388, 4
      %v1391 = vor.u32 %v1390, %v1386
      %v1392 = vrot.slane %v1391, 4
      %v1394 = vshll.u32 %v1079, 16
      %v1396 = vrot.slane %v1394, 5
      %v1397 = vsel %vm1085, %v1392, %v1396
      %v1399 = vshrl.u32 %v1060, 16
      %v1401 = vrot.slane %v1399, 4
      %v1402 = vshll.u32 %v1060, 16
      %v1404 = vrot.slane %v1402, 5
      %v1405 = vor.u32 %v1401, %v1404
      %v1406 = vrot.slane %v1405, 4
      %v1408 = vshll.u32 %v1061, 16
      %v1410 = vrot.slane %v1408, 5
      %v1411 = vsel %vm1085, %v1406, %v1410
      %v1412 = vshrl.u32 %v1061, 16
      %v1414 = vrot.slane %v1412, 4
      %v1415 = vor.u32 %v1414, %v1410
      %v1416 = vrot.slane %v1415, 4
      %v1418 = vshll.u32 %v1080, 16
      %v1420 = vrot.slane %v1418, 5
      %v1421 = vsel %vm1085, %v1416, %v1420
      %v1423 = vshrl.u32 %v1062, 16
      %v1425 = vrot.slane %v1423, 4
      %v1426 = vshll.u32 %v1062, 16
      %v1428 = vrot.slane %v1426, 5
      %v1429 = vor.u32 %v1425, %v1428
      %v1430 = vrot.slane %v1429, 4
      %v1432 = vshll.u32 %v1063, 16
      %v1434 = vrot.slane %v1432, 5
      %v1435 = vsel %vm1085, %v1430, %v1434
      %v1436 = vshrl.u32 %v1063, 16
      %v1438 = vrot.slane %v1436, 4
      %v1439 = vor.u32 %v1438, %v1434
      %v1440 = vrot.slane %v1439, 4
      %v1442 = vshll.u32 %v1081, 16
      %v1444 = vrot.slane %v1442, 5
      %v1445 = vsel %vm1085, %v1440, %v1444
      %v1447 = vshrl.u32 %v1064, 16
      %v1449 = vrot.slane %v1447, 4
      %v1450 = vshll.u32 %v1064, 16
      %v1452 = vrot.slane %v1450, 5
      %v1453 = vor.u32 %v1449, %v1452
      %v1454 = vrot.slane %v1453, 4
      %v1456 = vshll.u32 %v1065, 16
      %v1458 = vrot.slane %v1456, 5
      %v1459 = vsel %vm1085, %v1454, %v1458
      %v1460 = vshrl.u32 %v1065, 16
      %v1462 = vrot.slane %v1460, 4
      %v1463 = vor.u32 %v1462, %v1458
      %v1464 = vrot.slane %v1463, 4
      %v1466 = vshll.u32 %v1082, 16
      %v1468 = vrot.slane %v1466, 5
      %v1469 = vsel %vm1085, %v1464, %v1468
      %s1470 = scalar_lea.vmem %s3, 4
      %v1471 = vld [vmem:[%s1470] sm:$0xf]
      %v1472 = vunpack.c.l.b16 %v1099
      %v1473 = vunpack.c.l.b16 %v1109
      %v1474 = vunpack.c.l.b16 %v1123
      %v1475 = vunpack.c.l.b16 %v1133
      %v1476 = vunpack.c.l.b16 %v1147
      %v1477 = vunpack.c.l.b16 %v1157
      %v1478 = vunpack.c.l.b16 %v1171
      %v1479 = vunpack.c.l.b16 %v1181
      %v1480 = vunpack.c.l.b16 %v1195
      %v1481 = vunpack.c.l.b16 %v1205
      %v1482 = vunpack.c.l.b16 %v1219
      %v1483 = vunpack.c.l.b16 %v1229
      %v1484 = vunpack.c.l.b16 %v1243
      %v1485 = vunpack.c.l.b16 %v1253
      %v1486 = vunpack.c.l.b16 %v1267
      %v1487 = vunpack.c.l.b16 %v1277
      %v1488 = vunpack.c.l.b16 %v1291
      %v1489 = vunpack.c.l.b16 %v1301
      %v1490 = vunpack.c.l.b16 %v1315
      %v1491 = vunpack.c.l.b16 %v1325
      %v1492 = vunpack.c.l.b16 %v1339
      %v1493 = vunpack.c.l.b16 %v1349
      %v1494 = vunpack.c.l.b16 %v1363
      %v1495 = vunpack.c.l.b16 %v1373
      %v1496 = vunpack.c.l.b16 %v1387
      %v1497 = vunpack.c.l.b16 %v1397
      %v1498 = vunpack.c.l.b16 %v1411
      %v1499 = vunpack.c.l.b16 %v1421
      %v1500 = vunpack.c.l.b16 %v1435
      %v1501 = vunpack.c.l.b16 %v1445
      %v1502 = vunpack.c.l.b16 %v1459
      %v1503 = vunpack.c.l.b16 %v1469
      %v1504 = vpack.c.b16 %v1473, %v1472
      %v1505 = vpack.c.b16 %v1475, %v1474
      %v1506 = vpack.c.b16 %v1477, %v1476
      %v1507 = vpack.c.b16 %v1479, %v1478
      %v1508 = vpack.c.b16 %v1481, %v1480
      %v1509 = vpack.c.b16 %v1483, %v1482
      %v1510 = vpack.c.b16 %v1485, %v1484
      %v1511 = vpack.c.b16 %v1487, %v1486
      %v1512 = vpack.c.b16 %v1489, %v1488
      %v1513 = vpack.c.b16 %v1491, %v1490
      %v1514 = vpack.c.b16 %v1493, %v1492
      %v1515 = vpack.c.b16 %v1495, %v1494
      %v1516 = vpack.c.b16 %v1497, %v1496
      %v1517 = vpack.c.b16 %v1499, %v1498
      %v1518 = vpack.c.b16 %v1501, %v1500
      %v1519 = vpack.c.b16 %v1503, %v1502
      %vm1520 = vcmask 64512
      %v1522 = vsel %vm1520, %v1504, 0
      %v1525 = vsel %vm1520, %v1505, 0
      %v1528 = vsel %vm1520, %v1506, 0
      %v1531 = vsel %vm1520, %v1507, 0
      %v1534 = vsel %vm1520, %v1508, 0
      %v1537 = vsel %vm1520, %v1509, 0
      %v1540 = vsel %vm1520, %v1510, 0
      %v1543 = vsel %vm1520, %v1511, 0
      %v1546 = vsel %vm1520, %v1512, 0
      %v1549 = vsel %vm1520, %v1513, 0
      %v1552 = vsel %vm1520, %v1514, 0
      %v1555 = vsel %vm1520, %v1515, 0
      %v1558 = vsel %vm1520, %v1516, 0
      %v1561 = vsel %vm1520, %v1517, 0
      %v1564 = vsel %vm1520, %v1518, 0
      %v1567 = vsel %vm1520, %v1519, 0
      %vm1569 = vcmask 1043456
      %v1571 = vsel %vm1569, %v1471, 0
      %1573 = vmatprep.subr.bf16.mxu0 0
      %1574 = vmatpush1.bf16.msra.mxu0 0
      %1575 = vmatprep.subr.bf16.mxu0 0
      %1576 = vmatpush1.bf16.msra.mxu0 0
      %1577 = vmatprep.subr.bf16.mxu0 0
      %1578 = vmatpush1.bf16.msra.mxu0 0
      %1579 = vmatprep.subr.bf16.mxu0 0
      %1580 = vmatpush1.bf16.msra.mxu0 0
      %1581 = vmatprep.subr.bf16.mxu0 0
      %1582 = vmatpush1.bf16.msra.mxu0 0
      %1583 = vmatprep.subr.bf16.mxu0 0
      %1584 = vmatpush1.bf16.msra.mxu0 0
      %1585 = vmatprep.subr.bf16.mxu0 0
      %1586 = vmatpush1.bf16.msra.mxu0 0
      %1587 = vmatprep.subr.bf16.mxu0 0
      %1588 = vmatpush1.bf16.msra.mxu0 %v1571
      %1589 = vmatprep.subr.bf16.mxu0 0
      %1590 = vmatpush2.bf16.msra.mxu0 0
      %1591 = vmatprep.subr.bf16.mxu0 0
      %1592 = vmatpush2.bf16.msra.mxu0 0
      %1593 = vmatprep.subr.bf16.mxu0 0
      %1594 = vmatpush2.bf16.msra.mxu0 0
      %1595 = vmatprep.subr.bf16.mxu0 0
      %1596 = vmatpush2.bf16.msra.mxu0 0
      %1597 = vmatprep.subr.bf16.mxu0 0
      %1598 = vmatpush2.bf16.msra.mxu0 0
      %1599 = vmatprep.subr.bf16.mxu0 0
      %1600 = vmatpush2.bf16.msra.mxu0 0
      %1601 = vmatprep.subr.bf16.mxu0 0
      %1602 = vmatpush2.bf16.msra.mxu0 0
      %1603 = vmatprep.subr.bf16.mxu0 0
      %1604 = vmatpush2.bf16.msra.mxu0 0
      %1605 = vmatprep.mubr.bf16.mxu0 0
      %1606 = vmatmul.mubr.bf16.gmra.mxu0 %v1522
      %v1607 = vpop.f32.mrf.mxu0
      %v1608 = vadd.f32 0.0, %v1607
      %v1609 = vpop.f32.mrf.mxu0
      %v1610 = vpop.f32.mrf.mxu0
      %v1611 = vadd.f32 0.0, %v1610
      %v1612 = vpop.f32.mrf.mxu0
      %1613 = vmatprep.mubr.bf16.mxu0 0
      %1614 = vmatmul.mubr.bf16.gmra.mxu0 %v1525
      %v1615 = vpop.f32.mrf.mxu0
      %v1616 = vadd.f32 0.0, %v1615
      %v1617 = vpop.f32.mrf.mxu0
      %v1618 = vpop.f32.mrf.mxu0
      %v1619 = vadd.f32 0.0, %v1618
      %v1620 = vpop.f32.mrf.mxu0
      %1621 = vmatprep.mubr.bf16.mxu0 0
      %1622 = vmatmul.mubr.bf16.gmra.mxu0 %v1528
      %v1623 = vpop.f32.mrf.mxu0
      %v1624 = vadd.f32 0.0, %v1623
      %v1625 = vpop.f32.mrf.mxu0
      %v1626 = vpop.f32.mrf.mxu0
      %v1627 = vadd.f32 0.0, %v1626
      %v1628 = vpop.f32.mrf.mxu0
      %1629 = vmatprep.mubr.bf16.mxu0 0
      %1630 = vmatmul.mubr.bf16.gmra.mxu0 %v1531
      %v1631 = vpop.f32.mrf.mxu0
      %v1632 = vadd.f32 0.0, %v1631
      %v1633 = vpop.f32.mrf.mxu0
      %v1634 = vpop.f32.mrf.mxu0
      %v1635 = vadd.f32 0.0, %v1634
      %v1636 = vpop.f32.mrf.mxu0
      %1637 = vmatprep.mubr.bf16.mxu0 0
      %1638 = vmatmul.mubr.bf16.gmra.mxu0 %v1534
      %v1639 = vpop.f32.mrf.mxu0
      %v1640 = vadd.f32 0.0, %v1639
      %v1641 = vpop.f32.mrf.mxu0
      %v1642 = vpop.f32.mrf.mxu0
      %v1643 = vadd.f32 0.0, %v1642
      %v1644 = vpop.f32.mrf.mxu0
      %1645 = vmatprep.mubr.bf16.mxu0 0
      %1646 = vmatmul.mubr.bf16.gmra.mxu0 %v1537
      %v1647 = vpop.f32.mrf.mxu0
      %v1648 = vadd.f32 0.0, %v1647
      %v1649 = vpop.f32.mrf.mxu0
      %v1650 = vpop.f32.mrf.mxu0
      %v1651 = vadd.f32 0.0, %v1650
      %v1652 = vpop.f32.mrf.mxu0
      %1653 = vmatprep.mubr.bf16.mxu0 0
      %1654 = vmatmul.mubr.bf16.gmra.mxu0 %v1540
      %v1655 = vpop.f32.mrf.mxu0
      %v1656 = vadd.f32 0.0, %v1655
      %v1657 = vpop.f32.mrf.mxu0
      %v1658 = vpop.f32.mrf.mxu0
      %v1659 = vadd.f32 0.0, %v1658
      %v1660 = vpop.f32.mrf.mxu0
      %1661 = vmatprep.mubr.bf16.mxu0 0
      %1662 = vmatmul.mubr.bf16.gmra.mxu0 %v1543
      %v1663 = vpop.f32.mrf.mxu0
      %v1664 = vadd.f32 0.0, %v1663
      %v1665 = vpop.f32.mrf.mxu0
      %v1666 = vpop.f32.mrf.mxu0
      %v1667 = vadd.f32 0.0, %v1666
      %v1668 = vpop.f32.mrf.mxu0
      %1669 = vmatprep.mubr.bf16.mxu0 0
      %1670 = vmatmul.mubr.bf16.gmra.mxu0 %v1546
      %v1671 = vpop.f32.mrf.mxu0
      %v1672 = vadd.f32 0.0, %v1671
      %v1673 = vpop.f32.mrf.mxu0
      %v1674 = vpop.f32.mrf.mxu0
      %v1675 = vadd.f32 0.0, %v1674
      %v1676 = vpop.f32.mrf.mxu0
      %1677 = vmatprep.mubr.bf16.mxu0 0
      %1678 = vmatmul.mubr.bf16.gmra.mxu0 %v1549
      %v1679 = vpop.f32.mrf.mxu0
      %v1680 = vadd.f32 0.0, %v1679
      %v1681 = vpop.f32.mrf.mxu0
      %v1682 = vpop.f32.mrf.mxu0
      %v1683 = vadd.f32 0.0, %v1682
      %v1684 = vpop.f32.mrf.mxu0
      %1685 = vmatprep.mubr.bf16.mxu0 0
      %1686 = vmatmul.mubr.bf16.gmra.mxu0 %v1552
      %v1687 = vpop.f32.mrf.mxu0
      %v1688 = vadd.f32 0.0, %v1687
      %v1689 = vpop.f32.mrf.mxu0
      %v1690 = vpop.f32.mrf.mxu0
      %v1691 = vadd.f32 0.0, %v1690
      %v1692 = vpop.f32.mrf.mxu0
      %1693 = vmatprep.mubr.bf16.mxu0 0
      %1694 = vmatmul.mubr.bf16.gmra.mxu0 %v1555
      %v1695 = vpop.f32.mrf.mxu0
      %v1696 = vadd.f32 0.0, %v1695
      %v1697 = vpop.f32.mrf.mxu0
      %v1698 = vpop.f32.mrf.mxu0
      %v1699 = vadd.f32 0.0, %v1698
      %v1700 = vpop.f32.mrf.mxu0
      %1701 = vmatprep.mubr.bf16.mxu0 0
      %1702 = vmatmul.mubr.bf16.gmra.mxu0 %v1558
      %v1703 = vpop.f32.mrf.mxu0
      %v1704 = vadd.f32 0.0, %v1703
      %v1705 = vpop.f32.mrf.mxu0
      %v1706 = vpop.f32.mrf.mxu0
      %v1707 = vadd.f32 0.0, %v1706
      %v1708 = vpop.f32.mrf.mxu0
      %1709 = vmatprep.mubr.bf16.mxu0 0
      %1710 = vmatmul.mubr.bf16.gmra.mxu0 %v1561
      %v1711 = vpop.f32.mrf.mxu0
      %v1712 = vadd.f32 0.0, %v1711
      %v1713 = vpop.f32.mrf.mxu0
      %v1714 = vpop.f32.mrf.mxu0
      %v1715 = vadd.f32 0.0, %v1714
      %v1716 = vpop.f32.mrf.mxu0
      %1717 = vmatprep.mubr.bf16.mxu0 0
      %1718 = vmatmul.mubr.bf16.gmra.mxu0 %v1564
      %v1719 = vpop.f32.mrf.mxu0
      %v1720 = vadd.f32 0.0, %v1719
      %v1721 = vpop.f32.mrf.mxu0
      %v1722 = vpop.f32.mrf.mxu0
      %v1723 = vadd.f32 0.0, %v1722
      %v1724 = vpop.f32.mrf.mxu0
      %1725 = vmatprep.mubr.bf16.mxu0 0
      %1726 = vmatmul.mubr.bf16.gmra.mxu0 %v1567
      %v1727 = vpop.f32.mrf.mxu0
      %v1728 = vadd.f32 0.0, %v1727
      %v1729 = vpop.f32.mrf.mxu0
      %v1730 = vpop.f32.mrf.mxu0
      %v1731 = vadd.f32 0.0, %v1730
      %v1732 = vpop.f32.mrf.mxu0
      %1733 = vdwg.mxu0
      %v1766 = vunpack.c.l.b16 %v1034
      %v1767 = vunpack.c.l.b16 %v1035
      %v1768 = vunpack.c.l.b16 %v1036
      %v1769 = vunpack.c.l.b16 %v1037
      %v1770 = vunpack.c.l.b16 %v1038
      %v1771 = vunpack.c.l.b16 %v1039
      %v1772 = vunpack.c.l.b16 %v1040
      %v1773 = vunpack.c.l.b16 %v1041
      %v1774 = vunpack.c.l.b16 %v1042
      %v1775 = vunpack.c.l.b16 %v1043
      %v1776 = vunpack.c.l.b16 %v1044
      %v1777 = vunpack.c.l.b16 %v1045
      %v1778 = vunpack.c.l.b16 %v1046
      %v1779 = vunpack.c.l.b16 %v1047
      %v1780 = vunpack.c.l.b16 %v1048
      %v1781 = vunpack.c.l.b16 %v1049
      %v1782 = vunpack.c.l.b16 %v1050
      %v1783 = vunpack.c.l.b16 %v1051
      %v1784 = vunpack.c.l.b16 %v1052
      %v1785 = vunpack.c.l.b16 %v1053
      %v1786 = vunpack.c.l.b16 %v1054
      %v1787 = vunpack.c.l.b16 %v1055
      %v1788 = vunpack.c.l.b16 %v1056
      %v1789 = vunpack.c.l.b16 %v1057
      %v1790 = vunpack.c.l.b16 %v1058
      %v1791 = vunpack.c.l.b16 %v1059
      %v1792 = vunpack.c.l.b16 %v1060
      %v1793 = vunpack.c.l.b16 %v1061
      %v1794 = vunpack.c.l.b16 %v1062
      %v1795 = vunpack.c.l.b16 %v1063
      %v1796 = vunpack.c.l.b16 %v1064
      %v1797 = vunpack.c.l.b16 %v1065
      %v1798 = vpack.c.b16 %v1767, %v1766
      %v1799 = vpack.c.b16 %v1769, %v1768
      %v1800 = vpack.c.b16 %v1771, %v1770
      %v1801 = vpack.c.b16 %v1773, %v1772
      %v1802 = vpack.c.b16 %v1775, %v1774
      %v1803 = vpack.c.b16 %v1777, %v1776
      %v1804 = vpack.c.b16 %v1779, %v1778
      %v1805 = vpack.c.b16 %v1781, %v1780
      %v1806 = vpack.c.b16 %v1783, %v1782
      %v1807 = vpack.c.b16 %v1785, %v1784
      %v1808 = vpack.c.b16 %v1787, %v1786
      %v1809 = vpack.c.b16 %v1789, %v1788
      %v1810 = vpack.c.b16 %v1791, %v1790
      %v1811 = vpack.c.b16 %v1793, %v1792
      %v1812 = vpack.c.b16 %v1795, %v1794
      %v1813 = vpack.c.b16 %v1797, %v1796
      %v1815 = vsel %vm1520, %v1798, 0
      %v1818 = vsel %vm1520, %v1799, 0
      %v1821 = vsel %vm1520, %v1800, 0
      %v1824 = vsel %vm1520, %v1801, 0
      %v1827 = vsel %vm1520, %v1802, 0
      %v1830 = vsel %vm1520, %v1803, 0
      %v1833 = vsel %vm1520, %v1804, 0
      %v1836 = vsel %vm1520, %v1805, 0
      %v1839 = vsel %vm1520, %v1806, 0
      %v1842 = vsel %vm1520, %v1807, 0
      %v1845 = vsel %vm1520, %v1808, 0
      %v1848 = vsel %vm1520, %v1809, 0
      %v1851 = vsel %vm1520, %v1810, 0
      %v1854 = vsel %vm1520, %v1811, 0
      %v1857 = vsel %vm1520, %v1812, 0
      %v1860 = vsel %vm1520, %v1813, 0
      %v1863 = vsel %vm1569, %v1066, 0
      %1865 = vmatprep.subr.bf16.mxu0 0
      %1866 = vmatpush1.bf16.msra.mxu0 0
      %1867 = vmatprep.subr.bf16.mxu0 0
      %1868 = vmatpush1.bf16.msra.mxu0 0
      %1869 = vmatprep.subr.bf16.mxu0 0
      %1870 = vmatpush1.bf16.msra.mxu0 0
      %1871 = vmatprep.subr.bf16.mxu0 0
      %1872 = vmatpush1.bf16.msra.mxu0 0
      %1873 = vmatprep.subr.bf16.mxu0 0
      %1874 = vmatpush1.bf16.msra.mxu0 0
      %1875 = vmatprep.subr.bf16.mxu0 0
      %1876 = vmatpush1.bf16.msra.mxu0 0
      %1877 = vmatprep.subr.bf16.mxu0 0
      %1878 = vmatpush1.bf16.msra.mxu0 0
      %1879 = vmatprep.subr.bf16.mxu0 0
      %1880 = vmatpush1.bf16.msra.mxu0 %v1863
      %1881 = vmatprep.subr.bf16.mxu0 0
      %1882 = vmatpush2.bf16.msra.mxu0 0
      %1883 = vmatprep.subr.bf16.mxu0 0
      %1884 = vmatpush2.bf16.msra.mxu0 0
      %1885 = vmatprep.subr.bf16.mxu0 0
      %1886 = vmatpush2.bf16.msra.mxu0 0
      %1887 = vmatprep.subr.bf16.mxu0 0
      %1888 = vmatpush2.bf16.msra.mxu0 0
      %1889 = vmatprep.subr.bf16.mxu0 0
      %1890 = vmatpush2.bf16.msra.mxu0 0
      %1891 = vmatprep.subr.bf16.mxu0 0
      %1892 = vmatpush2.bf16.msra.mxu0 0
      %1893 = vmatprep.subr.bf16.mxu0 0
      %1894 = vmatpush2.bf16.msra.mxu0 0
      %1895 = vmatprep.subr.bf16.mxu0 0
      %1896 = vmatpush2.bf16.msra.mxu0 0
      %1897 = vmatprep.mubr.bf16.mxu0 0
      %1898 = vmatmul.mubr.bf16.gmra.mxu0 %v1815
      %v1899 = vpop.f32.mrf.mxu0
      %v1900 = vadd.f32 %v1608, %v1899
      %v1901 = vpop.f32.mrf.mxu0
      %v1902 = vpop.f32.mrf.mxu0
      %v1903 = vadd.f32 %v1611, %v1902
      %v1904 = vpop.f32.mrf.mxu0
      %1905 = vmatprep.mubr.bf16.mxu0 0
      %1906 = vmatmul.mubr.bf16.gmra.mxu0 %v1818
      %v1907 = vpop.f32.mrf.mxu0
      %v1908 = vadd.f32 %v1616, %v1907
      %v1909 = vpop.f32.mrf.mxu0
      %v1910 = vpop.f32.mrf.mxu0
      %v1911 = vadd.f32 %v1619, %v1910
      %v1912 = vpop.f32.mrf.mxu0
      %1913 = vmatprep.mubr.bf16.mxu0 0
      %1914 = vmatmul.mubr.bf16.gmra.mxu0 %v1821
      %v1915 = vpop.f32.mrf.mxu0
      %v1916 = vadd.f32 %v1624, %v1915
      %v1917 = vpop.f32.mrf.mxu0
      %v1918 = vpop.f32.mrf.mxu0
      %v1919 = vadd.f32 %v1627, %v1918
      %v1920 = vpop.f32.mrf.mxu0
      %1921 = vmatprep.mubr.bf16.mxu0 0
      %1922 = vmatmul.mubr.bf16.gmra.mxu0 %v1824
      %v1923 = vpop.f32.mrf.mxu0
      %v1924 = vadd.f32 %v1632, %v1923
      %v1925 = vpop.f32.mrf.mxu0
      %v1926 = vpop.f32.mrf.mxu0
      %v1927 = vadd.f32 %v1635, %v1926
      %v1928 = vpop.f32.mrf.mxu0
      %1929 = vmatprep.mubr.bf16.mxu0 0
      %1930 = vmatmul.mubr.bf16.gmra.mxu0 %v1827
      %v1931 = vpop.f32.mrf.mxu0
      %v1932 = vadd.f32 %v1640, %v1931
      %v1933 = vpop.f32.mrf.mxu0
      %v1934 = vpop.f32.mrf.mxu0
      %v1935 = vadd.f32 %v1643, %v1934
      %v1936 = vpop.f32.mrf.mxu0
      %1937 = vmatprep.mubr.bf16.mxu0 0
      %1938 = vmatmul.mubr.bf16.gmra.mxu0 %v1830
      %v1939 = vpop.f32.mrf.mxu0
      %v1940 = vadd.f32 %v1648, %v1939
      %v1941 = vpop.f32.mrf.mxu0
      %v1942 = vpop.f32.mrf.mxu0
      %v1943 = vadd.f32 %v1651, %v1942
      %v1944 = vpop.f32.mrf.mxu0
      %1945 = vmatprep.mubr.bf16.mxu0 0
      %1946 = vmatmul.mubr.bf16.gmra.mxu0 %v1833
      %v1947 = vpop.f32.mrf.mxu0
      %v1948 = vadd.f32 %v1656, %v1947
      %v1949 = vpop.f32.mrf.mxu0
      %v1950 = vpop.f32.mrf.mxu0
      %v1951 = vadd.f32 %v1659, %v1950
      %v1952 = vpop.f32.mrf.mxu0
      %1953 = vmatprep.mubr.bf16.mxu0 0
      %1954 = vmatmul.mubr.bf16.gmra.mxu0 %v1836
      %v1955 = vpop.f32.mrf.mxu0
      %v1956 = vadd.f32 %v1664, %v1955
      %v1957 = vpop.f32.mrf.mxu0
      %v1958 = vpop.f32.mrf.mxu0
      %v1959 = vadd.f32 %v1667, %v1958
      %v1960 = vpop.f32.mrf.mxu0
      %1961 = vmatprep.mubr.bf16.mxu0 0
      %1962 = vmatmul.mubr.bf16.gmra.mxu0 %v1839
      %v1963 = vpop.f32.mrf.mxu0
      %v1964 = vadd.f32 %v1672, %v1963
      %v1965 = vpop.f32.mrf.mxu0
      %v1966 = vpop.f32.mrf.mxu0
      %v1967 = vadd.f32 %v1675, %v1966
      %v1968 = vpop.f32.mrf.mxu0
      %1969 = vmatprep.mubr.bf16.mxu0 0
      %1970 = vmatmul.mubr.bf16.gmra.mxu0 %v1842
      %v1971 = vpop.f32.mrf.mxu0
      %v1972 = vadd.f32 %v1680, %v1971
      %v1973 = vpop.f32.mrf.mxu0
      %v1974 = vpop.f32.mrf.mxu0
      %v1975 = vadd.f32 %v1683, %v1974
      %v1976 = vpop.f32.mrf.mxu0
      %1977 = vmatprep.mubr.bf16.mxu0 0
      %1978 = vmatmul.mubr.bf16.gmra.mxu0 %v1845
      %v1979 = vpop.f32.mrf.mxu0
      %v1980 = vadd.f32 %v1688, %v1979
      %v1981 = vpop.f32.mrf.mxu0
      %v1982 = vpop.f32.mrf.mxu0
      %v1983 = vadd.f32 %v1691, %v1982
      %v1984 = vpop.f32.mrf.mxu0
      %1985 = vmatprep.mubr.bf16.mxu0 0
      %1986 = vmatmul.mubr.bf16.gmra.mxu0 %v1848
      %v1987 = vpop.f32.mrf.mxu0
      %v1988 = vadd.f32 %v1696, %v1987
      %v1989 = vpop.f32.mrf.mxu0
      %v1990 = vpop.f32.mrf.mxu0
      %v1991 = vadd.f32 %v1699, %v1990
      %v1992 = vpop.f32.mrf.mxu0
      %1993 = vmatprep.mubr.bf16.mxu0 0
      %1994 = vmatmul.mubr.bf16.gmra.mxu0 %v1851
      %v1995 = vpop.f32.mrf.mxu0
      %v1996 = vadd.f32 %v1704, %v1995
      %v1997 = vpop.f32.mrf.mxu0
      %v1998 = vpop.f32.mrf.mxu0
      %v1999 = vadd.f32 %v1707, %v1998
      %v2000 = vpop.f32.mrf.mxu0
      %2001 = vmatprep.mubr.bf16.mxu0 0
      %2002 = vmatmul.mubr.bf16.gmra.mxu0 %v1854
      %v2003 = vpop.f32.mrf.mxu0
      %v2004 = vadd.f32 %v1712, %v2003
      %v2005 = vpop.f32.mrf.mxu0
      %v2006 = vpop.f32.mrf.mxu0
      %v2007 = vadd.f32 %v1715, %v2006
      %v2008 = vpop.f32.mrf.mxu0
      %2009 = vmatprep.mubr.bf16.mxu0 0
      %2010 = vmatmul.mubr.bf16.gmra.mxu0 %v1857
      %v2011 = vpop.f32.mrf.mxu0
      %v2012 = vadd.f32 %v1720, %v2011
      %v2013 = vpop.f32.mrf.mxu0
      %v2014 = vpop.f32.mrf.mxu0
      %v2015 = vadd.f32 %v1723, %v2014
      %v2016 = vpop.f32.mrf.mxu0
      %2017 = vmatprep.mubr.bf16.mxu0 0
      %2018 = vmatmul.mubr.bf16.gmra.mxu0 %v1860
      %v2019 = vpop.f32.mrf.mxu0
      %v2020 = vadd.f32 %v1728, %v2019
      %v2021 = vpop.f32.mrf.mxu0
      %v2022 = vpop.f32.mrf.mxu0
      %v2023 = vadd.f32 %v1731, %v2022
      %v2024 = vpop.f32.mrf.mxu0
      %2025 = vdwg.mxu0
      %v2026 = vld [vmem:[#allocation2] sm:$0xe]
      %v2027 = vld [vmem:[#allocation2 + $0xc] sm:$0xe]
      %v2028 = vld [vmem:[#allocation2 + $0x18] sm:$0xe]
      %v2029 = vld [vmem:[#allocation2 + $0x24] sm:$0xe]
      %v2030 = vld [vmem:[#allocation2 + $0x30] sm:$0xe]
      %v2031 = vld [vmem:[#allocation2 + $0x3c] sm:$0xe]
      %v2032 = vld [vmem:[#allocation2 + $0x48] sm:$0xe]
      %v2033 = vld [vmem:[#allocation2 + $0x54] sm:$0xe]
      %v2034 = vld [vmem:[#allocation2 + $0x60] sm:$0xe]
      %v2035 = vld [vmem:[#allocation2 + $0x6c] sm:$0xe]
      %v2036 = vld [vmem:[#allocation2 + $0x78] sm:$0xe]
      %v2037 = vld [vmem:[#allocation2 + $0x84] sm:$0xe]
      %v2038 = vld [vmem:[#allocation2 + $0x90] sm:$0xe]
      %v2039 = vld [vmem:[#allocation2 + $0x9c] sm:$0xe]
      %v2040 = vld [vmem:[#allocation2 + $0xa8] sm:$0xe]
      %v2041 = vld [vmem:[#allocation2 + $0xb4] sm:$0xe]
      %vm2074 = vcmask 1042432
      %vm2075 = vcmask 1046532
      %vm2076 = vmor %vm2074, %vm2075
      %v2077 = vrot.slane %v2026, 5
      %v2078 = vrot.slane %v2077, 4
      %v2079 = vrot.slane %v1035, 5
      %v2080 = vsel %vm2076, %v2078, %v2079
      %v2081 = vrot.slane %v2079, 4
      %v2082 = vrot.slane %v1067, 5
      %v2083 = vsel %vm2076, %v2081, %v2082
      %v2084 = vrot.slane %v2027, 5
      %v2085 = vrot.slane %v2084, 4
      %v2086 = vrot.slane %v1037, 5
      %v2087 = vsel %vm2076, %v2085, %v2086
      %v2088 = vrot.slane %v2086, 4
      %v2089 = vrot.slane %v1068, 5
      %v2090 = vsel %vm2076, %v2088, %v2089
      %v2091 = vrot.slane %v2028, 5
      %v2092 = vrot.slane %v2091, 4
      %v2093 = vrot.slane %v1039, 5
      %v2094 = vsel %vm2076, %v2092, %v2093
      %v2095 = vrot.slane %v2093, 4
      %v2096 = vrot.slane %v1069, 5
      %v2097 = vsel %vm2076, %v2095, %v2096
      %v2098 = vrot.slane %v2029, 5
      %v2099 = vrot.slane %v2098, 4
      %v2100 = vrot.slane %v1041, 5
      %v2101 = vsel %vm2076, %v2099, %v2100
      %v2102 = vrot.slane %v2100, 4
      %v2103 = vrot.slane %v1070, 5
      %v2104 = vsel %vm2076, %v2102, %v2103
      %v2105 = vrot.slane %v2030, 5
      %v2106 = vrot.slane %v2105, 4
      %v2107 = vrot.slane %v1043, 5
      %v2108 = vsel %vm2076, %v2106, %v2107
      %v2109 = vrot.slane %v2107, 4
      %v2110 = vrot.slane %v1071, 5
      %v2111 = vsel %vm2076, %v2109, %v2110
      %v2112 = vrot.slane %v2031, 5
      %v2113 = vrot.slane %v2112, 4
      %v2114 = vrot.slane %v1045, 5
      %v2115 = vsel %vm2076, %v2113, %v2114
      %v2116 = vrot.slane %v2114, 4
      %v2117 = vrot.slane %v1072, 5
      %v2118 = vsel %vm2076, %v2116, %v2117
      %v2119 = vrot.slane %v2032, 5
      %v2120 = vrot.slane %v2119, 4
      %v2121 = vrot.slane %v1047, 5
      %v2122 = vsel %vm2076, %v2120, %v2121
      %v2123 = vrot.slane %v2121, 4
      %v2124 = vrot.slane %v1073, 5
      %v2125 = vsel %vm2076, %v2123, %v2124
      %v2126 = vrot.slane %v2033, 5
      %v2127 = vrot.slane %v2126, 4
      %v2128 = vrot.slane %v1049, 5
      %v2129 = vsel %vm2076, %v2127, %v2128
      %v2130 = vrot.slane %v2128, 4
      %v2131 = vrot.slane %v1074, 5
      %v2132 = vsel %vm2076, %v2130, %v2131
      %v2133 = vrot.slane %v2034, 5
      %v2134 = vrot.slane %v2133, 4
      %v2135 = vrot.slane %v1051, 5
      %v2136 = vsel %vm2076, %v2134, %v2135
      %v2137 = vrot.slane %v2135, 4
      %v2138 = vrot.slane %v1075, 5
      %v2139 = vsel %vm2076, %v2137, %v2138
      %v2140 = vrot.slane %v2035, 5
      %v2141 = vrot.slane %v2140, 4
      %v2142 = vrot.slane %v1053, 5
      %v2143 = vsel %vm2076, %v2141, %v2142
      %v2144 = vrot.slane %v2142, 4
      %v2145 = vrot.slane %v1076, 5
      %v2146 = vsel %vm2076, %v2144, %v2145
      %v2147 = vrot.slane %v2036, 5
      %v2148 = vrot.slane %v2147, 4
      %v2149 = vrot.slane %v1055, 5
      %v2150 = vsel %vm2076, %v2148, %v2149
      %v2151 = vrot.slane %v2149, 4
      %v2152 = vrot.slane %v1077, 5
      %v2153 = vsel %vm2076, %v2151, %v2152
      %v2154 = vrot.slane %v2037, 5
      %v2155 = vrot.slane %v2154, 4
      %v2156 = vrot.slane %v1057, 5
      %v2157 = vsel %vm2076, %v2155, %v2156
      %v2158 = vrot.slane %v2156, 4
      %v2159 = vrot.slane %v1078, 5
      %v2160 = vsel %vm2076, %v2158, %v2159
      %v2161 = vrot.slane %v2038, 5
      %v2162 = vrot.slane %v2161, 4
      %v2163 = vrot.slane %v1059, 5
      %v2164 = vsel %vm2076, %v2162, %v2163
      %v2165 = vrot.slane %v2163, 4
      %v2166 = vrot.slane %v1079, 5
      %v2167 = vsel %vm2076, %v2165, %v2166
      %v2168 = vrot.slane %v2039, 5
      %v2169 = vrot.slane %v2168, 4
      %v2170 = vrot.slane %v1061, 5
      %v2171 = vsel %vm2076, %v2169, %v2170
      %v2172 = vrot.slane %v2170, 4
      %v2173 = vrot.slane %v1080, 5
      %v2174 = vsel %vm2076, %v2172, %v2173
      %v2175 = vrot.slane %v2040, 5
      %v2176 = vrot.slane %v2175, 4
      %v2177 = vrot.slane %v1063, 5
      %v2178 = vsel %vm2076, %v2176, %v2177
      %v2179 = vrot.slane %v2177, 4
      %v2180 = vrot.slane %v1081, 5
      %v2181 = vsel %vm2076, %v2179, %v2180
      %v2182 = vrot.slane %v2041, 5
      %v2183 = vrot.slane %v2182, 4
      %v2184 = vrot.slane %v1065, 5
      %v2185 = vsel %vm2076, %v2183, %v2184
      %v2186 = vrot.slane %v2184, 4
      %v2187 = vrot.slane %v1082, 5
      %v2188 = vsel %vm2076, %v2186, %v2187
      %s2189 = scalar_lea.vmem %s3, 8
      %v2190 = vld [vmem:[%s2189] sm:$0xf]
      %v2191 = vunpack.c.l.b16 %v2080
      %v2192 = vunpack.c.l.b16 %v2083
      %v2193 = vunpack.c.l.b16 %v2087
      %v2194 = vunpack.c.l.b16 %v2090
      %v2195 = vunpack.c.l.b16 %v2094
      %v2196 = vunpack.c.l.b16 %v2097
      %v2197 = vunpack.c.l.b16 %v2101
      %v2198 = vunpack.c.l.b16 %v2104
      %v2199 = vunpack.c.l.b16 %v2108
      %v2200 = vunpack.c.l.b16 %v2111
      %v2201 = vunpack.c.l.b16 %v2115
      %v2202 = vunpack.c.l.b16 %v2118
      %v2203 = vunpack.c.l.b16 %v2122
      %v2204 = vunpack.c.l.b16 %v2125
      %v2205 = vunpack.c.l.b16 %v2129
      %v2206 = vunpack.c.l.b16 %v2132
      %v2207 = vunpack.c.l.b16 %v2136
      %v2208 = vunpack.c.l.b16 %v2139
      %v2209 = vunpack.c.l.b16 %v2143
      %v2210 = vunpack.c.l.b16 %v2146
      %v2211 = vunpack.c.l.b16 %v2150
      %v2212 = vunpack.c.l.b16 %v2153
      %v2213 = vunpack.c.l.b16 %v2157
      %v2214 = vunpack.c.l.b16 %v2160
      %v2215 = vunpack.c.l.b16 %v2164
      %v2216 = vunpack.c.l.b16 %v2167
      %v2217 = vunpack.c.l.b16 %v2171
      %v2218 = vunpack.c.l.b16 %v2174
      %v2219 = vunpack.c.l.b16 %v2178
      %v2220 = vunpack.c.l.b16 %v2181
      %v2221 = vunpack.c.l.b16 %v2185
      %v2222 = vunpack.c.l.b16 %v2188
      %v2223 = vpack.c.b16 %v2192, %v2191
      %v2224 = vpack.c.b16 %v2194, %v2193
      %v2225 = vpack.c.b16 %v2196, %v2195
      %v2226 = vpack.c.b16 %v2198, %v2197
      %v2227 = vpack.c.b16 %v2200, %v2199
      %v2228 = vpack.c.b16 %v2202, %v2201
      %v2229 = vpack.c.b16 %v2204, %v2203
      %v2230 = vpack.c.b16 %v2206, %v2205
      %v2231 = vpack.c.b16 %v2208, %v2207
      %v2232 = vpack.c.b16 %v2210, %v2209
      %v2233 = vpack.c.b16 %v2212, %v2211
      %v2234 = vpack.c.b16 %v2214, %v2213
      %v2235 = vpack.c.b16 %v2216, %v2215
      %v2236 = vpack.c.b16 %v2218, %v2217
      %v2237 = vpack.c.b16 %v2220, %v2219
      %v2238 = vpack.c.b16 %v2222, %v2221
      %v2240 = vsel %vm1520, %v2223, 0
      %v2243 = vsel %vm1520, %v2224, 0
      %v2246 = vsel %vm1520, %v2225, 0
      %v2249 = vsel %vm1520, %v2226, 0
      %v2252 = vsel %vm1520, %v2227, 0
      %v2255 = vsel %vm1520, %v2228, 0
      %v2258 = vsel %vm1520, %v2229, 0
      %v2261 = vsel %vm1520, %v2230, 0
      %v2264 = vsel %vm1520, %v2231, 0
      %v2267 = vsel %vm1520, %v2232, 0
      %v2270 = vsel %vm1520, %v2233, 0
      %v2273 = vsel %vm1520, %v2234, 0
      %v2276 = vsel %vm1520, %v2235, 0
      %v2279 = vsel %vm1520, %v2236, 0
      %v2282 = vsel %vm1520, %v2237, 0
      %v2285 = vsel %vm1520, %v2238, 0
      %v2288 = vsel %vm1569, %v2190, 0
      %2290 = vmatprep.subr.bf16.mxu0 0
      %2291 = vmatpush1.bf16.msra.mxu0 0
      %2292 = vmatprep.subr.bf16.mxu0 0
      %2293 = vmatpush1.bf16.msra.mxu0 0
      %2294 = vmatprep.subr.bf16.mxu0 0
      %2295 = vmatpush1.bf16.msra.mxu0 0
      %2296 = vmatprep.subr.bf16.mxu0 0
      %2297 = vmatpush1.bf16.msra.mxu0 0
      %2298 = vmatprep.subr.bf16.mxu0 0
      %2299 = vmatpush1.bf16.msra.mxu0 0
      %2300 = vmatprep.subr.bf16.mxu0 0
      %2301 = vmatpush1.bf16.msra.mxu0 0
      %2302 = vmatprep.subr.bf16.mxu0 0
      %2303 = vmatpush1.bf16.msra.mxu0 0
      %2304 = vmatprep.subr.bf16.mxu0 0
      %2305 = vmatpush1.bf16.msra.mxu0 %v2288
      %2306 = vmatprep.subr.bf16.mxu0 0
      %2307 = vmatpush2.bf16.msra.mxu0 0
      %2308 = vmatprep.subr.bf16.mxu0 0
      %2309 = vmatpush2.bf16.msra.mxu0 0
      %2310 = vmatprep.subr.bf16.mxu0 0
      %2311 = vmatpush2.bf16.msra.mxu0 0
      %2312 = vmatprep.subr.bf16.mxu0 0
      %2313 = vmatpush2.bf16.msra.mxu0 0
      %2314 = vmatprep.subr.bf16.mxu0 0
      %2315 = vmatpush2.bf16.msra.mxu0 0
      %2316 = vmatprep.subr.bf16.mxu0 0
      %2317 = vmatpush2.bf16.msra.mxu0 0
      %2318 = vmatprep.subr.bf16.mxu0 0
      %2319 = vmatpush2.bf16.msra.mxu0 0
      %2320 = vmatprep.subr.bf16.mxu0 0
      %2321 = vmatpush2.bf16.msra.mxu0 0
      %2322 = vmatprep.mubr.bf16.mxu0 0
      %2323 = vmatmul.mubr.bf16.gmra.mxu0 %v2240
      %v2324 = vpop.f32.mrf.mxu0
      %v2325 = vadd.f32 0.0, %v2324
      %v2326 = vpop.f32.mrf.mxu0
      %v2327 = vpop.f32.mrf.mxu0
      %v2328 = vadd.f32 0.0, %v2327
      %v2329 = vpop.f32.mrf.mxu0
      %2330 = vmatprep.mubr.bf16.mxu0 0
      %2331 = vmatmul.mubr.bf16.gmra.mxu0 %v2243
      %v2332 = vpop.f32.mrf.mxu0
      %v2333 = vadd.f32 0.0, %v2332
      %v2334 = vpop.f32.mrf.mxu0
      %v2335 = vpop.f32.mrf.mxu0
      %v2336 = vadd.f32 0.0, %v2335
      %v2337 = vpop.f32.mrf.mxu0
      %2338 = vmatprep.mubr.bf16.mxu0 0
      %2339 = vmatmul.mubr.bf16.gmra.mxu0 %v2246
      %v2340 = vpop.f32.mrf.mxu0
      %v2341 = vadd.f32 0.0, %v2340
      %v2342 = vpop.f32.mrf.mxu0
      %v2343 = vpop.f32.mrf.mxu0
      %v2344 = vadd.f32 0.0, %v2343
      %v2345 = vpop.f32.mrf.mxu0
      %2346 = vmatprep.mubr.bf16.mxu0 0
      %2347 = vmatmul.mubr.bf16.gmra.mxu0 %v2249
      %v2348 = vpop.f32.mrf.mxu0
      %v2349 = vadd.f32 0.0, %v2348
      %v2350 = vpop.f32.mrf.mxu0
      %v2351 = vpop.f32.mrf.mxu0
      %v2352 = vadd.f32 0.0, %v2351
      %v2353 = vpop.f32.mrf.mxu0
      %2354 = vmatprep.mubr.bf16.mxu0 0
      %2355 = vmatmul.mubr.bf16.gmra.mxu0 %v2252
      %v2356 = vpop.f32.mrf.mxu0
      %v2357 = vadd.f32 0.0, %v2356
      %v2358 = vpop.f32.mrf.mxu0
      %v2359 = vpop.f32.mrf.mxu0
      %v2360 = vadd.f32 0.0, %v2359
      %v2361 = vpop.f32.mrf.mxu0
      %2362 = vmatprep.mubr.bf16.mxu0 0
      %2363 = vmatmul.mubr.bf16.gmra.mxu0 %v2255
      %v2364 = vpop.f32.mrf.mxu0
      %v2365 = vadd.f32 0.0, %v2364
      %v2366 = vpop.f32.mrf.mxu0
      %v2367 = vpop.f32.mrf.mxu0
      %v2368 = vadd.f32 0.0, %v2367
      %v2369 = vpop.f32.mrf.mxu0
      %2370 = vmatprep.mubr.bf16.mxu0 0
      %2371 = vmatmul.mubr.bf16.gmra.mxu0 %v2258
      %v2372 = vpop.f32.mrf.mxu0
      %v2373 = vadd.f32 0.0, %v2372
      %v2374 = vpop.f32.mrf.mxu0
      %v2375 = vpop.f32.mrf.mxu0
      %v2376 = vadd.f32 0.0, %v2375
      %v2377 = vpop.f32.mrf.mxu0
      %2378 = vmatprep.mubr.bf16.mxu0 0
      %2379 = vmatmul.mubr.bf16.gmra.mxu0 %v2261
      %v2380 = vpop.f32.mrf.mxu0
      %v2381 = vadd.f32 0.0, %v2380
      %v2382 = vpop.f32.mrf.mxu0
      %v2383 = vpop.f32.mrf.mxu0
      %v2384 = vadd.f32 0.0, %v2383
      %v2385 = vpop.f32.mrf.mxu0
      %2386 = vmatprep.mubr.bf16.mxu0 0
      %2387 = vmatmul.mubr.bf16.gmra.mxu0 %v2264
      %v2388 = vpop.f32.mrf.mxu0
      %v2389 = vadd.f32 0.0, %v2388
      %v2390 = vpop.f32.mrf.mxu0
      %v2391 = vpop.f32.mrf.mxu0
      %v2392 = vadd.f32 0.0, %v2391
      %v2393 = vpop.f32.mrf.mxu0
      %2394 = vmatprep.mubr.bf16.mxu0 0
      %2395 = vmatmul.mubr.bf16.gmra.mxu0 %v2267
      %v2396 = vpop.f32.mrf.mxu0
      %v2397 = vadd.f32 0.0, %v2396
      %v2398 = vpop.f32.mrf.mxu0
      %v2399 = vpop.f32.mrf.mxu0
      %v2400 = vadd.f32 0.0, %v2399
      %v2401 = vpop.f32.mrf.mxu0
      %2402 = vmatprep.mubr.bf16.mxu0 0
      %2403 = vmatmul.mubr.bf16.gmra.mxu0 %v2270
      %v2404 = vpop.f32.mrf.mxu0
      %v2405 = vadd.f32 0.0, %v2404
      %v2406 = vpop.f32.mrf.mxu0
      %v2407 = vpop.f32.mrf.mxu0
      %v2408 = vadd.f32 0.0, %v2407
      %v2409 = vpop.f32.mrf.mxu0
      %2410 = vmatprep.mubr.bf16.mxu0 0
      %2411 = vmatmul.mubr.bf16.gmra.mxu0 %v2273
      %v2412 = vpop.f32.mrf.mxu0
      %v2413 = vadd.f32 0.0, %v2412
      %v2414 = vpop.f32.mrf.mxu0
      %v2415 = vpop.f32.mrf.mxu0
      %v2416 = vadd.f32 0.0, %v2415
      %v2417 = vpop.f32.mrf.mxu0
      %2418 = vmatprep.mubr.bf16.mxu0 0
      %2419 = vmatmul.mubr.bf16.gmra.mxu0 %v2276
      %v2420 = vpop.f32.mrf.mxu0
      %v2421 = vadd.f32 0.0, %v2420
      %v2422 = vpop.f32.mrf.mxu0
      %v2423 = vpop.f32.mrf.mxu0
      %v2424 = vadd.f32 0.0, %v2423
      %v2425 = vpop.f32.mrf.mxu0
      %2426 = vmatprep.mubr.bf16.mxu0 0
      %2427 = vmatmul.mubr.bf16.gmra.mxu0 %v2279
      %v2428 = vpop.f32.mrf.mxu0
      %v2429 = vadd.f32 0.0, %v2428
      %v2430 = vpop.f32.mrf.mxu0
      %v2431 = vpop.f32.mrf.mxu0
      %v2432 = vadd.f32 0.0, %v2431
      %v2433 = vpop.f32.mrf.mxu0
      %2434 = vmatprep.mubr.bf16.mxu0 0
      %2435 = vmatmul.mubr.bf16.gmra.mxu0 %v2282
      %v2436 = vpop.f32.mrf.mxu0
      %v2437 = vadd.f32 0.0, %v2436
      %v2438 = vpop.f32.mrf.mxu0
      %v2439 = vpop.f32.mrf.mxu0
      %v2440 = vadd.f32 0.0, %v2439
      %v2441 = vpop.f32.mrf.mxu0
      %2442 = vmatprep.mubr.bf16.mxu0 0
      %2443 = vmatmul.mubr.bf16.gmra.mxu0 %v2285
      %v2444 = vpop.f32.mrf.mxu0
      %v2445 = vadd.f32 0.0, %v2444
      %v2446 = vpop.f32.mrf.mxu0
      %v2447 = vpop.f32.mrf.mxu0
      %v2448 = vadd.f32 0.0, %v2447
      %v2449 = vpop.f32.mrf.mxu0
      %2450 = vdwg.mxu0
      %v2451 = vadd.f32 %v1900, %v2325
      %v2452 = vadd.f32 %v1903, %v2328
      %v2453 = vadd.f32 %v1908, %v2333
      %v2454 = vadd.f32 %v1911, %v2336
      %v2455 = vadd.f32 %v1916, %v2341
      %v2456 = vadd.f32 %v1919, %v2344
      %v2457 = vadd.f32 %v1924, %v2349
      %v2458 = vadd.f32 %v1927, %v2352
      %v2459 = vadd.f32 %v1932, %v2357
      %v2460 = vadd.f32 %v1935, %v2360
      %v2461 = vadd.f32 %v1940, %v2365
      %v2462 = vadd.f32 %v1943, %v2368
      %v2463 = vadd.f32 %v1948, %v2373
      %v2464 = vadd.f32 %v1951, %v2376
      %v2465 = vadd.f32 %v1956, %v2381
      %v2466 = vadd.f32 %v1959, %v2384
      %v2467 = vadd.f32 %v1964, %v2389
      %v2468 = vadd.f32 %v1967, %v2392
      %v2469 = vadd.f32 %v1972, %v2397
      %v2470 = vadd.f32 %v1975, %v2400
      %v2471 = vadd.f32 %v1980, %v2405
      %v2472 = vadd.f32 %v1983, %v2408
      %v2473 = vadd.f32 %v1988, %v2413
      %v2474 = vadd.f32 %v1991, %v2416
      %v2475 = vadd.f32 %v1996, %v2421
      %v2476 = vadd.f32 %v1999, %v2424
      %v2477 = vadd.f32 %v2004, %v2429
      %v2478 = vadd.f32 %v2007, %v2432
      %v2479 = vadd.f32 %v2012, %v2437
      %v2480 = vadd.f32 %v2015, %v2440
      %v2481 = vadd.f32 %v2020, %v2445
      %v2482 = vadd.f32 %v2023, %v2448
      %v2483 = vld [vmem:[%s919] sm:$0xf]
      %v2484 = vld [vmem:[%s919 + $0x4] sm:$0xf]
      %v2485 = vld [vmem:[%s919 + $0xc] sm:$0xf]
      %v2486 = vld [vmem:[%s919 + $0x10] sm:$0xf]
      %v2487 = vld [vmem:[%s919 + $0x18] sm:$0xf]
      %v2488 = vld [vmem:[%s919 + $0x1c] sm:$0xf]
      %v2489 = vld [vmem:[%s919 + $0x24] sm:$0xf]
      %v2490 = vld [vmem:[%s919 + $0x28] sm:$0xf]
      %v2491 = vld [vmem:[%s919 + $0x30] sm:$0xf]
      %v2492 = vld [vmem:[%s919 + $0x34] sm:$0xf]
      %v2493 = vld [vmem:[%s919 + $0x3c] sm:$0xf]
      %v2494 = vld [vmem:[%s919 + $0x40] sm:$0xf]
      %v2495 = vld [vmem:[%s919 + $0x48] sm:$0xf]
      %v2496 = vld [vmem:[%s919 + $0x4c] sm:$0xf]
      %v2497 = vld [vmem:[%s919 + $0x54] sm:$0xf]
      %v2498 = vld [vmem:[%s919 + $0x58] sm:$0xf]
      %v2499 = vld [vmem:[%s919 + $0x60] sm:$0xf]
      %v2500 = vld [vmem:[%s919 + $0x64] sm:$0xf]
      %v2501 = vld [vmem:[%s919 + $0x6c] sm:$0xf]
      %v2502 = vld [vmem:[%s919 + $0x70] sm:$0xf]
      %v2503 = vld [vmem:[%s919 + $0x78] sm:$0xf]
      %v2504 = vld [vmem:[%s919 + $0x7c] sm:$0xf]
      %v2505 = vld [vmem:[%s919 + $0x84] sm:$0xf]
      %v2506 = vld [vmem:[%s919 + $0x88] sm:$0xf]
      %v2507 = vld [vmem:[%s919 + $0x90] sm:$0xf]
      %v2508 = vld [vmem:[%s919 + $0x94] sm:$0xf]
      %v2509 = vld [vmem:[%s919 + $0x9c] sm:$0xf]
      %v2510 = vld [vmem:[%s919 + $0xa0] sm:$0xf]
      %v2511 = vld [vmem:[%s919 + $0xa8] sm:$0xf]
      %v2512 = vld [vmem:[%s919 + $0xac] sm:$0xf]
      %v2513 = vld [vmem:[%s919 + $0xb4] sm:$0xf]
      %v2514 = vld [vmem:[%s919 + $0xb8] sm:$0xf]
      %s2515 = scalar_lea.vmem %s3, 12
      %v2516 = vld [vmem:[%s2515] sm:$0xf]
      %v2549 = vunpack.c.l.b16 %v2483
      %v2550 = vunpack.c.l.b16 %v2484
      %v2551 = vunpack.c.l.b16 %v2485
      %v2552 = vunpack.c.l.b16 %v2486
      %v2553 = vunpack.c.l.b16 %v2487
      %v2554 = vunpack.c.l.b16 %v2488
      %v2555 = vunpack.c.l.b16 %v2489
      %v2556 = vunpack.c.l.b16 %v2490
      %v2557 = vunpack.c.l.b16 %v2491
      %v2558 = vunpack.c.l.b16 %v2492
      %v2559 = vunpack.c.l.b16 %v2493
      %v2560 = vunpack.c.l.b16 %v2494
      %v2561 = vunpack.c.l.b16 %v2495
      %v2562 = vunpack.c.l.b16 %v2496
      %v2563 = vunpack.c.l.b16 %v2497
      %v2564 = vunpack.c.l.b16 %v2498
      %v2565 = vunpack.c.l.b16 %v2499
      %v2566 = vunpack.c.l.b16 %v2500
      %v2567 = vunpack.c.l.b16 %v2501
      %v2568 = vunpack.c.l.b16 %v2502
      %v2569 = vunpack.c.l.b16 %v2503
      %v2570 = vunpack.c.l.b16 %v2504
      %v2571 = vunpack.c.l.b16 %v2505
      %v2572 = vunpack.c.l.b16 %v2506
      %v2573 = vunpack.c.l.b16 %v2507
      %v2574 = vunpack.c.l.b16 %v2508
      %v2575 = vunpack.c.l.b16 %v2509
      %v2576 = vunpack.c.l.b16 %v2510
      %v2577 = vunpack.c.l.b16 %v2511
      %v2578 = vunpack.c.l.b16 %v2512
      %v2579 = vunpack.c.l.b16 %v2513
      %v2580 = vunpack.c.l.b16 %v2514
      %v2581 = vpack.c.b16 %v2550, %v2549
      %v2582 = vpack.c.b16 %v2552, %v2551
      %v2583 = vpack.c.b16 %v2554, %v2553
      %v2584 = vpack.c.b16 %v2556, %v2555
      %v2585 = vpack.c.b16 %v2558, %v2557
      %v2586 = vpack.c.b16 %v2560, %v2559
      %v2587 = vpack.c.b16 %v2562, %v2561
      %v2588 = vpack.c.b16 %v2564, %v2563
      %v2589 = vpack.c.b16 %v2566, %v2565
      %v2590 = vpack.c.b16 %v2568, %v2567
      %v2591 = vpack.c.b16 %v2570, %v2569
      %v2592 = vpack.c.b16 %v2572, %v2571
      %v2593 = vpack.c.b16 %v2574, %v2573
      %v2594 = vpack.c.b16 %v2576, %v2575
      %v2595 = vpack.c.b16 %v2578, %v2577
      %v2596 = vpack.c.b16 %v2580, %v2579
      %v2598 = vsel %vm1520, %v2581, 0
      %v2601 = vsel %vm1520, %v2582, 0
      %v2604 = vsel %vm1520, %v2583, 0
      %v2607 = vsel %vm1520, %v2584, 0
      %v2610 = vsel %vm1520, %v2585, 0
      %v2613 = vsel %vm1520, %v2586, 0
      %v2616 = vsel %vm1520, %v2587, 0
      %v2619 = vsel %vm1520, %v2588, 0
      %v2622 = vsel %vm1520, %v2589, 0
      %v2625 = vsel %vm1520, %v2590, 0
      %v2628 = vsel %vm1520, %v2591, 0
      %v2631 = vsel %vm1520, %v2592, 0
      %v2634 = vsel %vm1520, %v2593, 0
      %v2637 = vsel %vm1520, %v2594, 0
      %v2640 = vsel %vm1520, %v2595, 0
      %v2643 = vsel %vm1520, %v2596, 0
      %v2646 = vsel %vm1569, %v2516, 0
      %2648 = vmatprep.subr.bf16.mxu0 0
      %2649 = vmatpush1.bf16.msra.mxu0 0
      %2650 = vmatprep.subr.bf16.mxu0 0
      %2651 = vmatpush1.bf16.msra.mxu0 0
      %2652 = vmatprep.subr.bf16.mxu0 0
      %2653 = vmatpush1.bf16.msra.mxu0 0
      %2654 = vmatprep.subr.bf16.mxu0 0
      %2655 = vmatpush1.bf16.msra.mxu0 0
      %2656 = vmatprep.subr.bf16.mxu0 0
      %2657 = vmatpush1.bf16.msra.mxu0 0
      %2658 = vmatprep.subr.bf16.mxu0 0
      %2659 = vmatpush1.bf16.msra.mxu0 0
      %2660 = vmatprep.subr.bf16.mxu0 0
      %2661 = vmatpush1.bf16.msra.mxu0 0
      %2662 = vmatprep.subr.bf16.mxu0 0
      %2663 = vmatpush1.bf16.msra.mxu0 %v2646
      %2664 = vmatprep.subr.bf16.mxu0 0
      %2665 = vmatpush2.bf16.msra.mxu0 0
      %2666 = vmatprep.subr.bf16.mxu0 0
      %2667 = vmatpush2.bf16.msra.mxu0 0
      %2668 = vmatprep.subr.bf16.mxu0 0
      %2669 = vmatpush2.bf16.msra.mxu0 0
      %2670 = vmatprep.subr.bf16.mxu0 0
      %2671 = vmatpush2.bf16.msra.mxu0 0
      %2672 = vmatprep.subr.bf16.mxu0 0
      %2673 = vmatpush2.bf16.msra.mxu0 0
      %2674 = vmatprep.subr.bf16.mxu0 0
      %2675 = vmatpush2.bf16.msra.mxu0 0
      %2676 = vmatprep.subr.bf16.mxu0 0
      %2677 = vmatpush2.bf16.msra.mxu0 0
      %2678 = vmatprep.subr.bf16.mxu0 0
      %2679 = vmatpush2.bf16.msra.mxu0 0
      %2680 = vmatprep.mubr.bf16.mxu0 0
      %2681 = vmatmul.mubr.bf16.gmra.mxu0 %v2598
      %v2682 = vpop.f32.mrf.mxu0
      %v2683 = vadd.f32 0.0, %v2682
      %v2684 = vpop.f32.mrf.mxu0
      %v2685 = vpop.f32.mrf.mxu0
      %v2686 = vadd.f32 0.0, %v2685
      %v2687 = vpop.f32.mrf.mxu0
      %2688 = vmatprep.mubr.bf16.mxu0 0
      %2689 = vmatmul.mubr.bf16.gmra.mxu0 %v2601
      %v2690 = vpop.f32.mrf.mxu0
      %v2691 = vadd.f32 0.0, %v2690
      %v2692 = vpop.f32.mrf.mxu0
      %v2693 = vpop.f32.mrf.mxu0
      %v2694 = vadd.f32 0.0, %v2693
      %v2695 = vpop.f32.mrf.mxu0
      %2696 = vmatprep.mubr.bf16.mxu0 0
      %2697 = vmatmul.mubr.bf16.gmra.mxu0 %v2604
      %v2698 = vpop.f32.mrf.mxu0
      %v2699 = vadd.f32 0.0, %v2698
      %v2700 = vpop.f32.mrf.mxu0
      %v2701 = vpop.f32.mrf.mxu0
      %v2702 = vadd.f32 0.0, %v2701
      %v2703 = vpop.f32.mrf.mxu0
      %2704 = vmatprep.mubr.bf16.mxu0 0
      %2705 = vmatmul.mubr.bf16.gmra.mxu0 %v2607
      %v2706 = vpop.f32.mrf.mxu0
      %v2707 = vadd.f32 0.0, %v2706
      %v2708 = vpop.f32.mrf.mxu0
      %v2709 = vpop.f32.mrf.mxu0
      %v2710 = vadd.f32 0.0, %v2709
      %v2711 = vpop.f32.mrf.mxu0
      %2712 = vmatprep.mubr.bf16.mxu0 0
      %2713 = vmatmul.mubr.bf16.gmra.mxu0 %v2610
      %v2714 = vpop.f32.mrf.mxu0
      %v2715 = vadd.f32 0.0, %v2714
      %v2716 = vpop.f32.mrf.mxu0
      %v2717 = vpop.f32.mrf.mxu0
      %v2718 = vadd.f32 0.0, %v2717
      %v2719 = vpop.f32.mrf.mxu0
      %2720 = vmatprep.mubr.bf16.mxu0 0
      %2721 = vmatmul.mubr.bf16.gmra.mxu0 %v2613
      %v2722 = vpop.f32.mrf.mxu0
      %v2723 = vadd.f32 0.0, %v2722
      %v2724 = vpop.f32.mrf.mxu0
      %v2725 = vpop.f32.mrf.mxu0
      %v2726 = vadd.f32 0.0, %v2725
      %v2727 = vpop.f32.mrf.mxu0
      %2728 = vmatprep.mubr.bf16.mxu0 0
      %2729 = vmatmul.mubr.bf16.gmra.mxu0 %v2616
      %v2730 = vpop.f32.mrf.mxu0
      %v2731 = vadd.f32 0.0, %v2730
      %v2732 = vpop.f32.mrf.mxu0
      %v2733 = vpop.f32.mrf.mxu0
      %v2734 = vadd.f32 0.0, %v2733
      %v2735 = vpop.f32.mrf.mxu0
      %2736 = vmatprep.mubr.bf16.mxu0 0
      %2737 = vmatmul.mubr.bf16.gmra.mxu0 %v2619
      %v2738 = vpop.f32.mrf.mxu0
      %v2739 = vadd.f32 0.0, %v2738
      %v2740 = vpop.f32.mrf.mxu0
      %v2741 = vpop.f32.mrf.mxu0
      %v2742 = vadd.f32 0.0, %v2741
      %v2743 = vpop.f32.mrf.mxu0
      %2744 = vmatprep.mubr.bf16.mxu0 0
      %2745 = vmatmul.mubr.bf16.gmra.mxu0 %v2622
      %v2746 = vpop.f32.mrf.mxu0
      %v2747 = vadd.f32 0.0, %v2746
      %v2748 = vpop.f32.mrf.mxu0
      %v2749 = vpop.f32.mrf.mxu0
      %v2750 = vadd.f32 0.0, %v2749
      %v2751 = vpop.f32.mrf.mxu0
      %2752 = vmatprep.mubr.bf16.mxu0 0
      %2753 = vmatmul.mubr.bf16.gmra.mxu0 %v2625
      %v2754 = vpop.f32.mrf.mxu0
      %v2755 = vadd.f32 0.0, %v2754
      %v2756 = vpop.f32.mrf.mxu0
      %v2757 = vpop.f32.mrf.mxu0
      %v2758 = vadd.f32 0.0, %v2757
      %v2759 = vpop.f32.mrf.mxu0
      %2760 = vmatprep.mubr.bf16.mxu0 0
      %2761 = vmatmul.mubr.bf16.gmra.mxu0 %v2628
      %v2762 = vpop.f32.mrf.mxu0
      %v2763 = vadd.f32 0.0, %v2762
      %v2764 = vpop.f32.mrf.mxu0
      %v2765 = vpop.f32.mrf.mxu0
      %v2766 = vadd.f32 0.0, %v2765
      %v2767 = vpop.f32.mrf.mxu0
      %2768 = vmatprep.mubr.bf16.mxu0 0
      %2769 = vmatmul.mubr.bf16.gmra.mxu0 %v2631
      %v2770 = vpop.f32.mrf.mxu0
      %v2771 = vadd.f32 0.0, %v2770
      %v2772 = vpop.f32.mrf.mxu0
      %v2773 = vpop.f32.mrf.mxu0
      %v2774 = vadd.f32 0.0, %v2773
      %v2775 = vpop.f32.mrf.mxu0
      %2776 = vmatprep.mubr.bf16.mxu0 0
      %2777 = vmatmul.mubr.bf16.gmra.mxu0 %v2634
      %v2778 = vpop.f32.mrf.mxu0
      %v2779 = vadd.f32 0.0, %v2778
      %v2780 = vpop.f32.mrf.mxu0
      %v2781 = vpop.f32.mrf.mxu0
      %v2782 = vadd.f32 0.0, %v2781
      %v2783 = vpop.f32.mrf.mxu0
      %2784 = vmatprep.mubr.bf16.mxu0 0
      %2785 = vmatmul.mubr.bf16.gmra.mxu0 %v2637
      %v2786 = vpop.f32.mrf.mxu0
      %v2787 = vadd.f32 0.0, %v2786
      %v2788 = vpop.f32.mrf.mxu0
      %v2789 = vpop.f32.mrf.mxu0
      %v2790 = vadd.f32 0.0, %v2789
      %v2791 = vpop.f32.mrf.mxu0
      %2792 = vmatprep.mubr.bf16.mxu0 0
      %2793 = vmatmul.mubr.bf16.gmra.mxu0 %v2640
      %v2794 = vpop.f32.mrf.mxu0
      %v2795 = vadd.f32 0.0, %v2794
      %v2796 = vpop.f32.mrf.mxu0
      %v2797 = vpop.f32.mrf.mxu0
      %v2798 = vadd.f32 0.0, %v2797
      %v2799 = vpop.f32.mrf.mxu0
      %2800 = vmatprep.mubr.bf16.mxu0 0
      %2801 = vmatmul.mubr.bf16.gmra.mxu0 %v2643
      %v2802 = vpop.f32.mrf.mxu0
      %v2803 = vadd.f32 0.0, %v2802
      %v2804 = vpop.f32.mrf.mxu0
      %v2805 = vpop.f32.mrf.mxu0
      %v2806 = vadd.f32 0.0, %v2805
      %v2807 = vpop.f32.mrf.mxu0
      %2808 = vdwg.mxu0
      %v2809 = vadd.f32 %v2451, %v2683
      %v2810 = vadd.f32 %v2452, %v2686
      %v2811 = vadd.f32 %v2453, %v2691
      %v2812 = vadd.f32 %v2454, %v2694
      %v2813 = vadd.f32 %v2455, %v2699
      %v2814 = vadd.f32 %v2456, %v2702
      %v2815 = vadd.f32 %v2457, %v2707
      %v2816 = vadd.f32 %v2458, %v2710
      %v2817 = vadd.f32 %v2459, %v2715
      %v2818 = vadd.f32 %v2460, %v2718
      %v2819 = vadd.f32 %v2461, %v2723
      %v2820 = vadd.f32 %v2462, %v2726
      %v2821 = vadd.f32 %v2463, %v2731
      %v2822 = vadd.f32 %v2464, %v2734
      %v2823 = vadd.f32 %v2465, %v2739
      %v2824 = vadd.f32 %v2466, %v2742
      %v2825 = vadd.f32 %v2467, %v2747
      %v2826 = vadd.f32 %v2468, %v2750
      %v2827 = vadd.f32 %v2469, %v2755
      %v2828 = vadd.f32 %v2470, %v2758
      %v2829 = vadd.f32 %v2471, %v2763
      %v2830 = vadd.f32 %v2472, %v2766
      %v2831 = vadd.f32 %v2473, %v2771
      %v2832 = vadd.f32 %v2474, %v2774
      %v2833 = vadd.f32 %v2475, %v2779
      %v2834 = vadd.f32 %v2476, %v2782
      %v2835 = vadd.f32 %v2477, %v2787
      %v2836 = vadd.f32 %v2478, %v2790
      %v2837 = vadd.f32 %v2479, %v2795
      %v2838 = vadd.f32 %v2480, %v2798
      %v2839 = vadd.f32 %v2481, %v2803
      %v2840 = vadd.f32 %v2482, %v2806
      %v2841 = vld [vmem:[%s919] sm:$0xf]
      %v2842 = vld [vmem:[%s919 + $0x4] sm:$0xf]
      %v2843 = vld [vmem:[%s919 + $0x8] sm:$0x1]
      %v2844 = vld [vmem:[%s919 + $0xc] sm:$0xf]
      %v2845 = vld [vmem:[%s919 + $0x10] sm:$0xf]
      %v2846 = vld [vmem:[%s919 + $0x14] sm:$0x1]
      %v2847 = vld [vmem:[%s919 + $0x18] sm:$0xf]
      %v2848 = vld [vmem:[%s919 + $0x1c] sm:$0xf]
      %v2849 = vld [vmem:[%s919 + $0x20] sm:$0x1]
      %v2850 = vld [vmem:[%s919 + $0x24] sm:$0xf]
      %v2851 = vld [vmem:[%s919 + $0x28] sm:$0xf]
      %v2852 = vld [vmem:[%s919 + $0x2c] sm:$0x1]
      %v2853 = vld [vmem:[%s919 + $0x30] sm:$0xf]
      %v2854 = vld [vmem:[%s919 + $0x34] sm:$0xf]
      %v2855 = vld [vmem:[%s919 + $0x38] sm:$0x1]
      %v2856 = vld [vmem:[%s919 + $0x3c] sm:$0xf]
      %v2857 = vld [vmem:[%s919 + $0x40] sm:$0xf]
      %v2858 = vld [vmem:[%s919 + $0x44] sm:$0x1]
      %v2859 = vld [vmem:[%s919 + $0x48] sm:$0xf]
      %v2860 = vld [vmem:[%s919 + $0x4c] sm:$0xf]
      %v2861 = vld [vmem:[%s919 + $0x50] sm:$0x1]
      %v2862 = vld [vmem:[%s919 + $0x54] sm:$0xf]
      %v2863 = vld [vmem:[%s919 + $0x58] sm:$0xf]
      %v2864 = vld [vmem:[%s919 + $0x5c] sm:$0x1]
      %v2865 = vld [vmem:[%s919 + $0x60] sm:$0xf]
      %v2866 = vld [vmem:[%s919 + $0x64] sm:$0xf]
      %v2867 = vld [vmem:[%s919 + $0x68] sm:$0x1]
      %v2868 = vld [vmem:[%s919 + $0x6c] sm:$0xf]
      %v2869 = vld [vmem:[%s919 + $0x70] sm:$0xf]
      %v2870 = vld [vmem:[%s919 + $0x74] sm:$0x1]
      %v2871 = vld [vmem:[%s919 + $0x78] sm:$0xf]
      %v2872 = vld [vmem:[%s919 + $0x7c] sm:$0xf]
      %v2873 = vld [vmem:[%s919 + $0x80] sm:$0x1]
      %v2874 = vld [vmem:[%s919 + $0x84] sm:$0xf]
      %v2875 = vld [vmem:[%s919 + $0x88] sm:$0xf]
      %v2876 = vld [vmem:[%s919 + $0x8c] sm:$0x1]
      %v2877 = vld [vmem:[%s919 + $0x90] sm:$0xf]
      %v2878 = vld [vmem:[%s919 + $0x94] sm:$0xf]
      %v2879 = vld [vmem:[%s919 + $0x98] sm:$0x1]
      %v2880 = vld [vmem:[%s919 + $0x9c] sm:$0xf]
      %v2881 = vld [vmem:[%s919 + $0xa0] sm:$0xf]
      %v2882 = vld [vmem:[%s919 + $0xa4] sm:$0x1]
      %v2883 = vld [vmem:[%s919 + $0xa8] sm:$0xf]
      %v2884 = vld [vmem:[%s919 + $0xac] sm:$0xf]
      %v2885 = vld [vmem:[%s919 + $0xb0] sm:$0x1]
      %v2886 = vld [vmem:[%s919 + $0xb4] sm:$0xf]
      %v2887 = vld [vmem:[%s919 + $0xb8] sm:$0xf]
      %v2888 = vld [vmem:[%s919 + $0xbc] sm:$0x1]
      %v2890 = vshrl.u32 %v2841, 16
      %v2892 = vrot.slane %v2890, 4
      %v2893 = vshll.u32 %v2841, 16
      %v2895 = vrot.slane %v2893, 5
      %v2896 = vor.u32 %v2892, %v2895
      %v2897 = vrot.slane %v2896, 4
      %v2899 = vshll.u32 %v2842, 16
      %v2901 = vrot.slane %v2899, 5
      %v2902 = vsel %vm1085, %v2897, %v2901
      %v2903 = vshrl.u32 %v2842, 16
      %v2905 = vrot.slane %v2903, 4
      %v2906 = vor.u32 %v2905, %v2901
      %v2907 = vrot.slane %v2906, 4
      %v2909 = vshll.u32 %v2843, 16
      %v2911 = vrot.slane %v2909, 5
      %v2912 = vsel %vm1085, %v2907, %v2911
      %v2914 = vshrl.u32 %v2844, 16
      %v2916 = vrot.slane %v2914, 4
      %v2917 = vshll.u32 %v2844, 16
      %v2919 = vrot.slane %v2917, 5
      %v2920 = vor.u32 %v2916, %v2919
      %v2921 = vrot.slane %v2920, 4
      %v2923 = vshll.u32 %v2845, 16
      %v2925 = vrot.slane %v2923, 5
      %v2926 = vsel %vm1085, %v2921, %v2925
      %v2927 = vshrl.u32 %v2845, 16
      %v2929 = vrot.slane %v2927, 4
      %v2930 = vor.u32 %v2929, %v2925
      %v2931 = vrot.slane %v2930, 4
      %v2933 = vshll.u32 %v2846, 16
      %v2935 = vrot.slane %v2933, 5
      %v2936 = vsel %vm1085, %v2931, %v2935
      %v2938 = vshrl.u32 %v2847, 16
      %v2940 = vrot.slane %v2938, 4
      %v2941 = vshll.u32 %v2847, 16
      %v2943 = vrot.slane %v2941, 5
      %v2944 = vor.u32 %v2940, %v2943
      %v2945 = vrot.slane %v2944, 4
      %v2947 = vshll.u32 %v2848, 16
      %v2949 = vrot.slane %v2947, 5
      %v2950 = vsel %vm1085, %v2945, %v2949
      %v2951 = vshrl.u32 %v2848, 16
      %v2953 = vrot.slane %v2951, 4
      %v2954 = vor.u32 %v2953, %v2949
      %v2955 = vrot.slane %v2954, 4
      %v2957 = vshll.u32 %v2849, 16
      %v2959 = vrot.slane %v2957, 5
      %v2960 = vsel %vm1085, %v2955, %v2959
      %v2962 = vshrl.u32 %v2850, 16
      %v2964 = vrot.slane %v2962, 4
      %v2965 = vshll.u32 %v2850, 16
      %v2967 = vrot.slane %v2965, 5
      %v2968 = vor.u32 %v2964, %v2967
      %v2969 = vrot.slane %v2968, 4
      %v2971 = vshll.u32 %v2851, 16
      %v2973 = vrot.slane %v2971, 5
      %v2974 = vsel %vm1085, %v2969, %v2973
      %v2975 = vshrl.u32 %v2851, 16
      %v2977 = vrot.slane %v2975, 4
      %v2978 = vor.u32 %v2977, %v2973
      %v2979 = vrot.slane %v2978, 4
      %v2981 = vshll.u32 %v2852, 16
      %v2983 = vrot.slane %v2981, 5
      %v2984 = vsel %vm1085, %v2979, %v2983
      %v2986 = vshrl.u32 %v2853, 16
      %v2988 = vrot.slane %v2986, 4
      %v2989 = vshll.u32 %v2853, 16
      %v2991 = vrot.slane %v2989, 5
      %v2992 = vor.u32 %v2988, %v2991
      %v2993 = vrot.slane %v2992, 4
      %v2995 = vshll.u32 %v2854, 16
      %v2997 = vrot.slane %v2995, 5
      %v2998 = vsel %vm1085, %v2993, %v2997
      %v2999 = vshrl.u32 %v2854, 16
      %v3001 = vrot.slane %v2999, 4
      %v3002 = vor.u32 %v3001, %v2997
      %v3003 = vrot.slane %v3002, 4
      %v3005 = vshll.u32 %v2855, 16
      %v3007 = vrot.slane %v3005, 5
      %v3008 = vsel %vm1085, %v3003, %v3007
      %v3010 = vshrl.u32 %v2856, 16
      %v3012 = vrot.slane %v3010, 4
      %v3013 = vshll.u32 %v2856, 16
      %v3015 = vrot.slane %v3013, 5
      %v3016 = vor.u32 %v3012, %v3015
      %v3017 = vrot.slane %v3016, 4
      %v3019 = vshll.u32 %v2857, 16
      %v3021 = vrot.slane %v3019, 5
      %v3022 = vsel %vm1085, %v3017, %v3021
      %v3023 = vshrl.u32 %v2857, 16
      %v3025 = vrot.slane %v3023, 4
      %v3026 = vor.u32 %v3025, %v3021
      %v3027 = vrot.slane %v3026, 4
      %v3029 = vshll.u32 %v2858, 16
      %v3031 = vrot.slane %v3029, 5
      %v3032 = vsel %vm1085, %v3027, %v3031
      %v3034 = vshrl.u32 %v2859, 16
      %v3036 = vrot.slane %v3034, 4
      %v3037 = vshll.u32 %v2859, 16
      %v3039 = vrot.slane %v3037, 5
      %v3040 = vor.u32 %v3036, %v3039
      %v3041 = vrot.slane %v3040, 4
      %v3043 = vshll.u32 %v2860, 16
      %v3045 = vrot.slane %v3043, 5
      %v3046 = vsel %vm1085, %v3041, %v3045
      %v3047 = vshrl.u32 %v2860, 16
      %v3049 = vrot.slane %v3047, 4
      %v3050 = vor.u32 %v3049, %v3045
      %v3051 = vrot.slane %v3050, 4
      %v3053 = vshll.u32 %v2861, 16
      %v3055 = vrot.slane %v3053, 5
      %v3056 = vsel %vm1085, %v3051, %v3055
      %v3058 = vshrl.u32 %v2862, 16
      %v3060 = vrot.slane %v3058, 4
      %v3061 = vshll.u32 %v2862, 16
      %v3063 = vrot.slane %v3061, 5
      %v3064 = vor.u32 %v3060, %v3063
      %v3065 = vrot.slane %v3064, 4
      %v3067 = vshll.u32 %v2863, 16
      %v3069 = vrot.slane %v3067, 5
      %v3070 = vsel %vm1085, %v3065, %v3069
      %v3071 = vshrl.u32 %v2863, 16
      %v3073 = vrot.slane %v3071, 4
      %v3074 = vor.u32 %v3073, %v3069
      %v3075 = vrot.slane %v3074, 4
      %v3077 = vshll.u32 %v2864, 16
      %v3079 = vrot.slane %v3077, 5
      %v3080 = vsel %vm1085, %v3075, %v3079
      %v3082 = vshrl.u32 %v2865, 16
      %v3084 = vrot.slane %v3082, 4
      %v3085 = vshll.u32 %v2865, 16
      %v3087 = vrot.slane %v3085, 5
      %v3088 = vor.u32 %v3084, %v3087
      %v3089 = vrot.slane %v3088, 4
      %v3091 = vshll.u32 %v2866, 16
      %v3093 = vrot.slane %v3091, 5
      %v3094 = vsel %vm1085, %v3089, %v3093
      %v3095 = vshrl.u32 %v2866, 16
      %v3097 = vrot.slane %v3095, 4
      %v3098 = vor.u32 %v3097, %v3093
      %v3099 = vrot.slane %v3098, 4
      %v3101 = vshll.u32 %v2867, 16
      %v3103 = vrot.slane %v3101, 5
      %v3104 = vsel %vm1085, %v3099, %v3103
      %v3106 = vshrl.u32 %v2868, 16
      %v3108 = vrot.slane %v3106, 4
      %v3109 = vshll.u32 %v2868, 16
      %v3111 = vrot.slane %v3109, 5
      %v3112 = vor.u32 %v3108, %v3111
      %v3113 = vrot.slane %v3112, 4
      %v3115 = vshll.u32 %v2869, 16
      %v3117 = vrot.slane %v3115, 5
      %v3118 = vsel %vm1085, %v3113, %v3117
      %v3119 = vshrl.u32 %v2869, 16
      %v3121 = vrot.slane %v3119, 4
      %v3122 = vor.u32 %v3121, %v3117
      %v3123 = vrot.slane %v3122, 4
      %v3125 = vshll.u32 %v2870, 16
      %v3127 = vrot.slane %v3125, 5
      %v3128 = vsel %vm1085, %v3123, %v3127
      %v3130 = vshrl.u32 %v2871, 16
      %v3132 = vrot.slane %v3130, 4
      %v3133 = vshll.u32 %v2871, 16
      %v3135 = vrot.slane %v3133, 5
      %v3136 = vor.u32 %v3132, %v3135
      %v3137 = vrot.slane %v3136, 4
      %v3139 = vshll.u32 %v2872, 16
      %v3141 = vrot.slane %v3139, 5
      %v3142 = vsel %vm1085, %v3137, %v3141
      %v3143 = vshrl.u32 %v2872, 16
      %v3145 = vrot.slane %v3143, 4
      %v3146 = vor.u32 %v3145, %v3141
      %v3147 = vrot.slane %v3146, 4
      %v3149 = vshll.u32 %v2873, 16
      %v3151 = vrot.slane %v3149, 5
      %v3152 = vsel %vm1085, %v3147, %v3151
      %v3154 = vshrl.u32 %v2874, 16
      %v3156 = vrot.slane %v3154, 4
      %v3157 = vshll.u32 %v2874, 16
      %v3159 = vrot.slane %v3157, 5
      %v3160 = vor.u32 %v3156, %v3159
      %v3161 = vrot.slane %v3160, 4
      %v3163 = vshll.u32 %v2875, 16
      %v3165 = vrot.slane %v3163, 5
      %v3166 = vsel %vm1085, %v3161, %v3165
      %v3167 = vshrl.u32 %v2875, 16
      %v3169 = vrot.slane %v3167, 4
      %v3170 = vor.u32 %v3169, %v3165
      %v3171 = vrot.slane %v3170, 4
      %v3173 = vshll.u32 %v2876, 16
      %v3175 = vrot.slane %v3173, 5
      %v3176 = vsel %vm1085, %v3171, %v3175
      %v3178 = vshrl.u32 %v2877, 16
      %v3180 = vrot.slane %v3178, 4
      %v3181 = vshll.u32 %v2877, 16
      %v3183 = vrot.slane %v3181, 5
      %v3184 = vor.u32 %v3180, %v3183
      %v3185 = vrot.slane %v3184, 4
      %v3187 = vshll.u32 %v2878, 16
      %v3189 = vrot.slane %v3187, 5
      %v3190 = vsel %vm1085, %v3185, %v3189
      %v3191 = vshrl.u32 %v2878, 16
      %v3193 = vrot.slane %v3191, 4
      %v3194 = vor.u32 %v3193, %v3189
      %v3195 = vrot.slane %v3194, 4
      %v3197 = vshll.u32 %v2879, 16
      %v3199 = vrot.slane %v3197, 5
      %v3200 = vsel %vm1085, %v3195, %v3199
      %v3202 = vshrl.u32 %v2880, 16
      %v3204 = vrot.slane %v3202, 4
      %v3205 = vshll.u32 %v2880, 16
      %v3207 = vrot.slane %v3205, 5
      %v3208 = vor.u32 %v3204, %v3207
      %v3209 = vrot.slane %v3208, 4
      %v3211 = vshll.u32 %v2881, 16
      %v3213 = vrot.slane %v3211, 5
      %v3214 = vsel %vm1085, %v3209, %v3213
      %v3215 = vshrl.u32 %v2881, 16
      %v3217 = vrot.slane %v3215, 4
      %v3218 = vor.u32 %v3217, %v3213
      %v3219 = vrot.slane %v3218, 4
      %v3221 = vshll.u32 %v2882, 16
      %v3223 = vrot.slane %v3221, 5
      %v3224 = vsel %vm1085, %v3219, %v3223
      %v3226 = vshrl.u32 %v2883, 16
      %v3228 = vrot.slane %v3226, 4
      %v3229 = vshll.u32 %v2883, 16
      %v3231 = vrot.slane %v3229, 5
      %v3232 = vor.u32 %v3228, %v3231
      %v3233 = vrot.slane %v3232, 4
      %v3235 = vshll.u32 %v2884, 16
      %v3237 = vrot.slane %v3235, 5
      %v3238 = vsel %vm1085, %v3233, %v3237
      %v3239 = vshrl.u32 %v2884, 16
      %v3241 = vrot.slane %v3239, 4
      %v3242 = vor.u32 %v3241, %v3237
      %v3243 = vrot.slane %v3242, 4
      %v3245 = vshll.u32 %v2885, 16
      %v3247 = vrot.slane %v3245, 5
      %v3248 = vsel %vm1085, %v3243, %v3247
      %v3250 = vshrl.u32 %v2886, 16
      %v3252 = vrot.slane %v3250, 4
      %v3253 = vshll.u32 %v2886, 16
      %v3255 = vrot.slane %v3253, 5
      %v3256 = vor.u32 %v3252, %v3255
      %v3257 = vrot.slane %v3256, 4
      %v3259 = vshll.u32 %v2887, 16
      %v3261 = vrot.slane %v3259, 5
      %v3262 = vsel %vm1085, %v3257, %v3261
      %v3263 = vshrl.u32 %v2887, 16
      %v3265 = vrot.slane %v3263, 4
      %v3266 = vor.u32 %v3265, %v3261
      %v3267 = vrot.slane %v3266, 4
      %v3269 = vshll.u32 %v2888, 16
      %v3271 = vrot.slane %v3269, 5
      %v3272 = vsel %vm1085, %v3267, %v3271
      %s3273 = scalar_lea.vmem %s3, 16
      %v3274 = vld [vmem:[%s3273] sm:$0xf]
      %v3275 = vunpack.c.l.b16 %v2902
      %v3276 = vunpack.c.l.b16 %v2912
      %v3277 = vunpack.c.l.b16 %v2926
      %v3278 = vunpack.c.l.b16 %v2936
      %v3279 = vunpack.c.l.b16 %v2950
      %v3280 = vunpack.c.l.b16 %v2960
      %v3281 = vunpack.c.l.b16 %v2974
      %v3282 = vunpack.c.l.b16 %v2984
      %v3283 = vunpack.c.l.b16 %v2998
      %v3284 = vunpack.c.l.b16 %v3008
      %v3285 = vunpack.c.l.b16 %v3022
      %v3286 = vunpack.c.l.b16 %v3032
      %v3287 = vunpack.c.l.b16 %v3046
      %v3288 = vunpack.c.l.b16 %v3056
      %v3289 = vunpack.c.l.b16 %v3070
      %v3290 = vunpack.c.l.b16 %v3080
      %v3291 = vunpack.c.l.b16 %v3094
      %v3292 = vunpack.c.l.b16 %v3104
      %v3293 = vunpack.c.l.b16 %v3118
      %v3294 = vunpack.c.l.b16 %v3128
      %v3295 = vunpack.c.l.b16 %v3142
      %v3296 = vunpack.c.l.b16 %v3152
      %v3297 = vunpack.c.l.b16 %v3166
      %v3298 = vunpack.c.l.b16 %v3176
      %v3299 = vunpack.c.l.b16 %v3190
      %v3300 = vunpack.c.l.b16 %v3200
      %v3301 = vunpack.c.l.b16 %v3214
      %v3302 = vunpack.c.l.b16 %v3224
      %v3303 = vunpack.c.l.b16 %v3238
      %v3304 = vunpack.c.l.b16 %v3248
      %v3305 = vunpack.c.l.b16 %v3262
      %v3306 = vunpack.c.l.b16 %v3272
      %v3307 = vpack.c.b16 %v3276, %v3275
      %v3308 = vpack.c.b16 %v3278, %v3277
      %v3309 = vpack.c.b16 %v3280, %v3279
      %v3310 = vpack.c.b16 %v3282, %v3281
      %v3311 = vpack.c.b16 %v3284, %v3283
      %v3312 = vpack.c.b16 %v3286, %v3285
      %v3313 = vpack.c.b16 %v3288, %v3287
      %v3314 = vpack.c.b16 %v3290, %v3289
      %v3315 = vpack.c.b16 %v3292, %v3291
      %v3316 = vpack.c.b16 %v3294, %v3293
      %v3317 = vpack.c.b16 %v3296, %v3295
      %v3318 = vpack.c.b16 %v3298, %v3297
      %v3319 = vpack.c.b16 %v3300, %v3299
      %v3320 = vpack.c.b16 %v3302, %v3301
      %v3321 = vpack.c.b16 %v3304, %v3303
      %v3322 = vpack.c.b16 %v3306, %v3305
      %v3324 = vsel %vm1520, %v3307, 0
      %v3327 = vsel %vm1520, %v3308, 0
      %v3330 = vsel %vm1520, %v3309, 0
      %v3333 = vsel %vm1520, %v3310, 0
      %v3336 = vsel %vm1520, %v3311, 0
      %v3339 = vsel %vm1520, %v3312, 0
      %v3342 = vsel %vm1520, %v3313, 0
      %v3345 = vsel %vm1520, %v3314, 0
      %v3348 = vsel %vm1520, %v3315, 0
      %v3351 = vsel %vm1520, %v3316, 0
      %v3354 = vsel %vm1520, %v3317, 0
      %v3357 = vsel %vm1520, %v3318, 0
      %v3360 = vsel %vm1520, %v3319, 0
      %v3363 = vsel %vm1520, %v3320, 0
      %v3366 = vsel %vm1520, %v3321, 0
      %v3369 = vsel %vm1520, %v3322, 0
      %v3372 = vsel %vm1569, %v3274, 0
      %3374 = vmatprep.subr.bf16.mxu0 0
      %3375 = vmatpush1.bf16.msra.mxu0 0
      %3376 = vmatprep.subr.bf16.mxu0 0
      %3377 = vmatpush1.bf16.msra.mxu0 0
      %3378 = vmatprep.subr.bf16.mxu0 0
      %3379 = vmatpush1.bf16.msra.mxu0 0
      %3380 = vmatprep.subr.bf16.mxu0 0
      %3381 = vmatpush1.bf16.msra.mxu0 0
      %3382 = vmatprep.subr.bf16.mxu0 0
      %3383 = vmatpush1.bf16.msra.mxu0 0
      %3384 = vmatprep.subr.bf16.mxu0 0
      %3385 = vmatpush1.bf16.msra.mxu0 0
      %3386 = vmatprep.subr.bf16.mxu0 0
      %3387 = vmatpush1.bf16.msra.mxu0 0
      %3388 = vmatprep.subr.bf16.mxu0 0
      %3389 = vmatpush1.bf16.msra.mxu0 %v3372
      %3390 = vmatprep.subr.bf16.mxu0 0
      %3391 = vmatpush2.bf16.msra.mxu0 0
      %3392 = vmatprep.subr.bf16.mxu0 0
      %3393 = vmatpush2.bf16.msra.mxu0 0
      %3394 = vmatprep.subr.bf16.mxu0 0
      %3395 = vmatpush2.bf16.msra.mxu0 0
      %3396 = vmatprep.subr.bf16.mxu0 0
      %3397 = vmatpush2.bf16.msra.mxu0 0
      %3398 = vmatprep.subr.bf16.mxu0 0
      %3399 = vmatpush2.bf16.msra.mxu0 0
      %3400 = vmatprep.subr.bf16.mxu0 0
      %3401 = vmatpush2.bf16.msra.mxu0 0
      %3402 = vmatprep.subr.bf16.mxu0 0
      %3403 = vmatpush2.bf16.msra.mxu0 0
      %3404 = vmatprep.subr.bf16.mxu0 0
      %3405 = vmatpush2.bf16.msra.mxu0 0
      %3406 = vmatprep.mubr.bf16.mxu0 0
      %3407 = vmatmul.mubr.bf16.gmra.mxu0 %v3324
      %v3408 = vpop.f32.mrf.mxu0
      %v3409 = vadd.f32 0.0, %v3408
      %v3410 = vpop.f32.mrf.mxu0
      %v3411 = vpop.f32.mrf.mxu0
      %v3412 = vadd.f32 0.0, %v3411
      %v3413 = vpop.f32.mrf.mxu0
      %3414 = vmatprep.mubr.bf16.mxu0 0
      %3415 = vmatmul.mubr.bf16.gmra.mxu0 %v3327
      %v3416 = vpop.f32.mrf.mxu0
      %v3417 = vadd.f32 0.0, %v3416
      %v3418 = vpop.f32.mrf.mxu0
      %v3419 = vpop.f32.mrf.mxu0
      %v3420 = vadd.f32 0.0, %v3419
      %v3421 = vpop.f32.mrf.mxu0
      %3422 = vmatprep.mubr.bf16.mxu0 0
      %3423 = vmatmul.mubr.bf16.gmra.mxu0 %v3330
      %v3424 = vpop.f32.mrf.mxu0
      %v3425 = vadd.f32 0.0, %v3424
      %v3426 = vpop.f32.mrf.mxu0
      %v3427 = vpop.f32.mrf.mxu0
      %v3428 = vadd.f32 0.0, %v3427
      %v3429 = vpop.f32.mrf.mxu0
      %3430 = vmatprep.mubr.bf16.mxu0 0
      %3431 = vmatmul.mubr.bf16.gmra.mxu0 %v3333
      %v3432 = vpop.f32.mrf.mxu0
      %v3433 = vadd.f32 0.0, %v3432
      %v3434 = vpop.f32.mrf.mxu0
      %v3435 = vpop.f32.mrf.mxu0
      %v3436 = vadd.f32 0.0, %v3435
      %v3437 = vpop.f32.mrf.mxu0
      %3438 = vmatprep.mubr.bf16.mxu0 0
      %3439 = vmatmul.mubr.bf16.gmra.mxu0 %v3336
      %v3440 = vpop.f32.mrf.mxu0
      %v3441 = vadd.f32 0.0, %v3440
      %v3442 = vpop.f32.mrf.mxu0
      %v3443 = vpop.f32.mrf.mxu0
      %v3444 = vadd.f32 0.0, %v3443
      %v3445 = vpop.f32.mrf.mxu0
      %3446 = vmatprep.mubr.bf16.mxu0 0
      %3447 = vmatmul.mubr.bf16.gmra.mxu0 %v3339
      %v3448 = vpop.f32.mrf.mxu0
      %v3449 = vadd.f32 0.0, %v3448
      %v3450 = vpop.f32.mrf.mxu0
      %v3451 = vpop.f32.mrf.mxu0
      %v3452 = vadd.f32 0.0, %v3451
      %v3453 = vpop.f32.mrf.mxu0
      %3454 = vmatprep.mubr.bf16.mxu0 0
      %3455 = vmatmul.mubr.bf16.gmra.mxu0 %v3342
      %v3456 = vpop.f32.mrf.mxu0
      %v3457 = vadd.f32 0.0, %v3456
      %v3458 = vpop.f32.mrf.mxu0
      %v3459 = vpop.f32.mrf.mxu0
      %v3460 = vadd.f32 0.0, %v3459
      %v3461 = vpop.f32.mrf.mxu0
      %3462 = vmatprep.mubr.bf16.mxu0 0
      %3463 = vmatmul.mubr.bf16.gmra.mxu0 %v3345
      %v3464 = vpop.f32.mrf.mxu0
      %v3465 = vadd.f32 0.0, %v3464
      %v3466 = vpop.f32.mrf.mxu0
      %v3467 = vpop.f32.mrf.mxu0
      %v3468 = vadd.f32 0.0, %v3467
      %v3469 = vpop.f32.mrf.mxu0
      %3470 = vmatprep.mubr.bf16.mxu0 0
      %3471 = vmatmul.mubr.bf16.gmra.mxu0 %v3348
      %v3472 = vpop.f32.mrf.mxu0
      %v3473 = vadd.f32 0.0, %v3472
      %v3474 = vpop.f32.mrf.mxu0
      %v3475 = vpop.f32.mrf.mxu0
      %v3476 = vadd.f32 0.0, %v3475
      %v3477 = vpop.f32.mrf.mxu0
      %3478 = vmatprep.mubr.bf16.mxu0 0
      %3479 = vmatmul.mubr.bf16.gmra.mxu0 %v3351
      %v3480 = vpop.f32.mrf.mxu0
      %v3481 = vadd.f32 0.0, %v3480
      %v3482 = vpop.f32.mrf.mxu0
      %v3483 = vpop.f32.mrf.mxu0
      %v3484 = vadd.f32 0.0, %v3483
      %v3485 = vpop.f32.mrf.mxu0
      %3486 = vmatprep.mubr.bf16.mxu0 0
      %3487 = vmatmul.mubr.bf16.gmra.mxu0 %v3354
      %v3488 = vpop.f32.mrf.mxu0
      %v3489 = vadd.f32 0.0, %v3488
      %v3490 = vpop.f32.mrf.mxu0
      %v3491 = vpop.f32.mrf.mxu0
      %v3492 = vadd.f32 0.0, %v3491
      %v3493 = vpop.f32.mrf.mxu0
      %3494 = vmatprep.mubr.bf16.mxu0 0
      %3495 = vmatmul.mubr.bf16.gmra.mxu0 %v3357
      %v3496 = vpop.f32.mrf.mxu0
      %v3497 = vadd.f32 0.0, %v3496
      %v3498 = vpop.f32.mrf.mxu0
      %v3499 = vpop.f32.mrf.mxu0
      %v3500 = vadd.f32 0.0, %v3499
      %v3501 = vpop.f32.mrf.mxu0
      %3502 = vmatprep.mubr.bf16.mxu0 0
      %3503 = vmatmul.mubr.bf16.gmra.mxu0 %v3360
      %v3504 = vpop.f32.mrf.mxu0
      %v3505 = vadd.f32 0.0, %v3504
      %v3506 = vpop.f32.mrf.mxu0
      %v3507 = vpop.f32.mrf.mxu0
      %v3508 = vadd.f32 0.0, %v3507
      %v3509 = vpop.f32.mrf.mxu0
      %3510 = vmatprep.mubr.bf16.mxu0 0
      %3511 = vmatmul.mubr.bf16.gmra.mxu0 %v3363
      %v3512 = vpop.f32.mrf.mxu0
      %v3513 = vadd.f32 0.0, %v3512
      %v3514 = vpop.f32.mrf.mxu0
      %v3515 = vpop.f32.mrf.mxu0
      %v3516 = vadd.f32 0.0, %v3515
      %v3517 = vpop.f32.mrf.mxu0
      %3518 = vmatprep.mubr.bf16.mxu0 0
      %3519 = vmatmul.mubr.bf16.gmra.mxu0 %v3366
      %v3520 = vpop.f32.mrf.mxu0
      %v3521 = vadd.f32 0.0, %v3520
      %v3522 = vpop.f32.mrf.mxu0
      %v3523 = vpop.f32.mrf.mxu0
      %v3524 = vadd.f32 0.0, %v3523
      %v3525 = vpop.f32.mrf.mxu0
      %3526 = vmatprep.mubr.bf16.mxu0 0
      %3527 = vmatmul.mubr.bf16.gmra.mxu0 %v3369
      %v3528 = vpop.f32.mrf.mxu0
      %v3529 = vadd.f32 0.0, %v3528
      %v3530 = vpop.f32.mrf.mxu0
      %v3531 = vpop.f32.mrf.mxu0
      %v3532 = vadd.f32 0.0, %v3531
      %v3533 = vpop.f32.mrf.mxu0
      %3534 = vdwg.mxu0
      %v3535 = vadd.f32 %v2809, %v3409
      %v3536 = vadd.f32 %v2810, %v3412
      %v3537 = vadd.f32 %v2811, %v3417
      %v3538 = vadd.f32 %v2812, %v3420
      %v3539 = vadd.f32 %v2813, %v3425
      %v3540 = vadd.f32 %v2814, %v3428
      %v3541 = vadd.f32 %v2815, %v3433
      %v3542 = vadd.f32 %v2816, %v3436
      %v3543 = vadd.f32 %v2817, %v3441
      %v3544 = vadd.f32 %v2818, %v3444
      %v3545 = vadd.f32 %v2819, %v3449
      %v3546 = vadd.f32 %v2820, %v3452
      %v3547 = vadd.f32 %v2821, %v3457
      %v3548 = vadd.f32 %v2822, %v3460
      %v3549 = vadd.f32 %v2823, %v3465
      %v3550 = vadd.f32 %v2824, %v3468
      %v3551 = vadd.f32 %v2825, %v3473
      %v3552 = vadd.f32 %v2826, %v3476
      %v3553 = vadd.f32 %v2827, %v3481
      %v3554 = vadd.f32 %v2828, %v3484
      %v3555 = vadd.f32 %v2829, %v3489
      %v3556 = vadd.f32 %v2830, %v3492
      %v3557 = vadd.f32 %v2831, %v3497
      %v3558 = vadd.f32 %v2832, %v3500
      %v3559 = vadd.f32 %v2833, %v3505
      %v3560 = vadd.f32 %v2834, %v3508
      %v3561 = vadd.f32 %v2835, %v3513
      %v3562 = vadd.f32 %v2836, %v3516
      %v3563 = vadd.f32 %v2837, %v3521
      %v3564 = vadd.f32 %v2838, %v3524
      %v3565 = vadd.f32 %v2839, %v3529
      %v3566 = vadd.f32 %v2840, %v3532
      %v3567 = vld [vmem:[%s919] sm:$0xe]
      %v3568 = vld [vmem:[%s919 + $0xc] sm:$0xe]
      %v3569 = vld [vmem:[%s919 + $0x18] sm:$0xe]
      %v3570 = vld [vmem:[%s919 + $0x24] sm:$0xe]
      %v3571 = vld [vmem:[%s919 + $0x30] sm:$0xe]
      %v3572 = vld [vmem:[%s919 + $0x3c] sm:$0xe]
      %v3573 = vld [vmem:[%s919 + $0x48] sm:$0xe]
      %v3574 = vld [vmem:[%s919 + $0x54] sm:$0xe]
      %v3575 = vld [vmem:[%s919 + $0x60] sm:$0xe]
      %v3576 = vld [vmem:[%s919 + $0x6c] sm:$0xe]
      %v3577 = vld [vmem:[%s919 + $0x78] sm:$0xe]
      %v3578 = vld [vmem:[%s919 + $0x84] sm:$0xe]
      %v3579 = vld [vmem:[%s919 + $0x90] sm:$0xe]
      %v3580 = vld [vmem:[%s919 + $0x9c] sm:$0xe]
      %v3581 = vld [vmem:[%s919 + $0xa8] sm:$0xe]
      %v3582 = vld [vmem:[%s919 + $0xb4] sm:$0xe]
      %v3631 = vrot.slane %v3567, 5
      %v3632 = vrot.slane %v3631, 4
      %v3633 = vrot.slane %v2842, 5
      %v3634 = vsel %vm2076, %v3632, %v3633
      %v3635 = vrot.slane %v3633, 4
      %v3636 = vrot.slane %v2843, 5
      %v3637 = vsel %vm2076, %v3635, %v3636
      %v3638 = vrot.slane %v3568, 5
      %v3639 = vrot.slane %v3638, 4
      %v3640 = vrot.slane %v2845, 5
      %v3641 = vsel %vm2076, %v3639, %v3640
      %v3642 = vrot.slane %v3640, 4
      %v3643 = vrot.slane %v2846, 5
      %v3644 = vsel %vm2076, %v3642, %v3643
      %v3645 = vrot.slane %v3569, 5
      %v3646 = vrot.slane %v3645, 4
      %v3647 = vrot.slane %v2848, 5
      %v3648 = vsel %vm2076, %v3646, %v3647
      %v3649 = vrot.slane %v3647, 4
      %v3650 = vrot.slane %v2849, 5
      %v3651 = vsel %vm2076, %v3649, %v3650
      %v3652 = vrot.slane %v3570, 5
      %v3653 = vrot.slane %v3652, 4
      %v3654 = vrot.slane %v2851, 5
      %v3655 = vsel %vm2076, %v3653, %v3654
      %v3656 = vrot.slane %v3654, 4
      %v3657 = vrot.slane %v2852, 5
      %v3658 = vsel %vm2076, %v3656, %v3657
      %v3659 = vrot.slane %v3571, 5
      %v3660 = vrot.slane %v3659, 4
      %v3661 = vrot.slane %v2854, 5
      %v3662 = vsel %vm2076, %v3660, %v3661
      %v3663 = vrot.slane %v3661, 4
      %v3664 = vrot.slane %v2855, 5
      %v3665 = vsel %vm2076, %v3663, %v3664
      %v3666 = vrot.slane %v3572, 5
      %v3667 = vrot.slane %v3666, 4
      %v3668 = vrot.slane %v2857, 5
      %v3669 = vsel %vm2076, %v3667, %v3668
      %v3670 = vrot.slane %v3668, 4
      %v3671 = vrot.slane %v2858, 5
      %v3672 = vsel %vm2076, %v3670, %v3671
      %v3673 = vrot.slane %v3573, 5
      %v3674 = vrot.slane %v3673, 4
      %v3675 = vrot.slane %v2860, 5
      %v3676 = vsel %vm2076, %v3674, %v3675
      %v3677 = vrot.slane %v3675, 4
      %v3678 = vrot.slane %v2861, 5
      %v3679 = vsel %vm2076, %v3677, %v3678
      %v3680 = vrot.slane %v3574, 5
      %v3681 = vrot.slane %v3680, 4
      %v3682 = vrot.slane %v2863, 5
      %v3683 = vsel %vm2076, %v3681, %v3682
      %v3684 = vrot.slane %v3682, 4
      %v3685 = vrot.slane %v2864, 5
      %v3686 = vsel %vm2076, %v3684, %v3685
      %v3687 = vrot.slane %v3575, 5
      %v3688 = vrot.slane %v3687, 4
      %v3689 = vrot.slane %v2866, 5
      %v3690 = vsel %vm2076, %v3688, %v3689
      %v3691 = vrot.slane %v3689, 4
      %v3692 = vrot.slane %v2867, 5
      %v3693 = vsel %vm2076, %v3691, %v3692
      %v3694 = vrot.slane %v3576, 5
      %v3695 = vrot.slane %v3694, 4
      %v3696 = vrot.slane %v2869, 5
      %v3697 = vsel %vm2076, %v3695, %v3696
      %v3698 = vrot.slane %v3696, 4
      %v3699 = vrot.slane %v2870, 5
      %v3700 = vsel %vm2076, %v3698, %v3699
      %v3701 = vrot.slane %v3577, 5
      %v3702 = vrot.slane %v3701, 4
      %v3703 = vrot.slane %v2872, 5
      %v3704 = vsel %vm2076, %v3702, %v3703
      %v3705 = vrot.slane %v3703, 4
      %v3706 = vrot.slane %v2873, 5
      %v3707 = vsel %vm2076, %v3705, %v3706
      %v3708 = vrot.slane %v3578, 5
      %v3709 = vrot.slane %v3708, 4
      %v3710 = vrot.slane %v2875, 5
      %v3711 = vsel %vm2076, %v3709, %v3710
      %v3712 = vrot.slane %v3710, 4
      %v3713 = vrot.slane %v2876, 5
      %v3714 = vsel %vm2076, %v3712, %v3713
      %v3715 = vrot.slane %v3579, 5
      %v3716 = vrot.slane %v3715, 4
      %v3717 = vrot.slane %v2878, 5
      %v3718 = vsel %vm2076, %v3716, %v3717
      %v3719 = vrot.slane %v3717, 4
      %v3720 = vrot.slane %v2879, 5
      %v3721 = vsel %vm2076, %v3719, %v3720
      %v3722 = vrot.slane %v3580, 5
      %v3723 = vrot.slane %v3722, 4
      %v3724 = vrot.slane %v2881, 5
      %v3725 = vsel %vm2076, %v3723, %v3724
      %v3726 = vrot.slane %v3724, 4
      %v3727 = vrot.slane %v2882, 5
      %v3728 = vsel %vm2076, %v3726, %v3727
      %v3729 = vrot.slane %v3581, 5
      %v3730 = vrot.slane %v3729, 4
      %v3731 = vrot.slane %v2884, 5
      %v3732 = vsel %vm2076, %v3730, %v3731
      %v3733 = vrot.slane %v3731, 4
      %v3734 = vrot.slane %v2885, 5
      %v3735 = vsel %vm2076, %v3733, %v3734
      %v3736 = vrot.slane %v3582, 5
      %v3737 = vrot.slane %v3736, 4
      %v3738 = vrot.slane %v2887, 5
      %v3739 = vsel %vm2076, %v3737, %v3738
      %v3740 = vrot.slane %v3738, 4
      %v3741 = vrot.slane %v2888, 5
      %v3742 = vsel %vm2076, %v3740, %v3741
      %s3743 = scalar_lea.vmem %s3, 20
      %v3744 = vld [vmem:[%s3743] sm:$0xf]
      %v3745 = vunpack.c.l.b16 %v3634
      %v3746 = vunpack.c.l.b16 %v3637
      %v3747 = vunpack.c.l.b16 %v3641
      %v3748 = vunpack.c.l.b16 %v3644
      %v3749 = vunpack.c.l.b16 %v3648
      %v3750 = vunpack.c.l.b16 %v3651
      %v3751 = vunpack.c.l.b16 %v3655
      %v3752 = vunpack.c.l.b16 %v3658
      %v3753 = vunpack.c.l.b16 %v3662
      %v3754 = vunpack.c.l.b16 %v3665
      %v3755 = vunpack.c.l.b16 %v3669
      %v3756 = vunpack.c.l.b16 %v3672
      %v3757 = vunpack.c.l.b16 %v3676
      %v3758 = vunpack.c.l.b16 %v3679
      %v3759 = vunpack.c.l.b16 %v3683
      %v3760 = vunpack.c.l.b16 %v3686
      %v3761 = vunpack.c.l.b16 %v3690
      %v3762 = vunpack.c.l.b16 %v3693
      %v3763 = vunpack.c.l.b16 %v3697
      %v3764 = vunpack.c.l.b16 %v3700
      %v3765 = vunpack.c.l.b16 %v3704
      %v3766 = vunpack.c.l.b16 %v3707
      %v3767 = vunpack.c.l.b16 %v3711
      %v3768 = vunpack.c.l.b16 %v3714
      %v3769 = vunpack.c.l.b16 %v3718
      %v3770 = vunpack.c.l.b16 %v3721
      %v3771 = vunpack.c.l.b16 %v3725
      %v3772 = vunpack.c.l.b16 %v3728
      %v3773 = vunpack.c.l.b16 %v3732
      %v3774 = vunpack.c.l.b16 %v3735
      %v3775 = vunpack.c.l.b16 %v3739
      %v3776 = vunpack.c.l.b16 %v3742
      %v3777 = vpack.c.b16 %v3746, %v3745
      %v3778 = vpack.c.b16 %v3748, %v3747
      %v3779 = vpack.c.b16 %v3750, %v3749
      %v3780 = vpack.c.b16 %v3752, %v3751
      %v3781 = vpack.c.b16 %v3754, %v3753
      %v3782 = vpack.c.b16 %v3756, %v3755
      %v3783 = vpack.c.b16 %v3758, %v3757
      %v3784 = vpack.c.b16 %v3760, %v3759
      %v3785 = vpack.c.b16 %v3762, %v3761
      %v3786 = vpack.c.b16 %v3764, %v3763
      %v3787 = vpack.c.b16 %v3766, %v3765
      %v3788 = vpack.c.b16 %v3768, %v3767
      %v3789 = vpack.c.b16 %v3770, %v3769
      %v3790 = vpack.c.b16 %v3772, %v3771
      %v3791 = vpack.c.b16 %v3774, %v3773
      %v3792 = vpack.c.b16 %v3776, %v3775
      %v3794 = vsel %vm1520, %v3777, 0
      %v3797 = vsel %vm1520, %v3778, 0
      %v3800 = vsel %vm1520, %v3779, 0
      %v3803 = vsel %vm1520, %v3780, 0
      %v3806 = vsel %vm1520, %v3781, 0
      %v3809 = vsel %vm1520, %v3782, 0
      %v3812 = vsel %vm1520, %v3783, 0
      %v3815 = vsel %vm1520, %v3784, 0
      %v3818 = vsel %vm1520, %v3785, 0
      %v3821 = vsel %vm1520, %v3786, 0
      %v3824 = vsel %vm1520, %v3787, 0
      %v3827 = vsel %vm1520, %v3788, 0
      %v3830 = vsel %vm1520, %v3789, 0
      %v3833 = vsel %vm1520, %v3790, 0
      %v3836 = vsel %vm1520, %v3791, 0
      %v3839 = vsel %vm1520, %v3792, 0
      %v3842 = vsel %vm1569, %v3744, 0
      %3844 = vmatprep.subr.bf16.mxu0 0
      %3845 = vmatpush1.bf16.msra.mxu0 0
      %3846 = vmatprep.subr.bf16.mxu0 0
      %3847 = vmatpush1.bf16.msra.mxu0 0
      %3848 = vmatprep.subr.bf16.mxu0 0
      %3849 = vmatpush1.bf16.msra.mxu0 0
      %3850 = vmatprep.subr.bf16.mxu0 0
      %3851 = vmatpush1.bf16.msra.mxu0 0
      %3852 = vmatprep.subr.bf16.mxu0 0
      %3853 = vmatpush1.bf16.msra.mxu0 0
      %3854 = vmatprep.subr.bf16.mxu0 0
      %3855 = vmatpush1.bf16.msra.mxu0 0
      %3856 = vmatprep.subr.bf16.mxu0 0
      %3857 = vmatpush1.bf16.msra.mxu0 0
      %3858 = vmatprep.subr.bf16.mxu0 0
      %3859 = vmatpush1.bf16.msra.mxu0 %v3842
      %3860 = vmatprep.subr.bf16.mxu0 0
      %3861 = vmatpush2.bf16.msra.mxu0 0
      %3862 = vmatprep.subr.bf16.mxu0 0
      %3863 = vmatpush2.bf16.msra.mxu0 0
      %3864 = vmatprep.subr.bf16.mxu0 0
      %3865 = vmatpush2.bf16.msra.mxu0 0
      %3866 = vmatprep.subr.bf16.mxu0 0
      %3867 = vmatpush2.bf16.msra.mxu0 0
      %3868 = vmatprep.subr.bf16.mxu0 0
      %3869 = vmatpush2.bf16.msra.mxu0 0
      %3870 = vmatprep.subr.bf16.mxu0 0
      %3871 = vmatpush2.bf16.msra.mxu0 0
      %3872 = vmatprep.subr.bf16.mxu0 0
      %3873 = vmatpush2.bf16.msra.mxu0 0
      %3874 = vmatprep.subr.bf16.mxu0 0
      %3875 = vmatpush2.bf16.msra.mxu0 0
      %3876 = vmatprep.mubr.bf16.mxu0 0
      %3877 = vmatmul.mubr.bf16.gmra.mxu0 %v3794
      %v3878 = vpop.f32.mrf.mxu0
      %v3879 = vadd.f32 0.0, %v3878
      %v3880 = vpop.f32.mrf.mxu0
      %v3881 = vpop.f32.mrf.mxu0
      %v3882 = vadd.f32 0.0, %v3881
      %v3883 = vpop.f32.mrf.mxu0
      %3884 = vmatprep.mubr.bf16.mxu0 0
      %3885 = vmatmul.mubr.bf16.gmra.mxu0 %v3797
      %v3886 = vpop.f32.mrf.mxu0
      %v3887 = vadd.f32 0.0, %v3886
      %v3888 = vpop.f32.mrf.mxu0
      %v3889 = vpop.f32.mrf.mxu0
      %v3890 = vadd.f32 0.0, %v3889
      %v3891 = vpop.f32.mrf.mxu0
      %3892 = vmatprep.mubr.bf16.mxu0 0
      %3893 = vmatmul.mubr.bf16.gmra.mxu0 %v3800
      %v3894 = vpop.f32.mrf.mxu0
      %v3895 = vadd.f32 0.0, %v3894
      %v3896 = vpop.f32.mrf.mxu0
      %v3897 = vpop.f32.mrf.mxu0
      %v3898 = vadd.f32 0.0, %v3897
      %v3899 = vpop.f32.mrf.mxu0
      %3900 = vmatprep.mubr.bf16.mxu0 0
      %3901 = vmatmul.mubr.bf16.gmra.mxu0 %v3803
      %v3902 = vpop.f32.mrf.mxu0
      %v3903 = vadd.f32 0.0, %v3902
      %v3904 = vpop.f32.mrf.mxu0
      %v3905 = vpop.f32.mrf.mxu0
      %v3906 = vadd.f32 0.0, %v3905
      %v3907 = vpop.f32.mrf.mxu0
      %3908 = vmatprep.mubr.bf16.mxu0 0
      %3909 = vmatmul.mubr.bf16.gmra.mxu0 %v3806
      %v3910 = vpop.f32.mrf.mxu0
      %v3911 = vadd.f32 0.0, %v3910
      %v3912 = vpop.f32.mrf.mxu0
      %v3913 = vpop.f32.mrf.mxu0
      %v3914 = vadd.f32 0.0, %v3913
      %v3915 = vpop.f32.mrf.mxu0
      %3916 = vmatprep.mubr.bf16.mxu0 0
      %3917 = vmatmul.mubr.bf16.gmra.mxu0 %v3809
      %v3918 = vpop.f32.mrf.mxu0
      %v3919 = vadd.f32 0.0, %v3918
      %v3920 = vpop.f32.mrf.mxu0
      %v3921 = vpop.f32.mrf.mxu0
      %v3922 = vadd.f32 0.0, %v3921
      %v3923 = vpop.f32.mrf.mxu0
      %3924 = vmatprep.mubr.bf16.mxu0 0
      %3925 = vmatmul.mubr.bf16.gmra.mxu0 %v3812
      %v3926 = vpop.f32.mrf.mxu0
      %v3927 = vadd.f32 0.0, %v3926
      %v3928 = vpop.f32.mrf.mxu0
      %v3929 = vpop.f32.mrf.mxu0
      %v3930 = vadd.f32 0.0, %v3929
      %v3931 = vpop.f32.mrf.mxu0
      %3932 = vmatprep.mubr.bf16.mxu0 0
      %3933 = vmatmul.mubr.bf16.gmra.mxu0 %v3815
      %v3934 = vpop.f32.mrf.mxu0
      %v3935 = vadd.f32 0.0, %v3934
      %v3936 = vpop.f32.mrf.mxu0
      %v3937 = vpop.f32.mrf.mxu0
      %v3938 = vadd.f32 0.0, %v3937
      %v3939 = vpop.f32.mrf.mxu0
      %3940 = vmatprep.mubr.bf16.mxu0 0
      %3941 = vmatmul.mubr.bf16.gmra.mxu0 %v3818
      %v3942 = vpop.f32.mrf.mxu0
      %v3943 = vadd.f32 0.0, %v3942
      %v3944 = vpop.f32.mrf.mxu0
      %v3945 = vpop.f32.mrf.mxu0
      %v3946 = vadd.f32 0.0, %v3945
      %v3947 = vpop.f32.mrf.mxu0
      %3948 = vmatprep.mubr.bf16.mxu0 0
      %3949 = vmatmul.mubr.bf16.gmra.mxu0 %v3821
      %v3950 = vpop.f32.mrf.mxu0
      %v3951 = vadd.f32 0.0, %v3950
      %v3952 = vpop.f32.mrf.mxu0
      %v3953 = vpop.f32.mrf.mxu0
      %v3954 = vadd.f32 0.0, %v3953
      %v3955 = vpop.f32.mrf.mxu0
      %3956 = vmatprep.mubr.bf16.mxu0 0
      %3957 = vmatmul.mubr.bf16.gmra.mxu0 %v3824
      %v3958 = vpop.f32.mrf.mxu0
      %v3959 = vadd.f32 0.0, %v3958
      %v3960 = vpop.f32.mrf.mxu0
      %v3961 = vpop.f32.mrf.mxu0
      %v3962 = vadd.f32 0.0, %v3961
      %v3963 = vpop.f32.mrf.mxu0
      %3964 = vmatprep.mubr.bf16.mxu0 0
      %3965 = vmatmul.mubr.bf16.gmra.mxu0 %v3827
      %v3966 = vpop.f32.mrf.mxu0
      %v3967 = vadd.f32 0.0, %v3966
      %v3968 = vpop.f32.mrf.mxu0
      %v3969 = vpop.f32.mrf.mxu0
      %v3970 = vadd.f32 0.0, %v3969
      %v3971 = vpop.f32.mrf.mxu0
      %3972 = vmatprep.mubr.bf16.mxu0 0
      %3973 = vmatmul.mubr.bf16.gmra.mxu0 %v3830
      %v3974 = vpop.f32.mrf.mxu0
      %v3975 = vadd.f32 0.0, %v3974
      %v3976 = vpop.f32.mrf.mxu0
      %v3977 = vpop.f32.mrf.mxu0
      %v3978 = vadd.f32 0.0, %v3977
      %v3979 = vpop.f32.mrf.mxu0
      %3980 = vmatprep.mubr.bf16.mxu0 0
      %3981 = vmatmul.mubr.bf16.gmra.mxu0 %v3833
      %v3982 = vpop.f32.mrf.mxu0
      %v3983 = vadd.f32 0.0, %v3982
      %v3984 = vpop.f32.mrf.mxu0
      %v3985 = vpop.f32.mrf.mxu0
      %v3986 = vadd.f32 0.0, %v3985
      %v3987 = vpop.f32.mrf.mxu0
      %3988 = vmatprep.mubr.bf16.mxu0 0
      %3989 = vmatmul.mubr.bf16.gmra.mxu0 %v3836
      %v3990 = vpop.f32.mrf.mxu0
      %v3991 = vadd.f32 0.0, %v3990
      %v3992 = vpop.f32.mrf.mxu0
      %v3993 = vpop.f32.mrf.mxu0
      %v3994 = vadd.f32 0.0, %v3993
      %v3995 = vpop.f32.mrf.mxu0
      %3996 = vmatprep.mubr.bf16.mxu0 0
      %3997 = vmatmul.mubr.bf16.gmra.mxu0 %v3839
      %v3998 = vpop.f32.mrf.mxu0
      %v3999 = vadd.f32 0.0, %v3998
      %v4000 = vpop.f32.mrf.mxu0
      %v4001 = vpop.f32.mrf.mxu0
      %v4002 = vadd.f32 0.0, %v4001
      %v4003 = vpop.f32.mrf.mxu0
      %4004 = vdwg.mxu0
      %v4005 = vadd.f32 %v3535, %v3879
      %v4006 = vadd.f32 %v3536, %v3882
      %v4007 = vadd.f32 %v3537, %v3887
      %v4008 = vadd.f32 %v3538, %v3890
      %v4009 = vadd.f32 %v3539, %v3895
      %v4010 = vadd.f32 %v3540, %v3898
      %v4011 = vadd.f32 %v3541, %v3903
      %v4012 = vadd.f32 %v3542, %v3906
      %v4013 = vadd.f32 %v3543, %v3911
      %v4014 = vadd.f32 %v3544, %v3914
      %v4015 = vadd.f32 %v3545, %v3919
      %v4016 = vadd.f32 %v3546, %v3922
      %v4017 = vadd.f32 %v3547, %v3927
      %v4018 = vadd.f32 %v3548, %v3930
      %v4019 = vadd.f32 %v3549, %v3935
      %v4020 = vadd.f32 %v3550, %v3938
      %v4021 = vadd.f32 %v3551, %v3943
      %v4022 = vadd.f32 %v3552, %v3946
      %v4023 = vadd.f32 %v3553, %v3951
      %v4024 = vadd.f32 %v3554, %v3954
      %v4025 = vadd.f32 %v3555, %v3959
      %v4026 = vadd.f32 %v3556, %v3962
      %v4027 = vadd.f32 %v3557, %v3967
      %v4028 = vadd.f32 %v3558, %v3970
      %v4029 = vadd.f32 %v3559, %v3975
      %v4030 = vadd.f32 %v3560, %v3978
      %v4031 = vadd.f32 %v3561, %v3983
      %v4032 = vadd.f32 %v3562, %v3986
      %v4033 = vadd.f32 %v3563, %v3991
      %v4034 = vadd.f32 %v3564, %v3994
      %v4035 = vadd.f32 %v3565, %v3999
      %v4036 = vadd.f32 %v3566, %v4002
      %s4037 = scalar_lea.vmem [#allocation2], 24
      %v4038 = vld [vmem:[%s4037] sm:$0xf]
      %v4039 = vld [vmem:[%s4037 + $0x4] sm:$0xf]
      %v4040 = vld [vmem:[%s4037 + $0xc] sm:$0xf]
      %v4041 = vld [vmem:[%s4037 + $0x10] sm:$0xf]
      %v4042 = vld [vmem:[%s4037 + $0x18] sm:$0xf]
      %v4043 = vld [vmem:[%s4037 + $0x1c] sm:$0xf]
      %v4044 = vld [vmem:[%s4037 + $0x24] sm:$0xf]
      %v4045 = vld [vmem:[%s4037 + $0x28] sm:$0xf]
      %v4046 = vld [vmem:[%s4037 + $0x30] sm:$0xf]
      %v4047 = vld [vmem:[%s4037 + $0x34] sm:$0xf]
      %v4048 = vld [vmem:[%s4037 + $0x3c] sm:$0xf]
      %v4049 = vld [vmem:[%s4037 + $0x40] sm:$0xf]
      %v4050 = vld [vmem:[%s4037 + $0x48] sm:$0xf]
      %v4051 = vld [vmem:[%s4037 + $0x4c] sm:$0xf]
      %v4052 = vld [vmem:[%s4037 + $0x54] sm:$0xf]
      %v4053 = vld [vmem:[%s4037 + $0x58] sm:$0xf]
      %v4054 = vld [vmem:[%s4037 + $0x60] sm:$0xf]
      %v4055 = vld [vmem:[%s4037 + $0x64] sm:$0xf]
      %v4056 = vld [vmem:[%s4037 + $0x6c] sm:$0xf]
      %v4057 = vld [vmem:[%s4037 + $0x70] sm:$0xf]
      %v4058 = vld [vmem:[%s4037 + $0x78] sm:$0xf]
      %v4059 = vld [vmem:[%s4037 + $0x7c] sm:$0xf]
      %v4060 = vld [vmem:[%s4037 + $0x84] sm:$0xf]
      %v4061 = vld [vmem:[%s4037 + $0x88] sm:$0xf]
      %v4062 = vld [vmem:[%s4037 + $0x90] sm:$0xf]
      %v4063 = vld [vmem:[%s4037 + $0x94] sm:$0xf]
      %v4064 = vld [vmem:[%s4037 + $0x9c] sm:$0xf]
      %v4065 = vld [vmem:[%s4037 + $0xa0] sm:$0xf]
      %v4066 = vld [vmem:[%s4037 + $0xa8] sm:$0xf]
      %v4067 = vld [vmem:[%s4037 + $0xac] sm:$0xf]
      %v4068 = vld [vmem:[%s4037 + $0xb4] sm:$0xf]
      %v4069 = vld [vmem:[%s4037 + $0xb8] sm:$0xf]
      %s4070 = scalar_lea.vmem %s3, 24
      %v4071 = vld [vmem:[%s4070] sm:$0xf]
      %v4104 = vunpack.c.l.b16 %v4038
      %v4105 = vunpack.c.l.b16 %v4039
      %v4106 = vunpack.c.l.b16 %v4040
      %v4107 = vunpack.c.l.b16 %v4041
      %v4108 = vunpack.c.l.b16 %v4042
      %v4109 = vunpack.c.l.b16 %v4043
      %v4110 = vunpack.c.l.b16 %v4044
      %v4111 = vunpack.c.l.b16 %v4045
      %v4112 = vunpack.c.l.b16 %v4046
      %v4113 = vunpack.c.l.b16 %v4047
      %v4114 = vunpack.c.l.b16 %v4048
      %v4115 = vunpack.c.l.b16 %v4049
      %v4116 = vunpack.c.l.b16 %v4050
      %v4117 = vunpack.c.l.b16 %v4051
      %v4118 = vunpack.c.l.b16 %v4052
      %v4119 = vunpack.c.l.b16 %v4053
      %v4120 = vunpack.c.l.b16 %v4054
      %v4121 = vunpack.c.l.b16 %v4055
      %v4122 = vunpack.c.l.b16 %v4056
      %v4123 = vunpack.c.l.b16 %v4057
      %v4124 = vunpack.c.l.b16 %v4058
      %v4125 = vunpack.c.l.b16 %v4059
      %v4126 = vunpack.c.l.b16 %v4060
      %v4127 = vunpack.c.l.b16 %v4061
      %v4128 = vunpack.c.l.b16 %v4062
      %v4129 = vunpack.c.l.b16 %v4063
      %v4130 = vunpack.c.l.b16 %v4064
      %v4131 = vunpack.c.l.b16 %v4065
      %v4132 = vunpack.c.l.b16 %v4066
      %v4133 = vunpack.c.l.b16 %v4067
      %v4134 = vunpack.c.l.b16 %v4068
      %v4135 = vunpack.c.l.b16 %v4069
      %v4136 = vpack.c.b16 %v4105, %v4104
      %v4137 = vpack.c.b16 %v4107, %v4106
      %v4138 = vpack.c.b16 %v4109, %v4108
      %v4139 = vpack.c.b16 %v4111, %v4110
      %v4140 = vpack.c.b16 %v4113, %v4112
      %v4141 = vpack.c.b16 %v4115, %v4114
      %v4142 = vpack.c.b16 %v4117, %v4116
      %v4143 = vpack.c.b16 %v4119, %v4118
      %v4144 = vpack.c.b16 %v4121, %v4120
      %v4145 = vpack.c.b16 %v4123, %v4122
      %v4146 = vpack.c.b16 %v4125, %v4124
      %v4147 = vpack.c.b16 %v4127, %v4126
      %v4148 = vpack.c.b16 %v4129, %v4128
      %v4149 = vpack.c.b16 %v4131, %v4130
      %v4150 = vpack.c.b16 %v4133, %v4132
      %v4151 = vpack.c.b16 %v4135, %v4134
      %v4153 = vsel %vm1520, %v4136, 0
      %v4156 = vsel %vm1520, %v4137, 0
      %v4159 = vsel %vm1520, %v4138, 0
      %v4162 = vsel %vm1520, %v4139, 0
      %v4165 = vsel %vm1520, %v4140, 0
      %v4168 = vsel %vm1520, %v4141, 0
      %v4171 = vsel %vm1520, %v4142, 0
      %v4174 = vsel %vm1520, %v4143, 0
      %v4177 = vsel %vm1520, %v4144, 0
      %v4180 = vsel %vm1520, %v4145, 0
      %v4183 = vsel %vm1520, %v4146, 0
      %v4186 = vsel %vm1520, %v4147, 0
      %v4189 = vsel %vm1520, %v4148, 0
      %v4192 = vsel %vm1520, %v4149, 0
      %v4195 = vsel %vm1520, %v4150, 0
      %v4198 = vsel %vm1520, %v4151, 0
      %v4201 = vsel %vm1569, %v4071, 0
      %4203 = vmatprep.subr.bf16.mxu0 0
      %4204 = vmatpush1.bf16.msra.mxu0 0
      %4205 = vmatprep.subr.bf16.mxu0 0
      %4206 = vmatpush1.bf16.msra.mxu0 0
      %4207 = vmatprep.subr.bf16.mxu0 0
      %4208 = vmatpush1.bf16.msra.mxu0 0
      %4209 = vmatprep.subr.bf16.mxu0 0
      %4210 = vmatpush1.bf16.msra.mxu0 0
      %4211 = vmatprep.subr.bf16.mxu0 0
      %4212 = vmatpush1.bf16.msra.mxu0 0
      %4213 = vmatprep.subr.bf16.mxu0 0
      %4214 = vmatpush1.bf16.msra.mxu0 0
      %4215 = vmatprep.subr.bf16.mxu0 0
      %4216 = vmatpush1.bf16.msra.mxu0 0
      %4217 = vmatprep.subr.bf16.mxu0 0
      %4218 = vmatpush1.bf16.msra.mxu0 %v4201
      %4219 = vmatprep.subr.bf16.mxu0 0
      %4220 = vmatpush2.bf16.msra.mxu0 0
      %4221 = vmatprep.subr.bf16.mxu0 0
      %4222 = vmatpush2.bf16.msra.mxu0 0
      %4223 = vmatprep.subr.bf16.mxu0 0
      %4224 = vmatpush2.bf16.msra.mxu0 0
      %4225 = vmatprep.subr.bf16.mxu0 0
      %4226 = vmatpush2.bf16.msra.mxu0 0
      %4227 = vmatprep.subr.bf16.mxu0 0
      %4228 = vmatpush2.bf16.msra.mxu0 0
      %4229 = vmatprep.subr.bf16.mxu0 0
      %4230 = vmatpush2.bf16.msra.mxu0 0
      %4231 = vmatprep.subr.bf16.mxu0 0
      %4232 = vmatpush2.bf16.msra.mxu0 0
      %4233 = vmatprep.subr.bf16.mxu0 0
      %4234 = vmatpush2.bf16.msra.mxu0 0
      %4235 = vmatprep.mubr.bf16.mxu0 0
      %4236 = vmatmul.mubr.bf16.gmra.mxu0 %v4153
      %v4237 = vpop.f32.mrf.mxu0
      %v4238 = vadd.f32 0.0, %v4237
      %v4239 = vpop.f32.mrf.mxu0
      %v4240 = vpop.f32.mrf.mxu0
      %v4241 = vadd.f32 0.0, %v4240
      %v4242 = vpop.f32.mrf.mxu0
      %4243 = vmatprep.mubr.bf16.mxu0 0
      %4244 = vmatmul.mubr.bf16.gmra.mxu0 %v4156
      %v4245 = vpop.f32.mrf.mxu0
      %v4246 = vadd.f32 0.0, %v4245
      %v4247 = vpop.f32.mrf.mxu0
      %v4248 = vpop.f32.mrf.mxu0
      %v4249 = vadd.f32 0.0, %v4248
      %v4250 = vpop.f32.mrf.mxu0
      %4251 = vmatprep.mubr.bf16.mxu0 0
      %4252 = vmatmul.mubr.bf16.gmra.mxu0 %v4159
      %v4253 = vpop.f32.mrf.mxu0
      %v4254 = vadd.f32 0.0, %v4253
      %v4255 = vpop.f32.mrf.mxu0
      %v4256 = vpop.f32.mrf.mxu0
      %v4257 = vadd.f32 0.0, %v4256
      %v4258 = vpop.f32.mrf.mxu0
      %4259 = vmatprep.mubr.bf16.mxu0 0
      %4260 = vmatmul.mubr.bf16.gmra.mxu0 %v4162
      %v4261 = vpop.f32.mrf.mxu0
      %v4262 = vadd.f32 0.0, %v4261
      %v4263 = vpop.f32.mrf.mxu0
      %v4264 = vpop.f32.mrf.mxu0
      %v4265 = vadd.f32 0.0, %v4264
      %v4266 = vpop.f32.mrf.mxu0
      %4267 = vmatprep.mubr.bf16.mxu0 0
      %4268 = vmatmul.mubr.bf16.gmra.mxu0 %v4165
      %v4269 = vpop.f32.mrf.mxu0
      %v4270 = vadd.f32 0.0, %v4269
      %v4271 = vpop.f32.mrf.mxu0
      %v4272 = vpop.f32.mrf.mxu0
      %v4273 = vadd.f32 0.0, %v4272
      %v4274 = vpop.f32.mrf.mxu0
      %4275 = vmatprep.mubr.bf16.mxu0 0
      %4276 = vmatmul.mubr.bf16.gmra.mxu0 %v4168
      %v4277 = vpop.f32.mrf.mxu0
      %v4278 = vadd.f32 0.0, %v4277
      %v4279 = vpop.f32.mrf.mxu0
      %v4280 = vpop.f32.mrf.mxu0
      %v4281 = vadd.f32 0.0, %v4280
      %v4282 = vpop.f32.mrf.mxu0
      %4283 = vmatprep.mubr.bf16.mxu0 0
      %4284 = vmatmul.mubr.bf16.gmra.mxu0 %v4171
      %v4285 = vpop.f32.mrf.mxu0
      %v4286 = vadd.f32 0.0, %v4285
      %v4287 = vpop.f32.mrf.mxu0
      %v4288 = vpop.f32.mrf.mxu0
      %v4289 = vadd.f32 0.0, %v4288
      %v4290 = vpop.f32.mrf.mxu0
      %4291 = vmatprep.mubr.bf16.mxu0 0
      %4292 = vmatmul.mubr.bf16.gmra.mxu0 %v4174
      %v4293 = vpop.f32.mrf.mxu0
      %v4294 = vadd.f32 0.0, %v4293
      %v4295 = vpop.f32.mrf.mxu0
      %v4296 = vpop.f32.mrf.mxu0
      %v4297 = vadd.f32 0.0, %v4296
      %v4298 = vpop.f32.mrf.mxu0
      %4299 = vmatprep.mubr.bf16.mxu0 0
      %4300 = vmatmul.mubr.bf16.gmra.mxu0 %v4177
      %v4301 = vpop.f32.mrf.mxu0
      %v4302 = vadd.f32 0.0, %v4301
      %v4303 = vpop.f32.mrf.mxu0
      %v4304 = vpop.f32.mrf.mxu0
      %v4305 = vadd.f32 0.0, %v4304
      %v4306 = vpop.f32.mrf.mxu0
      %4307 = vmatprep.mubr.bf16.mxu0 0
      %4308 = vmatmul.mubr.bf16.gmra.mxu0 %v4180
      %v4309 = vpop.f32.mrf.mxu0
      %v4310 = vadd.f32 0.0, %v4309
      %v4311 = vpop.f32.mrf.mxu0
      %v4312 = vpop.f32.mrf.mxu0
      %v4313 = vadd.f32 0.0, %v4312
      %v4314 = vpop.f32.mrf.mxu0
      %4315 = vmatprep.mubr.bf16.mxu0 0
      %4316 = vmatmul.mubr.bf16.gmra.mxu0 %v4183
      %v4317 = vpop.f32.mrf.mxu0
      %v4318 = vadd.f32 0.0, %v4317
      %v4319 = vpop.f32.mrf.mxu0
      %v4320 = vpop.f32.mrf.mxu0
      %v4321 = vadd.f32 0.0, %v4320
      %v4322 = vpop.f32.mrf.mxu0
      %4323 = vmatprep.mubr.bf16.mxu0 0
      %4324 = vmatmul.mubr.bf16.gmra.mxu0 %v4186
      %v4325 = vpop.f32.mrf.mxu0
      %v4326 = vadd.f32 0.0, %v4325
      %v4327 = vpop.f32.mrf.mxu0
      %v4328 = vpop.f32.mrf.mxu0
      %v4329 = vadd.f32 0.0, %v4328
      %v4330 = vpop.f32.mrf.mxu0
      %4331 = vmatprep.mubr.bf16.mxu0 0
      %4332 = vmatmul.mubr.bf16.gmra.mxu0 %v4189
      %v4333 = vpop.f32.mrf.mxu0
      %v4334 = vadd.f32 0.0, %v4333
      %v4335 = vpop.f32.mrf.mxu0
      %v4336 = vpop.f32.mrf.mxu0
      %v4337 = vadd.f32 0.0, %v4336
      %v4338 = vpop.f32.mrf.mxu0
      %4339 = vmatprep.mubr.bf16.mxu0 0
      %4340 = vmatmul.mubr.bf16.gmra.mxu0 %v4192
      %v4341 = vpop.f32.mrf.mxu0
      %v4342 = vadd.f32 0.0, %v4341
      %v4343 = vpop.f32.mrf.mxu0
      %v4344 = vpop.f32.mrf.mxu0
      %v4345 = vadd.f32 0.0, %v4344
      %v4346 = vpop.f32.mrf.mxu0
      %4347 = vmatprep.mubr.bf16.mxu0 0
      %4348 = vmatmul.mubr.bf16.gmra.mxu0 %v4195
      %v4349 = vpop.f32.mrf.mxu0
      %v4350 = vadd.f32 0.0, %v4349
      %v4351 = vpop.f32.mrf.mxu0
      %v4352 = vpop.f32.mrf.mxu0
      %v4353 = vadd.f32 0.0, %v4352
      %v4354 = vpop.f32.mrf.mxu0
      %4355 = vmatprep.mubr.bf16.mxu0 0
      %4356 = vmatmul.mubr.bf16.gmra.mxu0 %v4198
      %v4357 = vpop.f32.mrf.mxu0
      %v4358 = vadd.f32 0.0, %v4357
      %v4359 = vpop.f32.mrf.mxu0
      %v4360 = vpop.f32.mrf.mxu0
      %v4361 = vadd.f32 0.0, %v4360
      %v4362 = vpop.f32.mrf.mxu0
      %4363 = vdwg.mxu0
      %v4364 = vadd.f32 %v4005, %v4238
      %v4365 = vadd.f32 %v4006, %v4241
      %v4366 = vadd.f32 %v4007, %v4246
      %v4367 = vadd.f32 %v4008, %v4249
      %v4368 = vadd.f32 %v4009, %v4254
      %v4369 = vadd.f32 %v4010, %v4257
      %v4370 = vadd.f32 %v4011, %v4262
      %v4371 = vadd.f32 %v4012, %v4265
      %v4372 = vadd.f32 %v4013, %v4270
      %v4373 = vadd.f32 %v4014, %v4273
      %v4374 = vadd.f32 %v4015, %v4278
      %v4375 = vadd.f32 %v4016, %v4281
      %v4376 = vadd.f32 %v4017, %v4286
      %v4377 = vadd.f32 %v4018, %v4289
      %v4378 = vadd.f32 %v4019, %v4294
      %v4379 = vadd.f32 %v4020, %v4297
      %v4380 = vadd.f32 %v4021, %v4302
      %v4381 = vadd.f32 %v4022, %v4305
      %v4382 = vadd.f32 %v4023, %v4310
      %v4383 = vadd.f32 %v4024, %v4313
      %v4384 = vadd.f32 %v4025, %v4318
      %v4385 = vadd.f32 %v4026, %v4321
      %v4386 = vadd.f32 %v4027, %v4326
      %v4387 = vadd.f32 %v4028, %v4329
      %v4388 = vadd.f32 %v4029, %v4334
      %v4389 = vadd.f32 %v4030, %v4337
      %v4390 = vadd.f32 %v4031, %v4342
      %v4391 = vadd.f32 %v4032, %v4345
      %v4392 = vadd.f32 %v4033, %v4350
      %v4393 = vadd.f32 %v4034, %v4353
      %v4394 = vadd.f32 %v4035, %v4358
      %v4395 = vadd.f32 %v4036, %v4361
      %v4396 = vld [vmem:[%s4037] sm:$0xf]
      %v4397 = vld [vmem:[%s4037 + $0x4] sm:$0xf]
      %v4398 = vld [vmem:[%s4037 + $0x8] sm:$0x1]
      %v4399 = vld [vmem:[%s4037 + $0xc] sm:$0xf]
      %v4400 = vld [vmem:[%s4037 + $0x10] sm:$0xf]
      %v4401 = vld [vmem:[%s4037 + $0x14] sm:$0x1]
      %v4402 = vld [vmem:[%s4037 + $0x18] sm:$0xf]
      %v4403 = vld [vmem:[%s4037 + $0x1c] sm:$0xf]
      %v4404 = vld [vmem:[%s4037 + $0x20] sm:$0x1]
      %v4405 = vld [vmem:[%s4037 + $0x24] sm:$0xf]
      %v4406 = vld [vmem:[%s4037 + $0x28] sm:$0xf]
      %v4407 = vld [vmem:[%s4037 + $0x2c] sm:$0x1]
      %v4408 = vld [vmem:[%s4037 + $0x30] sm:$0xf]
      %v4409 = vld [vmem:[%s4037 + $0x34] sm:$0xf]
      %v4410 = vld [vmem:[%s4037 + $0x38] sm:$0x1]
      %v4411 = vld [vmem:[%s4037 + $0x3c] sm:$0xf]
      %v4412 = vld [vmem:[%s4037 + $0x40] sm:$0xf]
      %v4413 = vld [vmem:[%s4037 + $0x44] sm:$0x1]
      %v4414 = vld [vmem:[%s4037 + $0x48] sm:$0xf]
      %v4415 = vld [vmem:[%s4037 + $0x4c] sm:$0xf]
      %v4416 = vld [vmem:[%s4037 + $0x50] sm:$0x1]
      %v4417 = vld [vmem:[%s4037 + $0x54] sm:$0xf]
      %v4418 = vld [vmem:[%s4037 + $0x58] sm:$0xf]
      %v4419 = vld [vmem:[%s4037 + $0x5c] sm:$0x1]
      %v4420 = vld [vmem:[%s4037 + $0x60] sm:$0xf]
      %v4421 = vld [vmem:[%s4037 + $0x64] sm:$0xf]
      %v4422 = vld [vmem:[%s4037 + $0x68] sm:$0x1]
      %v4423 = vld [vmem:[%s4037 + $0x6c] sm:$0xf]
      %v4424 = vld [vmem:[%s4037 + $0x70] sm:$0xf]
      %v4425 = vld [vmem:[%s4037 + $0x74] sm:$0x1]
      %v4426 = vld [vmem:[%s4037 + $0x78] sm:$0xf]
      %v4427 = vld [vmem:[%s4037 + $0x7c] sm:$0xf]
      %v4428 = vld [vmem:[%s4037 + $0x80] sm:$0x1]
      %v4429 = vld [vmem:[%s4037 + $0x84] sm:$0xf]
      %v4430 = vld [vmem:[%s4037 + $0x88] sm:$0xf]
      %v4431 = vld [vmem:[%s4037 + $0x8c] sm:$0x1]
      %v4432 = vld [vmem:[%s4037 + $0x90] sm:$0xf]
      %v4433 = vld [vmem:[%s4037 + $0x94] sm:$0xf]
      %v4434 = vld [vmem:[%s4037 + $0x98] sm:$0x1]
      %v4435 = vld [vmem:[%s4037 + $0x9c] sm:$0xf]
      %v4436 = vld [vmem:[%s4037 + $0xa0] sm:$0xf]
      %v4437 = vld [vmem:[%s4037 + $0xa4] sm:$0x1]
      %v4438 = vld [vmem:[%s4037 + $0xa8] sm:$0xf]
      %v4439 = vld [vmem:[%s4037 + $0xac] sm:$0xf]
      %v4440 = vld [vmem:[%s4037 + $0xb0] sm:$0x1]
      %v4441 = vld [vmem:[%s4037 + $0xb4] sm:$0xf]
      %v4442 = vld [vmem:[%s4037 + $0xb8] sm:$0xf]
      %v4443 = vld [vmem:[%s4037 + $0xbc] sm:$0x1]
      %v4445 = vshrl.u32 %v4396, 16
      %v4447 = vrot.slane %v4445, 4
      %v4448 = vshll.u32 %v4396, 16
      %v4450 = vrot.slane %v4448, 5
      %v4451 = vor.u32 %v4447, %v4450
      %v4452 = vrot.slane %v4451, 4
      %v4454 = vshll.u32 %v4397, 16
      %v4456 = vrot.slane %v4454, 5
      %v4457 = vsel %vm1085, %v4452, %v4456
      %v4458 = vshrl.u32 %v4397, 16
      %v4460 = vrot.slane %v4458, 4
      %v4461 = vor.u32 %v4460, %v4456
      %v4462 = vrot.slane %v4461, 4
      %v4464 = vshll.u32 %v4398, 16
      %v4466 = vrot.slane %v4464, 5
      %v4467 = vsel %vm1085, %v4462, %v4466
      %v4469 = vshrl.u32 %v4399, 16
      %v4471 = vrot.slane %v4469, 4
      %v4472 = vshll.u32 %v4399, 16
      %v4474 = vrot.slane %v4472, 5
      %v4475 = vor.u32 %v4471, %v4474
      %v4476 = vrot.slane %v4475, 4
      %v4478 = vshll.u32 %v4400, 16
      %v4480 = vrot.slane %v4478, 5
      %v4481 = vsel %vm1085, %v4476, %v4480
      %v4482 = vshrl.u32 %v4400, 16
      %v4484 = vrot.slane %v4482, 4
      %v4485 = vor.u32 %v4484, %v4480
      %v4486 = vrot.slane %v4485, 4
      %v4488 = vshll.u32 %v4401, 16
      %v4490 = vrot.slane %v4488, 5
      %v4491 = vsel %vm1085, %v4486, %v4490
      %v4493 = vshrl.u32 %v4402, 16
      %v4495 = vrot.slane %v4493, 4
      %v4496 = vshll.u32 %v4402, 16
      %v4498 = vrot.slane %v4496, 5
      %v4499 = vor.u32 %v4495, %v4498
      %v4500 = vrot.slane %v4499, 4
      %v4502 = vshll.u32 %v4403, 16
      %v4504 = vrot.slane %v4502, 5
      %v4505 = vsel %vm1085, %v4500, %v4504
      %v4506 = vshrl.u32 %v4403, 16
      %v4508 = vrot.slane %v4506, 4
      %v4509 = vor.u32 %v4508, %v4504
      %v4510 = vrot.slane %v4509, 4
      %v4512 = vshll.u32 %v4404, 16
      %v4514 = vrot.slane %v4512, 5
      %v4515 = vsel %vm1085, %v4510, %v4514
      %v4517 = vshrl.u32 %v4405, 16
      %v4519 = vrot.slane %v4517, 4
      %v4520 = vshll.u32 %v4405, 16
      %v4522 = vrot.slane %v4520, 5
      %v4523 = vor.u32 %v4519, %v4522
      %v4524 = vrot.slane %v4523, 4
      %v4526 = vshll.u32 %v4406, 16
      %v4528 = vrot.slane %v4526, 5
      %v4529 = vsel %vm1085, %v4524, %v4528
      %v4530 = vshrl.u32 %v4406, 16
      %v4532 = vrot.slane %v4530, 4
      %v4533 = vor.u32 %v4532, %v4528
      %v4534 = vrot.slane %v4533, 4
      %v4536 = vshll.u32 %v4407, 16
      %v4538 = vrot.slane %v4536, 5
      %v4539 = vsel %vm1085, %v4534, %v4538
      %v4541 = vshrl.u32 %v4408, 16
      %v4543 = vrot.slane %v4541, 4
      %v4544 = vshll.u32 %v4408, 16
      %v4546 = vrot.slane %v4544, 5
      %v4547 = vor.u32 %v4543, %v4546
      %v4548 = vrot.slane %v4547, 4
      %v4550 = vshll.u32 %v4409, 16
      %v4552 = vrot.slane %v4550, 5
      %v4553 = vsel %vm1085, %v4548, %v4552
      %v4554 = vshrl.u32 %v4409, 16
      %v4556 = vrot.slane %v4554, 4
      %v4557 = vor.u32 %v4556, %v4552
      %v4558 = vrot.slane %v4557, 4
      %v4560 = vshll.u32 %v4410, 16
      %v4562 = vrot.slane %v4560, 5
      %v4563 = vsel %vm1085, %v4558, %v4562
      %v4565 = vshrl.u32 %v4411, 16
      %v4567 = vrot.slane %v4565, 4
      %v4568 = vshll.u32 %v4411, 16
      %v4570 = vrot.slane %v4568, 5
      %v4571 = vor.u32 %v4567, %v4570
      %v4572 = vrot.slane %v4571, 4
      %v4574 = vshll.u32 %v4412, 16
      %v4576 = vrot.slane %v4574, 5
      %v4577 = vsel %vm1085, %v4572, %v4576
      %v4578 = vshrl.u32 %v4412, 16
      %v4580 = vrot.slane %v4578, 4
      %v4581 = vor.u32 %v4580, %v4576
      %v4582 = vrot.slane %v4581, 4
      %v4584 = vshll.u32 %v4413, 16
      %v4586 = vrot.slane %v4584, 5
      %v4587 = vsel %vm1085, %v4582, %v4586
      %v4589 = vshrl.u32 %v4414, 16
      %v4591 = vrot.slane %v4589, 4
      %v4592 = vshll.u32 %v4414, 16
      %v4594 = vrot.slane %v4592, 5
      %v4595 = vor.u32 %v4591, %v4594
      %v4596 = vrot.slane %v4595, 4
      %v4598 = vshll.u32 %v4415, 16
      %v4600 = vrot.slane %v4598, 5
      %v4601 = vsel %vm1085, %v4596, %v4600
      %v4602 = vshrl.u32 %v4415, 16
      %v4604 = vrot.slane %v4602, 4
      %v4605 = vor.u32 %v4604, %v4600
      %v4606 = vrot.slane %v4605, 4
      %v4608 = vshll.u32 %v4416, 16
      %v4610 = vrot.slane %v4608, 5
      %v4611 = vsel %vm1085, %v4606, %v4610
      %v4613 = vshrl.u32 %v4417, 16
      %v4615 = vrot.slane %v4613, 4
      %v4616 = vshll.u32 %v4417, 16
      %v4618 = vrot.slane %v4616, 5
      %v4619 = vor.u32 %v4615, %v4618
      %v4620 = vrot.slane %v4619, 4
      %v4622 = vshll.u32 %v4418, 16
      %v4624 = vrot.slane %v4622, 5
      %v4625 = vsel %vm1085, %v4620, %v4624
      %v4626 = vshrl.u32 %v4418, 16
      %v4628 = vrot.slane %v4626, 4
      %v4629 = vor.u32 %v4628, %v4624
      %v4630 = vrot.slane %v4629, 4
      %v4632 = vshll.u32 %v4419, 16
      %v4634 = vrot.slane %v4632, 5
      %v4635 = vsel %vm1085, %v4630, %v4634
      %v4637 = vshrl.u32 %v4420, 16
      %v4639 = vrot.slane %v4637, 4
      %v4640 = vshll.u32 %v4420, 16
      %v4642 = vrot.slane %v4640, 5
      %v4643 = vor.u32 %v4639, %v4642
      %v4644 = vrot.slane %v4643, 4
      %v4646 = vshll.u32 %v4421, 16
      %v4648 = vrot.slane %v4646, 5
      %v4649 = vsel %vm1085, %v4644, %v4648
      %v4650 = vshrl.u32 %v4421, 16
      %v4652 = vrot.slane %v4650, 4
      %v4653 = vor.u32 %v4652, %v4648
      %v4654 = vrot.slane %v4653, 4
      %v4656 = vshll.u32 %v4422, 16
      %v4658 = vrot.slane %v4656, 5
      %v4659 = vsel %vm1085, %v4654, %v4658
      %v4661 = vshrl.u32 %v4423, 16
      %v4663 = vrot.slane %v4661, 4
      %v4664 = vshll.u32 %v4423, 16
      %v4666 = vrot.slane %v4664, 5
      %v4667 = vor.u32 %v4663, %v4666
      %v4668 = vrot.slane %v4667, 4
      %v4670 = vshll.u32 %v4424, 16
      %v4672 = vrot.slane %v4670, 5
      %v4673 = vsel %vm1085, %v4668, %v4672
      %v4674 = vshrl.u32 %v4424, 16
      %v4676 = vrot.slane %v4674, 4
      %v4677 = vor.u32 %v4676, %v4672
      %v4678 = vrot.slane %v4677, 4
      %v4680 = vshll.u32 %v4425, 16
      %v4682 = vrot.slane %v4680, 5
      %v4683 = vsel %vm1085, %v4678, %v4682
      %v4685 = vshrl.u32 %v4426, 16
      %v4687 = vrot.slane %v4685, 4
      %v4688 = vshll.u32 %v4426, 16
      %v4690 = vrot.slane %v4688, 5
      %v4691 = vor.u32 %v4687, %v4690
      %v4692 = vrot.slane %v4691, 4
      %v4694 = vshll.u32 %v4427, 16
      %v4696 = vrot.slane %v4694, 5
      %v4697 = vsel %vm1085, %v4692, %v4696
      %v4698 = vshrl.u32 %v4427, 16
      %v4700 = vrot.slane %v4698, 4
      %v4701 = vor.u32 %v4700, %v4696
      %v4702 = vrot.slane %v4701, 4
      %v4704 = vshll.u32 %v4428, 16
      %v4706 = vrot.slane %v4704, 5
      %v4707 = vsel %vm1085, %v4702, %v4706
      %v4709 = vshrl.u32 %v4429, 16
      %v4711 = vrot.slane %v4709, 4
      %v4712 = vshll.u32 %v4429, 16
      %v4714 = vrot.slane %v4712, 5
      %v4715 = vor.u32 %v4711, %v4714
      %v4716 = vrot.slane %v4715, 4
      %v4718 = vshll.u32 %v4430, 16
      %v4720 = vrot.slane %v4718, 5
      %v4721 = vsel %vm1085, %v4716, %v4720
      %v4722 = vshrl.u32 %v4430, 16
      %v4724 = vrot.slane %v4722, 4
      %v4725 = vor.u32 %v4724, %v4720
      %v4726 = vrot.slane %v4725, 4
      %v4728 = vshll.u32 %v4431, 16
      %v4730 = vrot.slane %v4728, 5
      %v4731 = vsel %vm1085, %v4726, %v4730
      %v4733 = vshrl.u32 %v4432, 16
      %v4735 = vrot.slane %v4733, 4
      %v4736 = vshll.u32 %v4432, 16
      %v4738 = vrot.slane %v4736, 5
      %v4739 = vor.u32 %v4735, %v4738
      %v4740 = vrot.slane %v4739, 4
      %v4742 = vshll.u32 %v4433, 16
      %v4744 = vrot.slane %v4742, 5
      %v4745 = vsel %vm1085, %v4740, %v4744
      %v4746 = vshrl.u32 %v4433, 16
      %v4748 = vrot.slane %v4746, 4
      %v4749 = vor.u32 %v4748, %v4744
      %v4750 = vrot.slane %v4749, 4
      %v4752 = vshll.u32 %v4434, 16
      %v4754 = vrot.slane %v4752, 5
      %v4755 = vsel %vm1085, %v4750, %v4754
      %v4757 = vshrl.u32 %v4435, 16
      %v4759 = vrot.slane %v4757, 4
      %v4760 = vshll.u32 %v4435, 16
      %v4762 = vrot.slane %v4760, 5
      %v4763 = vor.u32 %v4759, %v4762
      %v4764 = vrot.slane %v4763, 4
      %v4766 = vshll.u32 %v4436, 16
      %v4768 = vrot.slane %v4766, 5
      %v4769 = vsel %vm1085, %v4764, %v4768
      %v4770 = vshrl.u32 %v4436, 16
      %v4772 = vrot.slane %v4770, 4
      %v4773 = vor.u32 %v4772, %v4768
      %v4774 = vrot.slane %v4773, 4
      %v4776 = vshll.u32 %v4437, 16
      %v4778 = vrot.slane %v4776, 5
      %v4779 = vsel %vm1085, %v4774, %v4778
      %v4781 = vshrl.u32 %v4438, 16
      %v4783 = vrot.slane %v4781, 4
      %v4784 = vshll.u32 %v4438, 16
      %v4786 = vrot.slane %v4784, 5
      %v4787 = vor.u32 %v4783, %v4786
      %v4788 = vrot.slane %v4787, 4
      %v4790 = vshll.u32 %v4439, 16
      %v4792 = vrot.slane %v4790, 5
      %v4793 = vsel %vm1085, %v4788, %v4792
      %v4794 = vshrl.u32 %v4439, 16
      %v4796 = vrot.slane %v4794, 4
      %v4797 = vor.u32 %v4796, %v4792
      %v4798 = vrot.slane %v4797, 4
      %v4800 = vshll.u32 %v4440, 16
      %v4802 = vrot.slane %v4800, 5
      %v4803 = vsel %vm1085, %v4798, %v4802
      %v4805 = vshrl.u32 %v4441, 16
      %v4807 = vrot.slane %v4805, 4
      %v4808 = vshll.u32 %v4441, 16
      %v4810 = vrot.slane %v4808, 5
      %v4811 = vor.u32 %v4807, %v4810
      %v4812 = vrot.slane %v4811, 4
      %v4814 = vshll.u32 %v4442, 16
      %v4816 = vrot.slane %v4814, 5
      %v4817 = vsel %vm1085, %v4812, %v4816
      %v4818 = vshrl.u32 %v4442, 16
      %v4820 = vrot.slane %v4818, 4
      %v4821 = vor.u32 %v4820, %v4816
      %v4822 = vrot.slane %v4821, 4
      %v4824 = vshll.u32 %v4443, 16
      %v4826 = vrot.slane %v4824, 5
      %v4827 = vsel %vm1085, %v4822, %v4826
      %s4828 = scalar_lea.vmem %s3, 28
      %v4829 = vld [vmem:[%s4828] sm:$0xf]
      %v4830 = vunpack.c.l.b16 %v4457
      %v4831 = vunpack.c.l.b16 %v4467
      %v4832 = vunpack.c.l.b16 %v4481
      %v4833 = vunpack.c.l.b16 %v4491
      %v4834 = vunpack.c.l.b16 %v4505
      %v4835 = vunpack.c.l.b16 %v4515
      %v4836 = vunpack.c.l.b16 %v4529
      %v4837 = vunpack.c.l.b16 %v4539
      %v4838 = vunpack.c.l.b16 %v4553
      %v4839 = vunpack.c.l.b16 %v4563
      %v4840 = vunpack.c.l.b16 %v4577
      %v4841 = vunpack.c.l.b16 %v4587
      %v4842 = vunpack.c.l.b16 %v4601
      %v4843 = vunpack.c.l.b16 %v4611
      %v4844 = vunpack.c.l.b16 %v4625
      %v4845 = vunpack.c.l.b16 %v4635
      %v4846 = vunpack.c.l.b16 %v4649
      %v4847 = vunpack.c.l.b16 %v4659
      %v4848 = vunpack.c.l.b16 %v4673
      %v4849 = vunpack.c.l.b16 %v4683
      %v4850 = vunpack.c.l.b16 %v4697
      %v4851 = vunpack.c.l.b16 %v4707
      %v4852 = vunpack.c.l.b16 %v4721
      %v4853 = vunpack.c.l.b16 %v4731
      %v4854 = vunpack.c.l.b16 %v4745
      %v4855 = vunpack.c.l.b16 %v4755
      %v4856 = vunpack.c.l.b16 %v4769
      %v4857 = vunpack.c.l.b16 %v4779
      %v4858 = vunpack.c.l.b16 %v4793
      %v4859 = vunpack.c.l.b16 %v4803
      %v4860 = vunpack.c.l.b16 %v4817
      %v4861 = vunpack.c.l.b16 %v4827
      %v4862 = vpack.c.b16 %v4831, %v4830
      %v4863 = vpack.c.b16 %v4833, %v4832
      %v4864 = vpack.c.b16 %v4835, %v4834
      %v4865 = vpack.c.b16 %v4837, %v4836
      %v4866 = vpack.c.b16 %v4839, %v4838
      %v4867 = vpack.c.b16 %v4841, %v4840
      %v4868 = vpack.c.b16 %v4843, %v4842
      %v4869 = vpack.c.b16 %v4845, %v4844
      %v4870 = vpack.c.b16 %v4847, %v4846
      %v4871 = vpack.c.b16 %v4849, %v4848
      %v4872 = vpack.c.b16 %v4851, %v4850
      %v4873 = vpack.c.b16 %v4853, %v4852
      %v4874 = vpack.c.b16 %v4855, %v4854
      %v4875 = vpack.c.b16 %v4857, %v4856
      %v4876 = vpack.c.b16 %v4859, %v4858
      %v4877 = vpack.c.b16 %v4861, %v4860
      %v4879 = vsel %vm1520, %v4862, 0
      %v4882 = vsel %vm1520, %v4863, 0
      %v4885 = vsel %vm1520, %v4864, 0
      %v4888 = vsel %vm1520, %v4865, 0
      %v4891 = vsel %vm1520, %v4866, 0
      %v4894 = vsel %vm1520, %v4867, 0
      %v4897 = vsel %vm1520, %v4868, 0
      %v4900 = vsel %vm1520, %v4869, 0
      %v4903 = vsel %vm1520, %v4870, 0
      %v4906 = vsel %vm1520, %v4871, 0
      %v4909 = vsel %vm1520, %v4872, 0
      %v4912 = vsel %vm1520, %v4873, 0
      %v4915 = vsel %vm1520, %v4874, 0
      %v4918 = vsel %vm1520, %v4875, 0
      %v4921 = vsel %vm1520, %v4876, 0
      %v4924 = vsel %vm1520, %v4877, 0
      %v4927 = vsel %vm1569, %v4829, 0
      %4929 = vmatprep.subr.bf16.mxu0 0
      %4930 = vmatpush1.bf16.msra.mxu0 0
      %4931 = vmatprep.subr.bf16.mxu0 0
      %4932 = vmatpush1.bf16.msra.mxu0 0
      %4933 = vmatprep.subr.bf16.mxu0 0
      %4934 = vmatpush1.bf16.msra.mxu0 0
      %4935 = vmatprep.subr.bf16.mxu0 0
      %4936 = vmatpush1.bf16.msra.mxu0 0
      %4937 = vmatprep.subr.bf16.mxu0 0
      %4938 = vmatpush1.bf16.msra.mxu0 0
      %4939 = vmatprep.subr.bf16.mxu0 0
      %4940 = vmatpush1.bf16.msra.mxu0 0
      %4941 = vmatprep.subr.bf16.mxu0 0
      %4942 = vmatpush1.bf16.msra.mxu0 0
      %4943 = vmatprep.subr.bf16.mxu0 0
      %4944 = vmatpush1.bf16.msra.mxu0 %v4927
      %4945 = vmatprep.subr.bf16.mxu0 0
      %4946 = vmatpush2.bf16.msra.mxu0 0
      %4947 = vmatprep.subr.bf16.mxu0 0
      %4948 = vmatpush2.bf16.msra.mxu0 0
      %4949 = vmatprep.subr.bf16.mxu0 0
      %4950 = vmatpush2.bf16.msra.mxu0 0
      %4951 = vmatprep.subr.bf16.mxu0 0
      %4952 = vmatpush2.bf16.msra.mxu0 0
      %4953 = vmatprep.subr.bf16.mxu0 0
      %4954 = vmatpush2.bf16.msra.mxu0 0
      %4955 = vmatprep.subr.bf16.mxu0 0
      %4956 = vmatpush2.bf16.msra.mxu0 0
      %4957 = vmatprep.subr.bf16.mxu0 0
      %4958 = vmatpush2.bf16.msra.mxu0 0
      %4959 = vmatprep.subr.bf16.mxu0 0
      %4960 = vmatpush2.bf16.msra.mxu0 0
      %4961 = vmatprep.mubr.bf16.mxu0 0
      %4962 = vmatmul.mubr.bf16.gmra.mxu0 %v4879
      %v4963 = vpop.f32.mrf.mxu0
      %v4964 = vadd.f32 0.0, %v4963
      %v4965 = vpop.f32.mrf.mxu0
      %v4966 = vpop.f32.mrf.mxu0
      %v4967 = vadd.f32 0.0, %v4966
      %v4968 = vpop.f32.mrf.mxu0
      %4969 = vmatprep.mubr.bf16.mxu0 0
      %4970 = vmatmul.mubr.bf16.gmra.mxu0 %v4882
      %v4971 = vpop.f32.mrf.mxu0
      %v4972 = vadd.f32 0.0, %v4971
      %v4973 = vpop.f32.mrf.mxu0
      %v4974 = vpop.f32.mrf.mxu0
      %v4975 = vadd.f32 0.0, %v4974
      %v4976 = vpop.f32.mrf.mxu0
      %4977 = vmatprep.mubr.bf16.mxu0 0
      %4978 = vmatmul.mubr.bf16.gmra.mxu0 %v4885
      %v4979 = vpop.f32.mrf.mxu0
      %v4980 = vadd.f32 0.0, %v4979
      %v4981 = vpop.f32.mrf.mxu0
      %v4982 = vpop.f32.mrf.mxu0
      %v4983 = vadd.f32 0.0, %v4982
      %v4984 = vpop.f32.mrf.mxu0
      %4985 = vmatprep.mubr.bf16.mxu0 0
      %4986 = vmatmul.mubr.bf16.gmra.mxu0 %v4888
      %v4987 = vpop.f32.mrf.mxu0
      %v4988 = vadd.f32 0.0, %v4987
      %v4989 = vpop.f32.mrf.mxu0
      %v4990 = vpop.f32.mrf.mxu0
      %v4991 = vadd.f32 0.0, %v4990
      %v4992 = vpop.f32.mrf.mxu0
      %4993 = vmatprep.mubr.bf16.mxu0 0
      %4994 = vmatmul.mubr.bf16.gmra.mxu0 %v4891
      %v4995 = vpop.f32.mrf.mxu0
      %v4996 = vadd.f32 0.0, %v4995
      %v4997 = vpop.f32.mrf.mxu0
      %v4998 = vpop.f32.mrf.mxu0
      %v4999 = vadd.f32 0.0, %v4998
      %v5000 = vpop.f32.mrf.mxu0
      %5001 = vmatprep.mubr.bf16.mxu0 0
      %5002 = vmatmul.mubr.bf16.gmra.mxu0 %v4894
      %v5003 = vpop.f32.mrf.mxu0
      %v5004 = vadd.f32 0.0, %v5003
      %v5005 = vpop.f32.mrf.mxu0
      %v5006 = vpop.f32.mrf.mxu0
      %v5007 = vadd.f32 0.0, %v5006
      %v5008 = vpop.f32.mrf.mxu0
      %5009 = vmatprep.mubr.bf16.mxu0 0
      %5010 = vmatmul.mubr.bf16.gmra.mxu0 %v4897
      %v5011 = vpop.f32.mrf.mxu0
      %v5012 = vadd.f32 0.0, %v5011
      %v5013 = vpop.f32.mrf.mxu0
      %v5014 = vpop.f32.mrf.mxu0
      %v5015 = vadd.f32 0.0, %v5014
      %v5016 = vpop.f32.mrf.mxu0
      %5017 = vmatprep.mubr.bf16.mxu0 0
      %5018 = vmatmul.mubr.bf16.gmra.mxu0 %v4900
      %v5019 = vpop.f32.mrf.mxu0
      %v5020 = vadd.f32 0.0, %v5019
      %v5021 = vpop.f32.mrf.mxu0
      %v5022 = vpop.f32.mrf.mxu0
      %v5023 = vadd.f32 0.0, %v5022
      %v5024 = vpop.f32.mrf.mxu0
      %5025 = vmatprep.mubr.bf16.mxu0 0
      %5026 = vmatmul.mubr.bf16.gmra.mxu0 %v4903
      %v5027 = vpop.f32.mrf.mxu0
      %v5028 = vadd.f32 0.0, %v5027
      %v5029 = vpop.f32.mrf.mxu0
      %v5030 = vpop.f32.mrf.mxu0
      %v5031 = vadd.f32 0.0, %v5030
      %v5032 = vpop.f32.mrf.mxu0
      %5033 = vmatprep.mubr.bf16.mxu0 0
      %5034 = vmatmul.mubr.bf16.gmra.mxu0 %v4906
      %v5035 = vpop.f32.mrf.mxu0
      %v5036 = vadd.f32 0.0, %v5035
      %v5037 = vpop.f32.mrf.mxu0
      %v5038 = vpop.f32.mrf.mxu0
      %v5039 = vadd.f32 0.0, %v5038
      %v5040 = vpop.f32.mrf.mxu0
      %5041 = vmatprep.mubr.bf16.mxu0 0
      %5042 = vmatmul.mubr.bf16.gmra.mxu0 %v4909
      %v5043 = vpop.f32.mrf.mxu0
      %v5044 = vadd.f32 0.0, %v5043
      %v5045 = vpop.f32.mrf.mxu0
      %v5046 = vpop.f32.mrf.mxu0
      %v5047 = vadd.f32 0.0, %v5046
      %v5048 = vpop.f32.mrf.mxu0
      %5049 = vmatprep.mubr.bf16.mxu0 0
      %5050 = vmatmul.mubr.bf16.gmra.mxu0 %v4912
      %v5051 = vpop.f32.mrf.mxu0
      %v5052 = vadd.f32 0.0, %v5051
      %v5053 = vpop.f32.mrf.mxu0
      %v5054 = vpop.f32.mrf.mxu0
      %v5055 = vadd.f32 0.0, %v5054
      %v5056 = vpop.f32.mrf.mxu0
      %5057 = vmatprep.mubr.bf16.mxu0 0
      %5058 = vmatmul.mubr.bf16.gmra.mxu0 %v4915
      %v5059 = vpop.f32.mrf.mxu0
      %v5060 = vadd.f32 0.0, %v5059
      %v5061 = vpop.f32.mrf.mxu0
      %v5062 = vpop.f32.mrf.mxu0
      %v5063 = vadd.f32 0.0, %v5062
      %v5064 = vpop.f32.mrf.mxu0
      %5065 = vmatprep.mubr.bf16.mxu0 0
      %5066 = vmatmul.mubr.bf16.gmra.mxu0 %v4918
      %v5067 = vpop.f32.mrf.mxu0
      %v5068 = vadd.f32 0.0, %v5067
      %v5069 = vpop.f32.mrf.mxu0
      %v5070 = vpop.f32.mrf.mxu0
      %v5071 = vadd.f32 0.0, %v5070
      %v5072 = vpop.f32.mrf.mxu0
      %5073 = vmatprep.mubr.bf16.mxu0 0
      %5074 = vmatmul.mubr.bf16.gmra.mxu0 %v4921
      %v5075 = vpop.f32.mrf.mxu0
      %v5076 = vadd.f32 0.0, %v5075
      %v5077 = vpop.f32.mrf.mxu0
      %v5078 = vpop.f32.mrf.mxu0
      %v5079 = vadd.f32 0.0, %v5078
      %v5080 = vpop.f32.mrf.mxu0
      %5081 = vmatprep.mubr.bf16.mxu0 0
      %5082 = vmatmul.mubr.bf16.gmra.mxu0 %v4924
      %v5083 = vpop.f32.mrf.mxu0
      %v5084 = vadd.f32 0.0, %v5083
      %v5085 = vpop.f32.mrf.mxu0
      %v5086 = vpop.f32.mrf.mxu0
      %v5087 = vadd.f32 0.0, %v5086
      %v5088 = vpop.f32.mrf.mxu0
      %5089 = vdwg.mxu0
      %v5090 = vadd.f32 %v4364, %v4964
      %v5091 = vadd.f32 %v4365, %v4967
      %v5092 = vadd.f32 %v4366, %v4972
      %v5093 = vadd.f32 %v4367, %v4975
      %v5094 = vadd.f32 %v4368, %v4980
      %v5095 = vadd.f32 %v4369, %v4983
      %v5096 = vadd.f32 %v4370, %v4988
      %v5097 = vadd.f32 %v4371, %v4991
      %v5098 = vadd.f32 %v4372, %v4996
      %v5099 = vadd.f32 %v4373, %v4999
      %v5100 = vadd.f32 %v4374, %v5004
      %v5101 = vadd.f32 %v4375, %v5007
      %v5102 = vadd.f32 %v4376, %v5012
      %v5103 = vadd.f32 %v4377, %v5015
      %v5104 = vadd.f32 %v4378, %v5020
      %v5105 = vadd.f32 %v4379, %v5023
      %v5106 = vadd.f32 %v4380, %v5028
      %v5107 = vadd.f32 %v4381, %v5031
      %v5108 = vadd.f32 %v4382, %v5036
      %v5109 = vadd.f32 %v4383, %v5039
      %v5110 = vadd.f32 %v4384, %v5044
      %v5111 = vadd.f32 %v4385, %v5047
      %v5112 = vadd.f32 %v4386, %v5052
      %v5113 = vadd.f32 %v4387, %v5055
      %v5114 = vadd.f32 %v4388, %v5060
      %v5115 = vadd.f32 %v4389, %v5063
      %v5116 = vadd.f32 %v4390, %v5068
      %v5117 = vadd.f32 %v4391, %v5071
      %v5118 = vadd.f32 %v4392, %v5076
      %v5119 = vadd.f32 %v4393, %v5079
      %v5120 = vadd.f32 %v4394, %v5084
      %v5121 = vadd.f32 %v4395, %v5087
      %v5122 = vld [vmem:[%s4037] sm:$0xe]
      %v5123 = vld [vmem:[%s4037 + $0xc] sm:$0xe]
      %v5124 = vld [vmem:[%s4037 + $0x18] sm:$0xe]
      %v5125 = vld [vmem:[%s4037 + $0x24] sm:$0xe]
      %v5126 = vld [vmem:[%s4037 + $0x30] sm:$0xe]
      %v5127 = vld [vmem:[%s4037 + $0x3c] sm:$0xe]
      %v5128 = vld [vmem:[%s4037 + $0x48] sm:$0xe]
      %v5129 = vld [vmem:[%s4037 + $0x54] sm:$0xe]
      %v5130 = vld [vmem:[%s4037 + $0x60] sm:$0xe]
      %v5131 = vld [vmem:[%s4037 + $0x6c] sm:$0xe]
      %v5132 = vld [vmem:[%s4037 + $0x78] sm:$0xe]
      %v5133 = vld [vmem:[%s4037 + $0x84] sm:$0xe]
      %v5134 = vld [vmem:[%s4037 + $0x90] sm:$0xe]
      %v5135 = vld [vmem:[%s4037 + $0x9c] sm:$0xe]
      %v5136 = vld [vmem:[%s4037 + $0xa8] sm:$0xe]
      %v5137 = vld [vmem:[%s4037 + $0xb4] sm:$0xe]
      %v5186 = vrot.slane %v5122, 5
      %v5187 = vrot.slane %v5186, 4
      %v5188 = vrot.slane %v4397, 5
      %v5189 = vsel %vm2076, %v5187, %v5188
      %v5190 = vrot.slane %v5188, 4
      %v5191 = vrot.slane %v4398, 5
      %v5192 = vsel %vm2076, %v5190, %v5191
      %v5193 = vrot.slane %v5123, 5
      %v5194 = vrot.slane %v5193, 4
      %v5195 = vrot.slane %v4400, 5
      %v5196 = vsel %vm2076, %v5194, %v5195
      %v5197 = vrot.slane %v5195, 4
      %v5198 = vrot.slane %v4401, 5
      %v5199 = vsel %vm2076, %v5197, %v5198
      %v5200 = vrot.slane %v5124, 5
      %v5201 = vrot.slane %v5200, 4
      %v5202 = vrot.slane %v4403, 5
      %v5203 = vsel %vm2076, %v5201, %v5202
      %v5204 = vrot.slane %v5202, 4
      %v5205 = vrot.slane %v4404, 5
      %v5206 = vsel %vm2076, %v5204, %v5205
      %v5207 = vrot.slane %v5125, 5
      %v5208 = vrot.slane %v5207, 4
      %v5209 = vrot.slane %v4406, 5
      %v5210 = vsel %vm2076, %v5208, %v5209
      %v5211 = vrot.slane %v5209, 4
      %v5212 = vrot.slane %v4407, 5
      %v5213 = vsel %vm2076, %v5211, %v5212
      %v5214 = vrot.slane %v5126, 5
      %v5215 = vrot.slane %v5214, 4
      %v5216 = vrot.slane %v4409, 5
      %v5217 = vsel %vm2076, %v5215, %v5216
      %v5218 = vrot.slane %v5216, 4
      %v5219 = vrot.slane %v4410, 5
      %v5220 = vsel %vm2076, %v5218, %v5219
      %v5221 = vrot.slane %v5127, 5
      %v5222 = vrot.slane %v5221, 4
      %v5223 = vrot.slane %v4412, 5
      %v5224 = vsel %vm2076, %v5222, %v5223
      %v5225 = vrot.slane %v5223, 4
      %v5226 = vrot.slane %v4413, 5
      %v5227 = vsel %vm2076, %v5225, %v5226
      %v5228 = vrot.slane %v5128, 5
      %v5229 = vrot.slane %v5228, 4
      %v5230 = vrot.slane %v4415, 5
      %v5231 = vsel %vm2076, %v5229, %v5230
      %v5232 = vrot.slane %v5230, 4
      %v5233 = vrot.slane %v4416, 5
      %v5234 = vsel %vm2076, %v5232, %v5233
      %v5235 = vrot.slane %v5129, 5
      %v5236 = vrot.slane %v5235, 4
      %v5237 = vrot.slane %v4418, 5
      %v5238 = vsel %vm2076, %v5236, %v5237
      %v5239 = vrot.slane %v5237, 4
      %v5240 = vrot.slane %v4419, 5
      %v5241 = vsel %vm2076, %v5239, %v5240
      %v5242 = vrot.slane %v5130, 5
      %v5243 = vrot.slane %v5242, 4
      %v5244 = vrot.slane %v4421, 5
      %v5245 = vsel %vm2076, %v5243, %v5244
      %v5246 = vrot.slane %v5244, 4
      %v5247 = vrot.slane %v4422, 5
      %v5248 = vsel %vm2076, %v5246, %v5247
      %v5249 = vrot.slane %v5131, 5
      %v5250 = vrot.slane %v5249, 4
      %v5251 = vrot.slane %v4424, 5
      %v5252 = vsel %vm2076, %v5250, %v5251
      %v5253 = vrot.slane %v5251, 4
      %v5254 = vrot.slane %v4425, 5
      %v5255 = vsel %vm2076, %v5253, %v5254
      %v5256 = vrot.slane %v5132, 5
      %v5257 = vrot.slane %v5256, 4
      %v5258 = vrot.slane %v4427, 5
      %v5259 = vsel %vm2076, %v5257, %v5258
      %v5260 = vrot.slane %v5258, 4
      %v5261 = vrot.slane %v4428, 5
      %v5262 = vsel %vm2076, %v5260, %v5261
      %v5263 = vrot.slane %v5133, 5
      %v5264 = vrot.slane %v5263, 4
      %v5265 = vrot.slane %v4430, 5
      %v5266 = vsel %vm2076, %v5264, %v5265
      %v5267 = vrot.slane %v5265, 4
      %v5268 = vrot.slane %v4431, 5
      %v5269 = vsel %vm2076, %v5267, %v5268
      %v5270 = vrot.slane %v5134, 5
      %v5271 = vrot.slane %v5270, 4
      %v5272 = vrot.slane %v4433, 5
      %v5273 = vsel %vm2076, %v5271, %v5272
      %v5274 = vrot.slane %v5272, 4
      %v5275 = vrot.slane %v4434, 5
      %v5276 = vsel %vm2076, %v5274, %v5275
      %v5277 = vrot.slane %v5135, 5
      %v5278 = vrot.slane %v5277, 4
      %v5279 = vrot.slane %v4436, 5
      %v5280 = vsel %vm2076, %v5278, %v5279
      %v5281 = vrot.slane %v5279, 4
      %v5282 = vrot.slane %v4437, 5
      %v5283 = vsel %vm2076, %v5281, %v5282
      %v5284 = vrot.slane %v5136, 5
      %v5285 = vrot.slane %v5284, 4
      %v5286 = vrot.slane %v4439, 5
      %v5287 = vsel %vm2076, %v5285, %v5286
      %v5288 = vrot.slane %v5286, 4
      %v5289 = vrot.slane %v4440, 5
      %v5290 = vsel %vm2076, %v5288, %v5289
      %v5291 = vrot.slane %v5137, 5
      %v5292 = vrot.slane %v5291, 4
      %v5293 = vrot.slane %v4442, 5
      %v5294 = vsel %vm2076, %v5292, %v5293
      %v5295 = vrot.slane %v5293, 4
      %v5296 = vrot.slane %v4443, 5
      %v5297 = vsel %vm2076, %v5295, %v5296
      %s5298 = scalar_lea.vmem %s3, 32
      %v5299 = vld [vmem:[%s5298] sm:$0xf]
      %v5300 = vunpack.c.l.b16 %v5189
      %v5301 = vunpack.c.l.b16 %v5192
      %v5302 = vunpack.c.l.b16 %v5196
      %v5303 = vunpack.c.l.b16 %v5199
      %v5304 = vunpack.c.l.b16 %v5203
      %v5305 = vunpack.c.l.b16 %v5206
      %v5306 = vunpack.c.l.b16 %v5210
      %v5307 = vunpack.c.l.b16 %v5213
      %v5308 = vunpack.c.l.b16 %v5217
      %v5309 = vunpack.c.l.b16 %v5220
      %v5310 = vunpack.c.l.b16 %v5224
      %v5311 = vunpack.c.l.b16 %v5227
      %v5312 = vunpack.c.l.b16 %v5231
      %v5313 = vunpack.c.l.b16 %v5234
      %v5314 = vunpack.c.l.b16 %v5238
      %v5315 = vunpack.c.l.b16 %v5241
      %v5316 = vunpack.c.l.b16 %v5245
      %v5317 = vunpack.c.l.b16 %v5248
      %v5318 = vunpack.c.l.b16 %v5252
      %v5319 = vunpack.c.l.b16 %v5255
      %v5320 = vunpack.c.l.b16 %v5259
      %v5321 = vunpack.c.l.b16 %v5262
      %v5322 = vunpack.c.l.b16 %v5266
      %v5323 = vunpack.c.l.b16 %v5269
      %v5324 = vunpack.c.l.b16 %v5273
      %v5325 = vunpack.c.l.b16 %v5276
      %v5326 = vunpack.c.l.b16 %v5280
      %v5327 = vunpack.c.l.b16 %v5283
      %v5328 = vunpack.c.l.b16 %v5287
      %v5329 = vunpack.c.l.b16 %v5290
      %v5330 = vunpack.c.l.b16 %v5294
      %v5331 = vunpack.c.l.b16 %v5297
      %v5332 = vpack.c.b16 %v5301, %v5300
      %v5333 = vpack.c.b16 %v5303, %v5302
      %v5334 = vpack.c.b16 %v5305, %v5304
      %v5335 = vpack.c.b16 %v5307, %v5306
      %v5336 = vpack.c.b16 %v5309, %v5308
      %v5337 = vpack.c.b16 %v5311, %v5310
      %v5338 = vpack.c.b16 %v5313, %v5312
      %v5339 = vpack.c.b16 %v5315, %v5314
      %v5340 = vpack.c.b16 %v5317, %v5316
      %v5341 = vpack.c.b16 %v5319, %v5318
      %v5342 = vpack.c.b16 %v5321, %v5320
      %v5343 = vpack.c.b16 %v5323, %v5322
      %v5344 = vpack.c.b16 %v5325, %v5324
      %v5345 = vpack.c.b16 %v5327, %v5326
      %v5346 = vpack.c.b16 %v5329, %v5328
      %v5347 = vpack.c.b16 %v5331, %v5330
      %v5349 = vsel %vm1520, %v5332, 0
      %v5352 = vsel %vm1520, %v5333, 0
      %v5355 = vsel %vm1520, %v5334, 0
      %v5358 = vsel %vm1520, %v5335, 0
      %v5361 = vsel %vm1520, %v5336, 0
      %v5364 = vsel %vm1520, %v5337, 0
      %v5367 = vsel %vm1520, %v5338, 0
      %v5370 = vsel %vm1520, %v5339, 0
      %v5373 = vsel %vm1520, %v5340, 0
      %v5376 = vsel %vm1520, %v5341, 0
      %v5379 = vsel %vm1520, %v5342, 0
      %v5382 = vsel %vm1520, %v5343, 0
      %v5385 = vsel %vm1520, %v5344, 0
      %v5388 = vsel %vm1520, %v5345, 0
      %v5391 = vsel %vm1520, %v5346, 0
      %v5394 = vsel %vm1520, %v5347, 0
      %v5397 = vsel %vm1569, %v5299, 0
      %5399 = vmatprep.subr.bf16.mxu0 0
      %5400 = vmatpush1.bf16.msra.mxu0 0
      %5401 = vmatprep.subr.bf16.mxu0 0
      %5402 = vmatpush1.bf16.msra.mxu0 0
      %5403 = vmatprep.subr.bf16.mxu0 0
      %5404 = vmatpush1.bf16.msra.mxu0 0
      %5405 = vmatprep.subr.bf16.mxu0 0
      %5406 = vmatpush1.bf16.msra.mxu0 0
      %5407 = vmatprep.subr.bf16.mxu0 0
      %5408 = vmatpush1.bf16.msra.mxu0 0
      %5409 = vmatprep.subr.bf16.mxu0 0
      %5410 = vmatpush1.bf16.msra.mxu0 0
      %5411 = vmatprep.subr.bf16.mxu0 0
      %5412 = vmatpush1.bf16.msra.mxu0 0
      %5413 = vmatprep.subr.bf16.mxu0 0
      %5414 = vmatpush1.bf16.msra.mxu0 %v5397
      %5415 = vmatprep.subr.bf16.mxu0 0
      %5416 = vmatpush2.bf16.msra.mxu0 0
      %5417 = vmatprep.subr.bf16.mxu0 0
      %5418 = vmatpush2.bf16.msra.mxu0 0
      %5419 = vmatprep.subr.bf16.mxu0 0
      %5420 = vmatpush2.bf16.msra.mxu0 0
      %5421 = vmatprep.subr.bf16.mxu0 0
      %5422 = vmatpush2.bf16.msra.mxu0 0
      %5423 = vmatprep.subr.bf16.mxu0 0
      %5424 = vmatpush2.bf16.msra.mxu0 0
      %5425 = vmatprep.subr.bf16.mxu0 0
      %5426 = vmatpush2.bf16.msra.mxu0 0
      %5427 = vmatprep.subr.bf16.mxu0 0
      %5428 = vmatpush2.bf16.msra.mxu0 0
      %5429 = vmatprep.subr.bf16.mxu0 0
      %5430 = vmatpush2.bf16.msra.mxu0 0
      %5431 = vmatprep.mubr.bf16.mxu0 0
      %5432 = vmatmul.mubr.bf16.gmra.mxu0 %v5349
      %v5433 = vpop.f32.mrf.mxu0
      %v5434 = vadd.f32 0.0, %v5433
      %v5435 = vpop.f32.mrf.mxu0
      %v5436 = vpop.f32.mrf.mxu0
      %v5437 = vadd.f32 0.0, %v5436
      %v5438 = vpop.f32.mrf.mxu0
      %5439 = vmatprep.mubr.bf16.mxu0 0
      %5440 = vmatmul.mubr.bf16.gmra.mxu0 %v5352
      %v5441 = vpop.f32.mrf.mxu0
      %v5442 = vadd.f32 0.0, %v5441
      %v5443 = vpop.f32.mrf.mxu0
      %v5444 = vpop.f32.mrf.mxu0
      %v5445 = vadd.f32 0.0, %v5444
      %v5446 = vpop.f32.mrf.mxu0
      %5447 = vmatprep.mubr.bf16.mxu0 0
      %5448 = vmatmul.mubr.bf16.gmra.mxu0 %v5355
      %v5449 = vpop.f32.mrf.mxu0
      %v5450 = vadd.f32 0.0, %v5449
      %v5451 = vpop.f32.mrf.mxu0
      %v5452 = vpop.f32.mrf.mxu0
      %v5453 = vadd.f32 0.0, %v5452
      %v5454 = vpop.f32.mrf.mxu0
      %5455 = vmatprep.mubr.bf16.mxu0 0
      %5456 = vmatmul.mubr.bf16.gmra.mxu0 %v5358
      %v5457 = vpop.f32.mrf.mxu0
      %v5458 = vadd.f32 0.0, %v5457
      %v5459 = vpop.f32.mrf.mxu0
      %v5460 = vpop.f32.mrf.mxu0
      %v5461 = vadd.f32 0.0, %v5460
      %v5462 = vpop.f32.mrf.mxu0
      %5463 = vmatprep.mubr.bf16.mxu0 0
      %5464 = vmatmul.mubr.bf16.gmra.mxu0 %v5361
      %v5465 = vpop.f32.mrf.mxu0
      %v5466 = vadd.f32 0.0, %v5465
      %v5467 = vpop.f32.mrf.mxu0
      %v5468 = vpop.f32.mrf.mxu0
      %v5469 = vadd.f32 0.0, %v5468
      %v5470 = vpop.f32.mrf.mxu0
      %5471 = vmatprep.mubr.bf16.mxu0 0
      %5472 = vmatmul.mubr.bf16.gmra.mxu0 %v5364
      %v5473 = vpop.f32.mrf.mxu0
      %v5474 = vadd.f32 0.0, %v5473
      %v5475 = vpop.f32.mrf.mxu0
      %v5476 = vpop.f32.mrf.mxu0
      %v5477 = vadd.f32 0.0, %v5476
      %v5478 = vpop.f32.mrf.mxu0
      %5479 = vmatprep.mubr.bf16.mxu0 0
      %5480 = vmatmul.mubr.bf16.gmra.mxu0 %v5367
      %v5481 = vpop.f32.mrf.mxu0
      %v5482 = vadd.f32 0.0, %v5481
      %v5483 = vpop.f32.mrf.mxu0
      %v5484 = vpop.f32.mrf.mxu0
      %v5485 = vadd.f32 0.0, %v5484
      %v5486 = vpop.f32.mrf.mxu0
      %5487 = vmatprep.mubr.bf16.mxu0 0
      %5488 = vmatmul.mubr.bf16.gmra.mxu0 %v5370
      %v5489 = vpop.f32.mrf.mxu0
      %v5490 = vadd.f32 0.0, %v5489
      %v5491 = vpop.f32.mrf.mxu0
      %v5492 = vpop.f32.mrf.mxu0
      %v5493 = vadd.f32 0.0, %v5492
      %v5494 = vpop.f32.mrf.mxu0
      %5495 = vmatprep.mubr.bf16.mxu0 0
      %5496 = vmatmul.mubr.bf16.gmra.mxu0 %v5373
      %v5497 = vpop.f32.mrf.mxu0
      %v5498 = vadd.f32 0.0, %v5497
      %v5499 = vpop.f32.mrf.mxu0
      %v5500 = vpop.f32.mrf.mxu0
      %v5501 = vadd.f32 0.0, %v5500
      %v5502 = vpop.f32.mrf.mxu0
      %5503 = vmatprep.mubr.bf16.mxu0 0
      %5504 = vmatmul.mubr.bf16.gmra.mxu0 %v5376
      %v5505 = vpop.f32.mrf.mxu0
      %v5506 = vadd.f32 0.0, %v5505
      %v5507 = vpop.f32.mrf.mxu0
      %v5508 = vpop.f32.mrf.mxu0
      %v5509 = vadd.f32 0.0, %v5508
      %v5510 = vpop.f32.mrf.mxu0
      %5511 = vmatprep.mubr.bf16.mxu0 0
      %5512 = vmatmul.mubr.bf16.gmra.mxu0 %v5379
      %v5513 = vpop.f32.mrf.mxu0
      %v5514 = vadd.f32 0.0, %v5513
      %v5515 = vpop.f32.mrf.mxu0
      %v5516 = vpop.f32.mrf.mxu0
      %v5517 = vadd.f32 0.0, %v5516
      %v5518 = vpop.f32.mrf.mxu0
      %5519 = vmatprep.mubr.bf16.mxu0 0
      %5520 = vmatmul.mubr.bf16.gmra.mxu0 %v5382
      %v5521 = vpop.f32.mrf.mxu0
      %v5522 = vadd.f32 0.0, %v5521
      %v5523 = vpop.f32.mrf.mxu0
      %v5524 = vpop.f32.mrf.mxu0
      %v5525 = vadd.f32 0.0, %v5524
      %v5526 = vpop.f32.mrf.mxu0
      %5527 = vmatprep.mubr.bf16.mxu0 0
      %5528 = vmatmul.mubr.bf16.gmra.mxu0 %v5385
      %v5529 = vpop.f32.mrf.mxu0
      %v5530 = vadd.f32 0.0, %v5529
      %v5531 = vpop.f32.mrf.mxu0
      %v5532 = vpop.f32.mrf.mxu0
      %v5533 = vadd.f32 0.0, %v5532
      %v5534 = vpop.f32.mrf.mxu0
      %5535 = vmatprep.mubr.bf16.mxu0 0
      %5536 = vmatmul.mubr.bf16.gmra.mxu0 %v5388
      %v5537 = vpop.f32.mrf.mxu0
      %v5538 = vadd.f32 0.0, %v5537
      %v5539 = vpop.f32.mrf.mxu0
      %v5540 = vpop.f32.mrf.mxu0
      %v5541 = vadd.f32 0.0, %v5540
      %v5542 = vpop.f32.mrf.mxu0
      %5543 = vmatprep.mubr.bf16.mxu0 0
      %5544 = vmatmul.mubr.bf16.gmra.mxu0 %v5391
      %v5545 = vpop.f32.mrf.mxu0
      %v5546 = vadd.f32 0.0, %v5545
      %v5547 = vpop.f32.mrf.mxu0
      %v5548 = vpop.f32.mrf.mxu0
      %v5549 = vadd.f32 0.0, %v5548
      %v5550 = vpop.f32.mrf.mxu0
      %5551 = vmatprep.mubr.bf16.mxu0 0
      %5552 = vmatmul.mubr.bf16.gmra.mxu0 %v5394
      %v5553 = vpop.f32.mrf.mxu0
      %v5554 = vadd.f32 0.0, %v5553
      %v5555 = vpop.f32.mrf.mxu0
      %v5556 = vpop.f32.mrf.mxu0
      %v5557 = vadd.f32 0.0, %v5556
      %v5558 = vpop.f32.mrf.mxu0
      %5559 = vdwg.mxu0
      %v5560 = vadd.f32 %v5090, %v5434
      %v5561 = vadd.f32 %v5091, %v5437
      %v5562 = vadd.f32 %v5092, %v5442
      %v5563 = vadd.f32 %v5093, %v5445
      %v5564 = vadd.f32 %v5094, %v5450
      %v5565 = vadd.f32 %v5095, %v5453
      %v5566 = vadd.f32 %v5096, %v5458
      %v5567 = vadd.f32 %v5097, %v5461
      %v5568 = vadd.f32 %v5098, %v5466
      %v5569 = vadd.f32 %v5099, %v5469
      %v5570 = vadd.f32 %v5100, %v5474
      %v5571 = vadd.f32 %v5101, %v5477
      %v5572 = vadd.f32 %v5102, %v5482
      %v5573 = vadd.f32 %v5103, %v5485
      %v5574 = vadd.f32 %v5104, %v5490
      %v5575 = vadd.f32 %v5105, %v5493
      %v5576 = vadd.f32 %v5106, %v5498
      %v5577 = vadd.f32 %v5107, %v5501
      %v5578 = vadd.f32 %v5108, %v5506
      %v5579 = vadd.f32 %v5109, %v5509
      %v5580 = vadd.f32 %v5110, %v5514
      %v5581 = vadd.f32 %v5111, %v5517
      %v5582 = vadd.f32 %v5112, %v5522
      %v5583 = vadd.f32 %v5113, %v5525
      %v5584 = vadd.f32 %v5114, %v5530
      %v5585 = vadd.f32 %v5115, %v5533
      %v5586 = vadd.f32 %v5116, %v5538
      %v5587 = vadd.f32 %v5117, %v5541
      %v5588 = vadd.f32 %v5118, %v5546
      %v5589 = vadd.f32 %v5119, %v5549
      %v5590 = vadd.f32 %v5120, %v5554
      %v5591 = vadd.f32 %v5121, %v5557
      %v5592 = vsel %vm1520, %v5560, 0.0
      %v5593 = vsel %vm1520, %v5561, 0.0
      %v5594 = vadd.f32 %v5592, %v5593
      %v5595 = vsel %vm1520, %v5562, 0.0
      %v5596 = vadd.f32 %v5594, %v5595
      %v5597 = vsel %vm1520, %v5563, 0.0
      %v5598 = vadd.f32 %v5596, %v5597
      %v5599 = vsel %vm1520, %v5564, 0.0
      %v5600 = vadd.f32 %v5598, %v5599
      %v5601 = vsel %vm1520, %v5565, 0.0
      %v5602 = vadd.f32 %v5600, %v5601
      %v5603 = vsel %vm1520, %v5566, 0.0
      %v5604 = vadd.f32 %v5602, %v5603
      %v5605 = vsel %vm1520, %v5567, 0.0
      %v5606 = vadd.f32 %v5604, %v5605
      %v5607 = vsel %vm1520, %v5568, 0.0
      %v5608 = vadd.f32 %v5606, %v5607
      %v5609 = vsel %vm1520, %v5569, 0.0
      %v5610 = vadd.f32 %v5608, %v5609
      %v5611 = vsel %vm1520, %v5570, 0.0
      %v5612 = vadd.f32 %v5610, %v5611
      %v5613 = vsel %vm1520, %v5571, 0.0
      %v5614 = vadd.f32 %v5612, %v5613
      %v5615 = vsel %vm1520, %v5572, 0.0
      %v5616 = vadd.f32 %v5614, %v5615
      %v5617 = vsel %vm1520, %v5573, 0.0
      %v5618 = vadd.f32 %v5616, %v5617
      %v5619 = vsel %vm1520, %v5574, 0.0
      %v5620 = vadd.f32 %v5618, %v5619
      %v5621 = vsel %vm1520, %v5575, 0.0
      %v5622 = vadd.f32 %v5620, %v5621
      %v5623 = vsel %vm1520, %v5576, 0.0
      %v5624 = vadd.f32 %v5622, %v5623
      %v5625 = vsel %vm1520, %v5577, 0.0
      %v5626 = vadd.f32 %v5624, %v5625
      %v5627 = vsel %vm1520, %v5578, 0.0
      %v5628 = vadd.f32 %v5626, %v5627
      %v5629 = vsel %vm1520, %v5579, 0.0
      %v5630 = vadd.f32 %v5628, %v5629
      %v5631 = vsel %vm1520, %v5580, 0.0
      %v5632 = vadd.f32 %v5630, %v5631
      %v5633 = vsel %vm1520, %v5581, 0.0
      %v5634 = vadd.f32 %v5632, %v5633
      %v5635 = vsel %vm1520, %v5582, 0.0
      %v5636 = vadd.f32 %v5634, %v5635
      %v5637 = vsel %vm1520, %v5583, 0.0
      %v5638 = vadd.f32 %v5636, %v5637
      %v5639 = vsel %vm1520, %v5584, 0.0
      %v5640 = vadd.f32 %v5638, %v5639
      %v5641 = vsel %vm1520, %v5585, 0.0
      %v5642 = vadd.f32 %v5640, %v5641
      %v5643 = vsel %vm1520, %v5586, 0.0
      %v5644 = vadd.f32 %v5642, %v5643
      %v5645 = vsel %vm1520, %v5587, 0.0
      %v5646 = vadd.f32 %v5644, %v5645
      %v5647 = vsel %vm1520, %v5588, 0.0
      %v5648 = vadd.f32 %v5646, %v5647
      %v5649 = vsel %vm1520, %v5589, 0.0
      %v5650 = vadd.f32 %v5648, %v5649
      %v5651 = vsel %vm1520, %v5590, 0.0
      %v5652 = vadd.f32 %v5650, %v5651
      %v5653 = vsel %vm1520, %v5591, 0.0
      %v5654 = vadd.f32 %v5652, %v5653
      %v5655 = vrot.slane %v5654, 4
      %v5656 = vadd.f32 %v5654, %v5655
      %v5657 = vrot.slane %v5656, 2
      %v5658 = vadd.f32 %v5656, %v5657
      %v5659 = vrot.slane %v5658, 1
      %v5660 = vadd.f32 %v5658, %v5659
      %v5661 = vmul.f32 %v5660, 0.00390625
      %v5662 = vsub.f32 %v5560, %v5661
      %v5663 = vsub.f32 %v5561, %v5661
      %v5664 = vsub.f32 %v5562, %v5661
      %v5665 = vsub.f32 %v5563, %v5661
      %v5666 = vsub.f32 %v5564, %v5661
      %v5667 = vsub.f32 %v5565, %v5661
      %v5668 = vsub.f32 %v5566, %v5661
      %v5669 = vsub.f32 %v5567, %v5661
      %v5670 = vsub.f32 %v5568, %v5661
      %v5671 = vsub.f32 %v5569, %v5661
      %v5672 = vsub.f32 %v5570, %v5661
      %v5673 = vsub.f32 %v5571, %v5661
      %v5674 = vsub.f32 %v5572, %v5661
      %v5675 = vsub.f32 %v5573, %v5661
      %v5676 = vsub.f32 %v5574, %v5661
      %v5677 = vsub.f32 %v5575, %v5661
      %v5678 = vsub.f32 %v5576, %v5661
      %v5679 = vsub.f32 %v5577, %v5661
      %v5680 = vsub.f32 %v5578, %v5661
      %v5681 = vsub.f32 %v5579, %v5661
      %v5682 = vsub.f32 %v5580, %v5661
      %v5683 = vsub.f32 %v5581, %v5661
      %v5684 = vsub.f32 %v5582, %v5661
      %v5685 = vsub.f32 %v5583, %v5661
      %v5686 = vsub.f32 %v5584, %v5661
      %v5687 = vsub.f32 %v5585, %v5661
      %v5688 = vsub.f32 %v5586, %v5661
      %v5689 = vsub.f32 %v5587, %v5661
      %v5690 = vsub.f32 %v5588, %v5661
      %v5691 = vsub.f32 %v5589, %v5661
      %v5692 = vsub.f32 %v5590, %v5661
      %v5693 = vsub.f32 %v5591, %v5661
      %v5694 = vmul.f32 %v5662, %v5662
      %v5695 = vmul.f32 %v5663, %v5663
      %v5696 = vmul.f32 %v5664, %v5664
      %v5697 = vmul.f32 %v5665, %v5665
      %v5698 = vmul.f32 %v5666, %v5666
      %v5699 = vmul.f32 %v5667, %v5667
      %v5700 = vmul.f32 %v5668, %v5668
      %v5701 = vmul.f32 %v5669, %v5669
      %v5702 = vmul.f32 %v5670, %v5670
      %v5703 = vmul.f32 %v5671, %v5671
      %v5704 = vmul.f32 %v5672, %v5672
      %v5705 = vmul.f32 %v5673, %v5673
      %v5706 = vmul.f32 %v5674, %v5674
      %v5707 = vmul.f32 %v5675, %v5675
      %v5708 = vmul.f32 %v5676, %v5676
      %v5709 = vmul.f32 %v5677, %v5677
      %v5710 = vmul.f32 %v5678, %v5678
      %v5711 = vmul.f32 %v5679, %v5679
      %v5712 = vmul.f32 %v5680, %v5680
      %v5713 = vmul.f32 %v5681, %v5681
      %v5714 = vmul.f32 %v5682, %v5682
      %v5715 = vmul.f32 %v5683, %v5683
      %v5716 = vmul.f32 %v5684, %v5684
      %v5717 = vmul.f32 %v5685, %v5685
      %v5718 = vmul.f32 %v5686, %v5686
      %v5719 = vmul.f32 %v5687, %v5687
      %v5720 = vmul.f32 %v5688, %v5688
      %v5721 = vmul.f32 %v5689, %v5689
      %v5722 = vmul.f32 %v5690, %v5690
      %v5723 = vmul.f32 %v5691, %v5691
      %v5724 = vmul.f32 %v5692, %v5692
      %v5725 = vmul.f32 %v5693, %v5693
      %v5726 = vsel %vm1520, %v5694, 0.0
      %v5727 = vsel %vm1520, %v5695, 0.0
      %v5728 = vadd.f32 %v5726, %v5727
      %v5729 = vsel %vm1520, %v5696, 0.0
      %v5730 = vadd.f32 %v5728, %v5729
      %v5731 = vsel %vm1520, %v5697, 0.0
      %v5732 = vadd.f32 %v5730, %v5731
      %v5733 = vsel %vm1520, %v5698, 0.0
      %v5734 = vadd.f32 %v5732, %v5733
      %v5735 = vsel %vm1520, %v5699, 0.0
      %v5736 = vadd.f32 %v5734, %v5735
      %v5737 = vsel %vm1520, %v5700, 0.0
      %v5738 = vadd.f32 %v5736, %v5737
      %v5739 = vsel %vm1520, %v5701, 0.0
      %v5740 = vadd.f32 %v5738, %v5739
      %v5741 = vsel %vm1520, %v5702, 0.0
      %v5742 = vadd.f32 %v5740, %v5741
      %v5743 = vsel %vm1520, %v5703, 0.0
      %v5744 = vadd.f32 %v5742, %v5743
      %v5745 = vsel %vm1520, %v5704, 0.0
      %v5746 = vadd.f32 %v5744, %v5745
      %v5747 = vsel %vm1520, %v5705, 0.0
      %v5748 = vadd.f32 %v5746, %v5747
      %v5749 = vsel %vm1520, %v5706, 0.0
      %v5750 = vadd.f32 %v5748, %v5749
      %v5751 = vsel %vm1520, %v5707, 0.0
      %v5752 = vadd.f32 %v5750, %v5751
      %v5753 = vsel %vm1520, %v5708, 0.0
      %v5754 = vadd.f32 %v5752, %v5753
      %v5755 = vsel %vm1520, %v5709, 0.0
      %v5756 = vadd.f32 %v5754, %v5755
      %v5757 = vsel %vm1520, %v5710, 0.0
      %v5758 = vadd.f32 %v5756, %v5757
      %v5759 = vsel %vm1520, %v5711, 0.0
      %v5760 = vadd.f32 %v5758, %v5759
      %v5761 = vsel %vm1520, %v5712, 0.0
      %v5762 = vadd.f32 %v5760, %v5761
      %v5763 = vsel %vm1520, %v5713, 0.0
      %v5764 = vadd.f32 %v5762, %v5763
      %v5765 = vsel %vm1520, %v5714, 0.0
      %v5766 = vadd.f32 %v5764, %v5765
      %v5767 = vsel %vm1520, %v5715, 0.0
      %v5768 = vadd.f32 %v5766, %v5767
      %v5769 = vsel %vm1520, %v5716, 0.0
      %v5770 = vadd.f32 %v5768, %v5769
      %v5771 = vsel %vm1520, %v5717, 0.0
      %v5772 = vadd.f32 %v5770, %v5771
      %v5773 = vsel %vm1520, %v5718, 0.0
      %v5774 = vadd.f32 %v5772, %v5773
      %v5775 = vsel %vm1520, %v5719, 0.0
      %v5776 = vadd.f32 %v5774, %v5775
      %v5777 = vsel %vm1520, %v5720, 0.0
      %v5778 = vadd.f32 %v5776, %v5777
      %v5779 = vsel %vm1520, %v5721, 0.0
      %v5780 = vadd.f32 %v5778, %v5779
      %v5781 = vsel %vm1520, %v5722, 0.0
      %v5782 = vadd.f32 %v5780, %v5781
      %v5783 = vsel %vm1520, %v5723, 0.0
      %v5784 = vadd.f32 %v5782, %v5783
      %v5785 = vsel %vm1520, %v5724, 0.0
      %v5786 = vadd.f32 %v5784, %v5785
      %v5787 = vsel %vm1520, %v5725, 0.0
      %v5788 = vadd.f32 %v5786, %v5787
      %v5789 = vrot.slane %v5788, 4
      %v5790 = vadd.f32 %v5788, %v5789
      %v5791 = vrot.slane %v5790, 2
      %v5792 = vadd.f32 %v5790, %v5791
      %v5793 = vrot.slane %v5792, 1
      %v5794 = vadd.f32 %v5792, %v5793
      %vm5795 = vcmask 1040384
      %v5796 = vsel %vm5795, %v5660, %v5794
      %vm5797 = vcmask 58368
      %5798 = vst.msk [vmem:[%s235] sm:$0x3] %vm5797, %v5796
      %5799 = vst.msk [vmem:[%s231] sm:$0xff] %vm1520, %v5560
      %5800 = vst.msk [vmem:[%s231 + $0x8] sm:$0xff] %vm1520, %v5561
      %5801 = vst.msk [vmem:[%s231 + $0x10] sm:$0xff] %vm1520, %v5562
      %5802 = vst.msk [vmem:[%s231 + $0x18] sm:$0xff] %vm1520, %v5563
      %5803 = vst.msk [vmem:[%s231 + $0x20] sm:$0xff] %vm1520, %v5564
      %5804 = vst.msk [vmem:[%s231 + $0x28] sm:$0xff] %vm1520, %v5565
      %5805 = vst.msk [vmem:[%s231 + $0x30] sm:$0xff] %vm1520, %v5566
      %5806 = vst.msk [vmem:[%s231 + $0x38] sm:$0xff] %vm1520, %v5567
      %5807 = vst.msk [vmem:[%s231 + $0x40] sm:$0xff] %vm1520, %v5568
      %5808 = vst.msk [vmem:[%s231 + $0x48] sm:$0xff] %vm1520, %v5569
      %5809 = vst.msk [vmem:[%s231 + $0x50] sm:$0xff] %vm1520, %v5570
      %5810 = vst.msk [vmem:[%s231 + $0x58] sm:$0xff] %vm1520, %v5571
      %5811 = vst.msk [vmem:[%s231 + $0x60] sm:$0xff] %vm1520, %v5572
      %5812 = vst.msk [vmem:[%s231 + $0x68] sm:$0xff] %vm1520, %v5573
      %5813 = vst.msk [vmem:[%s231 + $0x70] sm:$0xff] %vm1520, %v5574
      %5814 = vst.msk [vmem:[%s231 + $0x78] sm:$0xff] %vm1520, %v5575
      %5815 = vst.msk [vmem:[%s231 + $0x80] sm:$0xff] %vm1520, %v5576
      %5816 = vst.msk [vmem:[%s231 + $0x88] sm:$0xff] %vm1520, %v5577
      %5817 = vst.msk [vmem:[%s231 + $0x90] sm:$0xff] %vm1520, %v5578
      %5818 = vst.msk [vmem:[%s231 + $0x98] sm:$0xff] %vm1520, %v5579
      %5819 = vst.msk [vmem:[%s231 + $0xa0] sm:$0xff] %vm1520, %v5580
      %5820 = vst.msk [vmem:[%s231 + $0xa8] sm:$0xff] %vm1520, %v5581
      %5821 = vst.msk [vmem:[%s231 + $0xb0] sm:$0xff] %vm1520, %v5582
      %5822 = vst.msk [vmem:[%s231 + $0xb8] sm:$0xff] %vm1520, %v5583
      %5823 = vst.msk [vmem:[%s231 + $0xc0] sm:$0xff] %vm1520, %v5584
      %5824 = vst.msk [vmem:[%s231 + $0xc8] sm:$0xff] %vm1520, %v5585
      %5825 = vst.msk [vmem:[%s231 + $0xd0] sm:$0xff] %vm1520, %v5586
      %5826 = vst.msk [vmem:[%s231 + $0xd8] sm:$0xff] %vm1520, %v5587
      %5827 = vst.msk [vmem:[%s231 + $0xe0] sm:$0xff] %vm1520, %v5588
      %5828 = vst.msk [vmem:[%s231 + $0xe8] sm:$0xff] %vm1520, %v5589
      %5829 = vst.msk [vmem:[%s231 + $0xf0] sm:$0xff] %vm1520, %v5590
      %5830 = vst.msk [vmem:[%s231 + $0xf8] sm:$0xff] %vm1520, %v5591
      %p5831 = scmp.lt.s32.totalorder %s17, 1
      %s5832 = scalar_select %p5831, %s17, 1
      %s5833 = smul.addr %s5832, 32
      %s5834 = smul.addr %s5833, 8
      %s5835 = scalar_lea.vmem %s4, %s5834
      %p5836 = scmp.lt.s32.totalorder %s17, 1
      %s5837 = scalar_select %p5836, %s17, 1
      %s5838 = smul.addr %s5837, 2
      %s5839 = scalar_lea.vmem %s5, %s5838
      // Predicated region
      $region37: #{double_conv.4} parent=35 // pred_check
        %p5840 = pneg %p124
      $region38: #{double_conv.4} parent=35 // pred_check_branch
        %5842 = sbr.rel (%p5840) target = $region40
      $region39: #{double_conv.4} parent=35 // pred_region
        _
      $region40: #{double_conv.4} parent=35 // pred_fallthru
        _
      // Predicated region
      $region41: #{double_conv.4} parent=35 // pred_check
        %p5843 = pneg %p150
      $region42: #{double_conv.4} parent=35 // pred_check_branch
        %5845 = sbr.rel (%p5843) target = $region44
      $region43: #{double_conv.4} parent=35 // pred_region
        _
      $region44: #{double_conv.4} parent=35 // pred_fallthru
        _
    $region36: #{double_conv.4} parent=5 // pred_fallthru
      _
    %p5846 = scmp.le.s32.totalorder 2, %s12
    // Predicated region
    $region45: #{double_conv.4} parent=5 // pred_check
      %p5847 = pneg %p5846
    $region46: #{double_conv.4} parent=5 // pred_check_branch
      %5849 = sbr.rel (%p5847) target = $region48
    $region47: #{double_conv.4} parent=5 // pred_region
      %s5850 = ssub.s32 %s12, 2
      // Predicated region
      $region49: #{double_conv.4} parent=47 // pred_check
        %p5851 = pneg %p130
      $region50: #{double_conv.4} parent=47 // pred_check_branch
        %5853 = sbr.rel (%p5851) target = $region52
      $region51: #{double_conv.4} parent=47 // pred_region
        %p5854 = scmp.lt.s32.totalorder %s18, 1
        %s5855 = scalar_select %p5854, %s18, 1
        %s5856 = smul.addr %s5855, 32
        %s5857 = smul.addr %s5856, 8
        %s5858 = scalar_lea.vmem %s4, %s5857
      $region52: #{double_conv.4} parent=47 // pred_fallthru
        _
      // Predicated region
      $region53: #{double_conv.4} parent=47 // pred_check
        %p5859 = pneg %p156
      $region54: #{double_conv.4} parent=47 // pred_check_branch
        %5861 = sbr.rel (%p5859) target = $region56
      $region55: #{double_conv.4} parent=47 // pred_region
        %p5862 = scmp.lt.s32.totalorder %s18, 1
        %s5863 = scalar_select %p5862, %s18, 1
        %s5864 = smul.addr %s5863, 2
        %s5865 = scalar_lea.vmem %s5, %s5864
      $region56: #{double_conv.4} parent=47 // pred_fallthru
        _
    $region48: #{double_conv.4} parent=5 // pred_fallthru
      _
  $region6: #{double_conv.4} parent=0 // loop_footer
    %s16 = sadd.s32 1, %s12
  $region7: #{double_conv.4} parent=0 // loop_footer_branch
    %11 = sbr.rel target = $region3
  $region8: #{double_conv.4} parent=0 // loop_exit
    _

</llo_original>
